<compile_context>
chip_gen: v7x
topology: tpu7x:2x2x1
jax: 0.10.0
libtpu: 0.0.40
codegen_flags: <defaults>
</compile_context>

<pallas_src>
import numpy as np
import jax
import jax.numpy as jnp
from jax.experimental import pallas as pl
from jax.experimental.pallas import tpu as pltpu

# ----------------------- configuration (mirrors __init__) -----------------------
D_IN = 3
D_OUT = 1
WIDTH = 64
DEPTH = 4
MULTIRES = 4
SKIP_LAYER = (2,)
COND_LAYER = (0,)          # only layer 0 supported as a cond layer in this kernel
COND_DIM = 8
DIM_COND_EMBED = 4
BIAS_INIT = 1.0
SOFTPLUS_BETA = 100.0
SOFTPLUS_THRESHOLD = 20.0  # torch.nn.Softplus default threshold

FREQS = tuple(float(f) for f in (2.0 ** np.linspace(0.0, MULTIRES - 1, MULTIRES)))
EMBED_DIM = D_IN * (1 + 2 * MULTIRES)          # 27: include_input + sin/cos per freq
EPAD = 32                                      # embedding padded to 32 lanes / rows

DIMS = [EMBED_DIM] + [WIDTH] * DEPTH + [D_OUT]
NUM_LAYERS = len(DIMS)
NUM_LIN = NUM_LAYERS - 1
H1 = WIDTH - EMBED_DIM                         # 37: width of layer-1 output (pre-skip)

# row offsets of each packed weight block inside the (256, 64) weight slab
OFF_W0E = 0
OFF_W1 = OFF_W0E + EPAD          # 32
OFF_W2X = OFF_W1 + WIDTH         # 96
OFF_W2E = OFF_W2X + WIDTH        # 160
OFF_W3 = OFF_W2E + EPAD          # 192
W_SLAB_ROWS = OFF_W3 + WIDTH     # 256

INV_SQRT2 = float(1.0 / np.sqrt(2.0))
HALF_PI = float(np.pi / 2.0)


def _layer_io_dims():
    """(in_dim, out_dim) of each torch.nn.Linear in the trunk."""
    out = []
    for l in range(NUM_LIN):
        if l + 1 in SKIP_LAYER:
            out_dim = DIMS[l + 1] - DIMS[0]
        else:
            out_dim = DIMS[l + 1]
        in_dim = DIMS[l] + (DIM_COND_EMBED if l in COND_LAYER else 0)
        out.append((in_dim, out_dim))
    return out


# ----------------------------- parameter init -----------------------------------
def init_params(key):
    """Deterministic replication of the geometric_init scheme (weight_norm folded)."""
    keys = jax.random.split(key, NUM_LIN + 2)

    lim = 1.0 / np.sqrt(COND_DIM)
    wp0 = jax.random.uniform(keys[0], (DIM_COND_EMBED, COND_DIM),
                             minval=-lim, maxval=lim, dtype=jnp.float32)
    bp0 = jax.random.uniform(keys[1], (DIM_COND_EMBED,),
                             minval=-lim, maxval=lim, dtype=jnp.float32)

    ws, bs = [], []
    for l, (din, dout) in enumerate(_layer_io_dims()):
        kw = keys[2 + l]
        if l == NUM_LIN - 1:  # last layer
            w = (-np.sqrt(np.pi) / np.sqrt(DIMS[l])
                 + 1e-4 * jax.random.normal(kw, (dout, din), dtype=jnp.float32))
            b = jnp.full((dout,), BIAS_INIT, dtype=jnp.float32)
        elif l == 0:          # multires > 0, first layer
            w = jnp.zeros((dout, din), dtype=jnp.float32)
            w = w.at[:, :3].set(np.sqrt(2.0) / np.sqrt(dout)
                                * jax.random.normal(kw, (dout, 3), dtype=jnp.float32))
            b = jnp.zeros((dout,), jnp.float32)
        elif l in SKIP_LAYER:  # multires > 0, skip layer
            w = (np.sqrt(2.0) / np.sqrt(dout)
                 * jax.random.normal(kw, (dout, din), dtype=jnp.float32))
            w = w.at[:, -(EMBED_DIM - 3):].set(0.0)
            b = jnp.zeros((dout,), jnp.float32)
        else:
            w = (np.sqrt(2.0) / np.sqrt(dout)
                 * jax.random.normal(kw, (dout, din), dtype=jnp.float32))
            b = jnp.zeros((dout,), jnp.float32)
        ws.append(w)
        bs.append(b)
    return wp0, bp0, ws, bs


# --------------------------------- kernel ----------------------------------------
def _softplus100(h):
    bz = SOFTPLUS_BETA * h
    return jnp.where(bz > SOFTPLUS_THRESHOLD,
                     h,
                     jnp.log1p(jnp.exp(jnp.minimum(bz, SOFTPLUS_THRESHOLD))) / SOFTPLUS_BETA)


def implicit_net_kernel(x_ref, bias0_ref, emb_ref, w_ref, bslab_ref, o_ref):
    xin = x_ref[0]                                  # (TN, 3)

    # --- positional embedding, 32-lane padded, via one aligned matmul + one sin ---
    ec = emb_ref[...]                               # (6, 32): 0:3 = S, 3 = id mask,
    #                                                 4 = trig mask, 5 = phase (cos = sin+pi/2)
    xs = jnp.dot(xin, ec[0:3, :], preferred_element_type=jnp.float32)   # (TN, 32)
    E = ec[3:4, :] * xs + ec[4:5, :] * jnp.sin(xs + ec[5:6, :])

    b0 = bias0_ref[0]                               # (1, WIDTH): bias0 + cond contribution
    bsl = bslab_ref[...]                            # (8, WIDTH)

    # layer 0: embed @ W0 (+ folded cond bias)
    h = _softplus100(jnp.dot(E, w_ref[OFF_W0E:OFF_W1, :],
                             preferred_element_type=jnp.float32) + b0)
    # layer 1 (output padded 37 -> 64; extra cols killed by zero rows of W2x)
    h = _softplus100(jnp.dot(h, w_ref[OFF_W1:OFF_W2X, :],
                             preferred_element_type=jnp.float32) + bsl[0:1, :])
    # layer 2 (skip): cat([x, embed]) / sqrt(2) realized as two aligned matmuls
    h = _softplus100(
        (jnp.dot(h, w_ref[OFF_W2X:OFF_W2E, :], preferred_element_type=jnp.float32)
         + jnp.dot(E, w_ref[OFF_W2E:OFF_W3, :], preferred_element_type=jnp.float32))
        * INV_SQRT2 + bsl[1:2, :])
    # layer 3
    h = _softplus100(jnp.dot(h, w_ref[OFF_W3:W_SLAB_ROWS, :],
                             preferred_element_type=jnp.float32) + bsl[2:3, :])

    # layer 4 (64 -> 1): compute bslab @ h^T so the result is lane-dense (points on
    # lanes); row 3 of the slab is the last-layer weight row, (4,0) the last bias.
    y8 = jax.lax.dot_general(bsl, h, (((1,), (1,)), ((), ())),
                             preferred_element_type=jnp.float32)        # (8, TN)
    y = y8[3:4, :] + bsl[4:5, 0:1]                                      # (1, TN)

    o_ref[...] = y.reshape(o_ref.shape).astype(o_ref.dtype)


# --------------------------------- wrapper ----------------------------------------
def implicit_network_forward(x, cond, params, tile_n=1024):
    """x: [B, N, 3] float32, cond: [B, COND_DIM] float32 -> [B, N, D_OUT] float32."""
    B, N, D = x.shape
    assert D == D_IN
    if B * N == 0:                       # mirror the PyTorch early-return
        return x
    wp0, bp0, ws, bs = params
    w0, w1, w2, w3, w4 = [w.astype(jnp.float32) for w in ws]
    b0, b1, b2, b3, b4 = [b.astype(jnp.float32) for b in bs]

    # ---- fold cond path into a per-batch layer-0 bias (removes the (T, cond) stream)
    cond_emb = cond.astype(jnp.float32) @ wp0.T + bp0                 # (B, 4)
    bias0 = (b0[None, :] + cond_emb @ w0[:, EMBED_DIM:].T)            # (B, 64)
    bias0 = bias0.reshape(B, 1, WIDTH)

    # ---- embedding constants: S (3x32 scale/selection) + id mask, trig mask, phase
    emb_const = np.zeros((6, EPAD), np.float32)
    for kpart in range(1 + 2 * MULTIRES):                             # x, sin f0, cos f0, ...
        for c in range(D_IN):
            col = 3 * kpart + c
            if kpart == 0:
                emb_const[c, col] = 1.0
                emb_const[3, col] = 1.0                               # identity mask
            else:
                emb_const[c, col] = FREQS[(kpart - 1) // 2]
                emb_const[4, col] = 1.0                               # sin/cos mask
                if kpart % 2 == 0:                                    # cos column
                    emb_const[5, col] = HALF_PI                       # cos(x)=sin(x+pi/2)
    emb_const = jnp.asarray(emb_const)

    # ---- pack all trunk weights into one 8-row-aligned (256, 64) slab ------------
    def _pad2(a, rows, cols):
        r, c = a.shape
        return jnp.pad(a, ((0, rows - r), (0, cols - c)))

    w0e_T = _pad2(w0[:, :EMBED_DIM].T, EPAD, WIDTH)    # (32, 64)  rows 27:32 = 0
    w1_T = _pad2(w1.T, WIDTH, WIDTH)                   # (64, 64)  cols 37:64 = 0
    w2x_T = _pad2(w2[:, :H1].T, WIDTH, WIDTH)          # (64, 64)  rows 37:64 = 0
    w2e_T = _pad2(w2[:, H1:].T, EPAD, WIDTH)           # (32, 64)  rows 27:32 = 0
    w3_T = w3.T                                        # (64, 64)
    w_slab = jnp.concatenate([w0e_T, w1_T, w2x_T, w2e_T, w3_T], axis=0)   # (256, 64)

    # ---- biases + last-layer weight row + last-layer bias in one (8, 64) slab ----
    bias_slab = jnp.zeros((8, WIDTH), jnp.float32)
    bias_slab = bias_slab.at[0, :H1].set(b1)
    bias_slab = bias_slab.at[1, :].set(b2)
    bias_slab = bias_slab.at[2, :].set(b3)
    bias_slab = bias_slab.at[3, :].set(w4[0])
    bias_slab = bias_slab.at[4, 0].set(b4[0])

    # ---- tiling: tile_n rows of points per grid step (multiple of 128) -----------
    tile_n = max(128, (int(tile_n) // 128) * 128)
    n_pad128 = ((N + 127) // 128) * 128
    tile_n = min(tile_n, n_pad128)
    n_tiles = (N + tile_n - 1) // tile_n
    N_pad = n_tiles * tile_n
    # grid = (B, n_tiles): B >= 2 guarantees >= 2 parallel steps (v7x megacore).
    # VMEM per step stays well under 1 MiB, far below every generation's limit.

    x_p = x.astype(jnp.float32)
    if N_pad != N:
        x_p = jnp.pad(x_p, ((0, 0), (0, N_pad - N), (0, 0)))

    out = pl.pallas_call(
        implicit_net_kernel,
        out_shape=jax.ShapeDtypeStruct((B, 1, N_pad), jnp.float32),
        grid_spec=pltpu.PrefetchScalarGridSpec(
            num_scalar_prefetch=0,
            grid=(B, n_tiles),
            in_specs=[
                pl.BlockSpec((1, tile_n, D_IN), lambda b, i: (b, i, 0)),
                pl.BlockSpec((1, 1, WIDTH), lambda b, i: (b, 0, 0)),
                pl.BlockSpec(emb_const.shape, lambda b, i: (0, 0)),
                pl.BlockSpec(w_slab.shape, lambda b, i: (0, 0)),
                pl.BlockSpec(bias_slab.shape, lambda b, i: (0, 0)),
            ],
            out_specs=pl.BlockSpec((1, 1, tile_n), lambda b, i: (b, 0, i)),
        ),
        compiler_params=pltpu.CompilerParams(
            dimension_semantics=("parallel", "parallel")),
    )(x_p, bias0, emb_const, w_slab, bias_slab)

    return out.reshape(B, N_pad)[:, :N].reshape(B, N, D_OUT)


# ------------------------------ pure-JAX reference ---------------------------------
def reference_forward(x, cond, params):
    B, N, D = x.shape
    wp0, bp0, ws, bs = params
    xf = x.reshape(B * N, D)
    embed = [xf]
    for f in FREQS:
        embed.append(jnp.sin(xf * f))
        embed.append(jnp.cos(xf * f))
    E = jnp.concatenate(embed, axis=-1)
    cond_exp = jnp.broadcast_to(cond[:, None, :], (B, N, COND_DIM)).reshape(B * N, COND_DIM)
    cond_emb = cond_exp @ wp0.T + bp0
    h = E
    for l in range(NUM_LIN):
        if l in COND_LAYER:
            h = jnp.concatenate([h, cond_emb], axis=-1)
        if l in SKIP_LAYER:
            h = jnp.concatenate([h, E], axis=-1) / np.sqrt(2.0)
        h = h @ ws[l].T + bs[l]
        if l < NUM_LIN - 1:
            h = _softplus100(h)
    return h.reshape(B, N, -1)


# ----------------------------------- main ------------------------------------------
if __name__ == "__main__":
    key = jax.random.PRNGKey(0)
    kx, kc, kp = jax.random.split(key, 3)

    B, N = 2, 200                     # N not a multiple of 128 -> exercises padding path
    x = jax.random.normal(kx, (B, N, D_IN), dtype=jnp.float32)
    cond = jax.random.normal(kc, (B, COND_DIM), dtype=jnp.float32)
    params = init_params(kp)

    out = implicit_network_forward(x, cond, params)
    out = jax.block_until_ready(out)
    assert out.shape == (B, N, D_OUT)

    ref = reference_forward(x, cond, params)
    err = float(jnp.max(jnp.abs(out - ref)))
    assert err < 1e-4, f"max abs err {err}"

    print("KERNEL_OK")
</pallas_src>

<mosaic_0001>
module attributes {stable_mosaic.version = 11 : i64} {
  func.func @implicit_net_kernel(%arg0: i32, %arg1: i32, %arg2: memref<1x256x3xf32, #tpu.memory_space<vmem>>, %arg3: memref<1x1x64xf32, #tpu.memory_space<vmem>>, %arg4: memref<6x32xf32, #tpu.memory_space<vmem>>, %arg5: memref<256x64xf32, #tpu.memory_space<vmem>>, %arg6: memref<8x64xf32, #tpu.memory_space<vmem>>, %arg7: memref<1x1x256xf32, #tpu.memory_space<vmem>>) attributes {dimension_semantics = [#tpu.dimension_semantics<parallel>, #tpu.dimension_semantics<parallel>], iteration_bounds = array<i64: 2, 1>, scalar_prefetch = 0 : i64, scratch_operands = 0 : i64, tpu.core_type = #tpu.core_type<tc>, window_params = [{transform_indices = @transform_0, window_bounds = array<i64: 1, 256, 3>}, {transform_indices = @transform_1, window_bounds = array<i64: 1, 1, 64>}, {pipeline_mode = #tpu.pipeline_mode<synchronous>, transform_indices = @transform_2, window_bounds = array<i64: 6, 32>}, {pipeline_mode = #tpu.pipeline_mode<synchronous>, transform_indices = @transform_3, window_bounds = array<i64: 256, 64>}, {pipeline_mode = #tpu.pipeline_mode<synchronous>, transform_indices = @transform_4, window_bounds = array<i64: 8, 64>}, {transform_indices = @transform_5, window_bounds = array<i64: 1, 1, 256>}]} {
    %c0 = arith.constant 0 : index
    %c0_0 = arith.constant 0 : index
    %c0_1 = arith.constant 0 : index
    %0 = vector.load %arg2[%c0, %c0_0, %c0_1] : memref<1x256x3xf32, #tpu.memory_space<vmem>>, vector<1x256x3xf32>
    %1 = vector.shape_cast %0 : vector<1x256x3xf32> to vector<256x3xf32>
    %c0_2 = arith.constant 0 : index
    %c0_3 = arith.constant 0 : index
    %2 = vector.load %arg4[%c0_2, %c0_3] : memref<6x32xf32, #tpu.memory_space<vmem>>, vector<6x32xf32>
    %3 = vector.extract_strided_slice %2 {offsets = [0, 0], sizes = [3, 32], strides = [1, 1]} : vector<6x32xf32> to vector<3x32xf32>
    %cst = arith.constant dense<0.000000e+00> : vector<256x32xf32>
    %4 = tpu.matmul %1, %3, %cst {dimension_numbers = #tpu.dot_dimension_numbers<[1], [0], [0], [1], [0, 0, 1, 1], [], []>} : vector<256x3xf32>, vector<3x32xf32>, vector<256x32xf32> -> vector<256x32xf32>
    %5 = vector.extract_strided_slice %2 {offsets = [3, 0], sizes = [1, 32], strides = [1, 1]} : vector<6x32xf32> to vector<1x32xf32>
    %6 = vector.broadcast %5 : vector<1x32xf32> to vector<256x32xf32>
    %7 = arith.mulf %6, %4 : vector<256x32xf32>
    %8 = vector.extract_strided_slice %2 {offsets = [4, 0], sizes = [1, 32], strides = [1, 1]} : vector<6x32xf32> to vector<1x32xf32>
    %9 = vector.extract_strided_slice %2 {offsets = [5, 0], sizes = [1, 32], strides = [1, 1]} : vector<6x32xf32> to vector<1x32xf32>
    %10 = vector.broadcast %9 : vector<1x32xf32> to vector<256x32xf32>
    %11 = arith.addf %4, %10 : vector<256x32xf32>
    %12 = math.sin %11 : vector<256x32xf32>
    %13 = vector.broadcast %8 : vector<1x32xf32> to vector<256x32xf32>
    %14 = arith.mulf %13, %12 : vector<256x32xf32>
    %15 = arith.addf %7, %14 : vector<256x32xf32>
    %c0_4 = arith.constant 0 : index
    %c0_5 = arith.constant 0 : index
    %c0_6 = arith.constant 0 : index
    %16 = vector.load %arg3[%c0_4, %c0_5, %c0_6] : memref<1x1x64xf32, #tpu.memory_space<vmem>>, vector<1x1x64xf32>
    %17 = vector.shape_cast %16 : vector<1x1x64xf32> to vector<1x64xf32>
    %c0_7 = arith.constant 0 : index
    %c0_8 = arith.constant 0 : index
    %18 = vector.load %arg6[%c0_7, %c0_8] : memref<8x64xf32, #tpu.memory_space<vmem>>, vector<8x64xf32>
    %c0_9 = arith.constant 0 : index
    %c0_10 = arith.constant 0 : index
    %19 = vector.load %arg5[%c0_9, %c0_10] : memref<256x64xf32, #tpu.memory_space<vmem>>, vector<32x64xf32>
    %cst_11 = arith.constant dense<0.000000e+00> : vector<256x64xf32>
    %20 = tpu.matmul %15, %19, %cst_11 {dimension_numbers = #tpu.dot_dimension_numbers<[1], [0], [0], [1], [0, 0, 1, 1], [], []>} : vector<256x32xf32>, vector<32x64xf32>, vector<256x64xf32> -> vector<256x64xf32>
    %21 = vector.broadcast %17 : vector<1x64xf32> to vector<256x64xf32>
    %22 = arith.addf %20, %21 : vector<256x64xf32>
    %cst_12 = arith.constant 1.000000e+02 : f32
    %23 = vector.broadcast %cst_12 : f32 to vector<256x64xf32>
    %24 = arith.mulf %23, %22 : vector<256x64xf32>
    %cst_13 = arith.constant 2.000000e+01 : f32
    %25 = vector.broadcast %cst_13 : f32 to vector<256x64xf32>
    %26 = arith.cmpf ogt, %24, %25 : vector<256x64xf32>
    %cst_14 = arith.constant 2.000000e+01 : f32
    %27 = vector.broadcast %cst_14 : f32 to vector<256x64xf32>
    %28 = arith.minimumf %24, %27 : vector<256x64xf32>
    %29 = math.exp %28 : vector<256x64xf32>
    %30 = math.log1p %29 : vector<256x64xf32>
    %cst_15 = arith.constant 1.000000e+02 : f32
    %31 = vector.broadcast %cst_15 : f32 to vector<256x64xf32>
    %32 = arith.divf %30, %31 : vector<256x64xf32>
    %33 = arith.select %26, %22, %32 : vector<256x64xi1>, vector<256x64xf32>
    %c32 = arith.constant 32 : index
    %c0_16 = arith.constant 0 : index
    %34 = vector.load %arg5[%c32, %c0_16] : memref<256x64xf32, #tpu.memory_space<vmem>>, vector<64x64xf32>
    %cst_17 = arith.constant dense<0.000000e+00> : vector<256x64xf32>
    %35 = tpu.matmul %33, %34, %cst_17 {dimension_numbers = #tpu.dot_dimension_numbers<[1], [0], [0], [1], [0, 0, 1, 1], [], []>} : vector<256x64xf32>, vector<64x64xf32>, vector<256x64xf32> -> vector<256x64xf32>
    %36 = vector.extract_strided_slice %18 {offsets = [0, 0], sizes = [1, 64], strides = [1, 1]} : vector<8x64xf32> to vector<1x64xf32>
    %37 = vector.broadcast %36 : vector<1x64xf32> to vector<256x64xf32>
    %38 = arith.addf %35, %37 : vector<256x64xf32>
    %cst_18 = arith.constant 1.000000e+02 : f32
    %39 = vector.broadcast %cst_18 : f32 to vector<256x64xf32>
    %40 = arith.mulf %39, %38 : vector<256x64xf32>
    %cst_19 = arith.constant 2.000000e+01 : f32
    %41 = vector.broadcast %cst_19 : f32 to vector<256x64xf32>
    %42 = arith.cmpf ogt, %40, %41 : vector<256x64xf32>
    %cst_20 = arith.constant 2.000000e+01 : f32
    %43 = vector.broadcast %cst_20 : f32 to vector<256x64xf32>
    %44 = arith.minimumf %40, %43 : vector<256x64xf32>
    %45 = math.exp %44 : vector<256x64xf32>
    %46 = math.log1p %45 : vector<256x64xf32>
    %cst_21 = arith.constant 1.000000e+02 : f32
    %47 = vector.broadcast %cst_21 : f32 to vector<256x64xf32>
    %48 = arith.divf %46, %47 : vector<256x64xf32>
    %49 = arith.select %42, %38, %48 : vector<256x64xi1>, vector<256x64xf32>
    %c96 = arith.constant 96 : index
    %c0_22 = arith.constant 0 : index
    %50 = vector.load %arg5[%c96, %c0_22] : memref<256x64xf32, #tpu.memory_space<vmem>>, vector<64x64xf32>
    %cst_23 = arith.constant dense<0.000000e+00> : vector<256x64xf32>
    %51 = tpu.matmul %49, %50, %cst_23 {dimension_numbers = #tpu.dot_dimension_numbers<[1], [0], [0], [1], [0, 0, 1, 1], [], []>} : vector<256x64xf32>, vector<64x64xf32>, vector<256x64xf32> -> vector<256x64xf32>
    %c160 = arith.constant 160 : index
    %c0_24 = arith.constant 0 : index
    %52 = vector.load %arg5[%c160, %c0_24] : memref<256x64xf32, #tpu.memory_space<vmem>>, vector<32x64xf32>
    %cst_25 = arith.constant dense<0.000000e+00> : vector<256x64xf32>
    %53 = tpu.matmul %15, %52, %cst_25 {dimension_numbers = #tpu.dot_dimension_numbers<[1], [0], [0], [1], [0, 0, 1, 1], [], []>} : vector<256x32xf32>, vector<32x64xf32>, vector<256x64xf32> -> vector<256x64xf32>
    %54 = arith.addf %51, %53 : vector<256x64xf32>
    %cst_26 = arith.constant 0.707106769 : f32
    %55 = vector.broadcast %cst_26 : f32 to vector<256x64xf32>
    %56 = arith.mulf %54, %55 : vector<256x64xf32>
    %57 = vector.extract_strided_slice %18 {offsets = [1, 0], sizes = [1, 64], strides = [1, 1]} : vector<8x64xf32> to vector<1x64xf32>
    %58 = vector.broadcast %57 : vector<1x64xf32> to vector<256x64xf32>
    %59 = arith.addf %56, %58 : vector<256x64xf32>
    %cst_27 = arith.constant 1.000000e+02 : f32
    %60 = vector.broadcast %cst_27 : f32 to vector<256x64xf32>
    %61 = arith.mulf %60, %59 : vector<256x64xf32>
    %cst_28 = arith.constant 2.000000e+01 : f32
    %62 = vector.broadcast %cst_28 : f32 to vector<256x64xf32>
    %63 = arith.cmpf ogt, %61, %62 : vector<256x64xf32>
    %cst_29 = arith.constant 2.000000e+01 : f32
    %64 = vector.broadcast %cst_29 : f32 to vector<256x64xf32>
    %65 = arith.minimumf %61, %64 : vector<256x64xf32>
    %66 = math.exp %65 : vector<256x64xf32>
    %67 = math.log1p %66 : vector<256x64xf32>
    %cst_30 = arith.constant 1.000000e+02 : f32
    %68 = vector.broadcast %cst_30 : f32 to vector<256x64xf32>
    %69 = arith.divf %67, %68 : vector<256x64xf32>
    %70 = arith.select %63, %59, %69 : vector<256x64xi1>, vector<256x64xf32>
    %c192 = arith.constant 192 : index
    %c0_31 = arith.constant 0 : index
    %71 = vector.load %arg5[%c192, %c0_31] : memref<256x64xf32, #tpu.memory_space<vmem>>, vector<64x64xf32>
    %cst_32 = arith.constant dense<0.000000e+00> : vector<256x64xf32>
    %72 = tpu.matmul %70, %71, %cst_32 {dimension_numbers = #tpu.dot_dimension_numbers<[1], [0], [0], [1], [0, 0, 1, 1], [], []>} : vector<256x64xf32>, vector<64x64xf32>, vector<256x64xf32> -> vector<256x64xf32>
    %73 = vector.extract_strided_slice %18 {offsets = [2, 0], sizes = [1, 64], strides = [1, 1]} : vector<8x64xf32> to vector<1x64xf32>
    %74 = vector.broadcast %73 : vector<1x64xf32> to vector<256x64xf32>
    %75 = arith.addf %72, %74 : vector<256x64xf32>
    %cst_33 = arith.constant 1.000000e+02 : f32
    %76 = vector.broadcast %cst_33 : f32 to vector<256x64xf32>
    %77 = arith.mulf %76, %75 : vector<256x64xf32>
    %cst_34 = arith.constant 2.000000e+01 : f32
    %78 = vector.broadcast %cst_34 : f32 to vector<256x64xf32>
    %79 = arith.cmpf ogt, %77, %78 : vector<256x64xf32>
    %cst_35 = arith.constant 2.000000e+01 : f32
    %80 = vector.broadcast %cst_35 : f32 to vector<256x64xf32>
    %81 = arith.minimumf %77, %80 : vector<256x64xf32>
    %82 = math.exp %81 : vector<256x64xf32>
    %83 = math.log1p %82 : vector<256x64xf32>
    %cst_36 = arith.constant 1.000000e+02 : f32
    %84 = vector.broadcast %cst_36 : f32 to vector<256x64xf32>
    %85 = arith.divf %83, %84 : vector<256x64xf32>
    %86 = arith.select %79, %75, %85 : vector<256x64xi1>, vector<256x64xf32>
    %cst_37 = arith.constant dense<0.000000e+00> : vector<8x256xf32>
    %87 = tpu.matmul %18, %86, %cst_37 {dimension_numbers = #tpu.dot_dimension_numbers<[1], [1], [0], [0], [0, 0, 1, 0], [], []>} : vector<8x64xf32>, vector<256x64xf32>, vector<8x256xf32> -> vector<8x256xf32>
    %88 = vector.extract_strided_slice %87 {offsets = [3, 0], sizes = [1, 256], strides = [1, 1]} : vector<8x256xf32> to vector<1x256xf32>
    %89 = vector.extract_strided_slice %18 {offsets = [4, 0], sizes = [1, 1], strides = [1, 1]} : vector<8x64xf32> to vector<1x1xf32>
    %90 = vector.broadcast %89 : vector<1x1xf32> to vector<1x256xf32>
    %91 = arith.addf %88, %90 : vector<1x256xf32>
    %92 = vector.shape_cast %91 : vector<1x256xf32> to vector<1x1x256xf32>
    %c0_38 = arith.constant 0 : index
    %c0_39 = arith.constant 0 : index
    %c0_40 = arith.constant 0 : index
    %93 = vector.load %arg7[%c0_38, %c0_39, %c0_40] : memref<1x1x256xf32, #tpu.memory_space<vmem>>, vector<1x1x256xf32>
    tpu.vector_store %arg7[%c0_38, %c0_39, %c0_40], %92 {strides = array<i32>} : memref<1x1x256xf32, #tpu.memory_space<vmem>>, vector<1x1x256xf32>,
    return
  }
  func.func @transform_0(%arg0: i32, %arg1: i32) -> (i32, i32, i32) {
    %c0_i32 = arith.constant 0 : i32
    %c0_i32_0 = arith.constant 0 : i32
    return %arg0, %arg1, %c0_i32 : i32, i32, i32
  }
  func.func @transform_1(%arg0: i32, %arg1: i32) -> (i32, i32, i32) {
    %c0_i32 = arith.constant 0 : i32
    %c0_i32_0 = arith.constant 0 : i32
    %c0_i32_1 = arith.constant 0 : i32
    return %arg0, %c0_i32, %c0_i32_0 : i32, i32, i32
  }
  func.func @transform_2(%arg0: i32, %arg1: i32) -> (i32, i32) {
    %c0_i32 = arith.constant 0 : i32
    %c0_i32_0 = arith.constant 0 : i32
    %c0_i32_1 = arith.constant 0 : i32
    return %c0_i32, %c0_i32_0 : i32, i32
  }
  func.func @transform_3(%arg0: i32, %arg1: i32) -> (i32, i32) {
    %c0_i32 = arith.constant 0 : i32
    %c0_i32_0 = arith.constant 0 : i32
    %c0_i32_1 = arith.constant 0 : i32
    return %c0_i32, %c0_i32_0 : i32, i32
  }
  func.func @transform_4(%arg0: i32, %arg1: i32) -> (i32, i32) {
    %c0_i32 = arith.constant 0 : i32
    %c0_i32_0 = arith.constant 0 : i32
    %c0_i32_1 = arith.constant 0 : i32
    return %c0_i32, %c0_i32_0 : i32, i32
  }
  func.func @transform_5(%arg0: i32, %arg1: i32) -> (i32, i32, i32) {
    %c0_i32 = arith.constant 0 : i32
    %c0_i32_0 = arith.constant 0 : i32
    return %arg0, %c0_i32, %arg1 : i32, i32, i32
  }
}

</mosaic_0001>

<llo_original>
// kernel: tpu_custom_call.1
$region0: #{tpu_custom_call.1}
  #allocation0 [shape = 'u32[]', space=smem, size = 0x4, offset = 0x4, fixed_abs, tag = 'smem constant byte address 0x4 - core index']
  #allocation1 [shape = 'u32[144,128]{1,0:T(1,128)}', space=vmem, size = 0x12000, scoped, tag = 'internal scratch']
  %s0 = inlined_call_operand.vmem [shape: f32[2,256,3], index: 0, kind: input, shape index: {}]
  %s1 = inlined_call_operand.vmem [shape: f32[2,1,64], index: 1, kind: input, shape index: {}]
  %s2 = inlined_call_operand.vmem [shape: f32[6,32], index: 2, kind: input, shape index: {}]
  %s3 = inlined_call_operand.vmem [shape: f32[256,64], index: 3, kind: input, shape index: {}]
  %s4 = inlined_call_operand.vmem [shape: f32[8,64], index: 4, kind: input, shape index: {}]
  %s5 = inlined_call_operand.hbm [shape: f32[2,1,256], index: 5, kind: output, shape index: {}]
  %s6 = sld [smem:[#allocation0]]
  $region53: #{tpu_custom_call.1} parent=0
    _
  %s8 = ssub.s32 1, %s6
  %s9 = scalar_select 0, %s8, %s6
  $region1: #{tpu_custom_call.1} parent=0
    #allocation2 [shape = 'u8[2048]{0}', space=vmem, size = 0x800, scoped, tag = 'output window, operand 0']
    #allocation3 [shape = 's32[2]{0}', space=sflag, size = 0x8, scoped, tag = 'scoped memory for tpu_custom_call.1']
    %10 = vsyncpa [#allocation3], 0
    %s11 = scalar_lea.sflag [#allocation3], 1
    %12 = vsyncpa %s11, 0
    loop: start=0, step=1, limit=4
    $region2: #{tpu_custom_call.1} parent=1 // loop_pre_header
      _
    $region3: #{tpu_custom_call.1} parent=1 // loop_header
      %s14 = sphi 0, %s18
      %p15 = scmp.ge.s32.totalorder %s14, 4
      %s21 = sphi 0, %s33
      %s22 = sphi 0, %s29
      %s23 = sphi 0, %s21
      %s24 = sphi 0, %s22
      %s25 = sphi 0, %s23
      %s26 = sphi 0, %s24
      %s38 = sphi 0, %s40
      %s41 = sphi 0, %s38
      %s42 = sphi 0, %s41
      %s58 = sphi 0, %s42
      %s64 = sphi 0, %s66
      %s67 = sphi 0, %s64
      %s68 = sphi 0, %s67
      %s84 = sphi 0, %s68
      %s88 = sphi 0, %s88
      %s90 = sphi 0, %s88
      %s91 = sphi 0, %s90
      %s105 = sphi 0, %s91
      %s109 = sphi 0, %s109
      %s111 = sphi 0, %s109
      %s112 = sphi 0, %s111
      %s126 = sphi 0, %s112
      %s130 = sphi 0, %s130
      %s132 = sphi 0, %s130
      %s133 = sphi 0, %s132
      %s147 = sphi 0, %s133
      %s155 = sphi 0, %s157
      %s158 = sphi 0, %s155
      %s159 = sphi 0, %s158
      %s175 = sphi 0, %s159
    $region4: #{tpu_custom_call.1} parent=1 // loop_header_branch
      %17 = sbr.rel (%p15) target = $region8
    $region5: #{tpu_custom_call.1} parent=1 // loop_body
      %s19 = ssub.s32 %s14, 1
      %s20 = ssub.s32 %s14, 2
      %s27 = sadd.s32 1, %s22
      %p28 = scmp.ge.s32.totalorder %s27, 1
      %s29 = scalar_select %p28, 0, %s27
      %s30 = sadd.s32 1, %s21
      %s31 = scalar_select %p28, %s30, %s21
      %p32 = scmp.ge.s32.totalorder %s31, 2
      %s33 = scalar_select %p32, 0, %s31
      %s34 = ssub.s32 %s21, %s33
      %s35 = ssub.s32 %s22, %s29
      %s36 = sor.u32 %s34, %s35
      %p37 = scmp.eq.s32.totalorder %s36, 0
      %s39 = sadd.s32 %s38, 1
      %s40 = scalar_select %p37, %s38, %s39
      %p43 = pneg %p37
      %p44 = scmp.eq.s32.totalorder %s14, 1
      %p45 = por %p43, %p44
      %p46 = scmp.ne.s32.totalorder %s38, %s41
      %p47 = scmp.eq.s32.totalorder %s14, 0
      %p48 = por %p46, %p47
      %p49 = scmp.ne.s32.totalorder %s38, %s41
      %p50 = scmp.eq.s32.totalorder %s19, 1
      %p51 = por %p49, %p50
      %p52 = scmp.ne.s32.totalorder %s41, %s42
      %p53 = scmp.eq.s32.totalorder %s19, 0
      %p54 = por %p52, %p53
      %p55 = scmp.ne.s32.totalorder %s41, %s42
      %p56 = scmp.eq.s32.totalorder %s20, 1
      %p57 = por %p55, %p56
      %p59 = scmp.ne.s32.totalorder %s42, %s58
      %p60 = scmp.eq.s32.totalorder %s20, 0
      %p61 = por %p59, %p60
      %s62 = ssub.s32 %s21, %s33
      %p63 = scmp.eq.s32.totalorder %s62, 0
      %s65 = sadd.s32 %s64, 1
      %s66 = scalar_select %p63, %s64, %s65
      %p69 = pneg %p63
      %p70 = scmp.eq.s32.totalorder %s14, 1
      %p71 = por %p69, %p70
      %p72 = scmp.ne.s32.totalorder %s64, %s67
      %p73 = scmp.eq.s32.totalorder %s14, 0
      %p74 = por %p72, %p73
      %p75 = scmp.ne.s32.totalorder %s64, %s67
      %p76 = scmp.eq.s32.totalorder %s19, 1
      %p77 = por %p75, %p76
      %p78 = scmp.ne.s32.totalorder %s67, %s68
      %p79 = scmp.eq.s32.totalorder %s19, 0
      %p80 = por %p78, %p79
      %p81 = scmp.ne.s32.totalorder %s67, %s68
      %p82 = scmp.eq.s32.totalorder %s20, 1
      %p83 = por %p81, %p82
      %p85 = scmp.ne.s32.totalorder %s68, %s84
      %p86 = scmp.eq.s32.totalorder %s20, 0
      %p87 = por %p85, %p86
      %s89 = sadd.s32 %s88, 1
      %p92 = scmp.eq.s32.totalorder %s14, 1
      %p93 = scmp.ne.s32.totalorder %s88, %s90
      %p94 = scmp.eq.s32.totalorder %s14, 0
      %p95 = por %p93, %p94
      %p96 = scmp.ne.s32.totalorder %s88, %s90
      %p97 = scmp.eq.s32.totalorder %s19, 1
      %p98 = por %p96, %p97
      %p99 = scmp.ne.s32.totalorder %s90, %s91
      %p100 = scmp.eq.s32.totalorder %s19, 0
      %p101 = por %p99, %p100
      %p102 = scmp.ne.s32.totalorder %s90, %s91
      %p103 = scmp.eq.s32.totalorder %s20, 1
      %p104 = por %p102, %p103
      %p106 = scmp.ne.s32.totalorder %s91, %s105
      %p107 = scmp.eq.s32.totalorder %s20, 0
      %p108 = por %p106, %p107
      %s110 = sadd.s32 %s109, 1
      %p113 = scmp.eq.s32.totalorder %s14, 1
      %p114 = scmp.ne.s32.totalorder %s109, %s111
      %p115 = scmp.eq.s32.totalorder %s14, 0
      %p116 = por %p114, %p115
      %p117 = scmp.ne.s32.totalorder %s109, %s111
      %p118 = scmp.eq.s32.totalorder %s19, 1
      %p119 = por %p117, %p118
      %p120 = scmp.ne.s32.totalorder %s111, %s112
      %p121 = scmp.eq.s32.totalorder %s19, 0
      %p122 = por %p120, %p121
      %p123 = scmp.ne.s32.totalorder %s111, %s112
      %p124 = scmp.eq.s32.totalorder %s20, 1
      %p125 = por %p123, %p124
      %p127 = scmp.ne.s32.totalorder %s112, %s126
      %p128 = scmp.eq.s32.totalorder %s20, 0
      %p129 = por %p127, %p128
      %s131 = sadd.s32 %s130, 1
      %p134 = scmp.eq.s32.totalorder %s14, 1
      %p135 = scmp.ne.s32.totalorder %s130, %s132
      %p136 = scmp.eq.s32.totalorder %s14, 0
      %p137 = por %p135, %p136
      %p138 = scmp.ne.s32.totalorder %s130, %s132
      %p139 = scmp.eq.s32.totalorder %s19, 1
      %p140 = por %p138, %p139
      %p141 = scmp.ne.s32.totalorder %s132, %s133
      %p142 = scmp.eq.s32.totalorder %s19, 0
      %p143 = por %p141, %p142
      %p144 = scmp.ne.s32.totalorder %s132, %s133
      %p145 = scmp.eq.s32.totalorder %s20, 1
      %p146 = por %p144, %p145
      %p148 = scmp.ne.s32.totalorder %s133, %s147
      %p149 = scmp.eq.s32.totalorder %s20, 0
      %p150 = por %p148, %p149
      %s151 = ssub.s32 %s21, %s33
      %s152 = ssub.s32 %s22, %s29
      %s153 = sor.u32 %s151, %s152
      %p154 = scmp.eq.s32.totalorder %s153, 0
      %s156 = sadd.s32 %s155, 1
      %s157 = scalar_select %p154, %s155, %s156
      %p160 = pneg %p154
      %p161 = scmp.eq.s32.totalorder %s14, 1
      %p162 = por %p160, %p161
      %p163 = scmp.ne.s32.totalorder %s155, %s158
      %p164 = scmp.eq.s32.totalorder %s14, 0
      %p165 = por %p163, %p164
      %p166 = scmp.ne.s32.totalorder %s155, %s158
      %p167 = scmp.eq.s32.totalorder %s19, 1
      %p168 = por %p166, %p167
      %p169 = scmp.ne.s32.totalorder %s158, %s159
      %p170 = scmp.eq.s32.totalorder %s19, 0
      %p171 = por %p169, %p170
      %p172 = scmp.ne.s32.totalorder %s158, %s159
      %p173 = scmp.eq.s32.totalorder %s20, 1
      %p174 = por %p172, %p173
      %p176 = scmp.ne.s32.totalorder %s159, %s175
      %p177 = scmp.eq.s32.totalorder %s20, 0
      %p178 = por %p176, %p177
      %p179 = scmp.le.s32.totalorder 1, %s14
      %p180 = scmp.lt.s32.totalorder %s14, 3
      %p181 = pnand %p179, %p180
      %p182 = pneg %p181
      // Predicated region
      $region9: #{tpu_custom_call.1} parent=5 // pred_check
        _
      $region10: #{tpu_custom_call.1} parent=5 // pred_check_branch
        %184 = sbr.rel (%p181) target = $region12
      $region11: #{tpu_custom_call.1} parent=5 // pred_region
        %s185 = ssub.s32 %s14, 1
        // Predicated region
        $region13: #{tpu_custom_call.1} parent=11 // pred_check
          %p186 = pneg %p101
        $region14: #{tpu_custom_call.1} parent=11 // pred_check_branch
          %188 = sbr.rel (%p186) target = $region16
        $region15: #{tpu_custom_call.1} parent=11 // pred_region
          _
        $region16: #{tpu_custom_call.1} parent=11 // pred_fallthru
          _
        // Predicated region
        $region17: #{tpu_custom_call.1} parent=11 // pred_check
          %p189 = pneg %p122
        $region18: #{tpu_custom_call.1} parent=11 // pred_check_branch
          %191 = sbr.rel (%p189) target = $region20
        $region19: #{tpu_custom_call.1} parent=11 // pred_region
          _
        $region20: #{tpu_custom_call.1} parent=11 // pred_fallthru
          _
        // Predicated region
        $region21: #{tpu_custom_call.1} parent=11 // pred_check
          %p192 = pneg %p143
        $region22: #{tpu_custom_call.1} parent=11 // pred_check_branch
          %194 = sbr.rel (%p192) target = $region24
        $region23: #{tpu_custom_call.1} parent=11 // pred_region
          _
        $region24: #{tpu_custom_call.1} parent=11 // pred_fallthru
          _
      $region12: #{tpu_custom_call.1} parent=5 // pred_fallthru
        _
      %p195 = scmp.lt.s32.totalorder %s14, 2
      // Predicated region
      $region25: #{tpu_custom_call.1} parent=5 // pred_check
        %p196 = pneg %p195
      $region26: #{tpu_custom_call.1} parent=5 // pred_check_branch
        %198 = sbr.rel (%p196) target = $region28
      $region27: #{tpu_custom_call.1} parent=5 // pred_region
        // Predicated region
        $region29: #{tpu_custom_call.1} parent=27 // pred_check
          %p199 = pneg %p48
        $region30: #{tpu_custom_call.1} parent=27 // pred_check_branch
          %201 = sbr.rel (%p199) target = $region32
        $region31: #{tpu_custom_call.1} parent=27 // pred_region
          %s202 = smul.u32 32, %s22
          %p203 = scmp.lt.s32.totalorder %s21, 1
          %s204 = scalar_select %p203, %s21, 1
          %p205 = scmp.lt.s32.totalorder %s202, 31
          %s206 = scalar_select %p205, %s202, 31
          %s207 = smul.addr %s204, 32
          %s208 = sadd.s32 %s206, %s207
          %s209 = smul.addr %s208, 8
          %s210 = scalar_lea.vmem %s0, %s209
          %s211 = smul.u32 32, %s22
        $region32: #{tpu_custom_call.1} parent=27 // pred_fallthru
          _
        // Predicated region
        $region33: #{tpu_custom_call.1} parent=27 // pred_check
          %p212 = pneg %p74
        $region34: #{tpu_custom_call.1} parent=27 // pred_check_branch
          %214 = sbr.rel (%p212) target = $region36
        $region35: #{tpu_custom_call.1} parent=27 // pred_region
          %p215 = scmp.lt.s32.totalorder %s21, 1
          %s216 = scalar_select %p215, %s21, 1
          %s217 = scalar_lea.vmem %s1, %s216
        $region36: #{tpu_custom_call.1} parent=27 // pred_fallthru
          _
      $region28: #{tpu_custom_call.1} parent=5 // pred_fallthru
        _
      %p218 = scmp.le.s32.totalorder 1, %s14
      %p219 = scmp.lt.s32.totalorder %s14, 3
      %p220 = pnand %p218, %p219
      %p221 = pneg %p220
      // Predicated region
      $region37: #{tpu_custom_call.1} parent=5 // pred_check
        _
      $region38: #{tpu_custom_call.1} parent=5 // pred_check_branch
        %223 = sbr.rel (%p220) target = $region40
      $region39: #{tpu_custom_call.1} parent=5 // pred_region
        %s224 = ssub.s32 %s14, 1
        %s225 = smul.u32 32, %s24
        %p226 = scmp.lt.s32.totalorder %s23, 1
        %s227 = scalar_select %p226, %s23, 1
        %p228 = scmp.lt.s32.totalorder %s225, 31
        %s229 = scalar_select %p228, %s225, 31
        %s230 = smul.addr %s227, 32
        %s231 = sadd.s32 %s229, %s230
        %s232 = smul.addr %s231, 8
        %s233 = scalar_lea.vmem %s0, %s232
        %p234 = pneg %p54
        %p235 = pneg %p51
        %p236 = scmp.lt.s32.totalorder %s23, 1
        %s237 = scalar_select %p236, %s23, 1
        %s238 = scalar_lea.vmem %s1, %s237
        %p239 = pneg %p80
        %p240 = pneg %p77
        %p241 = pneg %p101
        %p242 = pneg %p98
        %p243 = pneg %p122
        %p244 = pneg %p119
        %p245 = pneg %p143
        %p246 = pneg %p140
        %p247 = pneg %p171
        %p248 = pneg %p168
        %s249 = sand.u32 %s158, 1
        %s250 = scalar_lea.sflag [#allocation3], %s249
        %s251 = sand.u32 %s158, 1
        %s252 = smul.addr %s251, 2
        %s253 = scalar_lea.vmem [#allocation2], %s252
        %s254 = smul.u32 32, %s24
        %p255 = scmp.lt.s32.totalorder %s23, 1
        %s256 = scalar_select %p255, %s23, 1
        %p257 = scmp.lt.s32.totalorder %s254, 31
        %s258 = scalar_select %p257, %s254, 31
        %s259 = smul.addr %s256, 32
        %s260 = sadd.s32 %s258, %s259
        %s261 = smul.addr %s260, 8
        %s262 = scalar_lea.vmem %s0, %s261
        %s263 = smul.u32 32, %s24
        %p264 = scmp.lt.s32.totalorder %s23, 1
        %s265 = scalar_select %p264, %s23, 1
        %s266 = scalar_lea.vmem %s1, %s265
        %s267 = smul.u32 2, %s24
        %v268 = vld [vmem:[%s262] sm:$0xff]
        %v269 = vld [vmem:[%s262 + $0x8] sm:$0xff]
        %v270 = vld [vmem:[%s262 + $0x10] sm:$0xff]
        %v271 = vld [vmem:[%s262 + $0x18] sm:$0xff]
        %v272 = vld [vmem:[%s262 + $0x20] sm:$0xff]
        %v273 = vld [vmem:[%s262 + $0x28] sm:$0xff]
        %v274 = vld [vmem:[%s262 + $0x30] sm:$0xff]
        %v275 = vld [vmem:[%s262 + $0x38] sm:$0xff]
        %v276 = vld [vmem:[%s262 + $0x40] sm:$0xff]
        %v277 = vld [vmem:[%s262 + $0x48] sm:$0xff]
        %v278 = vld [vmem:[%s262 + $0x50] sm:$0xff]
        %v279 = vld [vmem:[%s262 + $0x58] sm:$0xff]
        %v280 = vld [vmem:[%s262 + $0x60] sm:$0xff]
        %v281 = vld [vmem:[%s262 + $0x68] sm:$0xff]
        %v282 = vld [vmem:[%s262 + $0x70] sm:$0xff]
        %v283 = vld [vmem:[%s262 + $0x78] sm:$0xff]
        %v284 = vld [vmem:[%s262 + $0x80] sm:$0xff]
        %v285 = vld [vmem:[%s262 + $0x88] sm:$0xff]
        %v286 = vld [vmem:[%s262 + $0x90] sm:$0xff]
        %v287 = vld [vmem:[%s262 + $0x98] sm:$0xff]
        %v288 = vld [vmem:[%s262 + $0xa0] sm:$0xff]
        %v289 = vld [vmem:[%s262 + $0xa8] sm:$0xff]
        %v290 = vld [vmem:[%s262 + $0xb0] sm:$0xff]
        %v291 = vld [vmem:[%s262 + $0xb8] sm:$0xff]
        %v292 = vld [vmem:[%s262 + $0xc0] sm:$0xff]
        %v293 = vld [vmem:[%s262 + $0xc8] sm:$0xff]
        %v294 = vld [vmem:[%s262 + $0xd0] sm:$0xff]
        %v295 = vld [vmem:[%s262 + $0xd8] sm:$0xff]
        %v296 = vld [vmem:[%s262 + $0xe0] sm:$0xff]
        %v297 = vld [vmem:[%s262 + $0xe8] sm:$0xff]
        %v298 = vld [vmem:[%s262 + $0xf0] sm:$0xff]
        %v299 = vld [vmem:[%s262 + $0xf8] sm:$0xff]
        %v300 = vld [vmem:[%s2] sm:$0x3f]
        %vm301 = vcmask 23552
        %v303 = vsel %vm301, %v268, 0
        %v306 = vsel %vm301, %v269, 0
        %v309 = vsel %vm301, %v270, 0
        %v312 = vsel %vm301, %v271, 0
        %v315 = vsel %vm301, %v272, 0
        %v318 = vsel %vm301, %v273, 0
        %v321 = vsel %vm301, %v274, 0
        %v324 = vsel %vm301, %v275, 0
        %v327 = vsel %vm301, %v276, 0
        %v330 = vsel %vm301, %v277, 0
        %v333 = vsel %vm301, %v278, 0
        %v336 = vsel %vm301, %v279, 0
        %v339 = vsel %vm301, %v280, 0
        %v342 = vsel %vm301, %v281, 0
        %v345 = vsel %vm301, %v282, 0
        %v348 = vsel %vm301, %v283, 0
        %v351 = vsel %vm301, %v284, 0
        %v354 = vsel %vm301, %v285, 0
        %v357 = vsel %vm301, %v286, 0
        %v360 = vsel %vm301, %v287, 0
        %v363 = vsel %vm301, %v288, 0
        %v366 = vsel %vm301, %v289, 0
        %v369 = vsel %vm301, %v290, 0
        %v372 = vsel %vm301, %v291, 0
        %v375 = vsel %vm301, %v292, 0
        %v378 = vsel %vm301, %v293, 0
        %v381 = vsel %vm301, %v294, 0
        %v384 = vsel %vm301, %v295, 0
        %v387 = vsel %vm301, %v296, 0
        %v390 = vsel %vm301, %v297, 0
        %v393 = vsel %vm301, %v298, 0
        %v396 = vsel %vm301, %v299, 0
        %vm398 = vcmask 1042432
        %v400 = vsel %vm398, %v300, 0
        %402 = vmatprep.subr.mxu0 0.0
        %403 = vmatpush1.msra.mxu0 %v400
        %404 = vmatprep.subr.mxu0 0.0
        %405 = vmatpush1.msra.mxu0 0.0
        %406 = vmatprep.subr.mxu0 0.0
        %407 = vmatpush1.msra.mxu0 0.0
        %408 = vmatprep.subr.mxu0 0.0
        %409 = vmatpush1.msra.mxu0 0.0
        %410 = vmatprep.subr.mxu0 0.0
        %411 = vmatpush1.msra.mxu0 0.0
        %412 = vmatprep.subr.mxu0 0.0
        %413 = vmatpush1.msra.mxu0 0.0
        %414 = vmatprep.subr.mxu0 0.0
        %415 = vmatpush1.msra.mxu0 0.0
        %416 = vmatprep.subr.mxu0 0.0
        %417 = vmatpush1.msra.mxu0 0.0
        %418 = vmatprep.subr.mxu0 0.0
        %419 = vmatpush1.msra.mxu0 0.0
        %420 = vmatprep.subr.mxu0 0.0
        %421 = vmatpush1.msra.mxu0 0.0
        %422 = vmatprep.subr.mxu0 0.0
        %423 = vmatpush1.msra.mxu0 0.0
        %424 = vmatprep.subr.mxu0 0.0
        %425 = vmatpush1.msra.mxu0 0.0
        %426 = vmatprep.subr.mxu0 0.0
        %427 = vmatpush1.msra.mxu0 0.0
        %428 = vmatprep.subr.mxu0 0.0
        %429 = vmatpush1.msra.mxu0 0.0
        %430 = vmatprep.subr.mxu0 0.0
        %431 = vmatpush1.msra.mxu0 0.0
        %432 = vmatprep.subr.mxu0 0.0
        %433 = vmatpush1.msra.mxu0 0.0
        %434 = vmatprep.subr.mxu0 0.0
        %435 = vmatpush1.msra.mxu0 0.0
        %436 = vmatprep.subr.mxu0 0.0
        %437 = vmatpush1.msra.mxu0 0.0
        %438 = vmatprep.subr.mxu0 0.0
        %439 = vmatpush1.msra.mxu0 0.0
        %440 = vmatprep.subr.mxu0 0.0
        %441 = vmatpush1.msra.mxu0 0.0
        %442 = vmatprep.subr.mxu0 0.0
        %443 = vmatpush1.msra.mxu0 0.0
        %444 = vmatprep.subr.mxu0 0.0
        %445 = vmatpush1.msra.mxu0 0.0
        %446 = vmatprep.subr.mxu0 0.0
        %447 = vmatpush1.msra.mxu0 0.0
        %448 = vmatprep.subr.mxu0 0.0
        %449 = vmatpush1.msra.mxu0 0.0
        %450 = vmatprep.subr.mxu0 0.0
        %451 = vmatpush1.msra.mxu0 0.0
        %452 = vmatprep.subr.mxu0 0.0
        %453 = vmatpush1.msra.mxu0 0.0
        %454 = vmatprep.subr.mxu0 0.0
        %455 = vmatpush1.msra.mxu0 0.0
        %456 = vmatprep.subr.mxu0 0.0
        %457 = vmatpush1.msra.mxu0 0.0
        %458 = vmatprep.subr.mxu0 0.0
        %459 = vmatpush1.msra.mxu0 0.0
        %460 = vmatprep.subr.mxu0 0.0
        %461 = vmatpush1.msra.mxu0 0.0
        %462 = vmatprep.subr.mxu0 0.0
        %463 = vmatpush1.msra.mxu0 0.0
        %464 = vmatprep.subr.mxu0 0.0
        %465 = vmatpush1.msra.mxu0 0.0
        %466 = vmatprep.mubr.f32.mxu0 0.0
        %467 = vmatmul.mubr.f32.gmra.mrb[0].mxu0 %v303
        %v468 = vpop.f32.mrb[0].mxu0
        %v469 = vadd.f32 0.0, %v468
        %v470 = vpop.f32.mrb[0].mxu0
        %471 = vmatprep.mubr.f32.mxu0 0.0
        %472 = vmatmul.mubr.f32.gmra.mrb[0].mxu0 %v306
        %v473 = vpop.f32.mrb[0].mxu0
        %v474 = vadd.f32 0.0, %v473
        %v475 = vpop.f32.mrb[0].mxu0
        %476 = vmatprep.mubr.f32.mxu0 0.0
        %477 = vmatmul.mubr.f32.gmra.mrb[0].mxu0 %v309
        %v478 = vpop.f32.mrb[0].mxu0
        %v479 = vadd.f32 0.0, %v478
        %v480 = vpop.f32.mrb[0].mxu0
        %481 = vmatprep.mubr.f32.mxu0 0.0
        %482 = vmatmul.mubr.f32.gmra.mrb[0].mxu0 %v312
        %v483 = vpop.f32.mrb[0].mxu0
        %v484 = vadd.f32 0.0, %v483
        %v485 = vpop.f32.mrb[0].mxu0
        %486 = vmatprep.mubr.f32.mxu0 0.0
        %487 = vmatmul.mubr.f32.gmra.mrb[0].mxu0 %v315
        %v488 = vpop.f32.mrb[0].mxu0
        %v489 = vadd.f32 0.0, %v488
        %v490 = vpop.f32.mrb[0].mxu0
        %491 = vmatprep.mubr.f32.mxu0 0.0
        %492 = vmatmul.mubr.f32.gmra.mrb[0].mxu0 %v318
        %v493 = vpop.f32.mrb[0].mxu0
        %v494 = vadd.f32 0.0, %v493
        %v495 = vpop.f32.mrb[0].mxu0
        %496 = vmatprep.mubr.f32.mxu0 0.0
        %497 = vmatmul.mubr.f32.gmra.mrb[0].mxu0 %v321
        %v498 = vpop.f32.mrb[0].mxu0
        %v499 = vadd.f32 0.0, %v498
        %v500 = vpop.f32.mrb[0].mxu0
        %501 = vmatprep.mubr.f32.mxu0 0.0
        %502 = vmatmul.mubr.f32.gmra.mrb[0].mxu0 %v324
        %v503 = vpop.f32.mrb[0].mxu0
        %v504 = vadd.f32 0.0, %v503
        %v505 = vpop.f32.mrb[0].mxu0
        %506 = vmatprep.mubr.f32.mxu0 0.0
        %507 = vmatmul.mubr.f32.gmra.mrb[0].mxu0 %v327
        %v508 = vpop.f32.mrb[0].mxu0
        %v509 = vadd.f32 0.0, %v508
        %v510 = vpop.f32.mrb[0].mxu0
        %511 = vmatprep.mubr.f32.mxu0 0.0
        %512 = vmatmul.mubr.f32.gmra.mrb[0].mxu0 %v330
        %v513 = vpop.f32.mrb[0].mxu0
        %v514 = vadd.f32 0.0, %v513
        %v515 = vpop.f32.mrb[0].mxu0
        %516 = vmatprep.mubr.f32.mxu0 0.0
        %517 = vmatmul.mubr.f32.gmra.mrb[0].mxu0 %v333
        %v518 = vpop.f32.mrb[0].mxu0
        %v519 = vadd.f32 0.0, %v518
        %v520 = vpop.f32.mrb[0].mxu0
        %521 = vmatprep.mubr.f32.mxu0 0.0
        %522 = vmatmul.mubr.f32.gmra.mrb[0].mxu0 %v336
        %v523 = vpop.f32.mrb[0].mxu0
        %v524 = vadd.f32 0.0, %v523
        %v525 = vpop.f32.mrb[0].mxu0
        %526 = vmatprep.mubr.f32.mxu0 0.0
        %527 = vmatmul.mubr.f32.gmra.mrb[0].mxu0 %v339
        %v528 = vpop.f32.mrb[0].mxu0
        %v529 = vadd.f32 0.0, %v528
        %v530 = vpop.f32.mrb[0].mxu0
        %531 = vmatprep.mubr.f32.mxu0 0.0
        %532 = vmatmul.mubr.f32.gmra.mrb[0].mxu0 %v342
        %v533 = vpop.f32.mrb[0].mxu0
        %v534 = vadd.f32 0.0, %v533
        %v535 = vpop.f32.mrb[0].mxu0
        %536 = vmatprep.mubr.f32.mxu0 0.0
        %537 = vmatmul.mubr.f32.gmra.mrb[0].mxu0 %v345
        %v538 = vpop.f32.mrb[0].mxu0
        %v539 = vadd.f32 0.0, %v538
        %v540 = vpop.f32.mrb[0].mxu0
        %541 = vmatprep.mubr.f32.mxu0 0.0
        %542 = vmatmul.mubr.f32.gmra.mrb[0].mxu0 %v348
        %v543 = vpop.f32.mrb[0].mxu0
        %v544 = vadd.f32 0.0, %v543
        %v545 = vpop.f32.mrb[0].mxu0
        %546 = vmatprep.mubr.f32.mxu0 0.0
        %547 = vmatmul.mubr.f32.gmra.mrb[0].mxu0 %v351
        %v548 = vpop.f32.mrb[0].mxu0
        %v549 = vadd.f32 0.0, %v548
        %v550 = vpop.f32.mrb[0].mxu0
        %551 = vmatprep.mubr.f32.mxu0 0.0
        %552 = vmatmul.mubr.f32.gmra.mrb[0].mxu0 %v354
        %v553 = vpop.f32.mrb[0].mxu0
        %v554 = vadd.f32 0.0, %v553
        %v555 = vpop.f32.mrb[0].mxu0
        %556 = vmatprep.mubr.f32.mxu0 0.0
        %557 = vmatmul.mubr.f32.gmra.mrb[0].mxu0 %v357
        %v558 = vpop.f32.mrb[0].mxu0
        %v559 = vadd.f32 0.0, %v558
        %v560 = vpop.f32.mrb[0].mxu0
        %561 = vmatprep.mubr.f32.mxu0 0.0
        %562 = vmatmul.mubr.f32.gmra.mrb[0].mxu0 %v360
        %v563 = vpop.f32.mrb[0].mxu0
        %v564 = vadd.f32 0.0, %v563
        %v565 = vpop.f32.mrb[0].mxu0
        %566 = vmatprep.mubr.f32.mxu0 0.0
        %567 = vmatmul.mubr.f32.gmra.mrb[0].mxu0 %v363
        %v568 = vpop.f32.mrb[0].mxu0
        %v569 = vadd.f32 0.0, %v568
        %v570 = vpop.f32.mrb[0].mxu0
        %571 = vmatprep.mubr.f32.mxu0 0.0
        %572 = vmatmul.mubr.f32.gmra.mrb[0].mxu0 %v366
        %v573 = vpop.f32.mrb[0].mxu0
        %v574 = vadd.f32 0.0, %v573
        %v575 = vpop.f32.mrb[0].mxu0
        %576 = vmatprep.mubr.f32.mxu0 0.0
        %577 = vmatmul.mubr.f32.gmra.mrb[0].mxu0 %v369
        %v578 = vpop.f32.mrb[0].mxu0
        %v579 = vadd.f32 0.0, %v578
        %v580 = vpop.f32.mrb[0].mxu0
        %581 = vmatprep.mubr.f32.mxu0 0.0
        %582 = vmatmul.mubr.f32.gmra.mrb[0].mxu0 %v372
        %v583 = vpop.f32.mrb[0].mxu0
        %v584 = vadd.f32 0.0, %v583
        %v585 = vpop.f32.mrb[0].mxu0
        %586 = vmatprep.mubr.f32.mxu0 0.0
        %587 = vmatmul.mubr.f32.gmra.mrb[0].mxu0 %v375
        %v588 = vpop.f32.mrb[0].mxu0
        %v589 = vadd.f32 0.0, %v588
        %v590 = vpop.f32.mrb[0].mxu0
        %591 = vmatprep.mubr.f32.mxu0 0.0
        %592 = vmatmul.mubr.f32.gmra.mrb[0].mxu0 %v378
        %v593 = vpop.f32.mrb[0].mxu0
        %v594 = vadd.f32 0.0, %v593
        %v595 = vpop.f32.mrb[0].mxu0
        %596 = vmatprep.mubr.f32.mxu0 0.0
        %597 = vmatmul.mubr.f32.gmra.mrb[0].mxu0 %v381
        %v598 = vpop.f32.mrb[0].mxu0
        %v599 = vadd.f32 0.0, %v598
        %v600 = vpop.f32.mrb[0].mxu0
        %601 = vmatprep.mubr.f32.mxu0 0.0
        %602 = vmatmul.mubr.f32.gmra.mrb[0].mxu0 %v384
        %v603 = vpop.f32.mrb[0].mxu0
        %v604 = vadd.f32 0.0, %v603
        %v605 = vpop.f32.mrb[0].mxu0
        %606 = vmatprep.mubr.f32.mxu0 0.0
        %607 = vmatmul.mubr.f32.gmra.mrb[0].mxu0 %v387
        %v608 = vpop.f32.mrb[0].mxu0
        %v609 = vadd.f32 0.0, %v608
        %v610 = vpop.f32.mrb[0].mxu0
        %611 = vmatprep.mubr.f32.mxu0 0.0
        %612 = vmatmul.mubr.f32.gmra.mrb[0].mxu0 %v390
        %v613 = vpop.f32.mrb[0].mxu0
        %v614 = vadd.f32 0.0, %v613
        %v615 = vpop.f32.mrb[0].mxu0
        %616 = vmatprep.mubr.f32.mxu0 0.0
        %617 = vmatmul.mubr.f32.gmra.mrb[0].mxu0 %v393
        %v618 = vpop.f32.mrb[0].mxu0
        %v619 = vadd.f32 0.0, %v618
        %v620 = vpop.f32.mrb[0].mxu0
        %621 = vmatprep.mubr.f32.mxu0 0.0
        %622 = vmatmul.mubr.f32.gmra.mrb[0].mxu0 %v396
        %v623 = vpop.f32.mrb[0].mxu0
        %v624 = vadd.f32 0.0, %v623
        %v625 = vpop.f32.mrb[0].mxu0
        %626 = vdwg.mxu0
        %v627 = vlaneseq
        %v628 = vshrl.u32 %v627, 7
        %v629 = vsub.s32 3, %v628
        %v630 = vrot.slane %v300, %v629
        %v631 = vmul.f32 %v630, %v469
        %v632 = vmul.f32 %v630, %v474
        %v633 = vmul.f32 %v630, %v479
        %v634 = vmul.f32 %v630, %v484
        %v635 = vmul.f32 %v630, %v489
        %v636 = vmul.f32 %v630, %v494
        %v637 = vmul.f32 %v630, %v499
        %v638 = vmul.f32 %v630, %v504
        %v639 = vmul.f32 %v630, %v509
        %v640 = vmul.f32 %v630, %v514
        %v641 = vmul.f32 %v630, %v519
        %v642 = vmul.f32 %v630, %v524
        %v643 = vmul.f32 %v630, %v529
        %v644 = vmul.f32 %v630, %v534
        %v645 = vmul.f32 %v630, %v539
        %v646 = vmul.f32 %v630, %v544
        %v647 = vmul.f32 %v630, %v549
        %v648 = vmul.f32 %v630, %v554
        %v649 = vmul.f32 %v630, %v559
        %v650 = vmul.f32 %v630, %v564
        %v651 = vmul.f32 %v630, %v569
        %v652 = vmul.f32 %v630, %v574
        %v653 = vmul.f32 %v630, %v579
        %v654 = vmul.f32 %v630, %v584
        %v655 = vmul.f32 %v630, %v589
        %v656 = vmul.f32 %v630, %v594
        %v657 = vmul.f32 %v630, %v599
        %v658 = vmul.f32 %v630, %v604
        %v659 = vmul.f32 %v630, %v609
        %v660 = vmul.f32 %v630, %v614
        %v661 = vmul.f32 %v630, %v619
        %v662 = vmul.f32 %v630, %v624
        %v663 = vlaneseq
        %v664 = vshrl.u32 %v663, 7
        %v665 = vsub.s32 5, %v664
        %v666 = vrot.slane %v300, %v665
        %v667 = vadd.f32 %v469, %v666
        %v668 = vadd.f32 %v474, %v666
        %v669 = vadd.f32 %v479, %v666
        %v670 = vadd.f32 %v484, %v666
        %v671 = vadd.f32 %v489, %v666
        %v672 = vadd.f32 %v494, %v666
        %v673 = vadd.f32 %v499, %v666
        %v674 = vadd.f32 %v504, %v666
        %v675 = vadd.f32 %v509, %v666
        %v676 = vadd.f32 %v514, %v666
        %v677 = vadd.f32 %v519, %v666
        %v678 = vadd.f32 %v524, %v666
        %v679 = vadd.f32 %v529, %v666
        %v680 = vadd.f32 %v534, %v666
        %v681 = vadd.f32 %v539, %v666
        %v682 = vadd.f32 %v544, %v666
        %v683 = vadd.f32 %v549, %v666
        %v684 = vadd.f32 %v554, %v666
        %v685 = vadd.f32 %v559, %v666
        %v686 = vadd.f32 %v564, %v666
        %v687 = vadd.f32 %v569, %v666
        %v688 = vadd.f32 %v574, %v666
        %v689 = vadd.f32 %v579, %v666
        %v690 = vadd.f32 %v584, %v666
        %v691 = vadd.f32 %v589, %v666
        %v692 = vadd.f32 %v594, %v666
        %v693 = vadd.f32 %v599, %v666
        %v694 = vadd.f32 %v604, %v666
        %v695 = vadd.f32 %v609, %v666
        %v696 = vadd.f32 %v614, %v666
        %v697 = vadd.f32 %v619, %v666
        %v698 = vadd.f32 %v624, %v666
        %v699 = vand.u32 2147483647, %v667
        %vm700 = vcmp.le.f32.partialorder %v699, 0.7853982
        %vm701 = vcmp.lt.s32.totalorder %v667, 0
        %v702 = vand.u32 %v667, 2139095040
        %v703 = vshrl.u32 %v702, 23
        %v704 = vsub.s32 %v703, 127
        %v705 = vand.u32 2147483647, %v667
        %v706 = vand.u32 %v705, 8388607
        %v707 = vor.u32 %v706, 8388608
        %v708 = vsub.s32 0, %v707
        %v709 = vadd.s32 %v704, 1
        %vm710 = vcmp.gt.s32.totalorder %v709, 0
        %v711 = vsel %vm710, %v709, 0
        %v712 = vshrl.u32 %v711, 5
        %v713 = vand.u32 %v711, 31
        %v714 = vsub.s32 32, %v713
        %v715 = vshrl.u32 683565275, %v714
        %v716 = vshll.u32 683565275, %v713
        %v717 = vshrl.u32 2475754826, %v714
        %v718 = vor.u32 %v716, %v717
        %v719 = vshll.u32 2475754826, %v713
        %v720 = vshrl.u32 2131351028, %v714
        %v721 = vor.u32 %v719, %v720
        %v722 = vshll.u32 2131351028, %v713
        %v723 = vshrl.u32 2102212464, %v714
        %v724 = vor.u32 %v722, %v723
        %v725 = vshll.u32 2102212464, %v713
        %v726 = vshrl.u32 920167782, %v714
        %v727 = vor.u32 %v725, %v726
        %v728 = vshll.u32 920167782, %v713
        %v729 = vshrl.u32 1326507024, %v714
        %v730 = vor.u32 %v728, %v729
        %vm731 = vcmp.lt.s32.totalorder %v712, 1
        %vm732 = vcmp.lt.s32.totalorder %v712, 2
        %vm733 = vcmp.lt.s32.totalorder %v712, 3
        %vm734 = vcmp.lt.s32.totalorder %v712, 4
        %v735 = vsel %vm731, %v715, %v718
        %v736 = vsel %vm734, %v724, 2102212464
        %v737 = vsel %vm733, %v721, %v736
        %v738 = vsel %vm732, %v735, %v737
        %v739 = vsel %vm731, %v718, %v721
        %v740 = vsel %vm734, %v727, 920167782
        %v741 = vsel %vm733, %v724, %v740
        %v742 = vsel %vm732, %v739, %v741
        %v743 = vsel %vm731, %v721, %v724
        %v744 = vsel %vm734, %v730, 1326507024
        %v745 = vsel %vm733, %v727, %v744
        %v746 = vsel %vm732, %v743, %v745
        %v747 = vshll.u32 %v707, 8
        %v748 = vmul.u32.u64.compose %v747, %v746
        %v749 = vextract.low.u32 %v748
        %v750 = vextract.high.u32 %v748
        %v751 = vmul.u32.u64.compose %v747, %v742
        %v752 = vextract.low.u32 %v751
        %v753 = vextract.high.u32 %v751
        %v754 = vmul.u32 %v747, %v738
        %v755 = vadd.s32 %v750, %v752
        %vm756 = vc.u32 %v750, %v752
        %v757 = vadd.s32 %v753, 1
        %v758 = vsel %vm756, %v757, %v753
        %v759 = vadd.s32 %v754, %v758
        %v760 = vadd.s32 %v759, 536870912
        %v761 = vshrl.u32 %v760, 30
        %v762 = vshll.u32 %v761, 30
        %v763 = vsub.s32 %v759, %v762
        %vm764 = vcmp.lt.s32.totalorder %v763, 0
        %v765 = vsub.s32 0, %v763
        %v766 = vsel %vm764, %v765, %v763
        %v767 = vclz %v766
        %v768 = vsub.s32 %v767, 2
        %vm769 = vcmp.gt.s32.totalorder 0, %v768
        %v770 = vsel %vm769, 0, %v768
        %v771 = vsub.s32 32, %v770
        %v772 = vshll.u32 %v763, %v770
        %v773 = vshrl.u32 %v755, %v771
        %v774 = vor.u32 %v772, %v773
        %v775 = vsub.s32 4294967266, %v770
        %v776 = vadd.s32 %v775, 127
        %v777 = vshll.u32 %v776, 23
        %v778 = vor.u32 4788187, %v777
        %v779 = vand.u32 2147483647, %v778
        %v781 = vcvt.s32.f32 %v774
        %v782 = vmul.f32 %v781, %v779
        %v783 = vxor.u32 %v782, 2147483648
        %v784 = vsel %vm701, %v783, %v782
        %v785 = vsub.s32 4, %v761
        %v786 = vsel %vm701, %v785, %v761
        %v787 = vsel %vm700, %v667, %v784
        %v788 = vsel %vm700, 0, %v786
        %v789 = vcosq.f32.pop %v787
        %v790 = vsinq.f32.pop %v787
        %vm791 = vweird.f32 %v667
        %v792 = vadd.s32 %v788, 3
        %v793 = vand.u32 %v792, 3
        %vm794 = vcmp.lt.s32.totalorder %v793, 2
        %vm795 = vcmp.eq.s32.totalorder %v793, 0
        %v796 = vxor.u32 %v790, 2147483648
        %v797 = vsel %vm795, %v789, %v796
        %vm798 = vcmp.eq.s32.totalorder %v793, 2
        %v799 = vxor.u32 %v789, 2147483648
        %v800 = vsel %vm798, %v799, %v790
        %v801 = vsel %vm794, %v797, %v800
        %v802 = vsel %vm791, nan, %v801
        %v803 = vand.u32 2147483647, %v668
        %vm804 = vcmp.le.f32.partialorder %v803, 0.7853982
        %vm805 = vcmp.lt.s32.totalorder %v668, 0
        %v806 = vand.u32 %v668, 2139095040
        %v807 = vshrl.u32 %v806, 23
        %v808 = vsub.s32 %v807, 127
        %v809 = vand.u32 2147483647, %v668
        %v810 = vand.u32 %v809, 8388607
        %v811 = vor.u32 %v810, 8388608
        %v812 = vsub.s32 0, %v811
        %v813 = vadd.s32 %v808, 1
        %vm814 = vcmp.gt.s32.totalorder %v813, 0
        %v815 = vsel %vm814, %v813, 0
        %v816 = vshrl.u32 %v815, 5
        %v817 = vand.u32 %v815, 31
        %v818 = vsub.s32 32, %v817
        %v819 = vshrl.u32 683565275, %v818
        %v820 = vshll.u32 683565275, %v817
        %v821 = vshrl.u32 2475754826, %v818
        %v822 = vor.u32 %v820, %v821
        %v823 = vshll.u32 2475754826, %v817
        %v824 = vshrl.u32 2131351028, %v818
        %v825 = vor.u32 %v823, %v824
        %v826 = vshll.u32 2131351028, %v817
        %v827 = vshrl.u32 2102212464, %v818
        %v828 = vor.u32 %v826, %v827
        %v829 = vshll.u32 2102212464, %v817
        %v830 = vshrl.u32 920167782, %v818
        %v831 = vor.u32 %v829, %v830
        %v832 = vshll.u32 920167782, %v817
        %v833 = vshrl.u32 1326507024, %v818
        %v834 = vor.u32 %v832, %v833
        %vm835 = vcmp.lt.s32.totalorder %v816, 1
        %vm836 = vcmp.lt.s32.totalorder %v816, 2
        %vm837 = vcmp.lt.s32.totalorder %v816, 3
        %vm838 = vcmp.lt.s32.totalorder %v816, 4
        %v839 = vsel %vm835, %v819, %v822
        %v840 = vsel %vm838, %v828, 2102212464
        %v841 = vsel %vm837, %v825, %v840
        %v842 = vsel %vm836, %v839, %v841
        %v843 = vsel %vm835, %v822, %v825
        %v844 = vsel %vm838, %v831, 920167782
        %v845 = vsel %vm837, %v828, %v844
        %v846 = vsel %vm836, %v843, %v845
        %v847 = vsel %vm835, %v825, %v828
        %v848 = vsel %vm838, %v834, 1326507024
        %v849 = vsel %vm837, %v831, %v848
        %v850 = vsel %vm836, %v847, %v849
        %v851 = vshll.u32 %v811, 8
        %v852 = vmul.u32.u64.compose %v851, %v850
        %v853 = vextract.low.u32 %v852
        %v854 = vextract.high.u32 %v852
        %v855 = vmul.u32.u64.compose %v851, %v846
        %v856 = vextract.low.u32 %v855
        %v857 = vextract.high.u32 %v855
        %v858 = vmul.u32 %v851, %v842
        %v859 = vadd.s32 %v854, %v856
        %vm860 = vc.u32 %v854, %v856
        %v861 = vadd.s32 %v857, 1
        %v862 = vsel %vm860, %v861, %v857
        %v863 = vadd.s32 %v858, %v862
        %v864 = vadd.s32 %v863, 536870912
        %v865 = vshrl.u32 %v864, 30
        %v866 = vshll.u32 %v865, 30
        %v867 = vsub.s32 %v863, %v866
        %vm868 = vcmp.lt.s32.totalorder %v867, 0
        %v869 = vsub.s32 0, %v867
        %v870 = vsel %vm868, %v869, %v867
        %v871 = vclz %v870
        %v872 = vsub.s32 %v871, 2
        %vm873 = vcmp.gt.s32.totalorder 0, %v872
        %v874 = vsel %vm873, 0, %v872
        %v875 = vsub.s32 32, %v874
        %v876 = vshll.u32 %v867, %v874
        %v877 = vshrl.u32 %v859, %v875
        %v878 = vor.u32 %v876, %v877
        %v879 = vsub.s32 4294967266, %v874
        %v880 = vadd.s32 %v879, 127
        %v881 = vshll.u32 %v880, 23
        %v882 = vor.u32 4788187, %v881
        %v883 = vand.u32 2147483647, %v882
        %v885 = vcvt.s32.f32 %v878
        %v886 = vmul.f32 %v885, %v883
        %v887 = vxor.u32 %v886, 2147483648
        %v888 = vsel %vm805, %v887, %v886
        %v889 = vsub.s32 4, %v865
        %v890 = vsel %vm805, %v889, %v865
        %v891 = vsel %vm804, %v668, %v888
        %v892 = vsel %vm804, 0, %v890
        %v893 = vcosq.f32.pop %v891
        %v894 = vsinq.f32.pop %v891
        %vm895 = vweird.f32 %v668
        %v896 = vadd.s32 %v892, 3
        %v897 = vand.u32 %v896, 3
        %vm898 = vcmp.lt.s32.totalorder %v897, 2
        %vm899 = vcmp.eq.s32.totalorder %v897, 0
        %v900 = vxor.u32 %v894, 2147483648
        %v901 = vsel %vm899, %v893, %v900
        %vm902 = vcmp.eq.s32.totalorder %v897, 2
        %v903 = vxor.u32 %v893, 2147483648
        %v904 = vsel %vm902, %v903, %v894
        %v905 = vsel %vm898, %v901, %v904
        %v906 = vsel %vm895, nan, %v905
        %v907 = vand.u32 2147483647, %v669
        %vm908 = vcmp.le.f32.partialorder %v907, 0.7853982
        %vm909 = vcmp.lt.s32.totalorder %v669, 0
        %v910 = vand.u32 %v669, 2139095040
        %v911 = vshrl.u32 %v910, 23
        %v912 = vsub.s32 %v911, 127
        %v913 = vand.u32 2147483647, %v669
        %v914 = vand.u32 %v913, 8388607
        %v915 = vor.u32 %v914, 8388608
        %v916 = vsub.s32 0, %v915
        %v917 = vadd.s32 %v912, 1
        %vm918 = vcmp.gt.s32.totalorder %v917, 0
        %v919 = vsel %vm918, %v917, 0
        %v920 = vshrl.u32 %v919, 5
        %v921 = vand.u32 %v919, 31
        %v922 = vsub.s32 32, %v921
        %v923 = vshrl.u32 683565275, %v922
        %v924 = vshll.u32 683565275, %v921
        %v925 = vshrl.u32 2475754826, %v922
        %v926 = vor.u32 %v924, %v925
        %v927 = vshll.u32 2475754826, %v921
        %v928 = vshrl.u32 2131351028, %v922
        %v929 = vor.u32 %v927, %v928
        %v930 = vshll.u32 2131351028, %v921
        %v931 = vshrl.u32 2102212464, %v922
        %v932 = vor.u32 %v930, %v931
        %v933 = vshll.u32 2102212464, %v921
        %v934 = vshrl.u32 920167782, %v922
        %v935 = vor.u32 %v933, %v934
        %v936 = vshll.u32 920167782, %v921
        %v937 = vshrl.u32 1326507024, %v922
        %v938 = vor.u32 %v936, %v937
        %vm939 = vcmp.lt.s32.totalorder %v920, 1
        %vm940 = vcmp.lt.s32.totalorder %v920, 2
        %vm941 = vcmp.lt.s32.totalorder %v920, 3
        %vm942 = vcmp.lt.s32.totalorder %v920, 4
        %v943 = vsel %vm939, %v923, %v926
        %v944 = vsel %vm942, %v932, 2102212464
        %v945 = vsel %vm941, %v929, %v944
        %v946 = vsel %vm940, %v943, %v945
        %v947 = vsel %vm939, %v926, %v929
        %v948 = vsel %vm942, %v935, 920167782
        %v949 = vsel %vm941, %v932, %v948
        %v950 = vsel %vm940, %v947, %v949
        %v951 = vsel %vm939, %v929, %v932
        %v952 = vsel %vm942, %v938, 1326507024
        %v953 = vsel %vm941, %v935, %v952
        %v954 = vsel %vm940, %v951, %v953
        %v955 = vshll.u32 %v915, 8
        %v956 = vmul.u32.u64.compose %v955, %v954
        %v957 = vextract.low.u32 %v956
        %v958 = vextract.high.u32 %v956
        %v959 = vmul.u32.u64.compose %v955, %v950
        %v960 = vextract.low.u32 %v959
        %v961 = vextract.high.u32 %v959
        %v962 = vmul.u32 %v955, %v946
        %v963 = vadd.s32 %v958, %v960
        %vm964 = vc.u32 %v958, %v960
        %v965 = vadd.s32 %v961, 1
        %v966 = vsel %vm964, %v965, %v961
        %v967 = vadd.s32 %v962, %v966
        %v968 = vadd.s32 %v967, 536870912
        %v969 = vshrl.u32 %v968, 30
        %v970 = vshll.u32 %v969, 30
        %v971 = vsub.s32 %v967, %v970
        %vm972 = vcmp.lt.s32.totalorder %v971, 0
        %v973 = vsub.s32 0, %v971
        %v974 = vsel %vm972, %v973, %v971
        %v975 = vclz %v974
        %v976 = vsub.s32 %v975, 2
        %vm977 = vcmp.gt.s32.totalorder 0, %v976
        %v978 = vsel %vm977, 0, %v976
        %v979 = vsub.s32 32, %v978
        %v980 = vshll.u32 %v971, %v978
        %v981 = vshrl.u32 %v963, %v979
        %v982 = vor.u32 %v980, %v981
        %v983 = vsub.s32 4294967266, %v978
        %v984 = vadd.s32 %v983, 127
        %v985 = vshll.u32 %v984, 23
        %v986 = vor.u32 4788187, %v985
        %v987 = vand.u32 2147483647, %v986
        %v989 = vcvt.s32.f32 %v982
        %v990 = vmul.f32 %v989, %v987
        %v991 = vxor.u32 %v990, 2147483648
        %v992 = vsel %vm909, %v991, %v990
        %v993 = vsub.s32 4, %v969
        %v994 = vsel %vm909, %v993, %v969
        %v995 = vsel %vm908, %v669, %v992
        %v996 = vsel %vm908, 0, %v994
        %v997 = vcosq.f32.pop %v995
        %v998 = vsinq.f32.pop %v995
        %vm999 = vweird.f32 %v669
        %v1000 = vadd.s32 %v996, 3
        %v1001 = vand.u32 %v1000, 3
        %vm1002 = vcmp.lt.s32.totalorder %v1001, 2
        %vm1003 = vcmp.eq.s32.totalorder %v1001, 0
        %v1004 = vxor.u32 %v998, 2147483648
        %v1005 = vsel %vm1003, %v997, %v1004
        %vm1006 = vcmp.eq.s32.totalorder %v1001, 2
        %v1007 = vxor.u32 %v997, 2147483648
        %v1008 = vsel %vm1006, %v1007, %v998
        %v1009 = vsel %vm1002, %v1005, %v1008
        %v1010 = vsel %vm999, nan, %v1009
        %v1011 = vand.u32 2147483647, %v670
        %vm1012 = vcmp.le.f32.partialorder %v1011, 0.7853982
        %vm1013 = vcmp.lt.s32.totalorder %v670, 0
        %v1014 = vand.u32 %v670, 2139095040
        %v1015 = vshrl.u32 %v1014, 23
        %v1016 = vsub.s32 %v1015, 127
        %v1017 = vand.u32 2147483647, %v670
        %v1018 = vand.u32 %v1017, 8388607
        %v1019 = vor.u32 %v1018, 8388608
        %v1020 = vsub.s32 0, %v1019
        %v1021 = vadd.s32 %v1016, 1
        %vm1022 = vcmp.gt.s32.totalorder %v1021, 0
        %v1023 = vsel %vm1022, %v1021, 0
        %v1024 = vshrl.u32 %v1023, 5
        %v1025 = vand.u32 %v1023, 31
        %v1026 = vsub.s32 32, %v1025
        %v1027 = vshrl.u32 683565275, %v1026
        %v1028 = vshll.u32 683565275, %v1025
        %v1029 = vshrl.u32 2475754826, %v1026
        %v1030 = vor.u32 %v1028, %v1029
        %v1031 = vshll.u32 2475754826, %v1025
        %v1032 = vshrl.u32 2131351028, %v1026
        %v1033 = vor.u32 %v1031, %v1032
        %v1034 = vshll.u32 2131351028, %v1025
        %v1035 = vshrl.u32 2102212464, %v1026
        %v1036 = vor.u32 %v1034, %v1035
        %v1037 = vshll.u32 2102212464, %v1025
        %v1038 = vshrl.u32 920167782, %v1026
        %v1039 = vor.u32 %v1037, %v1038
        %v1040 = vshll.u32 920167782, %v1025
        %v1041 = vshrl.u32 1326507024, %v1026
        %v1042 = vor.u32 %v1040, %v1041
        %vm1043 = vcmp.lt.s32.totalorder %v1024, 1
        %vm1044 = vcmp.lt.s32.totalorder %v1024, 2
        %vm1045 = vcmp.lt.s32.totalorder %v1024, 3
        %vm1046 = vcmp.lt.s32.totalorder %v1024, 4
        %v1047 = vsel %vm1043, %v1027, %v1030
        %v1048 = vsel %vm1046, %v1036, 2102212464
        %v1049 = vsel %vm1045, %v1033, %v1048
        %v1050 = vsel %vm1044, %v1047, %v1049
        %v1051 = vsel %vm1043, %v1030, %v1033
        %v1052 = vsel %vm1046, %v1039, 920167782
        %v1053 = vsel %vm1045, %v1036, %v1052
        %v1054 = vsel %vm1044, %v1051, %v1053
        %v1055 = vsel %vm1043, %v1033, %v1036
        %v1056 = vsel %vm1046, %v1042, 1326507024
        %v1057 = vsel %vm1045, %v1039, %v1056
        %v1058 = vsel %vm1044, %v1055, %v1057
        %v1059 = vshll.u32 %v1019, 8
        %v1060 = vmul.u32.u64.compose %v1059, %v1058
        %v1061 = vextract.low.u32 %v1060
        %v1062 = vextract.high.u32 %v1060
        %v1063 = vmul.u32.u64.compose %v1059, %v1054
        %v1064 = vextract.low.u32 %v1063
        %v1065 = vextract.high.u32 %v1063
        %v1066 = vmul.u32 %v1059, %v1050
        %v1067 = vadd.s32 %v1062, %v1064
        %vm1068 = vc.u32 %v1062, %v1064
        %v1069 = vadd.s32 %v1065, 1
        %v1070 = vsel %vm1068, %v1069, %v1065
        %v1071 = vadd.s32 %v1066, %v1070
        %v1072 = vadd.s32 %v1071, 536870912
        %v1073 = vshrl.u32 %v1072, 30
        %v1074 = vshll.u32 %v1073, 30
        %v1075 = vsub.s32 %v1071, %v1074
        %vm1076 = vcmp.lt.s32.totalorder %v1075, 0
        %v1077 = vsub.s32 0, %v1075
        %v1078 = vsel %vm1076, %v1077, %v1075
        %v1079 = vclz %v1078
        %v1080 = vsub.s32 %v1079, 2
        %vm1081 = vcmp.gt.s32.totalorder 0, %v1080
        %v1082 = vsel %vm1081, 0, %v1080
        %v1083 = vsub.s32 32, %v1082
        %v1084 = vshll.u32 %v1075, %v1082
        %v1085 = vshrl.u32 %v1067, %v1083
        %v1086 = vor.u32 %v1084, %v1085
        %v1087 = vsub.s32 4294967266, %v1082
        %v1088 = vadd.s32 %v1087, 127
        %v1089 = vshll.u32 %v1088, 23
        %v1090 = vor.u32 4788187, %v1089
        %v1091 = vand.u32 2147483647, %v1090
        %v1093 = vcvt.s32.f32 %v1086
        %v1094 = vmul.f32 %v1093, %v1091
        %v1095 = vxor.u32 %v1094, 2147483648
        %v1096 = vsel %vm1013, %v1095, %v1094
        %v1097 = vsub.s32 4, %v1073
        %v1098 = vsel %vm1013, %v1097, %v1073
        %v1099 = vsel %vm1012, %v670, %v1096
        %v1100 = vsel %vm1012, 0, %v1098
        %v1101 = vcosq.f32.pop %v1099
        %v1102 = vsinq.f32.pop %v1099
        %vm1103 = vweird.f32 %v670
        %v1104 = vadd.s32 %v1100, 3
        %v1105 = vand.u32 %v1104, 3
        %vm1106 = vcmp.lt.s32.totalorder %v1105, 2
        %vm1107 = vcmp.eq.s32.totalorder %v1105, 0
        %v1108 = vxor.u32 %v1102, 2147483648
        %v1109 = vsel %vm1107, %v1101, %v1108
        %vm1110 = vcmp.eq.s32.totalorder %v1105, 2
        %v1111 = vxor.u32 %v1101, 2147483648
        %v1112 = vsel %vm1110, %v1111, %v1102
        %v1113 = vsel %vm1106, %v1109, %v1112
        %v1114 = vsel %vm1103, nan, %v1113
        %v1115 = vand.u32 2147483647, %v671
        %vm1116 = vcmp.le.f32.partialorder %v1115, 0.7853982
        %vm1117 = vcmp.lt.s32.totalorder %v671, 0
        %v1118 = vand.u32 %v671, 2139095040
        %v1119 = vshrl.u32 %v1118, 23
        %v1120 = vsub.s32 %v1119, 127
        %v1121 = vand.u32 2147483647, %v671
        %v1122 = vand.u32 %v1121, 8388607
        %v1123 = vor.u32 %v1122, 8388608
        %v1124 = vsub.s32 0, %v1123
        %v1125 = vadd.s32 %v1120, 1
        %vm1126 = vcmp.gt.s32.totalorder %v1125, 0
        %v1127 = vsel %vm1126, %v1125, 0
        %v1128 = vshrl.u32 %v1127, 5
        %v1129 = vand.u32 %v1127, 31
        %v1130 = vsub.s32 32, %v1129
        %v1131 = vshrl.u32 683565275, %v1130
        %v1132 = vshll.u32 683565275, %v1129
        %v1133 = vshrl.u32 2475754826, %v1130
        %v1134 = vor.u32 %v1132, %v1133
        %v1135 = vshll.u32 2475754826, %v1129
        %v1136 = vshrl.u32 2131351028, %v1130
        %v1137 = vor.u32 %v1135, %v1136
        %v1138 = vshll.u32 2131351028, %v1129
        %v1139 = vshrl.u32 2102212464, %v1130
        %v1140 = vor.u32 %v1138, %v1139
        %v1141 = vshll.u32 2102212464, %v1129
        %v1142 = vshrl.u32 920167782, %v1130
        %v1143 = vor.u32 %v1141, %v1142
        %v1144 = vshll.u32 920167782, %v1129
        %v1145 = vshrl.u32 1326507024, %v1130
        %v1146 = vor.u32 %v1144, %v1145
        %vm1147 = vcmp.lt.s32.totalorder %v1128, 1
        %vm1148 = vcmp.lt.s32.totalorder %v1128, 2
        %vm1149 = vcmp.lt.s32.totalorder %v1128, 3
        %vm1150 = vcmp.lt.s32.totalorder %v1128, 4
        %v1151 = vsel %vm1147, %v1131, %v1134
        %v1152 = vsel %vm1150, %v1140, 2102212464
        %v1153 = vsel %vm1149, %v1137, %v1152
        %v1154 = vsel %vm1148, %v1151, %v1153
        %v1155 = vsel %vm1147, %v1134, %v1137
        %v1156 = vsel %vm1150, %v1143, 920167782
        %v1157 = vsel %vm1149, %v1140, %v1156
        %v1158 = vsel %vm1148, %v1155, %v1157
        %v1159 = vsel %vm1147, %v1137, %v1140
        %v1160 = vsel %vm1150, %v1146, 1326507024
        %v1161 = vsel %vm1149, %v1143, %v1160
        %v1162 = vsel %vm1148, %v1159, %v1161
        %v1163 = vshll.u32 %v1123, 8
        %v1164 = vmul.u32.u64.compose %v1163, %v1162
        %v1165 = vextract.low.u32 %v1164
        %v1166 = vextract.high.u32 %v1164
        %v1167 = vmul.u32.u64.compose %v1163, %v1158
        %v1168 = vextract.low.u32 %v1167
        %v1169 = vextract.high.u32 %v1167
        %v1170 = vmul.u32 %v1163, %v1154
        %v1171 = vadd.s32 %v1166, %v1168
        %vm1172 = vc.u32 %v1166, %v1168
        %v1173 = vadd.s32 %v1169, 1
        %v1174 = vsel %vm1172, %v1173, %v1169
        %v1175 = vadd.s32 %v1170, %v1174
        %v1176 = vadd.s32 %v1175, 536870912
        %v1177 = vshrl.u32 %v1176, 30
        %v1178 = vshll.u32 %v1177, 30
        %v1179 = vsub.s32 %v1175, %v1178
        %vm1180 = vcmp.lt.s32.totalorder %v1179, 0
        %v1181 = vsub.s32 0, %v1179
        %v1182 = vsel %vm1180, %v1181, %v1179
        %v1183 = vclz %v1182
        %v1184 = vsub.s32 %v1183, 2
        %vm1185 = vcmp.gt.s32.totalorder 0, %v1184
        %v1186 = vsel %vm1185, 0, %v1184
        %v1187 = vsub.s32 32, %v1186
        %v1188 = vshll.u32 %v1179, %v1186
        %v1189 = vshrl.u32 %v1171, %v1187
        %v1190 = vor.u32 %v1188, %v1189
        %v1191 = vsub.s32 4294967266, %v1186
        %v1192 = vadd.s32 %v1191, 127
        %v1193 = vshll.u32 %v1192, 23
        %v1194 = vor.u32 4788187, %v1193
        %v1195 = vand.u32 2147483647, %v1194
        %v1197 = vcvt.s32.f32 %v1190
        %v1198 = vmul.f32 %v1197, %v1195
        %v1199 = vxor.u32 %v1198, 2147483648
        %v1200 = vsel %vm1117, %v1199, %v1198
        %v1201 = vsub.s32 4, %v1177
        %v1202 = vsel %vm1117, %v1201, %v1177
        %v1203 = vsel %vm1116, %v671, %v1200
        %v1204 = vsel %vm1116, 0, %v1202
        %v1205 = vcosq.f32.pop %v1203
        %v1206 = vsinq.f32.pop %v1203
        %vm1207 = vweird.f32 %v671
        %v1208 = vadd.s32 %v1204, 3
        %v1209 = vand.u32 %v1208, 3
        %vm1210 = vcmp.lt.s32.totalorder %v1209, 2
        %vm1211 = vcmp.eq.s32.totalorder %v1209, 0
        %v1212 = vxor.u32 %v1206, 2147483648
        %v1213 = vsel %vm1211, %v1205, %v1212
        %vm1214 = vcmp.eq.s32.totalorder %v1209, 2
        %v1215 = vxor.u32 %v1205, 2147483648
        %v1216 = vsel %vm1214, %v1215, %v1206
        %v1217 = vsel %vm1210, %v1213, %v1216
        %v1218 = vsel %vm1207, nan, %v1217
        %v1219 = vand.u32 2147483647, %v672
        %vm1220 = vcmp.le.f32.partialorder %v1219, 0.7853982
        %vm1221 = vcmp.lt.s32.totalorder %v672, 0
        %v1222 = vand.u32 %v672, 2139095040
        %v1223 = vshrl.u32 %v1222, 23
        %v1224 = vsub.s32 %v1223, 127
        %v1225 = vand.u32 2147483647, %v672
        %v1226 = vand.u32 %v1225, 8388607
        %v1227 = vor.u32 %v1226, 8388608
        %v1228 = vsub.s32 0, %v1227
        %v1229 = vadd.s32 %v1224, 1
        %vm1230 = vcmp.gt.s32.totalorder %v1229, 0
        %v1231 = vsel %vm1230, %v1229, 0
        %v1232 = vshrl.u32 %v1231, 5
        %v1233 = vand.u32 %v1231, 31
        %v1234 = vsub.s32 32, %v1233
        %v1235 = vshrl.u32 683565275, %v1234
        %v1236 = vshll.u32 683565275, %v1233
        %v1237 = vshrl.u32 2475754826, %v1234
        %v1238 = vor.u32 %v1236, %v1237
        %v1239 = vshll.u32 2475754826, %v1233
        %v1240 = vshrl.u32 2131351028, %v1234
        %v1241 = vor.u32 %v1239, %v1240
        %v1242 = vshll.u32 2131351028, %v1233
        %v1243 = vshrl.u32 2102212464, %v1234
        %v1244 = vor.u32 %v1242, %v1243
        %v1245 = vshll.u32 2102212464, %v1233
        %v1246 = vshrl.u32 920167782, %v1234
        %v1247 = vor.u32 %v1245, %v1246
        %v1248 = vshll.u32 920167782, %v1233
        %v1249 = vshrl.u32 1326507024, %v1234
        %v1250 = vor.u32 %v1248, %v1249
        %vm1251 = vcmp.lt.s32.totalorder %v1232, 1
        %vm1252 = vcmp.lt.s32.totalorder %v1232, 2
        %vm1253 = vcmp.lt.s32.totalorder %v1232, 3
        %vm1254 = vcmp.lt.s32.totalorder %v1232, 4
        %v1255 = vsel %vm1251, %v1235, %v1238
        %v1256 = vsel %vm1254, %v1244, 2102212464
        %v1257 = vsel %vm1253, %v1241, %v1256
        %v1258 = vsel %vm1252, %v1255, %v1257
        %v1259 = vsel %vm1251, %v1238, %v1241
        %v1260 = vsel %vm1254, %v1247, 920167782
        %v1261 = vsel %vm1253, %v1244, %v1260
        %v1262 = vsel %vm1252, %v1259, %v1261
        %v1263 = vsel %vm1251, %v1241, %v1244
        %v1264 = vsel %vm1254, %v1250, 1326507024
        %v1265 = vsel %vm1253, %v1247, %v1264
        %v1266 = vsel %vm1252, %v1263, %v1265
        %v1267 = vshll.u32 %v1227, 8
        %v1268 = vmul.u32.u64.compose %v1267, %v1266
        %v1269 = vextract.low.u32 %v1268
        %v1270 = vextract.high.u32 %v1268
        %v1271 = vmul.u32.u64.compose %v1267, %v1262
        %v1272 = vextract.low.u32 %v1271
        %v1273 = vextract.high.u32 %v1271
        %v1274 = vmul.u32 %v1267, %v1258
        %v1275 = vadd.s32 %v1270, %v1272
        %vm1276 = vc.u32 %v1270, %v1272
        %v1277 = vadd.s32 %v1273, 1
        %v1278 = vsel %vm1276, %v1277, %v1273
        %v1279 = vadd.s32 %v1274, %v1278
        %v1280 = vadd.s32 %v1279, 536870912
        %v1281 = vshrl.u32 %v1280, 30
        %v1282 = vshll.u32 %v1281, 30
        %v1283 = vsub.s32 %v1279, %v1282
        %vm1284 = vcmp.lt.s32.totalorder %v1283, 0
        %v1285 = vsub.s32 0, %v1283
        %v1286 = vsel %vm1284, %v1285, %v1283
        %v1287 = vclz %v1286
        %v1288 = vsub.s32 %v1287, 2
        %vm1289 = vcmp.gt.s32.totalorder 0, %v1288
        %v1290 = vsel %vm1289, 0, %v1288
        %v1291 = vsub.s32 32, %v1290
        %v1292 = vshll.u32 %v1283, %v1290
        %v1293 = vshrl.u32 %v1275, %v1291
        %v1294 = vor.u32 %v1292, %v1293
        %v1295 = vsub.s32 4294967266, %v1290
        %v1296 = vadd.s32 %v1295, 127
        %v1297 = vshll.u32 %v1296, 23
        %v1298 = vor.u32 4788187, %v1297
        %v1299 = vand.u32 2147483647, %v1298
        %v1301 = vcvt.s32.f32 %v1294
        %v1302 = vmul.f32 %v1301, %v1299
        %v1303 = vxor.u32 %v1302, 2147483648
        %v1304 = vsel %vm1221, %v1303, %v1302
        %v1305 = vsub.s32 4, %v1281
        %v1306 = vsel %vm1221, %v1305, %v1281
        %v1307 = vsel %vm1220, %v672, %v1304
        %v1308 = vsel %vm1220, 0, %v1306
        %v1309 = vcosq.f32.pop %v1307
        %v1310 = vsinq.f32.pop %v1307
        %vm1311 = vweird.f32 %v672
        %v1312 = vadd.s32 %v1308, 3
        %v1313 = vand.u32 %v1312, 3
        %vm1314 = vcmp.lt.s32.totalorder %v1313, 2
        %vm1315 = vcmp.eq.s32.totalorder %v1313, 0
        %v1316 = vxor.u32 %v1310, 2147483648
        %v1317 = vsel %vm1315, %v1309, %v1316
        %vm1318 = vcmp.eq.s32.totalorder %v1313, 2
        %v1319 = vxor.u32 %v1309, 2147483648
        %v1320 = vsel %vm1318, %v1319, %v1310
        %v1321 = vsel %vm1314, %v1317, %v1320
        %v1322 = vsel %vm1311, nan, %v1321
        %v1323 = vand.u32 2147483647, %v673
        %vm1324 = vcmp.le.f32.partialorder %v1323, 0.7853982
        %vm1325 = vcmp.lt.s32.totalorder %v673, 0
        %v1326 = vand.u32 %v673, 2139095040
        %v1327 = vshrl.u32 %v1326, 23
        %v1328 = vsub.s32 %v1327, 127
        %v1329 = vand.u32 2147483647, %v673
        %v1330 = vand.u32 %v1329, 8388607
        %v1331 = vor.u32 %v1330, 8388608
        %v1332 = vsub.s32 0, %v1331
        %v1333 = vadd.s32 %v1328, 1
        %vm1334 = vcmp.gt.s32.totalorder %v1333, 0
        %v1335 = vsel %vm1334, %v1333, 0
        %v1336 = vshrl.u32 %v1335, 5
        %v1337 = vand.u32 %v1335, 31
        %v1338 = vsub.s32 32, %v1337
        %v1339 = vshrl.u32 683565275, %v1338
        %v1340 = vshll.u32 683565275, %v1337
        %v1341 = vshrl.u32 2475754826, %v1338
        %v1342 = vor.u32 %v1340, %v1341
        %v1343 = vshll.u32 2475754826, %v1337
        %v1344 = vshrl.u32 2131351028, %v1338
        %v1345 = vor.u32 %v1343, %v1344
        %v1346 = vshll.u32 2131351028, %v1337
        %v1347 = vshrl.u32 2102212464, %v1338
        %v1348 = vor.u32 %v1346, %v1347
        %v1349 = vshll.u32 2102212464, %v1337
        %v1350 = vshrl.u32 920167782, %v1338
        %v1351 = vor.u32 %v1349, %v1350
        %v1352 = vshll.u32 920167782, %v1337
        %v1353 = vshrl.u32 1326507024, %v1338
        %v1354 = vor.u32 %v1352, %v1353
        %vm1355 = vcmp.lt.s32.totalorder %v1336, 1
        %vm1356 = vcmp.lt.s32.totalorder %v1336, 2
        %vm1357 = vcmp.lt.s32.totalorder %v1336, 3
        %vm1358 = vcmp.lt.s32.totalorder %v1336, 4
        %v1359 = vsel %vm1355, %v1339, %v1342
        %v1360 = vsel %vm1358, %v1348, 2102212464
        %v1361 = vsel %vm1357, %v1345, %v1360
        %v1362 = vsel %vm1356, %v1359, %v1361
        %v1363 = vsel %vm1355, %v1342, %v1345
        %v1364 = vsel %vm1358, %v1351, 920167782
        %v1365 = vsel %vm1357, %v1348, %v1364
        %v1366 = vsel %vm1356, %v1363, %v1365
        %v1367 = vsel %vm1355, %v1345, %v1348
        %v1368 = vsel %vm1358, %v1354, 1326507024
        %v1369 = vsel %vm1357, %v1351, %v1368
        %v1370 = vsel %vm1356, %v1367, %v1369
        %v1371 = vshll.u32 %v1331, 8
        %v1372 = vmul.u32.u64.compose %v1371, %v1370
        %v1373 = vextract.low.u32 %v1372
        %v1374 = vextract.high.u32 %v1372
        %v1375 = vmul.u32.u64.compose %v1371, %v1366
        %v1376 = vextract.low.u32 %v1375
        %v1377 = vextract.high.u32 %v1375
        %v1378 = vmul.u32 %v1371, %v1362
        %v1379 = vadd.s32 %v1374, %v1376
        %vm1380 = vc.u32 %v1374, %v1376
        %v1381 = vadd.s32 %v1377, 1
        %v1382 = vsel %vm1380, %v1381, %v1377
        %v1383 = vadd.s32 %v1378, %v1382
        %v1384 = vadd.s32 %v1383, 536870912
        %v1385 = vshrl.u32 %v1384, 30
        %v1386 = vshll.u32 %v1385, 30
        %v1387 = vsub.s32 %v1383, %v1386
        %vm1388 = vcmp.lt.s32.totalorder %v1387, 0
        %v1389 = vsub.s32 0, %v1387
        %v1390 = vsel %vm1388, %v1389, %v1387
        %v1391 = vclz %v1390
        %v1392 = vsub.s32 %v1391, 2
        %vm1393 = vcmp.gt.s32.totalorder 0, %v1392
        %v1394 = vsel %vm1393, 0, %v1392
        %v1395 = vsub.s32 32, %v1394
        %v1396 = vshll.u32 %v1387, %v1394
        %v1397 = vshrl.u32 %v1379, %v1395
        %v1398 = vor.u32 %v1396, %v1397
        %v1399 = vsub.s32 4294967266, %v1394
        %v1400 = vadd.s32 %v1399, 127
        %v1401 = vshll.u32 %v1400, 23
        %v1402 = vor.u32 4788187, %v1401
        %v1403 = vand.u32 2147483647, %v1402
        %v1405 = vcvt.s32.f32 %v1398
        %v1406 = vmul.f32 %v1405, %v1403
        %v1407 = vxor.u32 %v1406, 2147483648
        %v1408 = vsel %vm1325, %v1407, %v1406
        %v1409 = vsub.s32 4, %v1385
        %v1410 = vsel %vm1325, %v1409, %v1385
        %v1411 = vsel %vm1324, %v673, %v1408
        %v1412 = vsel %vm1324, 0, %v1410
        %v1413 = vcosq.f32.pop %v1411
        %v1414 = vsinq.f32.pop %v1411
        %vm1415 = vweird.f32 %v673
        %v1416 = vadd.s32 %v1412, 3
        %v1417 = vand.u32 %v1416, 3
        %vm1418 = vcmp.lt.s32.totalorder %v1417, 2
        %vm1419 = vcmp.eq.s32.totalorder %v1417, 0
        %v1420 = vxor.u32 %v1414, 2147483648
        %v1421 = vsel %vm1419, %v1413, %v1420
        %vm1422 = vcmp.eq.s32.totalorder %v1417, 2
        %v1423 = vxor.u32 %v1413, 2147483648
        %v1424 = vsel %vm1422, %v1423, %v1414
        %v1425 = vsel %vm1418, %v1421, %v1424
        %v1426 = vsel %vm1415, nan, %v1425
        %v1427 = vand.u32 2147483647, %v674
        %vm1428 = vcmp.le.f32.partialorder %v1427, 0.7853982
        %vm1429 = vcmp.lt.s32.totalorder %v674, 0
        %v1430 = vand.u32 %v674, 2139095040
        %v1431 = vshrl.u32 %v1430, 23
        %v1432 = vsub.s32 %v1431, 127
        %v1433 = vand.u32 2147483647, %v674
        %v1434 = vand.u32 %v1433, 8388607
        %v1435 = vor.u32 %v1434, 8388608
        %v1436 = vsub.s32 0, %v1435
        %v1437 = vadd.s32 %v1432, 1
        %vm1438 = vcmp.gt.s32.totalorder %v1437, 0
        %v1439 = vsel %vm1438, %v1437, 0
        %v1440 = vshrl.u32 %v1439, 5
        %v1441 = vand.u32 %v1439, 31
        %v1442 = vsub.s32 32, %v1441
        %v1443 = vshrl.u32 683565275, %v1442
        %v1444 = vshll.u32 683565275, %v1441
        %v1445 = vshrl.u32 2475754826, %v1442
        %v1446 = vor.u32 %v1444, %v1445
        %v1447 = vshll.u32 2475754826, %v1441
        %v1448 = vshrl.u32 2131351028, %v1442
        %v1449 = vor.u32 %v1447, %v1448
        %v1450 = vshll.u32 2131351028, %v1441
        %v1451 = vshrl.u32 2102212464, %v1442
        %v1452 = vor.u32 %v1450, %v1451
        %v1453 = vshll.u32 2102212464, %v1441
        %v1454 = vshrl.u32 920167782, %v1442
        %v1455 = vor.u32 %v1453, %v1454
        %v1456 = vshll.u32 920167782, %v1441
        %v1457 = vshrl.u32 1326507024, %v1442
        %v1458 = vor.u32 %v1456, %v1457
        %vm1459 = vcmp.lt.s32.totalorder %v1440, 1
        %vm1460 = vcmp.lt.s32.totalorder %v1440, 2
        %vm1461 = vcmp.lt.s32.totalorder %v1440, 3
        %vm1462 = vcmp.lt.s32.totalorder %v1440, 4
        %v1463 = vsel %vm1459, %v1443, %v1446
        %v1464 = vsel %vm1462, %v1452, 2102212464
        %v1465 = vsel %vm1461, %v1449, %v1464
        %v1466 = vsel %vm1460, %v1463, %v1465
        %v1467 = vsel %vm1459, %v1446, %v1449
        %v1468 = vsel %vm1462, %v1455, 920167782
        %v1469 = vsel %vm1461, %v1452, %v1468
        %v1470 = vsel %vm1460, %v1467, %v1469
        %v1471 = vsel %vm1459, %v1449, %v1452
        %v1472 = vsel %vm1462, %v1458, 1326507024
        %v1473 = vsel %vm1461, %v1455, %v1472
        %v1474 = vsel %vm1460, %v1471, %v1473
        %v1475 = vshll.u32 %v1435, 8
        %v1476 = vmul.u32.u64.compose %v1475, %v1474
        %v1477 = vextract.low.u32 %v1476
        %v1478 = vextract.high.u32 %v1476
        %v1479 = vmul.u32.u64.compose %v1475, %v1470
        %v1480 = vextract.low.u32 %v1479
        %v1481 = vextract.high.u32 %v1479
        %v1482 = vmul.u32 %v1475, %v1466
        %v1483 = vadd.s32 %v1478, %v1480
        %vm1484 = vc.u32 %v1478, %v1480
        %v1485 = vadd.s32 %v1481, 1
        %v1486 = vsel %vm1484, %v1485, %v1481
        %v1487 = vadd.s32 %v1482, %v1486
        %v1488 = vadd.s32 %v1487, 536870912
        %v1489 = vshrl.u32 %v1488, 30
        %v1490 = vshll.u32 %v1489, 30
        %v1491 = vsub.s32 %v1487, %v1490
        %vm1492 = vcmp.lt.s32.totalorder %v1491, 0
        %v1493 = vsub.s32 0, %v1491
        %v1494 = vsel %vm1492, %v1493, %v1491
        %v1495 = vclz %v1494
        %v1496 = vsub.s32 %v1495, 2
        %vm1497 = vcmp.gt.s32.totalorder 0, %v1496
        %v1498 = vsel %vm1497, 0, %v1496
        %v1499 = vsub.s32 32, %v1498
        %v1500 = vshll.u32 %v1491, %v1498
        %v1501 = vshrl.u32 %v1483, %v1499
        %v1502 = vor.u32 %v1500, %v1501
        %v1503 = vsub.s32 4294967266, %v1498
        %v1504 = vadd.s32 %v1503, 127
        %v1505 = vshll.u32 %v1504, 23
        %v1506 = vor.u32 4788187, %v1505
        %v1507 = vand.u32 2147483647, %v1506
        %v1509 = vcvt.s32.f32 %v1502
        %v1510 = vmul.f32 %v1509, %v1507
        %v1511 = vxor.u32 %v1510, 2147483648
        %v1512 = vsel %vm1429, %v1511, %v1510
        %v1513 = vsub.s32 4, %v1489
        %v1514 = vsel %vm1429, %v1513, %v1489
        %v1515 = vsel %vm1428, %v674, %v1512
        %v1516 = vsel %vm1428, 0, %v1514
        %v1517 = vcosq.f32.pop %v1515
        %v1518 = vsinq.f32.pop %v1515
        %vm1519 = vweird.f32 %v674
        %v1520 = vadd.s32 %v1516, 3
        %v1521 = vand.u32 %v1520, 3
        %vm1522 = vcmp.lt.s32.totalorder %v1521, 2
        %vm1523 = vcmp.eq.s32.totalorder %v1521, 0
        %v1524 = vxor.u32 %v1518, 2147483648
        %v1525 = vsel %vm1523, %v1517, %v1524
        %vm1526 = vcmp.eq.s32.totalorder %v1521, 2
        %v1527 = vxor.u32 %v1517, 2147483648
        %v1528 = vsel %vm1526, %v1527, %v1518
        %v1529 = vsel %vm1522, %v1525, %v1528
        %v1530 = vsel %vm1519, nan, %v1529
        %v1531 = vand.u32 2147483647, %v675
        %vm1532 = vcmp.le.f32.partialorder %v1531, 0.7853982
        %vm1533 = vcmp.lt.s32.totalorder %v675, 0
        %v1534 = vand.u32 %v675, 2139095040
        %v1535 = vshrl.u32 %v1534, 23
        %v1536 = vsub.s32 %v1535, 127
        %v1537 = vand.u32 2147483647, %v675
        %v1538 = vand.u32 %v1537, 8388607
        %v1539 = vor.u32 %v1538, 8388608
        %v1540 = vsub.s32 0, %v1539
        %v1541 = vadd.s32 %v1536, 1
        %vm1542 = vcmp.gt.s32.totalorder %v1541, 0
        %v1543 = vsel %vm1542, %v1541, 0
        %v1544 = vshrl.u32 %v1543, 5
        %v1545 = vand.u32 %v1543, 31
        %v1546 = vsub.s32 32, %v1545
        %v1547 = vshrl.u32 683565275, %v1546
        %v1548 = vshll.u32 683565275, %v1545
        %v1549 = vshrl.u32 2475754826, %v1546
        %v1550 = vor.u32 %v1548, %v1549
        %v1551 = vshll.u32 2475754826, %v1545
        %v1552 = vshrl.u32 2131351028, %v1546
        %v1553 = vor.u32 %v1551, %v1552
        %v1554 = vshll.u32 2131351028, %v1545
        %v1555 = vshrl.u32 2102212464, %v1546
        %v1556 = vor.u32 %v1554, %v1555
        %v1557 = vshll.u32 2102212464, %v1545
        %v1558 = vshrl.u32 920167782, %v1546
        %v1559 = vor.u32 %v1557, %v1558
        %v1560 = vshll.u32 920167782, %v1545
        %v1561 = vshrl.u32 1326507024, %v1546
        %v1562 = vor.u32 %v1560, %v1561
        %vm1563 = vcmp.lt.s32.totalorder %v1544, 1
        %vm1564 = vcmp.lt.s32.totalorder %v1544, 2
        %vm1565 = vcmp.lt.s32.totalorder %v1544, 3
        %vm1566 = vcmp.lt.s32.totalorder %v1544, 4
        %v1567 = vsel %vm1563, %v1547, %v1550
        %v1568 = vsel %vm1566, %v1556, 2102212464
        %v1569 = vsel %vm1565, %v1553, %v1568
        %v1570 = vsel %vm1564, %v1567, %v1569
        %v1571 = vsel %vm1563, %v1550, %v1553
        %v1572 = vsel %vm1566, %v1559, 920167782
        %v1573 = vsel %vm1565, %v1556, %v1572
        %v1574 = vsel %vm1564, %v1571, %v1573
        %v1575 = vsel %vm1563, %v1553, %v1556
        %v1576 = vsel %vm1566, %v1562, 1326507024
        %v1577 = vsel %vm1565, %v1559, %v1576
        %v1578 = vsel %vm1564, %v1575, %v1577
        %v1579 = vshll.u32 %v1539, 8
        %v1580 = vmul.u32.u64.compose %v1579, %v1578
        %v1581 = vextract.low.u32 %v1580
        %v1582 = vextract.high.u32 %v1580
        %v1583 = vmul.u32.u64.compose %v1579, %v1574
        %v1584 = vextract.low.u32 %v1583
        %v1585 = vextract.high.u32 %v1583
        %v1586 = vmul.u32 %v1579, %v1570
        %v1587 = vadd.s32 %v1582, %v1584
        %vm1588 = vc.u32 %v1582, %v1584
        %v1589 = vadd.s32 %v1585, 1
        %v1590 = vsel %vm1588, %v1589, %v1585
        %v1591 = vadd.s32 %v1586, %v1590
        %v1592 = vadd.s32 %v1591, 536870912
        %v1593 = vshrl.u32 %v1592, 30
        %v1594 = vshll.u32 %v1593, 30
        %v1595 = vsub.s32 %v1591, %v1594
        %vm1596 = vcmp.lt.s32.totalorder %v1595, 0
        %v1597 = vsub.s32 0, %v1595
        %v1598 = vsel %vm1596, %v1597, %v1595
        %v1599 = vclz %v1598
        %v1600 = vsub.s32 %v1599, 2
        %vm1601 = vcmp.gt.s32.totalorder 0, %v1600
        %v1602 = vsel %vm1601, 0, %v1600
        %v1603 = vsub.s32 32, %v1602
        %v1604 = vshll.u32 %v1595, %v1602
        %v1605 = vshrl.u32 %v1587, %v1603
        %v1606 = vor.u32 %v1604, %v1605
        %v1607 = vsub.s32 4294967266, %v1602
        %v1608 = vadd.s32 %v1607, 127
        %v1609 = vshll.u32 %v1608, 23
        %v1610 = vor.u32 4788187, %v1609
        %v1611 = vand.u32 2147483647, %v1610
        %v1613 = vcvt.s32.f32 %v1606
        %v1614 = vmul.f32 %v1613, %v1611
        %v1615 = vxor.u32 %v1614, 2147483648
        %v1616 = vsel %vm1533, %v1615, %v1614
        %v1617 = vsub.s32 4, %v1593
        %v1618 = vsel %vm1533, %v1617, %v1593
        %v1619 = vsel %vm1532, %v675, %v1616
        %v1620 = vsel %vm1532, 0, %v1618
        %v1621 = vcosq.f32.pop %v1619
        %v1622 = vsinq.f32.pop %v1619
        %vm1623 = vweird.f32 %v675
        %v1624 = vadd.s32 %v1620, 3
        %v1625 = vand.u32 %v1624, 3
        %vm1626 = vcmp.lt.s32.totalorder %v1625, 2
        %vm1627 = vcmp.eq.s32.totalorder %v1625, 0
        %v1628 = vxor.u32 %v1622, 2147483648
        %v1629 = vsel %vm1627, %v1621, %v1628
        %vm1630 = vcmp.eq.s32.totalorder %v1625, 2
        %v1631 = vxor.u32 %v1621, 2147483648
        %v1632 = vsel %vm1630, %v1631, %v1622
        %v1633 = vsel %vm1626, %v1629, %v1632
        %v1634 = vsel %vm1623, nan, %v1633
        %v1635 = vand.u32 2147483647, %v676
        %vm1636 = vcmp.le.f32.partialorder %v1635, 0.7853982
        %vm1637 = vcmp.lt.s32.totalorder %v676, 0
        %v1638 = vand.u32 %v676, 2139095040
        %v1639 = vshrl.u32 %v1638, 23
        %v1640 = vsub.s32 %v1639, 127
        %v1641 = vand.u32 2147483647, %v676
        %v1642 = vand.u32 %v1641, 8388607
        %v1643 = vor.u32 %v1642, 8388608
        %v1644 = vsub.s32 0, %v1643
        %v1645 = vadd.s32 %v1640, 1
        %vm1646 = vcmp.gt.s32.totalorder %v1645, 0
        %v1647 = vsel %vm1646, %v1645, 0
        %v1648 = vshrl.u32 %v1647, 5
        %v1649 = vand.u32 %v1647, 31
        %v1650 = vsub.s32 32, %v1649
        %v1651 = vshrl.u32 683565275, %v1650
        %v1652 = vshll.u32 683565275, %v1649
        %v1653 = vshrl.u32 2475754826, %v1650
        %v1654 = vor.u32 %v1652, %v1653
        %v1655 = vshll.u32 2475754826, %v1649
        %v1656 = vshrl.u32 2131351028, %v1650
        %v1657 = vor.u32 %v1655, %v1656
        %v1658 = vshll.u32 2131351028, %v1649
        %v1659 = vshrl.u32 2102212464, %v1650
        %v1660 = vor.u32 %v1658, %v1659
        %v1661 = vshll.u32 2102212464, %v1649
        %v1662 = vshrl.u32 920167782, %v1650
        %v1663 = vor.u32 %v1661, %v1662
        %v1664 = vshll.u32 920167782, %v1649
        %v1665 = vshrl.u32 1326507024, %v1650
        %v1666 = vor.u32 %v1664, %v1665
        %vm1667 = vcmp.lt.s32.totalorder %v1648, 1
        %vm1668 = vcmp.lt.s32.totalorder %v1648, 2
        %vm1669 = vcmp.lt.s32.totalorder %v1648, 3
        %vm1670 = vcmp.lt.s32.totalorder %v1648, 4
        %v1671 = vsel %vm1667, %v1651, %v1654
        %v1672 = vsel %vm1670, %v1660, 2102212464
        %v1673 = vsel %vm1669, %v1657, %v1672
        %v1674 = vsel %vm1668, %v1671, %v1673
        %v1675 = vsel %vm1667, %v1654, %v1657
        %v1676 = vsel %vm1670, %v1663, 920167782
        %v1677 = vsel %vm1669, %v1660, %v1676
        %v1678 = vsel %vm1668, %v1675, %v1677
        %v1679 = vsel %vm1667, %v1657, %v1660
        %v1680 = vsel %vm1670, %v1666, 1326507024
        %v1681 = vsel %vm1669, %v1663, %v1680
        %v1682 = vsel %vm1668, %v1679, %v1681
        %v1683 = vshll.u32 %v1643, 8
        %v1684 = vmul.u32.u64.compose %v1683, %v1682
        %v1685 = vextract.low.u32 %v1684
        %v1686 = vextract.high.u32 %v1684
        %v1687 = vmul.u32.u64.compose %v1683, %v1678
        %v1688 = vextract.low.u32 %v1687
        %v1689 = vextract.high.u32 %v1687
        %v1690 = vmul.u32 %v1683, %v1674
        %v1691 = vadd.s32 %v1686, %v1688
        %vm1692 = vc.u32 %v1686, %v1688
        %v1693 = vadd.s32 %v1689, 1
        %v1694 = vsel %vm1692, %v1693, %v1689
        %v1695 = vadd.s32 %v1690, %v1694
        %v1696 = vadd.s32 %v1695, 536870912
        %v1697 = vshrl.u32 %v1696, 30
        %v1698 = vshll.u32 %v1697, 30
        %v1699 = vsub.s32 %v1695, %v1698
        %vm1700 = vcmp.lt.s32.totalorder %v1699, 0
        %v1701 = vsub.s32 0, %v1699
        %v1702 = vsel %vm1700, %v1701, %v1699
        %v1703 = vclz %v1702
        %v1704 = vsub.s32 %v1703, 2
        %vm1705 = vcmp.gt.s32.totalorder 0, %v1704
        %v1706 = vsel %vm1705, 0, %v1704
        %v1707 = vsub.s32 32, %v1706
        %v1708 = vshll.u32 %v1699, %v1706
        %v1709 = vshrl.u32 %v1691, %v1707
        %v1710 = vor.u32 %v1708, %v1709
        %v1711 = vsub.s32 4294967266, %v1706
        %v1712 = vadd.s32 %v1711, 127
        %v1713 = vshll.u32 %v1712, 23
        %v1714 = vor.u32 4788187, %v1713
        %v1715 = vand.u32 2147483647, %v1714
        %v1717 = vcvt.s32.f32 %v1710
        %v1718 = vmul.f32 %v1717, %v1715
        %v1719 = vxor.u32 %v1718, 2147483648
        %v1720 = vsel %vm1637, %v1719, %v1718
        %v1721 = vsub.s32 4, %v1697
        %v1722 = vsel %vm1637, %v1721, %v1697
        %v1723 = vsel %vm1636, %v676, %v1720
        %v1724 = vsel %vm1636, 0, %v1722
        %v1725 = vcosq.f32.pop %v1723
        %v1726 = vsinq.f32.pop %v1723
        %vm1727 = vweird.f32 %v676
        %v1728 = vadd.s32 %v1724, 3
        %v1729 = vand.u32 %v1728, 3
        %vm1730 = vcmp.lt.s32.totalorder %v1729, 2
        %vm1731 = vcmp.eq.s32.totalorder %v1729, 0
        %v1732 = vxor.u32 %v1726, 2147483648
        %v1733 = vsel %vm1731, %v1725, %v1732
        %vm1734 = vcmp.eq.s32.totalorder %v1729, 2
        %v1735 = vxor.u32 %v1725, 2147483648
        %v1736 = vsel %vm1734, %v1735, %v1726
        %v1737 = vsel %vm1730, %v1733, %v1736
        %v1738 = vsel %vm1727, nan, %v1737
        %v1739 = vand.u32 2147483647, %v677
        %vm1740 = vcmp.le.f32.partialorder %v1739, 0.7853982
        %vm1741 = vcmp.lt.s32.totalorder %v677, 0
        %v1742 = vand.u32 %v677, 2139095040
        %v1743 = vshrl.u32 %v1742, 23
        %v1744 = vsub.s32 %v1743, 127
        %v1745 = vand.u32 2147483647, %v677
        %v1746 = vand.u32 %v1745, 8388607
        %v1747 = vor.u32 %v1746, 8388608
        %v1748 = vsub.s32 0, %v1747
        %v1749 = vadd.s32 %v1744, 1
        %vm1750 = vcmp.gt.s32.totalorder %v1749, 0
        %v1751 = vsel %vm1750, %v1749, 0
        %v1752 = vshrl.u32 %v1751, 5
        %v1753 = vand.u32 %v1751, 31
        %v1754 = vsub.s32 32, %v1753
        %v1755 = vshrl.u32 683565275, %v1754
        %v1756 = vshll.u32 683565275, %v1753
        %v1757 = vshrl.u32 2475754826, %v1754
        %v1758 = vor.u32 %v1756, %v1757
        %v1759 = vshll.u32 2475754826, %v1753
        %v1760 = vshrl.u32 2131351028, %v1754
        %v1761 = vor.u32 %v1759, %v1760
        %v1762 = vshll.u32 2131351028, %v1753
        %v1763 = vshrl.u32 2102212464, %v1754
        %v1764 = vor.u32 %v1762, %v1763
        %v1765 = vshll.u32 2102212464, %v1753
        %v1766 = vshrl.u32 920167782, %v1754
        %v1767 = vor.u32 %v1765, %v1766
        %v1768 = vshll.u32 920167782, %v1753
        %v1769 = vshrl.u32 1326507024, %v1754
        %v1770 = vor.u32 %v1768, %v1769
        %vm1771 = vcmp.lt.s32.totalorder %v1752, 1
        %vm1772 = vcmp.lt.s32.totalorder %v1752, 2
        %vm1773 = vcmp.lt.s32.totalorder %v1752, 3
        %vm1774 = vcmp.lt.s32.totalorder %v1752, 4
        %v1775 = vsel %vm1771, %v1755, %v1758
        %v1776 = vsel %vm1774, %v1764, 2102212464
        %v1777 = vsel %vm1773, %v1761, %v1776
        %v1778 = vsel %vm1772, %v1775, %v1777
        %v1779 = vsel %vm1771, %v1758, %v1761
        %v1780 = vsel %vm1774, %v1767, 920167782
        %v1781 = vsel %vm1773, %v1764, %v1780
        %v1782 = vsel %vm1772, %v1779, %v1781
        %v1783 = vsel %vm1771, %v1761, %v1764
        %v1784 = vsel %vm1774, %v1770, 1326507024
        %v1785 = vsel %vm1773, %v1767, %v1784
        %v1786 = vsel %vm1772, %v1783, %v1785
        %v1787 = vshll.u32 %v1747, 8
        %v1788 = vmul.u32.u64.compose %v1787, %v1786
        %v1789 = vextract.low.u32 %v1788
        %v1790 = vextract.high.u32 %v1788
        %v1791 = vmul.u32.u64.compose %v1787, %v1782
        %v1792 = vextract.low.u32 %v1791
        %v1793 = vextract.high.u32 %v1791
        %v1794 = vmul.u32 %v1787, %v1778
        %v1795 = vadd.s32 %v1790, %v1792
        %vm1796 = vc.u32 %v1790, %v1792
        %v1797 = vadd.s32 %v1793, 1
        %v1798 = vsel %vm1796, %v1797, %v1793
        %v1799 = vadd.s32 %v1794, %v1798
        %v1800 = vadd.s32 %v1799, 536870912
        %v1801 = vshrl.u32 %v1800, 30
        %v1802 = vshll.u32 %v1801, 30
        %v1803 = vsub.s32 %v1799, %v1802
        %vm1804 = vcmp.lt.s32.totalorder %v1803, 0
        %v1805 = vsub.s32 0, %v1803
        %v1806 = vsel %vm1804, %v1805, %v1803
        %v1807 = vclz %v1806
        %v1808 = vsub.s32 %v1807, 2
        %vm1809 = vcmp.gt.s32.totalorder 0, %v1808
        %v1810 = vsel %vm1809, 0, %v1808
        %v1811 = vsub.s32 32, %v1810
        %v1812 = vshll.u32 %v1803, %v1810
        %v1813 = vshrl.u32 %v1795, %v1811
        %v1814 = vor.u32 %v1812, %v1813
        %v1815 = vsub.s32 4294967266, %v1810
        %v1816 = vadd.s32 %v1815, 127
        %v1817 = vshll.u32 %v1816, 23
        %v1818 = vor.u32 4788187, %v1817
        %v1819 = vand.u32 2147483647, %v1818
        %v1821 = vcvt.s32.f32 %v1814
        %v1822 = vmul.f32 %v1821, %v1819
        %v1823 = vxor.u32 %v1822, 2147483648
        %v1824 = vsel %vm1741, %v1823, %v1822
        %v1825 = vsub.s32 4, %v1801
        %v1826 = vsel %vm1741, %v1825, %v1801
        %v1827 = vsel %vm1740, %v677, %v1824
        %v1828 = vsel %vm1740, 0, %v1826
        %v1829 = vcosq.f32.pop %v1827
        %v1830 = vsinq.f32.pop %v1827
        %vm1831 = vweird.f32 %v677
        %v1832 = vadd.s32 %v1828, 3
        %v1833 = vand.u32 %v1832, 3
        %vm1834 = vcmp.lt.s32.totalorder %v1833, 2
        %vm1835 = vcmp.eq.s32.totalorder %v1833, 0
        %v1836 = vxor.u32 %v1830, 2147483648
        %v1837 = vsel %vm1835, %v1829, %v1836
        %vm1838 = vcmp.eq.s32.totalorder %v1833, 2
        %v1839 = vxor.u32 %v1829, 2147483648
        %v1840 = vsel %vm1838, %v1839, %v1830
        %v1841 = vsel %vm1834, %v1837, %v1840
        %v1842 = vsel %vm1831, nan, %v1841
        %v1843 = vand.u32 2147483647, %v678
        %vm1844 = vcmp.le.f32.partialorder %v1843, 0.7853982
        %vm1845 = vcmp.lt.s32.totalorder %v678, 0
        %v1846 = vand.u32 %v678, 2139095040
        %v1847 = vshrl.u32 %v1846, 23
        %v1848 = vsub.s32 %v1847, 127
        %v1849 = vand.u32 2147483647, %v678
        %v1850 = vand.u32 %v1849, 8388607
        %v1851 = vor.u32 %v1850, 8388608
        %v1852 = vsub.s32 0, %v1851
        %v1853 = vadd.s32 %v1848, 1
        %vm1854 = vcmp.gt.s32.totalorder %v1853, 0
        %v1855 = vsel %vm1854, %v1853, 0
        %v1856 = vshrl.u32 %v1855, 5
        %v1857 = vand.u32 %v1855, 31
        %v1858 = vsub.s32 32, %v1857
        %v1859 = vshrl.u32 683565275, %v1858
        %v1860 = vshll.u32 683565275, %v1857
        %v1861 = vshrl.u32 2475754826, %v1858
        %v1862 = vor.u32 %v1860, %v1861
        %v1863 = vshll.u32 2475754826, %v1857
        %v1864 = vshrl.u32 2131351028, %v1858
        %v1865 = vor.u32 %v1863, %v1864
        %v1866 = vshll.u32 2131351028, %v1857
        %v1867 = vshrl.u32 2102212464, %v1858
        %v1868 = vor.u32 %v1866, %v1867
        %v1869 = vshll.u32 2102212464, %v1857
        %v1870 = vshrl.u32 920167782, %v1858
        %v1871 = vor.u32 %v1869, %v1870
        %v1872 = vshll.u32 920167782, %v1857
        %v1873 = vshrl.u32 1326507024, %v1858
        %v1874 = vor.u32 %v1872, %v1873
        %vm1875 = vcmp.lt.s32.totalorder %v1856, 1
        %vm1876 = vcmp.lt.s32.totalorder %v1856, 2
        %vm1877 = vcmp.lt.s32.totalorder %v1856, 3
        %vm1878 = vcmp.lt.s32.totalorder %v1856, 4
        %v1879 = vsel %vm1875, %v1859, %v1862
        %v1880 = vsel %vm1878, %v1868, 2102212464
        %v1881 = vsel %vm1877, %v1865, %v1880
        %v1882 = vsel %vm1876, %v1879, %v1881
        %v1883 = vsel %vm1875, %v1862, %v1865
        %v1884 = vsel %vm1878, %v1871, 920167782
        %v1885 = vsel %vm1877, %v1868, %v1884
        %v1886 = vsel %vm1876, %v1883, %v1885
        %v1887 = vsel %vm1875, %v1865, %v1868
        %v1888 = vsel %vm1878, %v1874, 1326507024
        %v1889 = vsel %vm1877, %v1871, %v1888
        %v1890 = vsel %vm1876, %v1887, %v1889
        %v1891 = vshll.u32 %v1851, 8
        %v1892 = vmul.u32.u64.compose %v1891, %v1890
        %v1893 = vextract.low.u32 %v1892
        %v1894 = vextract.high.u32 %v1892
        %v1895 = vmul.u32.u64.compose %v1891, %v1886
        %v1896 = vextract.low.u32 %v1895
        %v1897 = vextract.high.u32 %v1895
        %v1898 = vmul.u32 %v1891, %v1882
        %v1899 = vadd.s32 %v1894, %v1896
        %vm1900 = vc.u32 %v1894, %v1896
        %v1901 = vadd.s32 %v1897, 1
        %v1902 = vsel %vm1900, %v1901, %v1897
        %v1903 = vadd.s32 %v1898, %v1902
        %v1904 = vadd.s32 %v1903, 536870912
        %v1905 = vshrl.u32 %v1904, 30
        %v1906 = vshll.u32 %v1905, 30
        %v1907 = vsub.s32 %v1903, %v1906
        %vm1908 = vcmp.lt.s32.totalorder %v1907, 0
        %v1909 = vsub.s32 0, %v1907
        %v1910 = vsel %vm1908, %v1909, %v1907
        %v1911 = vclz %v1910
        %v1912 = vsub.s32 %v1911, 2
        %vm1913 = vcmp.gt.s32.totalorder 0, %v1912
        %v1914 = vsel %vm1913, 0, %v1912
        %v1915 = vsub.s32 32, %v1914
        %v1916 = vshll.u32 %v1907, %v1914
        %v1917 = vshrl.u32 %v1899, %v1915
        %v1918 = vor.u32 %v1916, %v1917
        %v1919 = vsub.s32 4294967266, %v1914
        %v1920 = vadd.s32 %v1919, 127
        %v1921 = vshll.u32 %v1920, 23
        %v1922 = vor.u32 4788187, %v1921
        %v1923 = vand.u32 2147483647, %v1922
        %v1925 = vcvt.s32.f32 %v1918
        %v1926 = vmul.f32 %v1925, %v1923
        %v1927 = vxor.u32 %v1926, 2147483648
        %v1928 = vsel %vm1845, %v1927, %v1926
        %v1929 = vsub.s32 4, %v1905
        %v1930 = vsel %vm1845, %v1929, %v1905
        %v1931 = vsel %vm1844, %v678, %v1928
        %v1932 = vsel %vm1844, 0, %v1930
        %v1933 = vcosq.f32.pop %v1931
        %v1934 = vsinq.f32.pop %v1931
        %vm1935 = vweird.f32 %v678
        %v1936 = vadd.s32 %v1932, 3
        %v1937 = vand.u32 %v1936, 3
        %vm1938 = vcmp.lt.s32.totalorder %v1937, 2
        %vm1939 = vcmp.eq.s32.totalorder %v1937, 0
        %v1940 = vxor.u32 %v1934, 2147483648
        %v1941 = vsel %vm1939, %v1933, %v1940
        %vm1942 = vcmp.eq.s32.totalorder %v1937, 2
        %v1943 = vxor.u32 %v1933, 2147483648
        %v1944 = vsel %vm1942, %v1943, %v1934
        %v1945 = vsel %vm1938, %v1941, %v1944
        %v1946 = vsel %vm1935, nan, %v1945
        %v1947 = vand.u32 2147483647, %v679
        %vm1948 = vcmp.le.f32.partialorder %v1947, 0.7853982
        %vm1949 = vcmp.lt.s32.totalorder %v679, 0
        %v1950 = vand.u32 %v679, 2139095040
        %v1951 = vshrl.u32 %v1950, 23
        %v1952 = vsub.s32 %v1951, 127
        %v1953 = vand.u32 2147483647, %v679
        %v1954 = vand.u32 %v1953, 8388607
        %v1955 = vor.u32 %v1954, 8388608
        %v1956 = vsub.s32 0, %v1955
        %v1957 = vadd.s32 %v1952, 1
        %vm1958 = vcmp.gt.s32.totalorder %v1957, 0
        %v1959 = vsel %vm1958, %v1957, 0
        %v1960 = vshrl.u32 %v1959, 5
        %v1961 = vand.u32 %v1959, 31
        %v1962 = vsub.s32 32, %v1961
        %v1963 = vshrl.u32 683565275, %v1962
        %v1964 = vshll.u32 683565275, %v1961
        %v1965 = vshrl.u32 2475754826, %v1962
        %v1966 = vor.u32 %v1964, %v1965
        %v1967 = vshll.u32 2475754826, %v1961
        %v1968 = vshrl.u32 2131351028, %v1962
        %v1969 = vor.u32 %v1967, %v1968
        %v1970 = vshll.u32 2131351028, %v1961
        %v1971 = vshrl.u32 2102212464, %v1962
        %v1972 = vor.u32 %v1970, %v1971
        %v1973 = vshll.u32 2102212464, %v1961
        %v1974 = vshrl.u32 920167782, %v1962
        %v1975 = vor.u32 %v1973, %v1974
        %v1976 = vshll.u32 920167782, %v1961
        %v1977 = vshrl.u32 1326507024, %v1962
        %v1978 = vor.u32 %v1976, %v1977
        %vm1979 = vcmp.lt.s32.totalorder %v1960, 1
        %vm1980 = vcmp.lt.s32.totalorder %v1960, 2
        %vm1981 = vcmp.lt.s32.totalorder %v1960, 3
        %vm1982 = vcmp.lt.s32.totalorder %v1960, 4
        %v1983 = vsel %vm1979, %v1963, %v1966
        %v1984 = vsel %vm1982, %v1972, 2102212464
        %v1985 = vsel %vm1981, %v1969, %v1984
        %v1986 = vsel %vm1980, %v1983, %v1985
        %v1987 = vsel %vm1979, %v1966, %v1969
        %v1988 = vsel %vm1982, %v1975, 920167782
        %v1989 = vsel %vm1981, %v1972, %v1988
        %v1990 = vsel %vm1980, %v1987, %v1989
        %v1991 = vsel %vm1979, %v1969, %v1972
        %v1992 = vsel %vm1982, %v1978, 1326507024
        %v1993 = vsel %vm1981, %v1975, %v1992
        %v1994 = vsel %vm1980, %v1991, %v1993
        %v1995 = vshll.u32 %v1955, 8
        %v1996 = vmul.u32.u64.compose %v1995, %v1994
        %v1997 = vextract.low.u32 %v1996
        %v1998 = vextract.high.u32 %v1996
        %v1999 = vmul.u32.u64.compose %v1995, %v1990
        %v2000 = vextract.low.u32 %v1999
        %v2001 = vextract.high.u32 %v1999
        %v2002 = vmul.u32 %v1995, %v1986
        %v2003 = vadd.s32 %v1998, %v2000
        %vm2004 = vc.u32 %v1998, %v2000
        %v2005 = vadd.s32 %v2001, 1
        %v2006 = vsel %vm2004, %v2005, %v2001
        %v2007 = vadd.s32 %v2002, %v2006
        %v2008 = vadd.s32 %v2007, 536870912
        %v2009 = vshrl.u32 %v2008, 30
        %v2010 = vshll.u32 %v2009, 30
        %v2011 = vsub.s32 %v2007, %v2010
        %vm2012 = vcmp.lt.s32.totalorder %v2011, 0
        %v2013 = vsub.s32 0, %v2011
        %v2014 = vsel %vm2012, %v2013, %v2011
        %v2015 = vclz %v2014
        %v2016 = vsub.s32 %v2015, 2
        %vm2017 = vcmp.gt.s32.totalorder 0, %v2016
        %v2018 = vsel %vm2017, 0, %v2016
        %v2019 = vsub.s32 32, %v2018
        %v2020 = vshll.u32 %v2011, %v2018
        %v2021 = vshrl.u32 %v2003, %v2019
        %v2022 = vor.u32 %v2020, %v2021
        %v2023 = vsub.s32 4294967266, %v2018
        %v2024 = vadd.s32 %v2023, 127
        %v2025 = vshll.u32 %v2024, 23
        %v2026 = vor.u32 4788187, %v2025
        %v2027 = vand.u32 2147483647, %v2026
        %v2029 = vcvt.s32.f32 %v2022
        %v2030 = vmul.f32 %v2029, %v2027
        %v2031 = vxor.u32 %v2030, 2147483648
        %v2032 = vsel %vm1949, %v2031, %v2030
        %v2033 = vsub.s32 4, %v2009
        %v2034 = vsel %vm1949, %v2033, %v2009
        %v2035 = vsel %vm1948, %v679, %v2032
        %v2036 = vsel %vm1948, 0, %v2034
        %v2037 = vcosq.f32.pop %v2035
        %v2038 = vsinq.f32.pop %v2035
        %vm2039 = vweird.f32 %v679
        %v2040 = vadd.s32 %v2036, 3
        %v2041 = vand.u32 %v2040, 3
        %vm2042 = vcmp.lt.s32.totalorder %v2041, 2
        %vm2043 = vcmp.eq.s32.totalorder %v2041, 0
        %v2044 = vxor.u32 %v2038, 2147483648
        %v2045 = vsel %vm2043, %v2037, %v2044
        %vm2046 = vcmp.eq.s32.totalorder %v2041, 2
        %v2047 = vxor.u32 %v2037, 2147483648
        %v2048 = vsel %vm2046, %v2047, %v2038
        %v2049 = vsel %vm2042, %v2045, %v2048
        %v2050 = vsel %vm2039, nan, %v2049
        %v2051 = vand.u32 2147483647, %v680
        %vm2052 = vcmp.le.f32.partialorder %v2051, 0.7853982
        %vm2053 = vcmp.lt.s32.totalorder %v680, 0
        %v2054 = vand.u32 %v680, 2139095040
        %v2055 = vshrl.u32 %v2054, 23
        %v2056 = vsub.s32 %v2055, 127
        %v2057 = vand.u32 2147483647, %v680
        %v2058 = vand.u32 %v2057, 8388607
        %v2059 = vor.u32 %v2058, 8388608
        %v2060 = vsub.s32 0, %v2059
        %v2061 = vadd.s32 %v2056, 1
        %vm2062 = vcmp.gt.s32.totalorder %v2061, 0
        %v2063 = vsel %vm2062, %v2061, 0
        %v2064 = vshrl.u32 %v2063, 5
        %v2065 = vand.u32 %v2063, 31
        %v2066 = vsub.s32 32, %v2065
        %v2067 = vshrl.u32 683565275, %v2066
        %v2068 = vshll.u32 683565275, %v2065
        %v2069 = vshrl.u32 2475754826, %v2066
        %v2070 = vor.u32 %v2068, %v2069
        %v2071 = vshll.u32 2475754826, %v2065
        %v2072 = vshrl.u32 2131351028, %v2066
        %v2073 = vor.u32 %v2071, %v2072
        %v2074 = vshll.u32 2131351028, %v2065
        %v2075 = vshrl.u32 2102212464, %v2066
        %v2076 = vor.u32 %v2074, %v2075
        %v2077 = vshll.u32 2102212464, %v2065
        %v2078 = vshrl.u32 920167782, %v2066
        %v2079 = vor.u32 %v2077, %v2078
        %v2080 = vshll.u32 920167782, %v2065
        %v2081 = vshrl.u32 1326507024, %v2066
        %v2082 = vor.u32 %v2080, %v2081
        %vm2083 = vcmp.lt.s32.totalorder %v2064, 1
        %vm2084 = vcmp.lt.s32.totalorder %v2064, 2
        %vm2085 = vcmp.lt.s32.totalorder %v2064, 3
        %vm2086 = vcmp.lt.s32.totalorder %v2064, 4
        %v2087 = vsel %vm2083, %v2067, %v2070
        %v2088 = vsel %vm2086, %v2076, 2102212464
        %v2089 = vsel %vm2085, %v2073, %v2088
        %v2090 = vsel %vm2084, %v2087, %v2089
        %v2091 = vsel %vm2083, %v2070, %v2073
        %v2092 = vsel %vm2086, %v2079, 920167782
        %v2093 = vsel %vm2085, %v2076, %v2092
        %v2094 = vsel %vm2084, %v2091, %v2093
        %v2095 = vsel %vm2083, %v2073, %v2076
        %v2096 = vsel %vm2086, %v2082, 1326507024
        %v2097 = vsel %vm2085, %v2079, %v2096
        %v2098 = vsel %vm2084, %v2095, %v2097
        %v2099 = vshll.u32 %v2059, 8
        %v2100 = vmul.u32.u64.compose %v2099, %v2098
        %v2101 = vextract.low.u32 %v2100
        %v2102 = vextract.high.u32 %v2100
        %v2103 = vmul.u32.u64.compose %v2099, %v2094
        %v2104 = vextract.low.u32 %v2103
        %v2105 = vextract.high.u32 %v2103
        %v2106 = vmul.u32 %v2099, %v2090
        %v2107 = vadd.s32 %v2102, %v2104
        %vm2108 = vc.u32 %v2102, %v2104
        %v2109 = vadd.s32 %v2105, 1
        %v2110 = vsel %vm2108, %v2109, %v2105
        %v2111 = vadd.s32 %v2106, %v2110
        %v2112 = vadd.s32 %v2111, 536870912
        %v2113 = vshrl.u32 %v2112, 30
        %v2114 = vshll.u32 %v2113, 30
        %v2115 = vsub.s32 %v2111, %v2114
        %vm2116 = vcmp.lt.s32.totalorder %v2115, 0
        %v2117 = vsub.s32 0, %v2115
        %v2118 = vsel %vm2116, %v2117, %v2115
        %v2119 = vclz %v2118
        %v2120 = vsub.s32 %v2119, 2
        %vm2121 = vcmp.gt.s32.totalorder 0, %v2120
        %v2122 = vsel %vm2121, 0, %v2120
        %v2123 = vsub.s32 32, %v2122
        %v2124 = vshll.u32 %v2115, %v2122
        %v2125 = vshrl.u32 %v2107, %v2123
        %v2126 = vor.u32 %v2124, %v2125
        %v2127 = vsub.s32 4294967266, %v2122
        %v2128 = vadd.s32 %v2127, 127
        %v2129 = vshll.u32 %v2128, 23
        %v2130 = vor.u32 4788187, %v2129
        %v2131 = vand.u32 2147483647, %v2130
        %v2133 = vcvt.s32.f32 %v2126
        %v2134 = vmul.f32 %v2133, %v2131
        %v2135 = vxor.u32 %v2134, 2147483648
        %v2136 = vsel %vm2053, %v2135, %v2134
        %v2137 = vsub.s32 4, %v2113
        %v2138 = vsel %vm2053, %v2137, %v2113
        %v2139 = vsel %vm2052, %v680, %v2136
        %v2140 = vsel %vm2052, 0, %v2138
        %v2141 = vcosq.f32.pop %v2139
        %v2142 = vsinq.f32.pop %v2139
        %vm2143 = vweird.f32 %v680
        %v2144 = vadd.s32 %v2140, 3
        %v2145 = vand.u32 %v2144, 3
        %vm2146 = vcmp.lt.s32.totalorder %v2145, 2
        %vm2147 = vcmp.eq.s32.totalorder %v2145, 0
        %v2148 = vxor.u32 %v2142, 2147483648
        %v2149 = vsel %vm2147, %v2141, %v2148
        %vm2150 = vcmp.eq.s32.totalorder %v2145, 2
        %v2151 = vxor.u32 %v2141, 2147483648
        %v2152 = vsel %vm2150, %v2151, %v2142
        %v2153 = vsel %vm2146, %v2149, %v2152
        %v2154 = vsel %vm2143, nan, %v2153
        %v2155 = vand.u32 2147483647, %v681
        %vm2156 = vcmp.le.f32.partialorder %v2155, 0.7853982
        %vm2157 = vcmp.lt.s32.totalorder %v681, 0
        %v2158 = vand.u32 %v681, 2139095040
        %v2159 = vshrl.u32 %v2158, 23
        %v2160 = vsub.s32 %v2159, 127
        %v2161 = vand.u32 2147483647, %v681
        %v2162 = vand.u32 %v2161, 8388607
        %v2163 = vor.u32 %v2162, 8388608
        %v2164 = vsub.s32 0, %v2163
        %v2165 = vadd.s32 %v2160, 1
        %vm2166 = vcmp.gt.s32.totalorder %v2165, 0
        %v2167 = vsel %vm2166, %v2165, 0
        %v2168 = vshrl.u32 %v2167, 5
        %v2169 = vand.u32 %v2167, 31
        %v2170 = vsub.s32 32, %v2169
        %v2171 = vshrl.u32 683565275, %v2170
        %v2172 = vshll.u32 683565275, %v2169
        %v2173 = vshrl.u32 2475754826, %v2170
        %v2174 = vor.u32 %v2172, %v2173
        %v2175 = vshll.u32 2475754826, %v2169
        %v2176 = vshrl.u32 2131351028, %v2170
        %v2177 = vor.u32 %v2175, %v2176
        %v2178 = vshll.u32 2131351028, %v2169
        %v2179 = vshrl.u32 2102212464, %v2170
        %v2180 = vor.u32 %v2178, %v2179
        %v2181 = vshll.u32 2102212464, %v2169
        %v2182 = vshrl.u32 920167782, %v2170
        %v2183 = vor.u32 %v2181, %v2182
        %v2184 = vshll.u32 920167782, %v2169
        %v2185 = vshrl.u32 1326507024, %v2170
        %v2186 = vor.u32 %v2184, %v2185
        %vm2187 = vcmp.lt.s32.totalorder %v2168, 1
        %vm2188 = vcmp.lt.s32.totalorder %v2168, 2
        %vm2189 = vcmp.lt.s32.totalorder %v2168, 3
        %vm2190 = vcmp.lt.s32.totalorder %v2168, 4
        %v2191 = vsel %vm2187, %v2171, %v2174
        %v2192 = vsel %vm2190, %v2180, 2102212464
        %v2193 = vsel %vm2189, %v2177, %v2192
        %v2194 = vsel %vm2188, %v2191, %v2193
        %v2195 = vsel %vm2187, %v2174, %v2177
        %v2196 = vsel %vm2190, %v2183, 920167782
        %v2197 = vsel %vm2189, %v2180, %v2196
        %v2198 = vsel %vm2188, %v2195, %v2197
        %v2199 = vsel %vm2187, %v2177, %v2180
        %v2200 = vsel %vm2190, %v2186, 1326507024
        %v2201 = vsel %vm2189, %v2183, %v2200
        %v2202 = vsel %vm2188, %v2199, %v2201
        %v2203 = vshll.u32 %v2163, 8
        %v2204 = vmul.u32.u64.compose %v2203, %v2202
        %v2205 = vextract.low.u32 %v2204
        %v2206 = vextract.high.u32 %v2204
        %v2207 = vmul.u32.u64.compose %v2203, %v2198
        %v2208 = vextract.low.u32 %v2207
        %v2209 = vextract.high.u32 %v2207
        %v2210 = vmul.u32 %v2203, %v2194
        %v2211 = vadd.s32 %v2206, %v2208
        %vm2212 = vc.u32 %v2206, %v2208
        %v2213 = vadd.s32 %v2209, 1
        %v2214 = vsel %vm2212, %v2213, %v2209
        %v2215 = vadd.s32 %v2210, %v2214
        %v2216 = vadd.s32 %v2215, 536870912
        %v2217 = vshrl.u32 %v2216, 30
        %v2218 = vshll.u32 %v2217, 30
        %v2219 = vsub.s32 %v2215, %v2218
        %vm2220 = vcmp.lt.s32.totalorder %v2219, 0
        %v2221 = vsub.s32 0, %v2219
        %v2222 = vsel %vm2220, %v2221, %v2219
        %v2223 = vclz %v2222
        %v2224 = vsub.s32 %v2223, 2
        %vm2225 = vcmp.gt.s32.totalorder 0, %v2224
        %v2226 = vsel %vm2225, 0, %v2224
        %v2227 = vsub.s32 32, %v2226
        %v2228 = vshll.u32 %v2219, %v2226
        %v2229 = vshrl.u32 %v2211, %v2227
        %v2230 = vor.u32 %v2228, %v2229
        %v2231 = vsub.s32 4294967266, %v2226
        %v2232 = vadd.s32 %v2231, 127
        %v2233 = vshll.u32 %v2232, 23
        %v2234 = vor.u32 4788187, %v2233
        %v2235 = vand.u32 2147483647, %v2234
        %v2237 = vcvt.s32.f32 %v2230
        %v2238 = vmul.f32 %v2237, %v2235
        %v2239 = vxor.u32 %v2238, 2147483648
        %v2240 = vsel %vm2157, %v2239, %v2238
        %v2241 = vsub.s32 4, %v2217
        %v2242 = vsel %vm2157, %v2241, %v2217
        %v2243 = vsel %vm2156, %v681, %v2240
        %v2244 = vsel %vm2156, 0, %v2242
        %v2245 = vcosq.f32.pop %v2243
        %v2246 = vsinq.f32.pop %v2243
        %vm2247 = vweird.f32 %v681
        %v2248 = vadd.s32 %v2244, 3
        %v2249 = vand.u32 %v2248, 3
        %vm2250 = vcmp.lt.s32.totalorder %v2249, 2
        %vm2251 = vcmp.eq.s32.totalorder %v2249, 0
        %v2252 = vxor.u32 %v2246, 2147483648
        %v2253 = vsel %vm2251, %v2245, %v2252
        %vm2254 = vcmp.eq.s32.totalorder %v2249, 2
        %v2255 = vxor.u32 %v2245, 2147483648
        %v2256 = vsel %vm2254, %v2255, %v2246
        %v2257 = vsel %vm2250, %v2253, %v2256
        %v2258 = vsel %vm2247, nan, %v2257
        %v2259 = vand.u32 2147483647, %v682
        %vm2260 = vcmp.le.f32.partialorder %v2259, 0.7853982
        %vm2261 = vcmp.lt.s32.totalorder %v682, 0
        %v2262 = vand.u32 %v682, 2139095040
        %v2263 = vshrl.u32 %v2262, 23
        %v2264 = vsub.s32 %v2263, 127
        %v2265 = vand.u32 2147483647, %v682
        %v2266 = vand.u32 %v2265, 8388607
        %v2267 = vor.u32 %v2266, 8388608
        %v2268 = vsub.s32 0, %v2267
        %v2269 = vadd.s32 %v2264, 1
        %vm2270 = vcmp.gt.s32.totalorder %v2269, 0
        %v2271 = vsel %vm2270, %v2269, 0
        %v2272 = vshrl.u32 %v2271, 5
        %v2273 = vand.u32 %v2271, 31
        %v2274 = vsub.s32 32, %v2273
        %v2275 = vshrl.u32 683565275, %v2274
        %v2276 = vshll.u32 683565275, %v2273
        %v2277 = vshrl.u32 2475754826, %v2274
        %v2278 = vor.u32 %v2276, %v2277
        %v2279 = vshll.u32 2475754826, %v2273
        %v2280 = vshrl.u32 2131351028, %v2274
        %v2281 = vor.u32 %v2279, %v2280
        %v2282 = vshll.u32 2131351028, %v2273
        %v2283 = vshrl.u32 2102212464, %v2274
        %v2284 = vor.u32 %v2282, %v2283
        %v2285 = vshll.u32 2102212464, %v2273
        %v2286 = vshrl.u32 920167782, %v2274
        %v2287 = vor.u32 %v2285, %v2286
        %v2288 = vshll.u32 920167782, %v2273
        %v2289 = vshrl.u32 1326507024, %v2274
        %v2290 = vor.u32 %v2288, %v2289
        %vm2291 = vcmp.lt.s32.totalorder %v2272, 1
        %vm2292 = vcmp.lt.s32.totalorder %v2272, 2
        %vm2293 = vcmp.lt.s32.totalorder %v2272, 3
        %vm2294 = vcmp.lt.s32.totalorder %v2272, 4
        %v2295 = vsel %vm2291, %v2275, %v2278
        %v2296 = vsel %vm2294, %v2284, 2102212464
        %v2297 = vsel %vm2293, %v2281, %v2296
        %v2298 = vsel %vm2292, %v2295, %v2297
        %v2299 = vsel %vm2291, %v2278, %v2281
        %v2300 = vsel %vm2294, %v2287, 920167782
        %v2301 = vsel %vm2293, %v2284, %v2300
        %v2302 = vsel %vm2292, %v2299, %v2301
        %v2303 = vsel %vm2291, %v2281, %v2284
        %v2304 = vsel %vm2294, %v2290, 1326507024
        %v2305 = vsel %vm2293, %v2287, %v2304
        %v2306 = vsel %vm2292, %v2303, %v2305
        %v2307 = vshll.u32 %v2267, 8
        %v2308 = vmul.u32.u64.compose %v2307, %v2306
        %v2309 = vextract.low.u32 %v2308
        %v2310 = vextract.high.u32 %v2308
        %v2311 = vmul.u32.u64.compose %v2307, %v2302
        %v2312 = vextract.low.u32 %v2311
        %v2313 = vextract.high.u32 %v2311
        %v2314 = vmul.u32 %v2307, %v2298
        %v2315 = vadd.s32 %v2310, %v2312
        %vm2316 = vc.u32 %v2310, %v2312
        %v2317 = vadd.s32 %v2313, 1
        %v2318 = vsel %vm2316, %v2317, %v2313
        %v2319 = vadd.s32 %v2314, %v2318
        %v2320 = vadd.s32 %v2319, 536870912
        %v2321 = vshrl.u32 %v2320, 30
        %v2322 = vshll.u32 %v2321, 30
        %v2323 = vsub.s32 %v2319, %v2322
        %vm2324 = vcmp.lt.s32.totalorder %v2323, 0
        %v2325 = vsub.s32 0, %v2323
        %v2326 = vsel %vm2324, %v2325, %v2323
        %v2327 = vclz %v2326
        %v2328 = vsub.s32 %v2327, 2
        %vm2329 = vcmp.gt.s32.totalorder 0, %v2328
        %v2330 = vsel %vm2329, 0, %v2328
        %v2331 = vsub.s32 32, %v2330
        %v2332 = vshll.u32 %v2323, %v2330
        %v2333 = vshrl.u32 %v2315, %v2331
        %v2334 = vor.u32 %v2332, %v2333
        %v2335 = vsub.s32 4294967266, %v2330
        %v2336 = vadd.s32 %v2335, 127
        %v2337 = vshll.u32 %v2336, 23
        %v2338 = vor.u32 4788187, %v2337
        %v2339 = vand.u32 2147483647, %v2338
        %v2341 = vcvt.s32.f32 %v2334
        %v2342 = vmul.f32 %v2341, %v2339
        %v2343 = vxor.u32 %v2342, 2147483648
        %v2344 = vsel %vm2261, %v2343, %v2342
        %v2345 = vsub.s32 4, %v2321
        %v2346 = vsel %vm2261, %v2345, %v2321
        %v2347 = vsel %vm2260, %v682, %v2344
        %v2348 = vsel %vm2260, 0, %v2346
        %v2349 = vcosq.f32.pop %v2347
        %v2350 = vsinq.f32.pop %v2347
        %vm2351 = vweird.f32 %v682
        %v2352 = vadd.s32 %v2348, 3
        %v2353 = vand.u32 %v2352, 3
        %vm2354 = vcmp.lt.s32.totalorder %v2353, 2
        %vm2355 = vcmp.eq.s32.totalorder %v2353, 0
        %v2356 = vxor.u32 %v2350, 2147483648
        %v2357 = vsel %vm2355, %v2349, %v2356
        %vm2358 = vcmp.eq.s32.totalorder %v2353, 2
        %v2359 = vxor.u32 %v2349, 2147483648
        %v2360 = vsel %vm2358, %v2359, %v2350
        %v2361 = vsel %vm2354, %v2357, %v2360
        %v2362 = vsel %vm2351, nan, %v2361
        %v2363 = vand.u32 2147483647, %v683
        %vm2364 = vcmp.le.f32.partialorder %v2363, 0.7853982
        %vm2365 = vcmp.lt.s32.totalorder %v683, 0
        %v2366 = vand.u32 %v683, 2139095040
        %v2367 = vshrl.u32 %v2366, 23
        %v2368 = vsub.s32 %v2367, 127
        %v2369 = vand.u32 2147483647, %v683
        %v2370 = vand.u32 %v2369, 8388607
        %v2371 = vor.u32 %v2370, 8388608
        %v2372 = vsub.s32 0, %v2371
        %v2373 = vadd.s32 %v2368, 1
        %vm2374 = vcmp.gt.s32.totalorder %v2373, 0
        %v2375 = vsel %vm2374, %v2373, 0
        %v2376 = vshrl.u32 %v2375, 5
        %v2377 = vand.u32 %v2375, 31
        %v2378 = vsub.s32 32, %v2377
        %v2379 = vshrl.u32 683565275, %v2378
        %v2380 = vshll.u32 683565275, %v2377
        %v2381 = vshrl.u32 2475754826, %v2378
        %v2382 = vor.u32 %v2380, %v2381
        %v2383 = vshll.u32 2475754826, %v2377
        %v2384 = vshrl.u32 2131351028, %v2378
        %v2385 = vor.u32 %v2383, %v2384
        %v2386 = vshll.u32 2131351028, %v2377
        %v2387 = vshrl.u32 2102212464, %v2378
        %v2388 = vor.u32 %v2386, %v2387
        %v2389 = vshll.u32 2102212464, %v2377
        %v2390 = vshrl.u32 920167782, %v2378
        %v2391 = vor.u32 %v2389, %v2390
        %v2392 = vshll.u32 920167782, %v2377
        %v2393 = vshrl.u32 1326507024, %v2378
        %v2394 = vor.u32 %v2392, %v2393
        %vm2395 = vcmp.lt.s32.totalorder %v2376, 1
        %vm2396 = vcmp.lt.s32.totalorder %v2376, 2
        %vm2397 = vcmp.lt.s32.totalorder %v2376, 3
        %vm2398 = vcmp.lt.s32.totalorder %v2376, 4
        %v2399 = vsel %vm2395, %v2379, %v2382
        %v2400 = vsel %vm2398, %v2388, 2102212464
        %v2401 = vsel %vm2397, %v2385, %v2400
        %v2402 = vsel %vm2396, %v2399, %v2401
        %v2403 = vsel %vm2395, %v2382, %v2385
        %v2404 = vsel %vm2398, %v2391, 920167782
        %v2405 = vsel %vm2397, %v2388, %v2404
        %v2406 = vsel %vm2396, %v2403, %v2405
        %v2407 = vsel %vm2395, %v2385, %v2388
        %v2408 = vsel %vm2398, %v2394, 1326507024
        %v2409 = vsel %vm2397, %v2391, %v2408
        %v2410 = vsel %vm2396, %v2407, %v2409
        %v2411 = vshll.u32 %v2371, 8
        %v2412 = vmul.u32.u64.compose %v2411, %v2410
        %v2413 = vextract.low.u32 %v2412
        %v2414 = vextract.high.u32 %v2412
        %v2415 = vmul.u32.u64.compose %v2411, %v2406
        %v2416 = vextract.low.u32 %v2415
        %v2417 = vextract.high.u32 %v2415
        %v2418 = vmul.u32 %v2411, %v2402
        %v2419 = vadd.s32 %v2414, %v2416
        %vm2420 = vc.u32 %v2414, %v2416
        %v2421 = vadd.s32 %v2417, 1
        %v2422 = vsel %vm2420, %v2421, %v2417
        %v2423 = vadd.s32 %v2418, %v2422
        %v2424 = vadd.s32 %v2423, 536870912
        %v2425 = vshrl.u32 %v2424, 30
        %v2426 = vshll.u32 %v2425, 30
        %v2427 = vsub.s32 %v2423, %v2426
        %vm2428 = vcmp.lt.s32.totalorder %v2427, 0
        %v2429 = vsub.s32 0, %v2427
        %v2430 = vsel %vm2428, %v2429, %v2427
        %v2431 = vclz %v2430
        %v2432 = vsub.s32 %v2431, 2
        %vm2433 = vcmp.gt.s32.totalorder 0, %v2432
        %v2434 = vsel %vm2433, 0, %v2432
        %v2435 = vsub.s32 32, %v2434
        %v2436 = vshll.u32 %v2427, %v2434
        %v2437 = vshrl.u32 %v2419, %v2435
        %v2438 = vor.u32 %v2436, %v2437
        %v2439 = vsub.s32 4294967266, %v2434
        %v2440 = vadd.s32 %v2439, 127
        %v2441 = vshll.u32 %v2440, 23
        %v2442 = vor.u32 4788187, %v2441
        %v2443 = vand.u32 2147483647, %v2442
        %v2445 = vcvt.s32.f32 %v2438
        %v2446 = vmul.f32 %v2445, %v2443
        %v2447 = vxor.u32 %v2446, 2147483648
        %v2448 = vsel %vm2365, %v2447, %v2446
        %v2449 = vsub.s32 4, %v2425
        %v2450 = vsel %vm2365, %v2449, %v2425
        %v2451 = vsel %vm2364, %v683, %v2448
        %v2452 = vsel %vm2364, 0, %v2450
        %v2453 = vcosq.f32.pop %v2451
        %v2454 = vsinq.f32.pop %v2451
        %vm2455 = vweird.f32 %v683
        %v2456 = vadd.s32 %v2452, 3
        %v2457 = vand.u32 %v2456, 3
        %vm2458 = vcmp.lt.s32.totalorder %v2457, 2
        %vm2459 = vcmp.eq.s32.totalorder %v2457, 0
        %v2460 = vxor.u32 %v2454, 2147483648
        %v2461 = vsel %vm2459, %v2453, %v2460
        %vm2462 = vcmp.eq.s32.totalorder %v2457, 2
        %v2463 = vxor.u32 %v2453, 2147483648
        %v2464 = vsel %vm2462, %v2463, %v2454
        %v2465 = vsel %vm2458, %v2461, %v2464
        %v2466 = vsel %vm2455, nan, %v2465
        %v2467 = vand.u32 2147483647, %v684
        %vm2468 = vcmp.le.f32.partialorder %v2467, 0.7853982
        %vm2469 = vcmp.lt.s32.totalorder %v684, 0
        %v2470 = vand.u32 %v684, 2139095040
        %v2471 = vshrl.u32 %v2470, 23
        %v2472 = vsub.s32 %v2471, 127
        %v2473 = vand.u32 2147483647, %v684
        %v2474 = vand.u32 %v2473, 8388607
        %v2475 = vor.u32 %v2474, 8388608
        %v2476 = vsub.s32 0, %v2475
        %v2477 = vadd.s32 %v2472, 1
        %vm2478 = vcmp.gt.s32.totalorder %v2477, 0
        %v2479 = vsel %vm2478, %v2477, 0
        %v2480 = vshrl.u32 %v2479, 5
        %v2481 = vand.u32 %v2479, 31
        %v2482 = vsub.s32 32, %v2481
        %v2483 = vshrl.u32 683565275, %v2482
        %v2484 = vshll.u32 683565275, %v2481
        %v2485 = vshrl.u32 2475754826, %v2482
        %v2486 = vor.u32 %v2484, %v2485
        %v2487 = vshll.u32 2475754826, %v2481
        %v2488 = vshrl.u32 2131351028, %v2482
        %v2489 = vor.u32 %v2487, %v2488
        %v2490 = vshll.u32 2131351028, %v2481
        %v2491 = vshrl.u32 2102212464, %v2482
        %v2492 = vor.u32 %v2490, %v2491
        %v2493 = vshll.u32 2102212464, %v2481
        %v2494 = vshrl.u32 920167782, %v2482
        %v2495 = vor.u32 %v2493, %v2494
        %v2496 = vshll.u32 920167782, %v2481
        %v2497 = vshrl.u32 1326507024, %v2482
        %v2498 = vor.u32 %v2496, %v2497
        %vm2499 = vcmp.lt.s32.totalorder %v2480, 1
        %vm2500 = vcmp.lt.s32.totalorder %v2480, 2
        %vm2501 = vcmp.lt.s32.totalorder %v2480, 3
        %vm2502 = vcmp.lt.s32.totalorder %v2480, 4
        %v2503 = vsel %vm2499, %v2483, %v2486
        %v2504 = vsel %vm2502, %v2492, 2102212464
        %v2505 = vsel %vm2501, %v2489, %v2504
        %v2506 = vsel %vm2500, %v2503, %v2505
        %v2507 = vsel %vm2499, %v2486, %v2489
        %v2508 = vsel %vm2502, %v2495, 920167782
        %v2509 = vsel %vm2501, %v2492, %v2508
        %v2510 = vsel %vm2500, %v2507, %v2509
        %v2511 = vsel %vm2499, %v2489, %v2492
        %v2512 = vsel %vm2502, %v2498, 1326507024
        %v2513 = vsel %vm2501, %v2495, %v2512
        %v2514 = vsel %vm2500, %v2511, %v2513
        %v2515 = vshll.u32 %v2475, 8
        %v2516 = vmul.u32.u64.compose %v2515, %v2514
        %v2517 = vextract.low.u32 %v2516
        %v2518 = vextract.high.u32 %v2516
        %v2519 = vmul.u32.u64.compose %v2515, %v2510
        %v2520 = vextract.low.u32 %v2519
        %v2521 = vextract.high.u32 %v2519
        %v2522 = vmul.u32 %v2515, %v2506
        %v2523 = vadd.s32 %v2518, %v2520
        %vm2524 = vc.u32 %v2518, %v2520
        %v2525 = vadd.s32 %v2521, 1
        %v2526 = vsel %vm2524, %v2525, %v2521
        %v2527 = vadd.s32 %v2522, %v2526
        %v2528 = vadd.s32 %v2527, 536870912
        %v2529 = vshrl.u32 %v2528, 30
        %v2530 = vshll.u32 %v2529, 30
        %v2531 = vsub.s32 %v2527, %v2530
        %vm2532 = vcmp.lt.s32.totalorder %v2531, 0
        %v2533 = vsub.s32 0, %v2531
        %v2534 = vsel %vm2532, %v2533, %v2531
        %v2535 = vclz %v2534
        %v2536 = vsub.s32 %v2535, 2
        %vm2537 = vcmp.gt.s32.totalorder 0, %v2536
        %v2538 = vsel %vm2537, 0, %v2536
        %v2539 = vsub.s32 32, %v2538
        %v2540 = vshll.u32 %v2531, %v2538
        %v2541 = vshrl.u32 %v2523, %v2539
        %v2542 = vor.u32 %v2540, %v2541
        %v2543 = vsub.s32 4294967266, %v2538
        %v2544 = vadd.s32 %v2543, 127
        %v2545 = vshll.u32 %v2544, 23
        %v2546 = vor.u32 4788187, %v2545
        %v2547 = vand.u32 2147483647, %v2546
        %v2549 = vcvt.s32.f32 %v2542
        %v2550 = vmul.f32 %v2549, %v2547
        %v2551 = vxor.u32 %v2550, 2147483648
        %v2552 = vsel %vm2469, %v2551, %v2550
        %v2553 = vsub.s32 4, %v2529
        %v2554 = vsel %vm2469, %v2553, %v2529
        %v2555 = vsel %vm2468, %v684, %v2552
        %v2556 = vsel %vm2468, 0, %v2554
        %v2557 = vcosq.f32.pop %v2555
        %v2558 = vsinq.f32.pop %v2555
        %vm2559 = vweird.f32 %v684
        %v2560 = vadd.s32 %v2556, 3
        %v2561 = vand.u32 %v2560, 3
        %vm2562 = vcmp.lt.s32.totalorder %v2561, 2
        %vm2563 = vcmp.eq.s32.totalorder %v2561, 0
        %v2564 = vxor.u32 %v2558, 2147483648
        %v2565 = vsel %vm2563, %v2557, %v2564
        %vm2566 = vcmp.eq.s32.totalorder %v2561, 2
        %v2567 = vxor.u32 %v2557, 2147483648
        %v2568 = vsel %vm2566, %v2567, %v2558
        %v2569 = vsel %vm2562, %v2565, %v2568
        %v2570 = vsel %vm2559, nan, %v2569
        %v2571 = vand.u32 2147483647, %v685
        %vm2572 = vcmp.le.f32.partialorder %v2571, 0.7853982
        %vm2573 = vcmp.lt.s32.totalorder %v685, 0
        %v2574 = vand.u32 %v685, 2139095040
        %v2575 = vshrl.u32 %v2574, 23
        %v2576 = vsub.s32 %v2575, 127
        %v2577 = vand.u32 2147483647, %v685
        %v2578 = vand.u32 %v2577, 8388607
        %v2579 = vor.u32 %v2578, 8388608
        %v2580 = vsub.s32 0, %v2579
        %v2581 = vadd.s32 %v2576, 1
        %vm2582 = vcmp.gt.s32.totalorder %v2581, 0
        %v2583 = vsel %vm2582, %v2581, 0
        %v2584 = vshrl.u32 %v2583, 5
        %v2585 = vand.u32 %v2583, 31
        %v2586 = vsub.s32 32, %v2585
        %v2587 = vshrl.u32 683565275, %v2586
        %v2588 = vshll.u32 683565275, %v2585
        %v2589 = vshrl.u32 2475754826, %v2586
        %v2590 = vor.u32 %v2588, %v2589
        %v2591 = vshll.u32 2475754826, %v2585
        %v2592 = vshrl.u32 2131351028, %v2586
        %v2593 = vor.u32 %v2591, %v2592
        %v2594 = vshll.u32 2131351028, %v2585
        %v2595 = vshrl.u32 2102212464, %v2586
        %v2596 = vor.u32 %v2594, %v2595
        %v2597 = vshll.u32 2102212464, %v2585
        %v2598 = vshrl.u32 920167782, %v2586
        %v2599 = vor.u32 %v2597, %v2598
        %v2600 = vshll.u32 920167782, %v2585
        %v2601 = vshrl.u32 1326507024, %v2586
        %v2602 = vor.u32 %v2600, %v2601
        %vm2603 = vcmp.lt.s32.totalorder %v2584, 1
        %vm2604 = vcmp.lt.s32.totalorder %v2584, 2
        %vm2605 = vcmp.lt.s32.totalorder %v2584, 3
        %vm2606 = vcmp.lt.s32.totalorder %v2584, 4
        %v2607 = vsel %vm2603, %v2587, %v2590
        %v2608 = vsel %vm2606, %v2596, 2102212464
        %v2609 = vsel %vm2605, %v2593, %v2608
        %v2610 = vsel %vm2604, %v2607, %v2609
        %v2611 = vsel %vm2603, %v2590, %v2593
        %v2612 = vsel %vm2606, %v2599, 920167782
        %v2613 = vsel %vm2605, %v2596, %v2612
        %v2614 = vsel %vm2604, %v2611, %v2613
        %v2615 = vsel %vm2603, %v2593, %v2596
        %v2616 = vsel %vm2606, %v2602, 1326507024
        %v2617 = vsel %vm2605, %v2599, %v2616
        %v2618 = vsel %vm2604, %v2615, %v2617
        %v2619 = vshll.u32 %v2579, 8
        %v2620 = vmul.u32.u64.compose %v2619, %v2618
        %v2621 = vextract.low.u32 %v2620
        %v2622 = vextract.high.u32 %v2620
        %v2623 = vmul.u32.u64.compose %v2619, %v2614
        %v2624 = vextract.low.u32 %v2623
        %v2625 = vextract.high.u32 %v2623
        %v2626 = vmul.u32 %v2619, %v2610
        %v2627 = vadd.s32 %v2622, %v2624
        %vm2628 = vc.u32 %v2622, %v2624
        %v2629 = vadd.s32 %v2625, 1
        %v2630 = vsel %vm2628, %v2629, %v2625
        %v2631 = vadd.s32 %v2626, %v2630
        %v2632 = vadd.s32 %v2631, 536870912
        %v2633 = vshrl.u32 %v2632, 30
        %v2634 = vshll.u32 %v2633, 30
        %v2635 = vsub.s32 %v2631, %v2634
        %vm2636 = vcmp.lt.s32.totalorder %v2635, 0
        %v2637 = vsub.s32 0, %v2635
        %v2638 = vsel %vm2636, %v2637, %v2635
        %v2639 = vclz %v2638
        %v2640 = vsub.s32 %v2639, 2
        %vm2641 = vcmp.gt.s32.totalorder 0, %v2640
        %v2642 = vsel %vm2641, 0, %v2640
        %v2643 = vsub.s32 32, %v2642
        %v2644 = vshll.u32 %v2635, %v2642
        %v2645 = vshrl.u32 %v2627, %v2643
        %v2646 = vor.u32 %v2644, %v2645
        %v2647 = vsub.s32 4294967266, %v2642
        %v2648 = vadd.s32 %v2647, 127
        %v2649 = vshll.u32 %v2648, 23
        %v2650 = vor.u32 4788187, %v2649
        %v2651 = vand.u32 2147483647, %v2650
        %v2653 = vcvt.s32.f32 %v2646
        %v2654 = vmul.f32 %v2653, %v2651
        %v2655 = vxor.u32 %v2654, 2147483648
        %v2656 = vsel %vm2573, %v2655, %v2654
        %v2657 = vsub.s32 4, %v2633
        %v2658 = vsel %vm2573, %v2657, %v2633
        %v2659 = vsel %vm2572, %v685, %v2656
        %v2660 = vsel %vm2572, 0, %v2658
        %v2661 = vcosq.f32.pop %v2659
        %v2662 = vsinq.f32.pop %v2659
        %vm2663 = vweird.f32 %v685
        %v2664 = vadd.s32 %v2660, 3
        %v2665 = vand.u32 %v2664, 3
        %vm2666 = vcmp.lt.s32.totalorder %v2665, 2
        %vm2667 = vcmp.eq.s32.totalorder %v2665, 0
        %v2668 = vxor.u32 %v2662, 2147483648
        %v2669 = vsel %vm2667, %v2661, %v2668
        %vm2670 = vcmp.eq.s32.totalorder %v2665, 2
        %v2671 = vxor.u32 %v2661, 2147483648
        %v2672 = vsel %vm2670, %v2671, %v2662
        %v2673 = vsel %vm2666, %v2669, %v2672
        %v2674 = vsel %vm2663, nan, %v2673
        %v2675 = vand.u32 2147483647, %v686
        %vm2676 = vcmp.le.f32.partialorder %v2675, 0.7853982
        %vm2677 = vcmp.lt.s32.totalorder %v686, 0
        %v2678 = vand.u32 %v686, 2139095040
        %v2679 = vshrl.u32 %v2678, 23
        %v2680 = vsub.s32 %v2679, 127
        %v2681 = vand.u32 2147483647, %v686
        %v2682 = vand.u32 %v2681, 8388607
        %v2683 = vor.u32 %v2682, 8388608
        %v2684 = vsub.s32 0, %v2683
        %v2685 = vadd.s32 %v2680, 1
        %vm2686 = vcmp.gt.s32.totalorder %v2685, 0
        %v2687 = vsel %vm2686, %v2685, 0
        %v2688 = vshrl.u32 %v2687, 5
        %v2689 = vand.u32 %v2687, 31
        %v2690 = vsub.s32 32, %v2689
        %v2691 = vshrl.u32 683565275, %v2690
        %v2692 = vshll.u32 683565275, %v2689
        %v2693 = vshrl.u32 2475754826, %v2690
        %v2694 = vor.u32 %v2692, %v2693
        %v2695 = vshll.u32 2475754826, %v2689
        %v2696 = vshrl.u32 2131351028, %v2690
        %v2697 = vor.u32 %v2695, %v2696
        %v2698 = vshll.u32 2131351028, %v2689
        %v2699 = vshrl.u32 2102212464, %v2690
        %v2700 = vor.u32 %v2698, %v2699
        %v2701 = vshll.u32 2102212464, %v2689
        %v2702 = vshrl.u32 920167782, %v2690
        %v2703 = vor.u32 %v2701, %v2702
        %v2704 = vshll.u32 920167782, %v2689
        %v2705 = vshrl.u32 1326507024, %v2690
        %v2706 = vor.u32 %v2704, %v2705
        %vm2707 = vcmp.lt.s32.totalorder %v2688, 1
        %vm2708 = vcmp.lt.s32.totalorder %v2688, 2
        %vm2709 = vcmp.lt.s32.totalorder %v2688, 3
        %vm2710 = vcmp.lt.s32.totalorder %v2688, 4
        %v2711 = vsel %vm2707, %v2691, %v2694
        %v2712 = vsel %vm2710, %v2700, 2102212464
        %v2713 = vsel %vm2709, %v2697, %v2712
        %v2714 = vsel %vm2708, %v2711, %v2713
        %v2715 = vsel %vm2707, %v2694, %v2697
        %v2716 = vsel %vm2710, %v2703, 920167782
        %v2717 = vsel %vm2709, %v2700, %v2716
        %v2718 = vsel %vm2708, %v2715, %v2717
        %v2719 = vsel %vm2707, %v2697, %v2700
        %v2720 = vsel %vm2710, %v2706, 1326507024
        %v2721 = vsel %vm2709, %v2703, %v2720
        %v2722 = vsel %vm2708, %v2719, %v2721
        %v2723 = vshll.u32 %v2683, 8
        %v2724 = vmul.u32.u64.compose %v2723, %v2722
        %v2725 = vextract.low.u32 %v2724
        %v2726 = vextract.high.u32 %v2724
        %v2727 = vmul.u32.u64.compose %v2723, %v2718
        %v2728 = vextract.low.u32 %v2727
        %v2729 = vextract.high.u32 %v2727
        %v2730 = vmul.u32 %v2723, %v2714
        %v2731 = vadd.s32 %v2726, %v2728
        %vm2732 = vc.u32 %v2726, %v2728
        %v2733 = vadd.s32 %v2729, 1
        %v2734 = vsel %vm2732, %v2733, %v2729
        %v2735 = vadd.s32 %v2730, %v2734
        %v2736 = vadd.s32 %v2735, 536870912
        %v2737 = vshrl.u32 %v2736, 30
        %v2738 = vshll.u32 %v2737, 30
        %v2739 = vsub.s32 %v2735, %v2738
        %vm2740 = vcmp.lt.s32.totalorder %v2739, 0
        %v2741 = vsub.s32 0, %v2739
        %v2742 = vsel %vm2740, %v2741, %v2739
        %v2743 = vclz %v2742
        %v2744 = vsub.s32 %v2743, 2
        %vm2745 = vcmp.gt.s32.totalorder 0, %v2744
        %v2746 = vsel %vm2745, 0, %v2744
        %v2747 = vsub.s32 32, %v2746
        %v2748 = vshll.u32 %v2739, %v2746
        %v2749 = vshrl.u32 %v2731, %v2747
        %v2750 = vor.u32 %v2748, %v2749
        %v2751 = vsub.s32 4294967266, %v2746
        %v2752 = vadd.s32 %v2751, 127
        %v2753 = vshll.u32 %v2752, 23
        %v2754 = vor.u32 4788187, %v2753
        %v2755 = vand.u32 2147483647, %v2754
        %v2757 = vcvt.s32.f32 %v2750
        %v2758 = vmul.f32 %v2757, %v2755
        %v2759 = vxor.u32 %v2758, 2147483648
        %v2760 = vsel %vm2677, %v2759, %v2758
        %v2761 = vsub.s32 4, %v2737
        %v2762 = vsel %vm2677, %v2761, %v2737
        %v2763 = vsel %vm2676, %v686, %v2760
        %v2764 = vsel %vm2676, 0, %v2762
        %v2765 = vcosq.f32.pop %v2763
        %v2766 = vsinq.f32.pop %v2763
        %vm2767 = vweird.f32 %v686
        %v2768 = vadd.s32 %v2764, 3
        %v2769 = vand.u32 %v2768, 3
        %vm2770 = vcmp.lt.s32.totalorder %v2769, 2
        %vm2771 = vcmp.eq.s32.totalorder %v2769, 0
        %v2772 = vxor.u32 %v2766, 2147483648
        %v2773 = vsel %vm2771, %v2765, %v2772
        %vm2774 = vcmp.eq.s32.totalorder %v2769, 2
        %v2775 = vxor.u32 %v2765, 2147483648
        %v2776 = vsel %vm2774, %v2775, %v2766
        %v2777 = vsel %vm2770, %v2773, %v2776
        %v2778 = vsel %vm2767, nan, %v2777
        %v2779 = vand.u32 2147483647, %v687
        %vm2780 = vcmp.le.f32.partialorder %v2779, 0.7853982
        %vm2781 = vcmp.lt.s32.totalorder %v687, 0
        %v2782 = vand.u32 %v687, 2139095040
        %v2783 = vshrl.u32 %v2782, 23
        %v2784 = vsub.s32 %v2783, 127
        %v2785 = vand.u32 2147483647, %v687
        %v2786 = vand.u32 %v2785, 8388607
        %v2787 = vor.u32 %v2786, 8388608
        %v2788 = vsub.s32 0, %v2787
        %v2789 = vadd.s32 %v2784, 1
        %vm2790 = vcmp.gt.s32.totalorder %v2789, 0
        %v2791 = vsel %vm2790, %v2789, 0
        %v2792 = vshrl.u32 %v2791, 5
        %v2793 = vand.u32 %v2791, 31
        %v2794 = vsub.s32 32, %v2793
        %v2795 = vshrl.u32 683565275, %v2794
        %v2796 = vshll.u32 683565275, %v2793
        %v2797 = vshrl.u32 2475754826, %v2794
        %v2798 = vor.u32 %v2796, %v2797
        %v2799 = vshll.u32 2475754826, %v2793
        %v2800 = vshrl.u32 2131351028, %v2794
        %v2801 = vor.u32 %v2799, %v2800
        %v2802 = vshll.u32 2131351028, %v2793
        %v2803 = vshrl.u32 2102212464, %v2794
        %v2804 = vor.u32 %v2802, %v2803
        %v2805 = vshll.u32 2102212464, %v2793
        %v2806 = vshrl.u32 920167782, %v2794
        %v2807 = vor.u32 %v2805, %v2806
        %v2808 = vshll.u32 920167782, %v2793
        %v2809 = vshrl.u32 1326507024, %v2794
        %v2810 = vor.u32 %v2808, %v2809
        %vm2811 = vcmp.lt.s32.totalorder %v2792, 1
        %vm2812 = vcmp.lt.s32.totalorder %v2792, 2
        %vm2813 = vcmp.lt.s32.totalorder %v2792, 3
        %vm2814 = vcmp.lt.s32.totalorder %v2792, 4
        %v2815 = vsel %vm2811, %v2795, %v2798
        %v2816 = vsel %vm2814, %v2804, 2102212464
        %v2817 = vsel %vm2813, %v2801, %v2816
        %v2818 = vsel %vm2812, %v2815, %v2817
        %v2819 = vsel %vm2811, %v2798, %v2801
        %v2820 = vsel %vm2814, %v2807, 920167782
        %v2821 = vsel %vm2813, %v2804, %v2820
        %v2822 = vsel %vm2812, %v2819, %v2821
        %v2823 = vsel %vm2811, %v2801, %v2804
        %v2824 = vsel %vm2814, %v2810, 1326507024
        %v2825 = vsel %vm2813, %v2807, %v2824
        %v2826 = vsel %vm2812, %v2823, %v2825
        %v2827 = vshll.u32 %v2787, 8
        %v2828 = vmul.u32.u64.compose %v2827, %v2826
        %v2829 = vextract.low.u32 %v2828
        %v2830 = vextract.high.u32 %v2828
        %v2831 = vmul.u32.u64.compose %v2827, %v2822
        %v2832 = vextract.low.u32 %v2831
        %v2833 = vextract.high.u32 %v2831
        %v2834 = vmul.u32 %v2827, %v2818
        %v2835 = vadd.s32 %v2830, %v2832
        %vm2836 = vc.u32 %v2830, %v2832
        %v2837 = vadd.s32 %v2833, 1
        %v2838 = vsel %vm2836, %v2837, %v2833
        %v2839 = vadd.s32 %v2834, %v2838
        %v2840 = vadd.s32 %v2839, 536870912
        %v2841 = vshrl.u32 %v2840, 30
        %v2842 = vshll.u32 %v2841, 30
        %v2843 = vsub.s32 %v2839, %v2842
        %vm2844 = vcmp.lt.s32.totalorder %v2843, 0
        %v2845 = vsub.s32 0, %v2843
        %v2846 = vsel %vm2844, %v2845, %v2843
        %v2847 = vclz %v2846
        %v2848 = vsub.s32 %v2847, 2
        %vm2849 = vcmp.gt.s32.totalorder 0, %v2848
        %v2850 = vsel %vm2849, 0, %v2848
        %v2851 = vsub.s32 32, %v2850
        %v2852 = vshll.u32 %v2843, %v2850
        %v2853 = vshrl.u32 %v2835, %v2851
        %v2854 = vor.u32 %v2852, %v2853
        %v2855 = vsub.s32 4294967266, %v2850
        %v2856 = vadd.s32 %v2855, 127
        %v2857 = vshll.u32 %v2856, 23
        %v2858 = vor.u32 4788187, %v2857
        %v2859 = vand.u32 2147483647, %v2858
        %v2861 = vcvt.s32.f32 %v2854
        %v2862 = vmul.f32 %v2861, %v2859
        %v2863 = vxor.u32 %v2862, 2147483648
        %v2864 = vsel %vm2781, %v2863, %v2862
        %v2865 = vsub.s32 4, %v2841
        %v2866 = vsel %vm2781, %v2865, %v2841
        %v2867 = vsel %vm2780, %v687, %v2864
        %v2868 = vsel %vm2780, 0, %v2866
        %v2869 = vcosq.f32.pop %v2867
        %v2870 = vsinq.f32.pop %v2867
        %vm2871 = vweird.f32 %v687
        %v2872 = vadd.s32 %v2868, 3
        %v2873 = vand.u32 %v2872, 3
        %vm2874 = vcmp.lt.s32.totalorder %v2873, 2
        %vm2875 = vcmp.eq.s32.totalorder %v2873, 0
        %v2876 = vxor.u32 %v2870, 2147483648
        %v2877 = vsel %vm2875, %v2869, %v2876
        %vm2878 = vcmp.eq.s32.totalorder %v2873, 2
        %v2879 = vxor.u32 %v2869, 2147483648
        %v2880 = vsel %vm2878, %v2879, %v2870
        %v2881 = vsel %vm2874, %v2877, %v2880
        %v2882 = vsel %vm2871, nan, %v2881
        %v2883 = vand.u32 2147483647, %v688
        %vm2884 = vcmp.le.f32.partialorder %v2883, 0.7853982
        %vm2885 = vcmp.lt.s32.totalorder %v688, 0
        %v2886 = vand.u32 %v688, 2139095040
        %v2887 = vshrl.u32 %v2886, 23
        %v2888 = vsub.s32 %v2887, 127
        %v2889 = vand.u32 2147483647, %v688
        %v2890 = vand.u32 %v2889, 8388607
        %v2891 = vor.u32 %v2890, 8388608
        %v2892 = vsub.s32 0, %v2891
        %v2893 = vadd.s32 %v2888, 1
        %vm2894 = vcmp.gt.s32.totalorder %v2893, 0
        %v2895 = vsel %vm2894, %v2893, 0
        %v2896 = vshrl.u32 %v2895, 5
        %v2897 = vand.u32 %v2895, 31
        %v2898 = vsub.s32 32, %v2897
        %v2899 = vshrl.u32 683565275, %v2898
        %v2900 = vshll.u32 683565275, %v2897
        %v2901 = vshrl.u32 2475754826, %v2898
        %v2902 = vor.u32 %v2900, %v2901
        %v2903 = vshll.u32 2475754826, %v2897
        %v2904 = vshrl.u32 2131351028, %v2898
        %v2905 = vor.u32 %v2903, %v2904
        %v2906 = vshll.u32 2131351028, %v2897
        %v2907 = vshrl.u32 2102212464, %v2898
        %v2908 = vor.u32 %v2906, %v2907
        %v2909 = vshll.u32 2102212464, %v2897
        %v2910 = vshrl.u32 920167782, %v2898
        %v2911 = vor.u32 %v2909, %v2910
        %v2912 = vshll.u32 920167782, %v2897
        %v2913 = vshrl.u32 1326507024, %v2898
        %v2914 = vor.u32 %v2912, %v2913
        %vm2915 = vcmp.lt.s32.totalorder %v2896, 1
        %vm2916 = vcmp.lt.s32.totalorder %v2896, 2
        %vm2917 = vcmp.lt.s32.totalorder %v2896, 3
        %vm2918 = vcmp.lt.s32.totalorder %v2896, 4
        %v2919 = vsel %vm2915, %v2899, %v2902
        %v2920 = vsel %vm2918, %v2908, 2102212464
        %v2921 = vsel %vm2917, %v2905, %v2920
        %v2922 = vsel %vm2916, %v2919, %v2921
        %v2923 = vsel %vm2915, %v2902, %v2905
        %v2924 = vsel %vm2918, %v2911, 920167782
        %v2925 = vsel %vm2917, %v2908, %v2924
        %v2926 = vsel %vm2916, %v2923, %v2925
        %v2927 = vsel %vm2915, %v2905, %v2908
        %v2928 = vsel %vm2918, %v2914, 1326507024
        %v2929 = vsel %vm2917, %v2911, %v2928
        %v2930 = vsel %vm2916, %v2927, %v2929
        %v2931 = vshll.u32 %v2891, 8
        %v2932 = vmul.u32.u64.compose %v2931, %v2930
        %v2933 = vextract.low.u32 %v2932
        %v2934 = vextract.high.u32 %v2932
        %v2935 = vmul.u32.u64.compose %v2931, %v2926
        %v2936 = vextract.low.u32 %v2935
        %v2937 = vextract.high.u32 %v2935
        %v2938 = vmul.u32 %v2931, %v2922
        %v2939 = vadd.s32 %v2934, %v2936
        %vm2940 = vc.u32 %v2934, %v2936
        %v2941 = vadd.s32 %v2937, 1
        %v2942 = vsel %vm2940, %v2941, %v2937
        %v2943 = vadd.s32 %v2938, %v2942
        %v2944 = vadd.s32 %v2943, 536870912
        %v2945 = vshrl.u32 %v2944, 30
        %v2946 = vshll.u32 %v2945, 30
        %v2947 = vsub.s32 %v2943, %v2946
        %vm2948 = vcmp.lt.s32.totalorder %v2947, 0
        %v2949 = vsub.s32 0, %v2947
        %v2950 = vsel %vm2948, %v2949, %v2947
        %v2951 = vclz %v2950
        %v2952 = vsub.s32 %v2951, 2
        %vm2953 = vcmp.gt.s32.totalorder 0, %v2952
        %v2954 = vsel %vm2953, 0, %v2952
        %v2955 = vsub.s32 32, %v2954
        %v2956 = vshll.u32 %v2947, %v2954
        %v2957 = vshrl.u32 %v2939, %v2955
        %v2958 = vor.u32 %v2956, %v2957
        %v2959 = vsub.s32 4294967266, %v2954
        %v2960 = vadd.s32 %v2959, 127
        %v2961 = vshll.u32 %v2960, 23
        %v2962 = vor.u32 4788187, %v2961
        %v2963 = vand.u32 2147483647, %v2962
        %v2965 = vcvt.s32.f32 %v2958
        %v2966 = vmul.f32 %v2965, %v2963
        %v2967 = vxor.u32 %v2966, 2147483648
        %v2968 = vsel %vm2885, %v2967, %v2966
        %v2969 = vsub.s32 4, %v2945
        %v2970 = vsel %vm2885, %v2969, %v2945
        %v2971 = vsel %vm2884, %v688, %v2968
        %v2972 = vsel %vm2884, 0, %v2970
        %v2973 = vcosq.f32.pop %v2971
        %v2974 = vsinq.f32.pop %v2971
        %vm2975 = vweird.f32 %v688
        %v2976 = vadd.s32 %v2972, 3
        %v2977 = vand.u32 %v2976, 3
        %vm2978 = vcmp.lt.s32.totalorder %v2977, 2
        %vm2979 = vcmp.eq.s32.totalorder %v2977, 0
        %v2980 = vxor.u32 %v2974, 2147483648
        %v2981 = vsel %vm2979, %v2973, %v2980
        %vm2982 = vcmp.eq.s32.totalorder %v2977, 2
        %v2983 = vxor.u32 %v2973, 2147483648
        %v2984 = vsel %vm2982, %v2983, %v2974
        %v2985 = vsel %vm2978, %v2981, %v2984
        %v2986 = vsel %vm2975, nan, %v2985
        %v2987 = vand.u32 2147483647, %v689
        %vm2988 = vcmp.le.f32.partialorder %v2987, 0.7853982
        %vm2989 = vcmp.lt.s32.totalorder %v689, 0
        %v2990 = vand.u32 %v689, 2139095040
        %v2991 = vshrl.u32 %v2990, 23
        %v2992 = vsub.s32 %v2991, 127
        %v2993 = vand.u32 2147483647, %v689
        %v2994 = vand.u32 %v2993, 8388607
        %v2995 = vor.u32 %v2994, 8388608
        %v2996 = vsub.s32 0, %v2995
        %v2997 = vadd.s32 %v2992, 1
        %vm2998 = vcmp.gt.s32.totalorder %v2997, 0
        %v2999 = vsel %vm2998, %v2997, 0
        %v3000 = vshrl.u32 %v2999, 5
        %v3001 = vand.u32 %v2999, 31
        %v3002 = vsub.s32 32, %v3001
        %v3003 = vshrl.u32 683565275, %v3002
        %v3004 = vshll.u32 683565275, %v3001
        %v3005 = vshrl.u32 2475754826, %v3002
        %v3006 = vor.u32 %v3004, %v3005
        %v3007 = vshll.u32 2475754826, %v3001
        %v3008 = vshrl.u32 2131351028, %v3002
        %v3009 = vor.u32 %v3007, %v3008
        %v3010 = vshll.u32 2131351028, %v3001
        %v3011 = vshrl.u32 2102212464, %v3002
        %v3012 = vor.u32 %v3010, %v3011
        %v3013 = vshll.u32 2102212464, %v3001
        %v3014 = vshrl.u32 920167782, %v3002
        %v3015 = vor.u32 %v3013, %v3014
        %v3016 = vshll.u32 920167782, %v3001
        %v3017 = vshrl.u32 1326507024, %v3002
        %v3018 = vor.u32 %v3016, %v3017
        %vm3019 = vcmp.lt.s32.totalorder %v3000, 1
        %vm3020 = vcmp.lt.s32.totalorder %v3000, 2
        %vm3021 = vcmp.lt.s32.totalorder %v3000, 3
        %vm3022 = vcmp.lt.s32.totalorder %v3000, 4
        %v3023 = vsel %vm3019, %v3003, %v3006
        %v3024 = vsel %vm3022, %v3012, 2102212464
        %v3025 = vsel %vm3021, %v3009, %v3024
        %v3026 = vsel %vm3020, %v3023, %v3025
        %v3027 = vsel %vm3019, %v3006, %v3009
        %v3028 = vsel %vm3022, %v3015, 920167782
        %v3029 = vsel %vm3021, %v3012, %v3028
        %v3030 = vsel %vm3020, %v3027, %v3029
        %v3031 = vsel %vm3019, %v3009, %v3012
        %v3032 = vsel %vm3022, %v3018, 1326507024
        %v3033 = vsel %vm3021, %v3015, %v3032
        %v3034 = vsel %vm3020, %v3031, %v3033
        %v3035 = vshll.u32 %v2995, 8
        %v3036 = vmul.u32.u64.compose %v3035, %v3034
        %v3037 = vextract.low.u32 %v3036
        %v3038 = vextract.high.u32 %v3036
        %v3039 = vmul.u32.u64.compose %v3035, %v3030
        %v3040 = vextract.low.u32 %v3039
        %v3041 = vextract.high.u32 %v3039
        %v3042 = vmul.u32 %v3035, %v3026
        %v3043 = vadd.s32 %v3038, %v3040
        %vm3044 = vc.u32 %v3038, %v3040
        %v3045 = vadd.s32 %v3041, 1
        %v3046 = vsel %vm3044, %v3045, %v3041
        %v3047 = vadd.s32 %v3042, %v3046
        %v3048 = vadd.s32 %v3047, 536870912
        %v3049 = vshrl.u32 %v3048, 30
        %v3050 = vshll.u32 %v3049, 30
        %v3051 = vsub.s32 %v3047, %v3050
        %vm3052 = vcmp.lt.s32.totalorder %v3051, 0
        %v3053 = vsub.s32 0, %v3051
        %v3054 = vsel %vm3052, %v3053, %v3051
        %v3055 = vclz %v3054
        %v3056 = vsub.s32 %v3055, 2
        %vm3057 = vcmp.gt.s32.totalorder 0, %v3056
        %v3058 = vsel %vm3057, 0, %v3056
        %v3059 = vsub.s32 32, %v3058
        %v3060 = vshll.u32 %v3051, %v3058
        %v3061 = vshrl.u32 %v3043, %v3059
        %v3062 = vor.u32 %v3060, %v3061
        %v3063 = vsub.s32 4294967266, %v3058
        %v3064 = vadd.s32 %v3063, 127
        %v3065 = vshll.u32 %v3064, 23
        %v3066 = vor.u32 4788187, %v3065
        %v3067 = vand.u32 2147483647, %v3066
        %v3069 = vcvt.s32.f32 %v3062
        %v3070 = vmul.f32 %v3069, %v3067
        %v3071 = vxor.u32 %v3070, 2147483648
        %v3072 = vsel %vm2989, %v3071, %v3070
        %v3073 = vsub.s32 4, %v3049
        %v3074 = vsel %vm2989, %v3073, %v3049
        %v3075 = vsel %vm2988, %v689, %v3072
        %v3076 = vsel %vm2988, 0, %v3074
        %v3077 = vcosq.f32.pop %v3075
        %v3078 = vsinq.f32.pop %v3075
        %vm3079 = vweird.f32 %v689
        %v3080 = vadd.s32 %v3076, 3
        %v3081 = vand.u32 %v3080, 3
        %vm3082 = vcmp.lt.s32.totalorder %v3081, 2
        %vm3083 = vcmp.eq.s32.totalorder %v3081, 0
        %v3084 = vxor.u32 %v3078, 2147483648
        %v3085 = vsel %vm3083, %v3077, %v3084
        %vm3086 = vcmp.eq.s32.totalorder %v3081, 2
        %v3087 = vxor.u32 %v3077, 2147483648
        %v3088 = vsel %vm3086, %v3087, %v3078
        %v3089 = vsel %vm3082, %v3085, %v3088
        %v3090 = vsel %vm3079, nan, %v3089
        %v3091 = vand.u32 2147483647, %v690
        %vm3092 = vcmp.le.f32.partialorder %v3091, 0.7853982
        %vm3093 = vcmp.lt.s32.totalorder %v690, 0
        %v3094 = vand.u32 %v690, 2139095040
        %v3095 = vshrl.u32 %v3094, 23
        %v3096 = vsub.s32 %v3095, 127
        %v3097 = vand.u32 2147483647, %v690
        %v3098 = vand.u32 %v3097, 8388607
        %v3099 = vor.u32 %v3098, 8388608
        %v3100 = vsub.s32 0, %v3099
        %v3101 = vadd.s32 %v3096, 1
        %vm3102 = vcmp.gt.s32.totalorder %v3101, 0
        %v3103 = vsel %vm3102, %v3101, 0
        %v3104 = vshrl.u32 %v3103, 5
        %v3105 = vand.u32 %v3103, 31
        %v3106 = vsub.s32 32, %v3105
        %v3107 = vshrl.u32 683565275, %v3106
        %v3108 = vshll.u32 683565275, %v3105
        %v3109 = vshrl.u32 2475754826, %v3106
        %v3110 = vor.u32 %v3108, %v3109
        %v3111 = vshll.u32 2475754826, %v3105
        %v3112 = vshrl.u32 2131351028, %v3106
        %v3113 = vor.u32 %v3111, %v3112
        %v3114 = vshll.u32 2131351028, %v3105
        %v3115 = vshrl.u32 2102212464, %v3106
        %v3116 = vor.u32 %v3114, %v3115
        %v3117 = vshll.u32 2102212464, %v3105
        %v3118 = vshrl.u32 920167782, %v3106
        %v3119 = vor.u32 %v3117, %v3118
        %v3120 = vshll.u32 920167782, %v3105
        %v3121 = vshrl.u32 1326507024, %v3106
        %v3122 = vor.u32 %v3120, %v3121
        %vm3123 = vcmp.lt.s32.totalorder %v3104, 1
        %vm3124 = vcmp.lt.s32.totalorder %v3104, 2
        %vm3125 = vcmp.lt.s32.totalorder %v3104, 3
        %vm3126 = vcmp.lt.s32.totalorder %v3104, 4
        %v3127 = vsel %vm3123, %v3107, %v3110
        %v3128 = vsel %vm3126, %v3116, 2102212464
        %v3129 = vsel %vm3125, %v3113, %v3128
        %v3130 = vsel %vm3124, %v3127, %v3129
        %v3131 = vsel %vm3123, %v3110, %v3113
        %v3132 = vsel %vm3126, %v3119, 920167782
        %v3133 = vsel %vm3125, %v3116, %v3132
        %v3134 = vsel %vm3124, %v3131, %v3133
        %v3135 = vsel %vm3123, %v3113, %v3116
        %v3136 = vsel %vm3126, %v3122, 1326507024
        %v3137 = vsel %vm3125, %v3119, %v3136
        %v3138 = vsel %vm3124, %v3135, %v3137
        %v3139 = vshll.u32 %v3099, 8
        %v3140 = vmul.u32.u64.compose %v3139, %v3138
        %v3141 = vextract.low.u32 %v3140
        %v3142 = vextract.high.u32 %v3140
        %v3143 = vmul.u32.u64.compose %v3139, %v3134
        %v3144 = vextract.low.u32 %v3143
        %v3145 = vextract.high.u32 %v3143
        %v3146 = vmul.u32 %v3139, %v3130
        %v3147 = vadd.s32 %v3142, %v3144
        %vm3148 = vc.u32 %v3142, %v3144
        %v3149 = vadd.s32 %v3145, 1
        %v3150 = vsel %vm3148, %v3149, %v3145
        %v3151 = vadd.s32 %v3146, %v3150
        %v3152 = vadd.s32 %v3151, 536870912
        %v3153 = vshrl.u32 %v3152, 30
        %v3154 = vshll.u32 %v3153, 30
        %v3155 = vsub.s32 %v3151, %v3154
        %vm3156 = vcmp.lt.s32.totalorder %v3155, 0
        %v3157 = vsub.s32 0, %v3155
        %v3158 = vsel %vm3156, %v3157, %v3155
        %v3159 = vclz %v3158
        %v3160 = vsub.s32 %v3159, 2
        %vm3161 = vcmp.gt.s32.totalorder 0, %v3160
        %v3162 = vsel %vm3161, 0, %v3160
        %v3163 = vsub.s32 32, %v3162
        %v3164 = vshll.u32 %v3155, %v3162
        %v3165 = vshrl.u32 %v3147, %v3163
        %v3166 = vor.u32 %v3164, %v3165
        %v3167 = vsub.s32 4294967266, %v3162
        %v3168 = vadd.s32 %v3167, 127
        %v3169 = vshll.u32 %v3168, 23
        %v3170 = vor.u32 4788187, %v3169
        %v3171 = vand.u32 2147483647, %v3170
        %v3173 = vcvt.s32.f32 %v3166
        %v3174 = vmul.f32 %v3173, %v3171
        %v3175 = vxor.u32 %v3174, 2147483648
        %v3176 = vsel %vm3093, %v3175, %v3174
        %v3177 = vsub.s32 4, %v3153
        %v3178 = vsel %vm3093, %v3177, %v3153
        %v3179 = vsel %vm3092, %v690, %v3176
        %v3180 = vsel %vm3092, 0, %v3178
        %v3181 = vcosq.f32.pop %v3179
        %v3182 = vsinq.f32.pop %v3179
        %vm3183 = vweird.f32 %v690
        %v3184 = vadd.s32 %v3180, 3
        %v3185 = vand.u32 %v3184, 3
        %vm3186 = vcmp.lt.s32.totalorder %v3185, 2
        %vm3187 = vcmp.eq.s32.totalorder %v3185, 0
        %v3188 = vxor.u32 %v3182, 2147483648
        %v3189 = vsel %vm3187, %v3181, %v3188
        %vm3190 = vcmp.eq.s32.totalorder %v3185, 2
        %v3191 = vxor.u32 %v3181, 2147483648
        %v3192 = vsel %vm3190, %v3191, %v3182
        %v3193 = vsel %vm3186, %v3189, %v3192
        %v3194 = vsel %vm3183, nan, %v3193
        %v3195 = vand.u32 2147483647, %v691
        %vm3196 = vcmp.le.f32.partialorder %v3195, 0.7853982
        %vm3197 = vcmp.lt.s32.totalorder %v691, 0
        %v3198 = vand.u32 %v691, 2139095040
        %v3199 = vshrl.u32 %v3198, 23
        %v3200 = vsub.s32 %v3199, 127
        %v3201 = vand.u32 2147483647, %v691
        %v3202 = vand.u32 %v3201, 8388607
        %v3203 = vor.u32 %v3202, 8388608
        %v3204 = vsub.s32 0, %v3203
        %v3205 = vadd.s32 %v3200, 1
        %vm3206 = vcmp.gt.s32.totalorder %v3205, 0
        %v3207 = vsel %vm3206, %v3205, 0
        %v3208 = vshrl.u32 %v3207, 5
        %v3209 = vand.u32 %v3207, 31
        %v3210 = vsub.s32 32, %v3209
        %v3211 = vshrl.u32 683565275, %v3210
        %v3212 = vshll.u32 683565275, %v3209
        %v3213 = vshrl.u32 2475754826, %v3210
        %v3214 = vor.u32 %v3212, %v3213
        %v3215 = vshll.u32 2475754826, %v3209
        %v3216 = vshrl.u32 2131351028, %v3210
        %v3217 = vor.u32 %v3215, %v3216
        %v3218 = vshll.u32 2131351028, %v3209
        %v3219 = vshrl.u32 2102212464, %v3210
        %v3220 = vor.u32 %v3218, %v3219
        %v3221 = vshll.u32 2102212464, %v3209
        %v3222 = vshrl.u32 920167782, %v3210
        %v3223 = vor.u32 %v3221, %v3222
        %v3224 = vshll.u32 920167782, %v3209
        %v3225 = vshrl.u32 1326507024, %v3210
        %v3226 = vor.u32 %v3224, %v3225
        %vm3227 = vcmp.lt.s32.totalorder %v3208, 1
        %vm3228 = vcmp.lt.s32.totalorder %v3208, 2
        %vm3229 = vcmp.lt.s32.totalorder %v3208, 3
        %vm3230 = vcmp.lt.s32.totalorder %v3208, 4
        %v3231 = vsel %vm3227, %v3211, %v3214
        %v3232 = vsel %vm3230, %v3220, 2102212464
        %v3233 = vsel %vm3229, %v3217, %v3232
        %v3234 = vsel %vm3228, %v3231, %v3233
        %v3235 = vsel %vm3227, %v3214, %v3217
        %v3236 = vsel %vm3230, %v3223, 920167782
        %v3237 = vsel %vm3229, %v3220, %v3236
        %v3238 = vsel %vm3228, %v3235, %v3237
        %v3239 = vsel %vm3227, %v3217, %v3220
        %v3240 = vsel %vm3230, %v3226, 1326507024
        %v3241 = vsel %vm3229, %v3223, %v3240
        %v3242 = vsel %vm3228, %v3239, %v3241
        %v3243 = vshll.u32 %v3203, 8
        %v3244 = vmul.u32.u64.compose %v3243, %v3242
        %v3245 = vextract.low.u32 %v3244
        %v3246 = vextract.high.u32 %v3244
        %v3247 = vmul.u32.u64.compose %v3243, %v3238
        %v3248 = vextract.low.u32 %v3247
        %v3249 = vextract.high.u32 %v3247
        %v3250 = vmul.u32 %v3243, %v3234
        %v3251 = vadd.s32 %v3246, %v3248
        %vm3252 = vc.u32 %v3246, %v3248
        %v3253 = vadd.s32 %v3249, 1
        %v3254 = vsel %vm3252, %v3253, %v3249
        %v3255 = vadd.s32 %v3250, %v3254
        %v3256 = vadd.s32 %v3255, 536870912
        %v3257 = vshrl.u32 %v3256, 30
        %v3258 = vshll.u32 %v3257, 30
        %v3259 = vsub.s32 %v3255, %v3258
        %vm3260 = vcmp.lt.s32.totalorder %v3259, 0
        %v3261 = vsub.s32 0, %v3259
        %v3262 = vsel %vm3260, %v3261, %v3259
        %v3263 = vclz %v3262
        %v3264 = vsub.s32 %v3263, 2
        %vm3265 = vcmp.gt.s32.totalorder 0, %v3264
        %v3266 = vsel %vm3265, 0, %v3264
        %v3267 = vsub.s32 32, %v3266
        %v3268 = vshll.u32 %v3259, %v3266
        %v3269 = vshrl.u32 %v3251, %v3267
        %v3270 = vor.u32 %v3268, %v3269
        %v3271 = vsub.s32 4294967266, %v3266
        %v3272 = vadd.s32 %v3271, 127
        %v3273 = vshll.u32 %v3272, 23
        %v3274 = vor.u32 4788187, %v3273
        %v3275 = vand.u32 2147483647, %v3274
        %v3277 = vcvt.s32.f32 %v3270
        %v3278 = vmul.f32 %v3277, %v3275
        %v3279 = vxor.u32 %v3278, 2147483648
        %v3280 = vsel %vm3197, %v3279, %v3278
        %v3281 = vsub.s32 4, %v3257
        %v3282 = vsel %vm3197, %v3281, %v3257
        %v3283 = vsel %vm3196, %v691, %v3280
        %v3284 = vsel %vm3196, 0, %v3282
        %v3285 = vcosq.f32.pop %v3283
        %v3286 = vsinq.f32.pop %v3283
        %vm3287 = vweird.f32 %v691
        %v3288 = vadd.s32 %v3284, 3
        %v3289 = vand.u32 %v3288, 3
        %vm3290 = vcmp.lt.s32.totalorder %v3289, 2
        %vm3291 = vcmp.eq.s32.totalorder %v3289, 0
        %v3292 = vxor.u32 %v3286, 2147483648
        %v3293 = vsel %vm3291, %v3285, %v3292
        %vm3294 = vcmp.eq.s32.totalorder %v3289, 2
        %v3295 = vxor.u32 %v3285, 2147483648
        %v3296 = vsel %vm3294, %v3295, %v3286
        %v3297 = vsel %vm3290, %v3293, %v3296
        %v3298 = vsel %vm3287, nan, %v3297
        %v3299 = vand.u32 2147483647, %v692
        %vm3300 = vcmp.le.f32.partialorder %v3299, 0.7853982
        %vm3301 = vcmp.lt.s32.totalorder %v692, 0
        %v3302 = vand.u32 %v692, 2139095040
        %v3303 = vshrl.u32 %v3302, 23
        %v3304 = vsub.s32 %v3303, 127
        %v3305 = vand.u32 2147483647, %v692
        %v3306 = vand.u32 %v3305, 8388607
        %v3307 = vor.u32 %v3306, 8388608
        %v3308 = vsub.s32 0, %v3307
        %v3309 = vadd.s32 %v3304, 1
        %vm3310 = vcmp.gt.s32.totalorder %v3309, 0
        %v3311 = vsel %vm3310, %v3309, 0
        %v3312 = vshrl.u32 %v3311, 5
        %v3313 = vand.u32 %v3311, 31
        %v3314 = vsub.s32 32, %v3313
        %v3315 = vshrl.u32 683565275, %v3314
        %v3316 = vshll.u32 683565275, %v3313
        %v3317 = vshrl.u32 2475754826, %v3314
        %v3318 = vor.u32 %v3316, %v3317
        %v3319 = vshll.u32 2475754826, %v3313
        %v3320 = vshrl.u32 2131351028, %v3314
        %v3321 = vor.u32 %v3319, %v3320
        %v3322 = vshll.u32 2131351028, %v3313
        %v3323 = vshrl.u32 2102212464, %v3314
        %v3324 = vor.u32 %v3322, %v3323
        %v3325 = vshll.u32 2102212464, %v3313
        %v3326 = vshrl.u32 920167782, %v3314
        %v3327 = vor.u32 %v3325, %v3326
        %v3328 = vshll.u32 920167782, %v3313
        %v3329 = vshrl.u32 1326507024, %v3314
        %v3330 = vor.u32 %v3328, %v3329
        %vm3331 = vcmp.lt.s32.totalorder %v3312, 1
        %vm3332 = vcmp.lt.s32.totalorder %v3312, 2
        %vm3333 = vcmp.lt.s32.totalorder %v3312, 3
        %vm3334 = vcmp.lt.s32.totalorder %v3312, 4
        %v3335 = vsel %vm3331, %v3315, %v3318
        %v3336 = vsel %vm3334, %v3324, 2102212464
        %v3337 = vsel %vm3333, %v3321, %v3336
        %v3338 = vsel %vm3332, %v3335, %v3337
        %v3339 = vsel %vm3331, %v3318, %v3321
        %v3340 = vsel %vm3334, %v3327, 920167782
        %v3341 = vsel %vm3333, %v3324, %v3340
        %v3342 = vsel %vm3332, %v3339, %v3341
        %v3343 = vsel %vm3331, %v3321, %v3324
        %v3344 = vsel %vm3334, %v3330, 1326507024
        %v3345 = vsel %vm3333, %v3327, %v3344
        %v3346 = vsel %vm3332, %v3343, %v3345
        %v3347 = vshll.u32 %v3307, 8
        %v3348 = vmul.u32.u64.compose %v3347, %v3346
        %v3349 = vextract.low.u32 %v3348
        %v3350 = vextract.high.u32 %v3348
        %v3351 = vmul.u32.u64.compose %v3347, %v3342
        %v3352 = vextract.low.u32 %v3351
        %v3353 = vextract.high.u32 %v3351
        %v3354 = vmul.u32 %v3347, %v3338
        %v3355 = vadd.s32 %v3350, %v3352
        %vm3356 = vc.u32 %v3350, %v3352
        %v3357 = vadd.s32 %v3353, 1
        %v3358 = vsel %vm3356, %v3357, %v3353
        %v3359 = vadd.s32 %v3354, %v3358
        %v3360 = vadd.s32 %v3359, 536870912
        %v3361 = vshrl.u32 %v3360, 30
        %v3362 = vshll.u32 %v3361, 30
        %v3363 = vsub.s32 %v3359, %v3362
        %vm3364 = vcmp.lt.s32.totalorder %v3363, 0
        %v3365 = vsub.s32 0, %v3363
        %v3366 = vsel %vm3364, %v3365, %v3363
        %v3367 = vclz %v3366
        %v3368 = vsub.s32 %v3367, 2
        %vm3369 = vcmp.gt.s32.totalorder 0, %v3368
        %v3370 = vsel %vm3369, 0, %v3368
        %v3371 = vsub.s32 32, %v3370
        %v3372 = vshll.u32 %v3363, %v3370
        %v3373 = vshrl.u32 %v3355, %v3371
        %v3374 = vor.u32 %v3372, %v3373
        %v3375 = vsub.s32 4294967266, %v3370
        %v3376 = vadd.s32 %v3375, 127
        %v3377 = vshll.u32 %v3376, 23
        %v3378 = vor.u32 4788187, %v3377
        %v3379 = vand.u32 2147483647, %v3378
        %v3381 = vcvt.s32.f32 %v3374
        %v3382 = vmul.f32 %v3381, %v3379
        %v3383 = vxor.u32 %v3382, 2147483648
        %v3384 = vsel %vm3301, %v3383, %v3382
        %v3385 = vsub.s32 4, %v3361
        %v3386 = vsel %vm3301, %v3385, %v3361
        %v3387 = vsel %vm3300, %v692, %v3384
        %v3388 = vsel %vm3300, 0, %v3386
        %v3389 = vcosq.f32.pop %v3387
        %v3390 = vsinq.f32.pop %v3387
        %vm3391 = vweird.f32 %v692
        %v3392 = vadd.s32 %v3388, 3
        %v3393 = vand.u32 %v3392, 3
        %vm3394 = vcmp.lt.s32.totalorder %v3393, 2
        %vm3395 = vcmp.eq.s32.totalorder %v3393, 0
        %v3396 = vxor.u32 %v3390, 2147483648
        %v3397 = vsel %vm3395, %v3389, %v3396
        %vm3398 = vcmp.eq.s32.totalorder %v3393, 2
        %v3399 = vxor.u32 %v3389, 2147483648
        %v3400 = vsel %vm3398, %v3399, %v3390
        %v3401 = vsel %vm3394, %v3397, %v3400
        %v3402 = vsel %vm3391, nan, %v3401
        %v3403 = vand.u32 2147483647, %v693
        %vm3404 = vcmp.le.f32.partialorder %v3403, 0.7853982
        %vm3405 = vcmp.lt.s32.totalorder %v693, 0
        %v3406 = vand.u32 %v693, 2139095040
        %v3407 = vshrl.u32 %v3406, 23
        %v3408 = vsub.s32 %v3407, 127
        %v3409 = vand.u32 2147483647, %v693
        %v3410 = vand.u32 %v3409, 8388607
        %v3411 = vor.u32 %v3410, 8388608
        %v3412 = vsub.s32 0, %v3411
        %v3413 = vadd.s32 %v3408, 1
        %vm3414 = vcmp.gt.s32.totalorder %v3413, 0
        %v3415 = vsel %vm3414, %v3413, 0
        %v3416 = vshrl.u32 %v3415, 5
        %v3417 = vand.u32 %v3415, 31
        %v3418 = vsub.s32 32, %v3417
        %v3419 = vshrl.u32 683565275, %v3418
        %v3420 = vshll.u32 683565275, %v3417
        %v3421 = vshrl.u32 2475754826, %v3418
        %v3422 = vor.u32 %v3420, %v3421
        %v3423 = vshll.u32 2475754826, %v3417
        %v3424 = vshrl.u32 2131351028, %v3418
        %v3425 = vor.u32 %v3423, %v3424
        %v3426 = vshll.u32 2131351028, %v3417
        %v3427 = vshrl.u32 2102212464, %v3418
        %v3428 = vor.u32 %v3426, %v3427
        %v3429 = vshll.u32 2102212464, %v3417
        %v3430 = vshrl.u32 920167782, %v3418
        %v3431 = vor.u32 %v3429, %v3430
        %v3432 = vshll.u32 920167782, %v3417
        %v3433 = vshrl.u32 1326507024, %v3418
        %v3434 = vor.u32 %v3432, %v3433
        %vm3435 = vcmp.lt.s32.totalorder %v3416, 1
        %vm3436 = vcmp.lt.s32.totalorder %v3416, 2
        %vm3437 = vcmp.lt.s32.totalorder %v3416, 3
        %vm3438 = vcmp.lt.s32.totalorder %v3416, 4
        %v3439 = vsel %vm3435, %v3419, %v3422
        %v3440 = vsel %vm3438, %v3428, 2102212464
        %v3441 = vsel %vm3437, %v3425, %v3440
        %v3442 = vsel %vm3436, %v3439, %v3441
        %v3443 = vsel %vm3435, %v3422, %v3425
        %v3444 = vsel %vm3438, %v3431, 920167782
        %v3445 = vsel %vm3437, %v3428, %v3444
        %v3446 = vsel %vm3436, %v3443, %v3445
        %v3447 = vsel %vm3435, %v3425, %v3428
        %v3448 = vsel %vm3438, %v3434, 1326507024
        %v3449 = vsel %vm3437, %v3431, %v3448
        %v3450 = vsel %vm3436, %v3447, %v3449
        %v3451 = vshll.u32 %v3411, 8
        %v3452 = vmul.u32.u64.compose %v3451, %v3450
        %v3453 = vextract.low.u32 %v3452
        %v3454 = vextract.high.u32 %v3452
        %v3455 = vmul.u32.u64.compose %v3451, %v3446
        %v3456 = vextract.low.u32 %v3455
        %v3457 = vextract.high.u32 %v3455
        %v3458 = vmul.u32 %v3451, %v3442
        %v3459 = vadd.s32 %v3454, %v3456
        %vm3460 = vc.u32 %v3454, %v3456
        %v3461 = vadd.s32 %v3457, 1
        %v3462 = vsel %vm3460, %v3461, %v3457
        %v3463 = vadd.s32 %v3458, %v3462
        %v3464 = vadd.s32 %v3463, 536870912
        %v3465 = vshrl.u32 %v3464, 30
        %v3466 = vshll.u32 %v3465, 30
        %v3467 = vsub.s32 %v3463, %v3466
        %vm3468 = vcmp.lt.s32.totalorder %v3467, 0
        %v3469 = vsub.s32 0, %v3467
        %v3470 = vsel %vm3468, %v3469, %v3467
        %v3471 = vclz %v3470
        %v3472 = vsub.s32 %v3471, 2
        %vm3473 = vcmp.gt.s32.totalorder 0, %v3472
        %v3474 = vsel %vm3473, 0, %v3472
        %v3475 = vsub.s32 32, %v3474
        %v3476 = vshll.u32 %v3467, %v3474
        %v3477 = vshrl.u32 %v3459, %v3475
        %v3478 = vor.u32 %v3476, %v3477
        %v3479 = vsub.s32 4294967266, %v3474
        %v3480 = vadd.s32 %v3479, 127
        %v3481 = vshll.u32 %v3480, 23
        %v3482 = vor.u32 4788187, %v3481
        %v3483 = vand.u32 2147483647, %v3482
        %v3485 = vcvt.s32.f32 %v3478
        %v3486 = vmul.f32 %v3485, %v3483
        %v3487 = vxor.u32 %v3486, 2147483648
        %v3488 = vsel %vm3405, %v3487, %v3486
        %v3489 = vsub.s32 4, %v3465
        %v3490 = vsel %vm3405, %v3489, %v3465
        %v3491 = vsel %vm3404, %v693, %v3488
        %v3492 = vsel %vm3404, 0, %v3490
        %v3493 = vcosq.f32.pop %v3491
        %v3494 = vsinq.f32.pop %v3491
        %vm3495 = vweird.f32 %v693
        %v3496 = vadd.s32 %v3492, 3
        %v3497 = vand.u32 %v3496, 3
        %vm3498 = vcmp.lt.s32.totalorder %v3497, 2
        %vm3499 = vcmp.eq.s32.totalorder %v3497, 0
        %v3500 = vxor.u32 %v3494, 2147483648
        %v3501 = vsel %vm3499, %v3493, %v3500
        %vm3502 = vcmp.eq.s32.totalorder %v3497, 2
        %v3503 = vxor.u32 %v3493, 2147483648
        %v3504 = vsel %vm3502, %v3503, %v3494
        %v3505 = vsel %vm3498, %v3501, %v3504
        %v3506 = vsel %vm3495, nan, %v3505
        %v3507 = vand.u32 2147483647, %v694
        %vm3508 = vcmp.le.f32.partialorder %v3507, 0.7853982
        %vm3509 = vcmp.lt.s32.totalorder %v694, 0
        %v3510 = vand.u32 %v694, 2139095040
        %v3511 = vshrl.u32 %v3510, 23
        %v3512 = vsub.s32 %v3511, 127
        %v3513 = vand.u32 2147483647, %v694
        %v3514 = vand.u32 %v3513, 8388607
        %v3515 = vor.u32 %v3514, 8388608
        %v3516 = vsub.s32 0, %v3515
        %v3517 = vadd.s32 %v3512, 1
        %vm3518 = vcmp.gt.s32.totalorder %v3517, 0
        %v3519 = vsel %vm3518, %v3517, 0
        %v3520 = vshrl.u32 %v3519, 5
        %v3521 = vand.u32 %v3519, 31
        %v3522 = vsub.s32 32, %v3521
        %v3523 = vshrl.u32 683565275, %v3522
        %v3524 = vshll.u32 683565275, %v3521
        %v3525 = vshrl.u32 2475754826, %v3522
        %v3526 = vor.u32 %v3524, %v3525
        %v3527 = vshll.u32 2475754826, %v3521
        %v3528 = vshrl.u32 2131351028, %v3522
        %v3529 = vor.u32 %v3527, %v3528
        %v3530 = vshll.u32 2131351028, %v3521
        %v3531 = vshrl.u32 2102212464, %v3522
        %v3532 = vor.u32 %v3530, %v3531
        %v3533 = vshll.u32 2102212464, %v3521
        %v3534 = vshrl.u32 920167782, %v3522
        %v3535 = vor.u32 %v3533, %v3534
        %v3536 = vshll.u32 920167782, %v3521
        %v3537 = vshrl.u32 1326507024, %v3522
        %v3538 = vor.u32 %v3536, %v3537
        %vm3539 = vcmp.lt.s32.totalorder %v3520, 1
        %vm3540 = vcmp.lt.s32.totalorder %v3520, 2
        %vm3541 = vcmp.lt.s32.totalorder %v3520, 3
        %vm3542 = vcmp.lt.s32.totalorder %v3520, 4
        %v3543 = vsel %vm3539, %v3523, %v3526
        %v3544 = vsel %vm3542, %v3532, 2102212464
        %v3545 = vsel %vm3541, %v3529, %v3544
        %v3546 = vsel %vm3540, %v3543, %v3545
        %v3547 = vsel %vm3539, %v3526, %v3529
        %v3548 = vsel %vm3542, %v3535, 920167782
        %v3549 = vsel %vm3541, %v3532, %v3548
        %v3550 = vsel %vm3540, %v3547, %v3549
        %v3551 = vsel %vm3539, %v3529, %v3532
        %v3552 = vsel %vm3542, %v3538, 1326507024
        %v3553 = vsel %vm3541, %v3535, %v3552
        %v3554 = vsel %vm3540, %v3551, %v3553
        %v3555 = vshll.u32 %v3515, 8
        %v3556 = vmul.u32.u64.compose %v3555, %v3554
        %v3557 = vextract.low.u32 %v3556
        %v3558 = vextract.high.u32 %v3556
        %v3559 = vmul.u32.u64.compose %v3555, %v3550
        %v3560 = vextract.low.u32 %v3559
        %v3561 = vextract.high.u32 %v3559
        %v3562 = vmul.u32 %v3555, %v3546
        %v3563 = vadd.s32 %v3558, %v3560
        %vm3564 = vc.u32 %v3558, %v3560
        %v3565 = vadd.s32 %v3561, 1
        %v3566 = vsel %vm3564, %v3565, %v3561
        %v3567 = vadd.s32 %v3562, %v3566
        %v3568 = vadd.s32 %v3567, 536870912
        %v3569 = vshrl.u32 %v3568, 30
        %v3570 = vshll.u32 %v3569, 30
        %v3571 = vsub.s32 %v3567, %v3570
        %vm3572 = vcmp.lt.s32.totalorder %v3571, 0
        %v3573 = vsub.s32 0, %v3571
        %v3574 = vsel %vm3572, %v3573, %v3571
        %v3575 = vclz %v3574
        %v3576 = vsub.s32 %v3575, 2
        %vm3577 = vcmp.gt.s32.totalorder 0, %v3576
        %v3578 = vsel %vm3577, 0, %v3576
        %v3579 = vsub.s32 32, %v3578
        %v3580 = vshll.u32 %v3571, %v3578
        %v3581 = vshrl.u32 %v3563, %v3579
        %v3582 = vor.u32 %v3580, %v3581
        %v3583 = vsub.s32 4294967266, %v3578
        %v3584 = vadd.s32 %v3583, 127
        %v3585 = vshll.u32 %v3584, 23
        %v3586 = vor.u32 4788187, %v3585
        %v3587 = vand.u32 2147483647, %v3586
        %v3589 = vcvt.s32.f32 %v3582
        %v3590 = vmul.f32 %v3589, %v3587
        %v3591 = vxor.u32 %v3590, 2147483648
        %v3592 = vsel %vm3509, %v3591, %v3590
        %v3593 = vsub.s32 4, %v3569
        %v3594 = vsel %vm3509, %v3593, %v3569
        %v3595 = vsel %vm3508, %v694, %v3592
        %v3596 = vsel %vm3508, 0, %v3594
        %v3597 = vcosq.f32.pop %v3595
        %v3598 = vsinq.f32.pop %v3595
        %vm3599 = vweird.f32 %v694
        %v3600 = vadd.s32 %v3596, 3
        %v3601 = vand.u32 %v3600, 3
        %vm3602 = vcmp.lt.s32.totalorder %v3601, 2
        %vm3603 = vcmp.eq.s32.totalorder %v3601, 0
        %v3604 = vxor.u32 %v3598, 2147483648
        %v3605 = vsel %vm3603, %v3597, %v3604
        %vm3606 = vcmp.eq.s32.totalorder %v3601, 2
        %v3607 = vxor.u32 %v3597, 2147483648
        %v3608 = vsel %vm3606, %v3607, %v3598
        %v3609 = vsel %vm3602, %v3605, %v3608
        %v3610 = vsel %vm3599, nan, %v3609
        %v3611 = vand.u32 2147483647, %v695
        %vm3612 = vcmp.le.f32.partialorder %v3611, 0.7853982
        %vm3613 = vcmp.lt.s32.totalorder %v695, 0
        %v3614 = vand.u32 %v695, 2139095040
        %v3615 = vshrl.u32 %v3614, 23
        %v3616 = vsub.s32 %v3615, 127
        %v3617 = vand.u32 2147483647, %v695
        %v3618 = vand.u32 %v3617, 8388607
        %v3619 = vor.u32 %v3618, 8388608
        %v3620 = vsub.s32 0, %v3619
        %v3621 = vadd.s32 %v3616, 1
        %vm3622 = vcmp.gt.s32.totalorder %v3621, 0
        %v3623 = vsel %vm3622, %v3621, 0
        %v3624 = vshrl.u32 %v3623, 5
        %v3625 = vand.u32 %v3623, 31
        %v3626 = vsub.s32 32, %v3625
        %v3627 = vshrl.u32 683565275, %v3626
        %v3628 = vshll.u32 683565275, %v3625
        %v3629 = vshrl.u32 2475754826, %v3626
        %v3630 = vor.u32 %v3628, %v3629
        %v3631 = vshll.u32 2475754826, %v3625
        %v3632 = vshrl.u32 2131351028, %v3626
        %v3633 = vor.u32 %v3631, %v3632
        %v3634 = vshll.u32 2131351028, %v3625
        %v3635 = vshrl.u32 2102212464, %v3626
        %v3636 = vor.u32 %v3634, %v3635
        %v3637 = vshll.u32 2102212464, %v3625
        %v3638 = vshrl.u32 920167782, %v3626
        %v3639 = vor.u32 %v3637, %v3638
        %v3640 = vshll.u32 920167782, %v3625
        %v3641 = vshrl.u32 1326507024, %v3626
        %v3642 = vor.u32 %v3640, %v3641
        %vm3643 = vcmp.lt.s32.totalorder %v3624, 1
        %vm3644 = vcmp.lt.s32.totalorder %v3624, 2
        %vm3645 = vcmp.lt.s32.totalorder %v3624, 3
        %vm3646 = vcmp.lt.s32.totalorder %v3624, 4
        %v3647 = vsel %vm3643, %v3627, %v3630
        %v3648 = vsel %vm3646, %v3636, 2102212464
        %v3649 = vsel %vm3645, %v3633, %v3648
        %v3650 = vsel %vm3644, %v3647, %v3649
        %v3651 = vsel %vm3643, %v3630, %v3633
        %v3652 = vsel %vm3646, %v3639, 920167782
        %v3653 = vsel %vm3645, %v3636, %v3652
        %v3654 = vsel %vm3644, %v3651, %v3653
        %v3655 = vsel %vm3643, %v3633, %v3636
        %v3656 = vsel %vm3646, %v3642, 1326507024
        %v3657 = vsel %vm3645, %v3639, %v3656
        %v3658 = vsel %vm3644, %v3655, %v3657
        %v3659 = vshll.u32 %v3619, 8
        %v3660 = vmul.u32.u64.compose %v3659, %v3658
        %v3661 = vextract.low.u32 %v3660
        %v3662 = vextract.high.u32 %v3660
        %v3663 = vmul.u32.u64.compose %v3659, %v3654
        %v3664 = vextract.low.u32 %v3663
        %v3665 = vextract.high.u32 %v3663
        %v3666 = vmul.u32 %v3659, %v3650
        %v3667 = vadd.s32 %v3662, %v3664
        %vm3668 = vc.u32 %v3662, %v3664
        %v3669 = vadd.s32 %v3665, 1
        %v3670 = vsel %vm3668, %v3669, %v3665
        %v3671 = vadd.s32 %v3666, %v3670
        %v3672 = vadd.s32 %v3671, 536870912
        %v3673 = vshrl.u32 %v3672, 30
        %v3674 = vshll.u32 %v3673, 30
        %v3675 = vsub.s32 %v3671, %v3674
        %vm3676 = vcmp.lt.s32.totalorder %v3675, 0
        %v3677 = vsub.s32 0, %v3675
        %v3678 = vsel %vm3676, %v3677, %v3675
        %v3679 = vclz %v3678
        %v3680 = vsub.s32 %v3679, 2
        %vm3681 = vcmp.gt.s32.totalorder 0, %v3680
        %v3682 = vsel %vm3681, 0, %v3680
        %v3683 = vsub.s32 32, %v3682
        %v3684 = vshll.u32 %v3675, %v3682
        %v3685 = vshrl.u32 %v3667, %v3683
        %v3686 = vor.u32 %v3684, %v3685
        %v3687 = vsub.s32 4294967266, %v3682
        %v3688 = vadd.s32 %v3687, 127
        %v3689 = vshll.u32 %v3688, 23
        %v3690 = vor.u32 4788187, %v3689
        %v3691 = vand.u32 2147483647, %v3690
        %v3693 = vcvt.s32.f32 %v3686
        %v3694 = vmul.f32 %v3693, %v3691
        %v3695 = vxor.u32 %v3694, 2147483648
        %v3696 = vsel %vm3613, %v3695, %v3694
        %v3697 = vsub.s32 4, %v3673
        %v3698 = vsel %vm3613, %v3697, %v3673
        %v3699 = vsel %vm3612, %v695, %v3696
        %v3700 = vsel %vm3612, 0, %v3698
        %v3701 = vcosq.f32.pop %v3699
        %v3702 = vsinq.f32.pop %v3699
        %vm3703 = vweird.f32 %v695
        %v3704 = vadd.s32 %v3700, 3
        %v3705 = vand.u32 %v3704, 3
        %vm3706 = vcmp.lt.s32.totalorder %v3705, 2
        %vm3707 = vcmp.eq.s32.totalorder %v3705, 0
        %v3708 = vxor.u32 %v3702, 2147483648
        %v3709 = vsel %vm3707, %v3701, %v3708
        %vm3710 = vcmp.eq.s32.totalorder %v3705, 2
        %v3711 = vxor.u32 %v3701, 2147483648
        %v3712 = vsel %vm3710, %v3711, %v3702
        %v3713 = vsel %vm3706, %v3709, %v3712
        %v3714 = vsel %vm3703, nan, %v3713
        %v3715 = vand.u32 2147483647, %v696
        %vm3716 = vcmp.le.f32.partialorder %v3715, 0.7853982
        %vm3717 = vcmp.lt.s32.totalorder %v696, 0
        %v3718 = vand.u32 %v696, 2139095040
        %v3719 = vshrl.u32 %v3718, 23
        %v3720 = vsub.s32 %v3719, 127
        %v3721 = vand.u32 2147483647, %v696
        %v3722 = vand.u32 %v3721, 8388607
        %v3723 = vor.u32 %v3722, 8388608
        %v3724 = vsub.s32 0, %v3723
        %v3725 = vadd.s32 %v3720, 1
        %vm3726 = vcmp.gt.s32.totalorder %v3725, 0
        %v3727 = vsel %vm3726, %v3725, 0
        %v3728 = vshrl.u32 %v3727, 5
        %v3729 = vand.u32 %v3727, 31
        %v3730 = vsub.s32 32, %v3729
        %v3731 = vshrl.u32 683565275, %v3730
        %v3732 = vshll.u32 683565275, %v3729
        %v3733 = vshrl.u32 2475754826, %v3730
        %v3734 = vor.u32 %v3732, %v3733
        %v3735 = vshll.u32 2475754826, %v3729
        %v3736 = vshrl.u32 2131351028, %v3730
        %v3737 = vor.u32 %v3735, %v3736
        %v3738 = vshll.u32 2131351028, %v3729
        %v3739 = vshrl.u32 2102212464, %v3730
        %v3740 = vor.u32 %v3738, %v3739
        %v3741 = vshll.u32 2102212464, %v3729
        %v3742 = vshrl.u32 920167782, %v3730
        %v3743 = vor.u32 %v3741, %v3742
        %v3744 = vshll.u32 920167782, %v3729
        %v3745 = vshrl.u32 1326507024, %v3730
        %v3746 = vor.u32 %v3744, %v3745
        %vm3747 = vcmp.lt.s32.totalorder %v3728, 1
        %vm3748 = vcmp.lt.s32.totalorder %v3728, 2
        %vm3749 = vcmp.lt.s32.totalorder %v3728, 3
        %vm3750 = vcmp.lt.s32.totalorder %v3728, 4
        %v3751 = vsel %vm3747, %v3731, %v3734
        %v3752 = vsel %vm3750, %v3740, 2102212464
        %v3753 = vsel %vm3749, %v3737, %v3752
        %v3754 = vsel %vm3748, %v3751, %v3753
        %v3755 = vsel %vm3747, %v3734, %v3737
        %v3756 = vsel %vm3750, %v3743, 920167782
        %v3757 = vsel %vm3749, %v3740, %v3756
        %v3758 = vsel %vm3748, %v3755, %v3757
        %v3759 = vsel %vm3747, %v3737, %v3740
        %v3760 = vsel %vm3750, %v3746, 1326507024
        %v3761 = vsel %vm3749, %v3743, %v3760
        %v3762 = vsel %vm3748, %v3759, %v3761
        %v3763 = vshll.u32 %v3723, 8
        %v3764 = vmul.u32.u64.compose %v3763, %v3762
        %v3765 = vextract.low.u32 %v3764
        %v3766 = vextract.high.u32 %v3764
        %v3767 = vmul.u32.u64.compose %v3763, %v3758
        %v3768 = vextract.low.u32 %v3767
        %v3769 = vextract.high.u32 %v3767
        %v3770 = vmul.u32 %v3763, %v3754
        %v3771 = vadd.s32 %v3766, %v3768
        %vm3772 = vc.u32 %v3766, %v3768
        %v3773 = vadd.s32 %v3769, 1
        %v3774 = vsel %vm3772, %v3773, %v3769
        %v3775 = vadd.s32 %v3770, %v3774
        %v3776 = vadd.s32 %v3775, 536870912
        %v3777 = vshrl.u32 %v3776, 30
        %v3778 = vshll.u32 %v3777, 30
        %v3779 = vsub.s32 %v3775, %v3778
        %vm3780 = vcmp.lt.s32.totalorder %v3779, 0
        %v3781 = vsub.s32 0, %v3779
        %v3782 = vsel %vm3780, %v3781, %v3779
        %v3783 = vclz %v3782
        %v3784 = vsub.s32 %v3783, 2
        %vm3785 = vcmp.gt.s32.totalorder 0, %v3784
        %v3786 = vsel %vm3785, 0, %v3784
        %v3787 = vsub.s32 32, %v3786
        %v3788 = vshll.u32 %v3779, %v3786
        %v3789 = vshrl.u32 %v3771, %v3787
        %v3790 = vor.u32 %v3788, %v3789
        %v3791 = vsub.s32 4294967266, %v3786
        %v3792 = vadd.s32 %v3791, 127
        %v3793 = vshll.u32 %v3792, 23
        %v3794 = vor.u32 4788187, %v3793
        %v3795 = vand.u32 2147483647, %v3794
        %v3797 = vcvt.s32.f32 %v3790
        %v3798 = vmul.f32 %v3797, %v3795
        %v3799 = vxor.u32 %v3798, 2147483648
        %v3800 = vsel %vm3717, %v3799, %v3798
        %v3801 = vsub.s32 4, %v3777
        %v3802 = vsel %vm3717, %v3801, %v3777
        %v3803 = vsel %vm3716, %v696, %v3800
        %v3804 = vsel %vm3716, 0, %v3802
        %v3805 = vcosq.f32.pop %v3803
        %v3806 = vsinq.f32.pop %v3803
        %vm3807 = vweird.f32 %v696
        %v3808 = vadd.s32 %v3804, 3
        %v3809 = vand.u32 %v3808, 3
        %vm3810 = vcmp.lt.s32.totalorder %v3809, 2
        %vm3811 = vcmp.eq.s32.totalorder %v3809, 0
        %v3812 = vxor.u32 %v3806, 2147483648
        %v3813 = vsel %vm3811, %v3805, %v3812
        %vm3814 = vcmp.eq.s32.totalorder %v3809, 2
        %v3815 = vxor.u32 %v3805, 2147483648
        %v3816 = vsel %vm3814, %v3815, %v3806
        %v3817 = vsel %vm3810, %v3813, %v3816
        %v3818 = vsel %vm3807, nan, %v3817
        %v3819 = vand.u32 2147483647, %v697
        %vm3820 = vcmp.le.f32.partialorder %v3819, 0.7853982
        %vm3821 = vcmp.lt.s32.totalorder %v697, 0
        %v3822 = vand.u32 %v697, 2139095040
        %v3823 = vshrl.u32 %v3822, 23
        %v3824 = vsub.s32 %v3823, 127
        %v3825 = vand.u32 2147483647, %v697
        %v3826 = vand.u32 %v3825, 8388607
        %v3827 = vor.u32 %v3826, 8388608
        %v3828 = vsub.s32 0, %v3827
        %v3829 = vadd.s32 %v3824, 1
        %vm3830 = vcmp.gt.s32.totalorder %v3829, 0
        %v3831 = vsel %vm3830, %v3829, 0
        %v3832 = vshrl.u32 %v3831, 5
        %v3833 = vand.u32 %v3831, 31
        %v3834 = vsub.s32 32, %v3833
        %v3835 = vshrl.u32 683565275, %v3834
        %v3836 = vshll.u32 683565275, %v3833
        %v3837 = vshrl.u32 2475754826, %v3834
        %v3838 = vor.u32 %v3836, %v3837
        %v3839 = vshll.u32 2475754826, %v3833
        %v3840 = vshrl.u32 2131351028, %v3834
        %v3841 = vor.u32 %v3839, %v3840
        %v3842 = vshll.u32 2131351028, %v3833
        %v3843 = vshrl.u32 2102212464, %v3834
        %v3844 = vor.u32 %v3842, %v3843
        %v3845 = vshll.u32 2102212464, %v3833
        %v3846 = vshrl.u32 920167782, %v3834
        %v3847 = vor.u32 %v3845, %v3846
        %v3848 = vshll.u32 920167782, %v3833
        %v3849 = vshrl.u32 1326507024, %v3834
        %v3850 = vor.u32 %v3848, %v3849
        %vm3851 = vcmp.lt.s32.totalorder %v3832, 1
        %vm3852 = vcmp.lt.s32.totalorder %v3832, 2
        %vm3853 = vcmp.lt.s32.totalorder %v3832, 3
        %vm3854 = vcmp.lt.s32.totalorder %v3832, 4
        %v3855 = vsel %vm3851, %v3835, %v3838
        %v3856 = vsel %vm3854, %v3844, 2102212464
        %v3857 = vsel %vm3853, %v3841, %v3856
        %v3858 = vsel %vm3852, %v3855, %v3857
        %v3859 = vsel %vm3851, %v3838, %v3841
        %v3860 = vsel %vm3854, %v3847, 920167782
        %v3861 = vsel %vm3853, %v3844, %v3860
        %v3862 = vsel %vm3852, %v3859, %v3861
        %v3863 = vsel %vm3851, %v3841, %v3844
        %v3864 = vsel %vm3854, %v3850, 1326507024
        %v3865 = vsel %vm3853, %v3847, %v3864
        %v3866 = vsel %vm3852, %v3863, %v3865
        %v3867 = vshll.u32 %v3827, 8
        %v3868 = vmul.u32.u64.compose %v3867, %v3866
        %v3869 = vextract.low.u32 %v3868
        %v3870 = vextract.high.u32 %v3868
        %v3871 = vmul.u32.u64.compose %v3867, %v3862
        %v3872 = vextract.low.u32 %v3871
        %v3873 = vextract.high.u32 %v3871
        %v3874 = vmul.u32 %v3867, %v3858
        %v3875 = vadd.s32 %v3870, %v3872
        %vm3876 = vc.u32 %v3870, %v3872
        %v3877 = vadd.s32 %v3873, 1
        %v3878 = vsel %vm3876, %v3877, %v3873
        %v3879 = vadd.s32 %v3874, %v3878
        %v3880 = vadd.s32 %v3879, 536870912
        %v3881 = vshrl.u32 %v3880, 30
        %v3882 = vshll.u32 %v3881, 30
        %v3883 = vsub.s32 %v3879, %v3882
        %vm3884 = vcmp.lt.s32.totalorder %v3883, 0
        %v3885 = vsub.s32 0, %v3883
        %v3886 = vsel %vm3884, %v3885, %v3883
        %v3887 = vclz %v3886
        %v3888 = vsub.s32 %v3887, 2
        %vm3889 = vcmp.gt.s32.totalorder 0, %v3888
        %v3890 = vsel %vm3889, 0, %v3888
        %v3891 = vsub.s32 32, %v3890
        %v3892 = vshll.u32 %v3883, %v3890
        %v3893 = vshrl.u32 %v3875, %v3891
        %v3894 = vor.u32 %v3892, %v3893
        %v3895 = vsub.s32 4294967266, %v3890
        %v3896 = vadd.s32 %v3895, 127
        %v3897 = vshll.u32 %v3896, 23
        %v3898 = vor.u32 4788187, %v3897
        %v3899 = vand.u32 2147483647, %v3898
        %v3901 = vcvt.s32.f32 %v3894
        %v3902 = vmul.f32 %v3901, %v3899
        %v3903 = vxor.u32 %v3902, 2147483648
        %v3904 = vsel %vm3821, %v3903, %v3902
        %v3905 = vsub.s32 4, %v3881
        %v3906 = vsel %vm3821, %v3905, %v3881
        %v3907 = vsel %vm3820, %v697, %v3904
        %v3908 = vsel %vm3820, 0, %v3906
        %v3909 = vcosq.f32.pop %v3907
        %v3910 = vsinq.f32.pop %v3907
        %vm3911 = vweird.f32 %v697
        %v3912 = vadd.s32 %v3908, 3
        %v3913 = vand.u32 %v3912, 3
        %vm3914 = vcmp.lt.s32.totalorder %v3913, 2
        %vm3915 = vcmp.eq.s32.totalorder %v3913, 0
        %v3916 = vxor.u32 %v3910, 2147483648
        %v3917 = vsel %vm3915, %v3909, %v3916
        %vm3918 = vcmp.eq.s32.totalorder %v3913, 2
        %v3919 = vxor.u32 %v3909, 2147483648
        %v3920 = vsel %vm3918, %v3919, %v3910
        %v3921 = vsel %vm3914, %v3917, %v3920
        %v3922 = vsel %vm3911, nan, %v3921
        %v3923 = vand.u32 2147483647, %v698
        %vm3924 = vcmp.le.f32.partialorder %v3923, 0.7853982
        %vm3925 = vcmp.lt.s32.totalorder %v698, 0
        %v3926 = vand.u32 %v698, 2139095040
        %v3927 = vshrl.u32 %v3926, 23
        %v3928 = vsub.s32 %v3927, 127
        %v3929 = vand.u32 2147483647, %v698
        %v3930 = vand.u32 %v3929, 8388607
        %v3931 = vor.u32 %v3930, 8388608
        %v3932 = vsub.s32 0, %v3931
        %v3933 = vadd.s32 %v3928, 1
        %vm3934 = vcmp.gt.s32.totalorder %v3933, 0
        %v3935 = vsel %vm3934, %v3933, 0
        %v3936 = vshrl.u32 %v3935, 5
        %v3937 = vand.u32 %v3935, 31
        %v3938 = vsub.s32 32, %v3937
        %v3939 = vshrl.u32 683565275, %v3938
        %v3940 = vshll.u32 683565275, %v3937
        %v3941 = vshrl.u32 2475754826, %v3938
        %v3942 = vor.u32 %v3940, %v3941
        %v3943 = vshll.u32 2475754826, %v3937
        %v3944 = vshrl.u32 2131351028, %v3938
        %v3945 = vor.u32 %v3943, %v3944
        %v3946 = vshll.u32 2131351028, %v3937
        %v3947 = vshrl.u32 2102212464, %v3938
        %v3948 = vor.u32 %v3946, %v3947
        %v3949 = vshll.u32 2102212464, %v3937
        %v3950 = vshrl.u32 920167782, %v3938
        %v3951 = vor.u32 %v3949, %v3950
        %v3952 = vshll.u32 920167782, %v3937
        %v3953 = vshrl.u32 1326507024, %v3938
        %v3954 = vor.u32 %v3952, %v3953
        %vm3955 = vcmp.lt.s32.totalorder %v3936, 1
        %vm3956 = vcmp.lt.s32.totalorder %v3936, 2
        %vm3957 = vcmp.lt.s32.totalorder %v3936, 3
        %vm3958 = vcmp.lt.s32.totalorder %v3936, 4
        %v3959 = vsel %vm3955, %v3939, %v3942
        %v3960 = vsel %vm3958, %v3948, 2102212464
        %v3961 = vsel %vm3957, %v3945, %v3960
        %v3962 = vsel %vm3956, %v3959, %v3961
        %v3963 = vsel %vm3955, %v3942, %v3945
        %v3964 = vsel %vm3958, %v3951, 920167782
        %v3965 = vsel %vm3957, %v3948, %v3964
        %v3966 = vsel %vm3956, %v3963, %v3965
        %v3967 = vsel %vm3955, %v3945, %v3948
        %v3968 = vsel %vm3958, %v3954, 1326507024
        %v3969 = vsel %vm3957, %v3951, %v3968
        %v3970 = vsel %vm3956, %v3967, %v3969
        %v3971 = vshll.u32 %v3931, 8
        %v3972 = vmul.u32.u64.compose %v3971, %v3970
        %v3973 = vextract.low.u32 %v3972
        %v3974 = vextract.high.u32 %v3972
        %v3975 = vmul.u32.u64.compose %v3971, %v3966
        %v3976 = vextract.low.u32 %v3975
        %v3977 = vextract.high.u32 %v3975
        %v3978 = vmul.u32 %v3971, %v3962
        %v3979 = vadd.s32 %v3974, %v3976
        %vm3980 = vc.u32 %v3974, %v3976
        %v3981 = vadd.s32 %v3977, 1
        %v3982 = vsel %vm3980, %v3981, %v3977
        %v3983 = vadd.s32 %v3978, %v3982
        %v3984 = vadd.s32 %v3983, 536870912
        %v3985 = vshrl.u32 %v3984, 30
        %v3986 = vshll.u32 %v3985, 30
        %v3987 = vsub.s32 %v3983, %v3986
        %vm3988 = vcmp.lt.s32.totalorder %v3987, 0
        %v3989 = vsub.s32 0, %v3987
        %v3990 = vsel %vm3988, %v3989, %v3987
        %v3991 = vclz %v3990
        %v3992 = vsub.s32 %v3991, 2
        %vm3993 = vcmp.gt.s32.totalorder 0, %v3992
        %v3994 = vsel %vm3993, 0, %v3992
        %v3995 = vsub.s32 32, %v3994
        %v3996 = vshll.u32 %v3987, %v3994
        %v3997 = vshrl.u32 %v3979, %v3995
        %v3998 = vor.u32 %v3996, %v3997
        %v3999 = vsub.s32 4294967266, %v3994
        %v4000 = vadd.s32 %v3999, 127
        %v4001 = vshll.u32 %v4000, 23
        %v4002 = vor.u32 4788187, %v4001
        %v4003 = vand.u32 2147483647, %v4002
        %v4005 = vcvt.s32.f32 %v3998
        %v4006 = vmul.f32 %v4005, %v4003
        %v4007 = vxor.u32 %v4006, 2147483648
        %v4008 = vsel %vm3925, %v4007, %v4006
        %v4009 = vsub.s32 4, %v3985
        %v4010 = vsel %vm3925, %v4009, %v3985
        %v4011 = vsel %vm3924, %v698, %v4008
        %v4012 = vsel %vm3924, 0, %v4010
        %v4013 = vcosq.f32.pop %v4011
        %v4014 = vsinq.f32.pop %v4011
        %vm4015 = vweird.f32 %v698
        %v4016 = vadd.s32 %v4012, 3
        %v4017 = vand.u32 %v4016, 3
        %vm4018 = vcmp.lt.s32.totalorder %v4017, 2
        %vm4019 = vcmp.eq.s32.totalorder %v4017, 0
        %v4020 = vxor.u32 %v4014, 2147483648
        %v4021 = vsel %vm4019, %v4013, %v4020
        %vm4022 = vcmp.eq.s32.totalorder %v4017, 2
        %v4023 = vxor.u32 %v4013, 2147483648
        %v4024 = vsel %vm4022, %v4023, %v4014
        %v4025 = vsel %vm4018, %v4021, %v4024
        %v4026 = vsel %vm4015, nan, %v4025
        %v4027 = vlaneseq
        %v4028 = vshrl.u32 %v4027, 7
        %v4029 = vsub.s32 4, %v4028
        %v4030 = vrot.slane %v300, %v4029
        %v4031 = vmul.f32 %v4030, %v802
        %v4032 = vmul.f32 %v4030, %v906
        %v4033 = vmul.f32 %v4030, %v1010
        %v4034 = vmul.f32 %v4030, %v1114
        %v4035 = vmul.f32 %v4030, %v1218
        %v4036 = vmul.f32 %v4030, %v1322
        %v4037 = vmul.f32 %v4030, %v1426
        %v4038 = vmul.f32 %v4030, %v1530
        %v4039 = vmul.f32 %v4030, %v1634
        %v4040 = vmul.f32 %v4030, %v1738
        %v4041 = vmul.f32 %v4030, %v1842
        %v4042 = vmul.f32 %v4030, %v1946
        %v4043 = vmul.f32 %v4030, %v2050
        %v4044 = vmul.f32 %v4030, %v2154
        %v4045 = vmul.f32 %v4030, %v2258
        %v4046 = vmul.f32 %v4030, %v2362
        %v4047 = vmul.f32 %v4030, %v2466
        %v4048 = vmul.f32 %v4030, %v2570
        %v4049 = vmul.f32 %v4030, %v2674
        %v4050 = vmul.f32 %v4030, %v2778
        %v4051 = vmul.f32 %v4030, %v2882
        %v4052 = vmul.f32 %v4030, %v2986
        %v4053 = vmul.f32 %v4030, %v3090
        %v4054 = vmul.f32 %v4030, %v3194
        %v4055 = vmul.f32 %v4030, %v3298
        %v4056 = vmul.f32 %v4030, %v3402
        %v4057 = vmul.f32 %v4030, %v3506
        %v4058 = vmul.f32 %v4030, %v3610
        %v4059 = vmul.f32 %v4030, %v3714
        %v4060 = vmul.f32 %v4030, %v3818
        %v4061 = vmul.f32 %v4030, %v3922
        %v4062 = vmul.f32 %v4030, %v4026
        %v4063 = vadd.f32 %v631, %v4031
        %v4064 = vadd.f32 %v632, %v4032
        %v4065 = vadd.f32 %v633, %v4033
        %v4066 = vadd.f32 %v634, %v4034
        %v4067 = vadd.f32 %v635, %v4035
        %v4068 = vadd.f32 %v636, %v4036
        %v4069 = vadd.f32 %v637, %v4037
        %v4070 = vadd.f32 %v638, %v4038
        %v4071 = vadd.f32 %v639, %v4039
        %v4072 = vadd.f32 %v640, %v4040
        %v4073 = vadd.f32 %v641, %v4041
        %v4074 = vadd.f32 %v642, %v4042
        %v4075 = vadd.f32 %v643, %v4043
        %v4076 = vadd.f32 %v644, %v4044
        %v4077 = vadd.f32 %v645, %v4045
        %v4078 = vadd.f32 %v646, %v4046
        %v4079 = vadd.f32 %v647, %v4047
        %v4080 = vadd.f32 %v648, %v4048
        %v4081 = vadd.f32 %v649, %v4049
        %v4082 = vadd.f32 %v650, %v4050
        %v4083 = vadd.f32 %v651, %v4051
        %v4084 = vadd.f32 %v652, %v4052
        %v4085 = vadd.f32 %v653, %v4053
        %v4086 = vadd.f32 %v654, %v4054
        %v4087 = vadd.f32 %v655, %v4055
        %v4088 = vadd.f32 %v656, %v4056
        %v4089 = vadd.f32 %v657, %v4057
        %v4090 = vadd.f32 %v658, %v4058
        %v4091 = vadd.f32 %v659, %v4059
        %v4092 = vadd.f32 %v660, %v4060
        %v4093 = vadd.f32 %v661, %v4061
        %v4094 = vadd.f32 %v662, %v4062
        %v4095 = vld [vmem:[%s266] sm:$0x1]
        %v4096 = vld [vmem:[%s4] sm:$0xff]
        %v4097 = vld [vmem:[%s3] sm:$0xff]
        %v4098 = vld [vmem:[%s3 + $0x8] sm:$0xff]
        %v4099 = vld [vmem:[%s3 + $0x10] sm:$0xff]
        %v4100 = vld [vmem:[%s3 + $0x18] sm:$0xff]
        %v4102 = vlaneseq
        %v4103 = vshrl.u32 %v4102, 7
        %v4104 = vsub.s32 0, %v4103
        %v4105 = vrot.slane %v4095, %v4104
        %vm4107 = vcmask 261120
        %v4109 = vsel %vm4107, %v4063, 0
        %v4112 = vsel %vm4107, %v4064, 0
        %v4115 = vsel %vm4107, %v4065, 0
        %v4118 = vsel %vm4107, %v4066, 0
        %v4121 = vsel %vm4107, %v4067, 0
        %v4124 = vsel %vm4107, %v4068, 0
        %v4127 = vsel %vm4107, %v4069, 0
        %v4130 = vsel %vm4107, %v4070, 0
        %v4133 = vsel %vm4107, %v4071, 0
        %v4136 = vsel %vm4107, %v4072, 0
        %v4139 = vsel %vm4107, %v4073, 0
        %v4142 = vsel %vm4107, %v4074, 0
        %v4145 = vsel %vm4107, %v4075, 0
        %v4148 = vsel %vm4107, %v4076, 0
        %v4151 = vsel %vm4107, %v4077, 0
        %v4154 = vsel %vm4107, %v4078, 0
        %v4157 = vsel %vm4107, %v4079, 0
        %v4160 = vsel %vm4107, %v4080, 0
        %v4163 = vsel %vm4107, %v4081, 0
        %v4166 = vsel %vm4107, %v4082, 0
        %v4169 = vsel %vm4107, %v4083, 0
        %v4172 = vsel %vm4107, %v4084, 0
        %v4175 = vsel %vm4107, %v4085, 0
        %v4178 = vsel %vm4107, %v4086, 0
        %v4181 = vsel %vm4107, %v4087, 0
        %v4184 = vsel %vm4107, %v4088, 0
        %v4187 = vsel %vm4107, %v4089, 0
        %v4190 = vsel %vm4107, %v4090, 0
        %v4193 = vsel %vm4107, %v4091, 0
        %v4196 = vsel %vm4107, %v4092, 0
        %v4199 = vsel %vm4107, %v4093, 0
        %v4202 = vsel %vm4107, %v4094, 0
        %4204 = vmatprep.subr.mxu0 0.0
        %4205 = vmatpush1.msra.mxu0 %v4097
        %4206 = vmatprep.subr.mxu0 0.0
        %4207 = vmatpush1.msra.mxu0 %v4098
        %4208 = vmatprep.subr.mxu0 0.0
        %4209 = vmatpush1.msra.mxu0 %v4099
        %4210 = vmatprep.subr.mxu0 0.0
        %4211 = vmatpush1.msra.mxu0 %v4100
        %4212 = vmatprep.subr.mxu0 0.0
        %4213 = vmatpush1.msra.mxu0 0.0
        %4214 = vmatprep.subr.mxu0 0.0
        %4215 = vmatpush1.msra.mxu0 0.0
        %4216 = vmatprep.subr.mxu0 0.0
        %4217 = vmatpush1.msra.mxu0 0.0
        %4218 = vmatprep.subr.mxu0 0.0
        %4219 = vmatpush1.msra.mxu0 0.0
        %4220 = vmatprep.subr.mxu0 0.0
        %4221 = vmatpush1.msra.mxu0 0.0
        %4222 = vmatprep.subr.mxu0 0.0
        %4223 = vmatpush1.msra.mxu0 0.0
        %4224 = vmatprep.subr.mxu0 0.0
        %4225 = vmatpush1.msra.mxu0 0.0
        %4226 = vmatprep.subr.mxu0 0.0
        %4227 = vmatpush1.msra.mxu0 0.0
        %4228 = vmatprep.subr.mxu0 0.0
        %4229 = vmatpush1.msra.mxu0 0.0
        %4230 = vmatprep.subr.mxu0 0.0
        %4231 = vmatpush1.msra.mxu0 0.0
        %4232 = vmatprep.subr.mxu0 0.0
        %4233 = vmatpush1.msra.mxu0 0.0
        %4234 = vmatprep.subr.mxu0 0.0
        %4235 = vmatpush1.msra.mxu0 0.0
        %4236 = vmatprep.subr.mxu0 0.0
        %4237 = vmatpush1.msra.mxu0 0.0
        %4238 = vmatprep.subr.mxu0 0.0
        %4239 = vmatpush1.msra.mxu0 0.0
        %4240 = vmatprep.subr.mxu0 0.0
        %4241 = vmatpush1.msra.mxu0 0.0
        %4242 = vmatprep.subr.mxu0 0.0
        %4243 = vmatpush1.msra.mxu0 0.0
        %4244 = vmatprep.subr.mxu0 0.0
        %4245 = vmatpush1.msra.mxu0 0.0
        %4246 = vmatprep.subr.mxu0 0.0
        %4247 = vmatpush1.msra.mxu0 0.0
        %4248 = vmatprep.subr.mxu0 0.0
        %4249 = vmatpush1.msra.mxu0 0.0
        %4250 = vmatprep.subr.mxu0 0.0
        %4251 = vmatpush1.msra.mxu0 0.0
        %4252 = vmatprep.subr.mxu0 0.0
        %4253 = vmatpush1.msra.mxu0 0.0
        %4254 = vmatprep.subr.mxu0 0.0
        %4255 = vmatpush1.msra.mxu0 0.0
        %4256 = vmatprep.subr.mxu0 0.0
        %4257 = vmatpush1.msra.mxu0 0.0
        %4258 = vmatprep.subr.mxu0 0.0
        %4259 = vmatpush1.msra.mxu0 0.0
        %4260 = vmatprep.subr.mxu0 0.0
        %4261 = vmatpush1.msra.mxu0 0.0
        %4262 = vmatprep.subr.mxu0 0.0
        %4263 = vmatpush1.msra.mxu0 0.0
        %4264 = vmatprep.subr.mxu0 0.0
        %4265 = vmatpush1.msra.mxu0 0.0
        %4266 = vmatprep.subr.mxu0 0.0
        %4267 = vmatpush1.msra.mxu0 0.0
        %4268 = vmatprep.mubr.f32.mxu0 0.0
        %4269 = vmatmul.mubr.f32.gmra.mrb[0].mxu0 %v4109
        %v4270 = vpop.f32.mrb[0].mxu0
        %v4271 = vadd.f32 %v4105, %v4270
        %v4272 = vpop.f32.mrb[0].mxu0
        %4273 = vmatprep.mubr.f32.mxu0 0.0
        %4274 = vmatmul.mubr.f32.gmra.mrb[0].mxu0 %v4112
        %v4275 = vpop.f32.mrb[0].mxu0
        %v4276 = vadd.f32 %v4105, %v4275
        %v4277 = vpop.f32.mrb[0].mxu0
        %4278 = vmatprep.mubr.f32.mxu0 0.0
        %4279 = vmatmul.mubr.f32.gmra.mrb[0].mxu0 %v4115
        %v4280 = vpop.f32.mrb[0].mxu0
        %v4281 = vadd.f32 %v4105, %v4280
        %v4282 = vpop.f32.mrb[0].mxu0
        %4283 = vmatprep.mubr.f32.mxu0 0.0
        %4284 = vmatmul.mubr.f32.gmra.mrb[0].mxu0 %v4118
        %v4285 = vpop.f32.mrb[0].mxu0
        %v4286 = vadd.f32 %v4105, %v4285
        %v4287 = vpop.f32.mrb[0].mxu0
        %4288 = vmatprep.mubr.f32.mxu0 0.0
        %4289 = vmatmul.mubr.f32.gmra.mrb[0].mxu0 %v4121
        %v4290 = vpop.f32.mrb[0].mxu0
        %v4291 = vadd.f32 %v4105, %v4290
        %v4292 = vpop.f32.mrb[0].mxu0
        %4293 = vmatprep.mubr.f32.mxu0 0.0
        %4294 = vmatmul.mubr.f32.gmra.mrb[0].mxu0 %v4124
        %v4295 = vpop.f32.mrb[0].mxu0
        %v4296 = vadd.f32 %v4105, %v4295
        %v4297 = vpop.f32.mrb[0].mxu0
        %4298 = vmatprep.mubr.f32.mxu0 0.0
        %4299 = vmatmul.mubr.f32.gmra.mrb[0].mxu0 %v4127
        %v4300 = vpop.f32.mrb[0].mxu0
        %v4301 = vadd.f32 %v4105, %v4300
        %v4302 = vpop.f32.mrb[0].mxu0
        %4303 = vmatprep.mubr.f32.mxu0 0.0
        %4304 = vmatmul.mubr.f32.gmra.mrb[0].mxu0 %v4130
        %v4305 = vpop.f32.mrb[0].mxu0
        %v4306 = vadd.f32 %v4105, %v4305
        %v4307 = vpop.f32.mrb[0].mxu0
        %4308 = vmatprep.mubr.f32.mxu0 0.0
        %4309 = vmatmul.mubr.f32.gmra.mrb[0].mxu0 %v4133
        %v4310 = vpop.f32.mrb[0].mxu0
        %v4311 = vadd.f32 %v4105, %v4310
        %v4312 = vpop.f32.mrb[0].mxu0
        %4313 = vmatprep.mubr.f32.mxu0 0.0
        %4314 = vmatmul.mubr.f32.gmra.mrb[0].mxu0 %v4136
        %v4315 = vpop.f32.mrb[0].mxu0
        %v4316 = vadd.f32 %v4105, %v4315
        %v4317 = vpop.f32.mrb[0].mxu0
        %4318 = vmatprep.mubr.f32.mxu0 0.0
        %4319 = vmatmul.mubr.f32.gmra.mrb[0].mxu0 %v4139
        %v4320 = vpop.f32.mrb[0].mxu0
        %v4321 = vadd.f32 %v4105, %v4320
        %v4322 = vpop.f32.mrb[0].mxu0
        %4323 = vmatprep.mubr.f32.mxu0 0.0
        %4324 = vmatmul.mubr.f32.gmra.mrb[0].mxu0 %v4142
        %v4325 = vpop.f32.mrb[0].mxu0
        %v4326 = vadd.f32 %v4105, %v4325
        %v4327 = vpop.f32.mrb[0].mxu0
        %4328 = vmatprep.mubr.f32.mxu0 0.0
        %4329 = vmatmul.mubr.f32.gmra.mrb[0].mxu0 %v4145
        %v4330 = vpop.f32.mrb[0].mxu0
        %v4331 = vadd.f32 %v4105, %v4330
        %v4332 = vpop.f32.mrb[0].mxu0
        %4333 = vmatprep.mubr.f32.mxu0 0.0
        %4334 = vmatmul.mubr.f32.gmra.mrb[0].mxu0 %v4148
        %v4335 = vpop.f32.mrb[0].mxu0
        %v4336 = vadd.f32 %v4105, %v4335
        %v4337 = vpop.f32.mrb[0].mxu0
        %4338 = vmatprep.mubr.f32.mxu0 0.0
        %4339 = vmatmul.mubr.f32.gmra.mrb[0].mxu0 %v4151
        %v4340 = vpop.f32.mrb[0].mxu0
        %v4341 = vadd.f32 %v4105, %v4340
        %v4342 = vpop.f32.mrb[0].mxu0
        %4343 = vmatprep.mubr.f32.mxu0 0.0
        %4344 = vmatmul.mubr.f32.gmra.mrb[0].mxu0 %v4154
        %v4345 = vpop.f32.mrb[0].mxu0
        %v4346 = vadd.f32 %v4105, %v4345
        %v4347 = vpop.f32.mrb[0].mxu0
        %4348 = vmatprep.mubr.f32.mxu0 0.0
        %4349 = vmatmul.mubr.f32.gmra.mrb[0].mxu0 %v4157
        %v4350 = vpop.f32.mrb[0].mxu0
        %v4351 = vadd.f32 %v4105, %v4350
        %v4352 = vpop.f32.mrb[0].mxu0
        %4353 = vmatprep.mubr.f32.mxu0 0.0
        %4354 = vmatmul.mubr.f32.gmra.mrb[0].mxu0 %v4160
        %v4355 = vpop.f32.mrb[0].mxu0
        %v4356 = vadd.f32 %v4105, %v4355
        %v4357 = vpop.f32.mrb[0].mxu0
        %4358 = vmatprep.mubr.f32.mxu0 0.0
        %4359 = vmatmul.mubr.f32.gmra.mrb[0].mxu0 %v4163
        %v4360 = vpop.f32.mrb[0].mxu0
        %v4361 = vadd.f32 %v4105, %v4360
        %v4362 = vpop.f32.mrb[0].mxu0
        %4363 = vmatprep.mubr.f32.mxu0 0.0
        %4364 = vmatmul.mubr.f32.gmra.mrb[0].mxu0 %v4166
        %v4365 = vpop.f32.mrb[0].mxu0
        %v4366 = vadd.f32 %v4105, %v4365
        %v4367 = vpop.f32.mrb[0].mxu0
        %4368 = vmatprep.mubr.f32.mxu0 0.0
        %4369 = vmatmul.mubr.f32.gmra.mrb[0].mxu0 %v4169
        %v4370 = vpop.f32.mrb[0].mxu0
        %v4371 = vadd.f32 %v4105, %v4370
        %v4372 = vpop.f32.mrb[0].mxu0
        %4373 = vmatprep.mubr.f32.mxu0 0.0
        %4374 = vmatmul.mubr.f32.gmra.mrb[0].mxu0 %v4172
        %v4375 = vpop.f32.mrb[0].mxu0
        %v4376 = vadd.f32 %v4105, %v4375
        %v4377 = vpop.f32.mrb[0].mxu0
        %4378 = vmatprep.mubr.f32.mxu0 0.0
        %4379 = vmatmul.mubr.f32.gmra.mrb[0].mxu0 %v4175
        %v4380 = vpop.f32.mrb[0].mxu0
        %v4381 = vadd.f32 %v4105, %v4380
        %v4382 = vpop.f32.mrb[0].mxu0
        %4383 = vmatprep.mubr.f32.mxu0 0.0
        %4384 = vmatmul.mubr.f32.gmra.mrb[0].mxu0 %v4178
        %v4385 = vpop.f32.mrb[0].mxu0
        %v4386 = vadd.f32 %v4105, %v4385
        %v4387 = vpop.f32.mrb[0].mxu0
        %4388 = vmatprep.mubr.f32.mxu0 0.0
        %4389 = vmatmul.mubr.f32.gmra.mrb[0].mxu0 %v4181
        %v4390 = vpop.f32.mrb[0].mxu0
        %v4391 = vadd.f32 %v4105, %v4390
        %v4392 = vpop.f32.mrb[0].mxu0
        %4393 = vmatprep.mubr.f32.mxu0 0.0
        %4394 = vmatmul.mubr.f32.gmra.mrb[0].mxu0 %v4184
        %v4395 = vpop.f32.mrb[0].mxu0
        %v4396 = vadd.f32 %v4105, %v4395
        %v4397 = vpop.f32.mrb[0].mxu0
        %4398 = vmatprep.mubr.f32.mxu0 0.0
        %4399 = vmatmul.mubr.f32.gmra.mrb[0].mxu0 %v4187
        %v4400 = vpop.f32.mrb[0].mxu0
        %v4401 = vadd.f32 %v4105, %v4400
        %v4402 = vpop.f32.mrb[0].mxu0
        %4403 = vmatprep.mubr.f32.mxu0 0.0
        %4404 = vmatmul.mubr.f32.gmra.mrb[0].mxu0 %v4190
        %v4405 = vpop.f32.mrb[0].mxu0
        %v4406 = vadd.f32 %v4105, %v4405
        %v4407 = vpop.f32.mrb[0].mxu0
        %4408 = vmatprep.mubr.f32.mxu0 0.0
        %4409 = vmatmul.mubr.f32.gmra.mrb[0].mxu0 %v4193
        %v4410 = vpop.f32.mrb[0].mxu0
        %v4411 = vadd.f32 %v4105, %v4410
        %v4412 = vpop.f32.mrb[0].mxu0
        %4413 = vmatprep.mubr.f32.mxu0 0.0
        %4414 = vmatmul.mubr.f32.gmra.mrb[0].mxu0 %v4196
        %v4415 = vpop.f32.mrb[0].mxu0
        %v4416 = vadd.f32 %v4105, %v4415
        %v4417 = vpop.f32.mrb[0].mxu0
        %4418 = vmatprep.mubr.f32.mxu0 0.0
        %4419 = vmatmul.mubr.f32.gmra.mrb[0].mxu0 %v4199
        %v4420 = vpop.f32.mrb[0].mxu0
        %v4421 = vadd.f32 %v4105, %v4420
        %v4422 = vpop.f32.mrb[0].mxu0
        %4423 = vmatprep.mubr.f32.mxu0 0.0
        %4424 = vmatmul.mubr.f32.gmra.mrb[0].mxu0 %v4202
        %v4425 = vpop.f32.mrb[0].mxu0
        %v4426 = vadd.f32 %v4105, %v4425
        %v4427 = vpop.f32.mrb[0].mxu0
        %4428 = vdwg.mxu0
        %v4429 = vmul.f32 %v4271, 100.0
        %v4430 = vmul.f32 %v4276, 100.0
        %v4431 = vmul.f32 %v4281, 100.0
        %v4432 = vmul.f32 %v4286, 100.0
        %v4433 = vmul.f32 %v4291, 100.0
        %v4434 = vmul.f32 %v4296, 100.0
        %v4435 = vmul.f32 %v4301, 100.0
        %v4436 = vmul.f32 %v4306, 100.0
        %v4437 = vmul.f32 %v4311, 100.0
        %v4438 = vmul.f32 %v4316, 100.0
        %v4439 = vmul.f32 %v4321, 100.0
        %v4440 = vmul.f32 %v4326, 100.0
        %v4441 = vmul.f32 %v4331, 100.0
        %v4442 = vmul.f32 %v4336, 100.0
        %v4443 = vmul.f32 %v4341, 100.0
        %v4444 = vmul.f32 %v4346, 100.0
        %v4445 = vmul.f32 %v4351, 100.0
        %v4446 = vmul.f32 %v4356, 100.0
        %v4447 = vmul.f32 %v4361, 100.0
        %v4448 = vmul.f32 %v4366, 100.0
        %v4449 = vmul.f32 %v4371, 100.0
        %v4450 = vmul.f32 %v4376, 100.0
        %v4451 = vmul.f32 %v4381, 100.0
        %v4452 = vmul.f32 %v4386, 100.0
        %v4453 = vmul.f32 %v4391, 100.0
        %v4454 = vmul.f32 %v4396, 100.0
        %v4455 = vmul.f32 %v4401, 100.0
        %v4456 = vmul.f32 %v4406, 100.0
        %v4457 = vmul.f32 %v4411, 100.0
        %v4458 = vmul.f32 %v4416, 100.0
        %v4459 = vmul.f32 %v4421, 100.0
        %v4460 = vmul.f32 %v4426, 100.0
        %vm4461 = vcmp.gt.f32.partialorder %v4429, 20.0
        %vm4462 = vcmp.gt.f32.partialorder %v4430, 20.0
        %vm4463 = vcmp.gt.f32.partialorder %v4431, 20.0
        %vm4464 = vcmp.gt.f32.partialorder %v4432, 20.0
        %vm4465 = vcmp.gt.f32.partialorder %v4433, 20.0
        %vm4466 = vcmp.gt.f32.partialorder %v4434, 20.0
        %vm4467 = vcmp.gt.f32.partialorder %v4435, 20.0
        %vm4468 = vcmp.gt.f32.partialorder %v4436, 20.0
        %vm4469 = vcmp.gt.f32.partialorder %v4437, 20.0
        %vm4470 = vcmp.gt.f32.partialorder %v4438, 20.0
        %vm4471 = vcmp.gt.f32.partialorder %v4439, 20.0
        %vm4472 = vcmp.gt.f32.partialorder %v4440, 20.0
        %vm4473 = vcmp.gt.f32.partialorder %v4441, 20.0
        %vm4474 = vcmp.gt.f32.partialorder %v4442, 20.0
        %vm4475 = vcmp.gt.f32.partialorder %v4443, 20.0
        %vm4476 = vcmp.gt.f32.partialorder %v4444, 20.0
        %vm4477 = vcmp.gt.f32.partialorder %v4445, 20.0
        %vm4478 = vcmp.gt.f32.partialorder %v4446, 20.0
        %vm4479 = vcmp.gt.f32.partialorder %v4447, 20.0
        %vm4480 = vcmp.gt.f32.partialorder %v4448, 20.0
        %vm4481 = vcmp.gt.f32.partialorder %v4449, 20.0
        %vm4482 = vcmp.gt.f32.partialorder %v4450, 20.0
        %vm4483 = vcmp.gt.f32.partialorder %v4451, 20.0
        %vm4484 = vcmp.gt.f32.partialorder %v4452, 20.0
        %vm4485 = vcmp.gt.f32.partialorder %v4453, 20.0
        %vm4486 = vcmp.gt.f32.partialorder %v4454, 20.0
        %vm4487 = vcmp.gt.f32.partialorder %v4455, 20.0
        %vm4488 = vcmp.gt.f32.partialorder %v4456, 20.0
        %vm4489 = vcmp.gt.f32.partialorder %v4457, 20.0
        %vm4490 = vcmp.gt.f32.partialorder %v4458, 20.0
        %vm4491 = vcmp.gt.f32.partialorder %v4459, 20.0
        %vm4492 = vcmp.gt.f32.partialorder %v4460, 20.0
        %v4493 = vmin.f32 %v4429, 20.0
        %v4494 = vmin.f32 %v4430, 20.0
        %v4495 = vmin.f32 %v4431, 20.0
        %v4496 = vmin.f32 %v4432, 20.0
        %v4497 = vmin.f32 %v4433, 20.0
        %v4498 = vmin.f32 %v4434, 20.0
        %v4499 = vmin.f32 %v4435, 20.0
        %v4500 = vmin.f32 %v4436, 20.0
        %v4501 = vmin.f32 %v4437, 20.0
        %v4502 = vmin.f32 %v4438, 20.0
        %v4503 = vmin.f32 %v4439, 20.0
        %v4504 = vmin.f32 %v4440, 20.0
        %v4505 = vmin.f32 %v4441, 20.0
        %v4506 = vmin.f32 %v4442, 20.0
        %v4507 = vmin.f32 %v4443, 20.0
        %v4508 = vmin.f32 %v4444, 20.0
        %v4509 = vmin.f32 %v4445, 20.0
        %v4510 = vmin.f32 %v4446, 20.0
        %v4511 = vmin.f32 %v4447, 20.0
        %v4512 = vmin.f32 %v4448, 20.0
        %v4513 = vmin.f32 %v4449, 20.0
        %v4514 = vmin.f32 %v4450, 20.0
        %v4515 = vmin.f32 %v4451, 20.0
        %v4516 = vmin.f32 %v4452, 20.0
        %v4517 = vmin.f32 %v4453, 20.0
        %v4518 = vmin.f32 %v4454, 20.0
        %v4519 = vmin.f32 %v4455, 20.0
        %v4520 = vmin.f32 %v4456, 20.0
        %v4521 = vmin.f32 %v4457, 20.0
        %v4522 = vmin.f32 %v4458, 20.0
        %v4523 = vmin.f32 %v4459, 20.0
        %v4524 = vmin.f32 %v4460, 20.0
        %v4525 = vmul.f32 %v4493, 1.442695
        %v4526 = vpow.pop %v4525
        %v4527 = vmul.f32 %v4494, 1.442695
        %v4528 = vpow.pop %v4527
        %v4529 = vmul.f32 %v4495, 1.442695
        %v4530 = vpow.pop %v4529
        %v4531 = vmul.f32 %v4496, 1.442695
        %v4532 = vpow.pop %v4531
        %v4533 = vmul.f32 %v4497, 1.442695
        %v4534 = vpow.pop %v4533
        %v4535 = vmul.f32 %v4498, 1.442695
        %v4536 = vpow.pop %v4535
        %v4537 = vmul.f32 %v4499, 1.442695
        %v4538 = vpow.pop %v4537
        %v4539 = vmul.f32 %v4500, 1.442695
        %v4540 = vpow.pop %v4539
        %v4541 = vmul.f32 %v4501, 1.442695
        %v4542 = vpow.pop %v4541
        %v4543 = vmul.f32 %v4502, 1.442695
        %v4544 = vpow.pop %v4543
        %v4545 = vmul.f32 %v4503, 1.442695
        %v4546 = vpow.pop %v4545
        %v4547 = vmul.f32 %v4504, 1.442695
        %v4548 = vpow.pop %v4547
        %v4549 = vmul.f32 %v4505, 1.442695
        %v4550 = vpow.pop %v4549
        %v4551 = vmul.f32 %v4506, 1.442695
        %v4552 = vpow.pop %v4551
        %v4553 = vmul.f32 %v4507, 1.442695
        %v4554 = vpow.pop %v4553
        %v4555 = vmul.f32 %v4508, 1.442695
        %v4556 = vpow.pop %v4555
        %v4557 = vmul.f32 %v4509, 1.442695
        %v4558 = vpow.pop %v4557
        %v4559 = vmul.f32 %v4510, 1.442695
        %v4560 = vpow.pop %v4559
        %v4561 = vmul.f32 %v4511, 1.442695
        %v4562 = vpow.pop %v4561
        %v4563 = vmul.f32 %v4512, 1.442695
        %v4564 = vpow.pop %v4563
        %v4565 = vmul.f32 %v4513, 1.442695
        %v4566 = vpow.pop %v4565
        %v4567 = vmul.f32 %v4514, 1.442695
        %v4568 = vpow.pop %v4567
        %v4569 = vmul.f32 %v4515, 1.442695
        %v4570 = vpow.pop %v4569
        %v4571 = vmul.f32 %v4516, 1.442695
        %v4572 = vpow.pop %v4571
        %v4573 = vmul.f32 %v4517, 1.442695
        %v4574 = vpow.pop %v4573
        %v4575 = vmul.f32 %v4518, 1.442695
        %v4576 = vpow.pop %v4575
        %v4577 = vmul.f32 %v4519, 1.442695
        %v4578 = vpow.pop %v4577
        %v4579 = vmul.f32 %v4520, 1.442695
        %v4580 = vpow.pop %v4579
        %v4581 = vmul.f32 %v4521, 1.442695
        %v4582 = vpow.pop %v4581
        %v4583 = vmul.f32 %v4522, 1.442695
        %v4584 = vpow.pop %v4583
        %v4585 = vmul.f32 %v4523, 1.442695
        %v4586 = vpow.pop %v4585
        %v4587 = vmul.f32 %v4524, 1.442695
        %v4588 = vpow.pop %v4587
        %v4589 = vadd.f32 %v4526, 1.0
        %v4590 = vlog2.pop %v4589
        %v4591 = vmul.f32 %v4590, 0.6931472
        %v4592 = vmul.f32 -0.5, %v4526
        %v4593 = vadd.f32 %v4592, 1.0
        %v4594 = vmul.f32 %v4593, %v4526
        %v4595 = vand.u32 2147483647, %v4526
        %vm4596 = vcmp.lt.f32.partialorder %v4595, 0.0004427343
        %v4597 = vsel %vm4596, %v4594, %v4591
        %v4598 = vadd.f32 %v4528, 1.0
        %v4599 = vlog2.pop %v4598
        %v4600 = vmul.f32 %v4599, 0.6931472
        %v4601 = vmul.f32 -0.5, %v4528
        %v4602 = vadd.f32 %v4601, 1.0
        %v4603 = vmul.f32 %v4602, %v4528
        %v4604 = vand.u32 2147483647, %v4528
        %vm4605 = vcmp.lt.f32.partialorder %v4604, 0.0004427343
        %v4606 = vsel %vm4605, %v4603, %v4600
        %v4607 = vadd.f32 %v4530, 1.0
        %v4608 = vlog2.pop %v4607
        %v4609 = vmul.f32 %v4608, 0.6931472
        %v4610 = vmul.f32 -0.5, %v4530
        %v4611 = vadd.f32 %v4610, 1.0
        %v4612 = vmul.f32 %v4611, %v4530
        %v4613 = vand.u32 2147483647, %v4530
        %vm4614 = vcmp.lt.f32.partialorder %v4613, 0.0004427343
        %v4615 = vsel %vm4614, %v4612, %v4609
        %v4616 = vadd.f32 %v4532, 1.0
        %v4617 = vlog2.pop %v4616
        %v4618 = vmul.f32 %v4617, 0.6931472
        %v4619 = vmul.f32 -0.5, %v4532
        %v4620 = vadd.f32 %v4619, 1.0
        %v4621 = vmul.f32 %v4620, %v4532
        %v4622 = vand.u32 2147483647, %v4532
        %vm4623 = vcmp.lt.f32.partialorder %v4622, 0.0004427343
        %v4624 = vsel %vm4623, %v4621, %v4618
        %v4625 = vadd.f32 %v4534, 1.0
        %v4626 = vlog2.pop %v4625
        %v4627 = vmul.f32 %v4626, 0.6931472
        %v4628 = vmul.f32 -0.5, %v4534
        %v4629 = vadd.f32 %v4628, 1.0
        %v4630 = vmul.f32 %v4629, %v4534
        %v4631 = vand.u32 2147483647, %v4534
        %vm4632 = vcmp.lt.f32.partialorder %v4631, 0.0004427343
        %v4633 = vsel %vm4632, %v4630, %v4627
        %v4634 = vadd.f32 %v4536, 1.0
        %v4635 = vlog2.pop %v4634
        %v4636 = vmul.f32 %v4635, 0.6931472
        %v4637 = vmul.f32 -0.5, %v4536
        %v4638 = vadd.f32 %v4637, 1.0
        %v4639 = vmul.f32 %v4638, %v4536
        %v4640 = vand.u32 2147483647, %v4536
        %vm4641 = vcmp.lt.f32.partialorder %v4640, 0.0004427343
        %v4642 = vsel %vm4641, %v4639, %v4636
        %v4643 = vadd.f32 %v4538, 1.0
        %v4644 = vlog2.pop %v4643
        %v4645 = vmul.f32 %v4644, 0.6931472
        %v4646 = vmul.f32 -0.5, %v4538
        %v4647 = vadd.f32 %v4646, 1.0
        %v4648 = vmul.f32 %v4647, %v4538
        %v4649 = vand.u32 2147483647, %v4538
        %vm4650 = vcmp.lt.f32.partialorder %v4649, 0.0004427343
        %v4651 = vsel %vm4650, %v4648, %v4645
        %v4652 = vadd.f32 %v4540, 1.0
        %v4653 = vlog2.pop %v4652
        %v4654 = vmul.f32 %v4653, 0.6931472
        %v4655 = vmul.f32 -0.5, %v4540
        %v4656 = vadd.f32 %v4655, 1.0
        %v4657 = vmul.f32 %v4656, %v4540
        %v4658 = vand.u32 2147483647, %v4540
        %vm4659 = vcmp.lt.f32.partialorder %v4658, 0.0004427343
        %v4660 = vsel %vm4659, %v4657, %v4654
        %v4661 = vadd.f32 %v4542, 1.0
        %v4662 = vlog2.pop %v4661
        %v4663 = vmul.f32 %v4662, 0.6931472
        %v4664 = vmul.f32 -0.5, %v4542
        %v4665 = vadd.f32 %v4664, 1.0
        %v4666 = vmul.f32 %v4665, %v4542
        %v4667 = vand.u32 2147483647, %v4542
        %vm4668 = vcmp.lt.f32.partialorder %v4667, 0.0004427343
        %v4669 = vsel %vm4668, %v4666, %v4663
        %v4670 = vadd.f32 %v4544, 1.0
        %v4671 = vlog2.pop %v4670
        %v4672 = vmul.f32 %v4671, 0.6931472
        %v4673 = vmul.f32 -0.5, %v4544
        %v4674 = vadd.f32 %v4673, 1.0
        %v4675 = vmul.f32 %v4674, %v4544
        %v4676 = vand.u32 2147483647, %v4544
        %vm4677 = vcmp.lt.f32.partialorder %v4676, 0.0004427343
        %v4678 = vsel %vm4677, %v4675, %v4672
        %v4679 = vadd.f32 %v4546, 1.0
        %v4680 = vlog2.pop %v4679
        %v4681 = vmul.f32 %v4680, 0.6931472
        %v4682 = vmul.f32 -0.5, %v4546
        %v4683 = vadd.f32 %v4682, 1.0
        %v4684 = vmul.f32 %v4683, %v4546
        %v4685 = vand.u32 2147483647, %v4546
        %vm4686 = vcmp.lt.f32.partialorder %v4685, 0.0004427343
        %v4687 = vsel %vm4686, %v4684, %v4681
        %v4688 = vadd.f32 %v4548, 1.0
        %v4689 = vlog2.pop %v4688
        %v4690 = vmul.f32 %v4689, 0.6931472
        %v4691 = vmul.f32 -0.5, %v4548
        %v4692 = vadd.f32 %v4691, 1.0
        %v4693 = vmul.f32 %v4692, %v4548
        %v4694 = vand.u32 2147483647, %v4548
        %vm4695 = vcmp.lt.f32.partialorder %v4694, 0.0004427343
        %v4696 = vsel %vm4695, %v4693, %v4690
        %v4697 = vadd.f32 %v4550, 1.0
        %v4698 = vlog2.pop %v4697
        %v4699 = vmul.f32 %v4698, 0.6931472
        %v4700 = vmul.f32 -0.5, %v4550
        %v4701 = vadd.f32 %v4700, 1.0
        %v4702 = vmul.f32 %v4701, %v4550
        %v4703 = vand.u32 2147483647, %v4550
        %vm4704 = vcmp.lt.f32.partialorder %v4703, 0.0004427343
        %v4705 = vsel %vm4704, %v4702, %v4699
        %v4706 = vadd.f32 %v4552, 1.0
        %v4707 = vlog2.pop %v4706
        %v4708 = vmul.f32 %v4707, 0.6931472
        %v4709 = vmul.f32 -0.5, %v4552
        %v4710 = vadd.f32 %v4709, 1.0
        %v4711 = vmul.f32 %v4710, %v4552
        %v4712 = vand.u32 2147483647, %v4552
        %vm4713 = vcmp.lt.f32.partialorder %v4712, 0.0004427343
        %v4714 = vsel %vm4713, %v4711, %v4708
        %v4715 = vadd.f32 %v4554, 1.0
        %v4716 = vlog2.pop %v4715
        %v4717 = vmul.f32 %v4716, 0.6931472
        %v4718 = vmul.f32 -0.5, %v4554
        %v4719 = vadd.f32 %v4718, 1.0
        %v4720 = vmul.f32 %v4719, %v4554
        %v4721 = vand.u32 2147483647, %v4554
        %vm4722 = vcmp.lt.f32.partialorder %v4721, 0.0004427343
        %v4723 = vsel %vm4722, %v4720, %v4717
        %v4724 = vadd.f32 %v4556, 1.0
        %v4725 = vlog2.pop %v4724
        %v4726 = vmul.f32 %v4725, 0.6931472
        %v4727 = vmul.f32 -0.5, %v4556
        %v4728 = vadd.f32 %v4727, 1.0
        %v4729 = vmul.f32 %v4728, %v4556
        %v4730 = vand.u32 2147483647, %v4556
        %vm4731 = vcmp.lt.f32.partialorder %v4730, 0.0004427343
        %v4732 = vsel %vm4731, %v4729, %v4726
        %v4733 = vadd.f32 %v4558, 1.0
        %v4734 = vlog2.pop %v4733
        %v4735 = vmul.f32 %v4734, 0.6931472
        %v4736 = vmul.f32 -0.5, %v4558
        %v4737 = vadd.f32 %v4736, 1.0
        %v4738 = vmul.f32 %v4737, %v4558
        %v4739 = vand.u32 2147483647, %v4558
        %vm4740 = vcmp.lt.f32.partialorder %v4739, 0.0004427343
        %v4741 = vsel %vm4740, %v4738, %v4735
        %v4742 = vadd.f32 %v4560, 1.0
        %v4743 = vlog2.pop %v4742
        %v4744 = vmul.f32 %v4743, 0.6931472
        %v4745 = vmul.f32 -0.5, %v4560
        %v4746 = vadd.f32 %v4745, 1.0
        %v4747 = vmul.f32 %v4746, %v4560
        %v4748 = vand.u32 2147483647, %v4560
        %vm4749 = vcmp.lt.f32.partialorder %v4748, 0.0004427343
        %v4750 = vsel %vm4749, %v4747, %v4744
        %v4751 = vadd.f32 %v4562, 1.0
        %v4752 = vlog2.pop %v4751
        %v4753 = vmul.f32 %v4752, 0.6931472
        %v4754 = vmul.f32 -0.5, %v4562
        %v4755 = vadd.f32 %v4754, 1.0
        %v4756 = vmul.f32 %v4755, %v4562
        %v4757 = vand.u32 2147483647, %v4562
        %vm4758 = vcmp.lt.f32.partialorder %v4757, 0.0004427343
        %v4759 = vsel %vm4758, %v4756, %v4753
        %v4760 = vadd.f32 %v4564, 1.0
        %v4761 = vlog2.pop %v4760
        %v4762 = vmul.f32 %v4761, 0.6931472
        %v4763 = vmul.f32 -0.5, %v4564
        %v4764 = vadd.f32 %v4763, 1.0
        %v4765 = vmul.f32 %v4764, %v4564
        %v4766 = vand.u32 2147483647, %v4564
        %vm4767 = vcmp.lt.f32.partialorder %v4766, 0.0004427343
        %v4768 = vsel %vm4767, %v4765, %v4762
        %v4769 = vadd.f32 %v4566, 1.0
        %v4770 = vlog2.pop %v4769
        %v4771 = vmul.f32 %v4770, 0.6931472
        %v4772 = vmul.f32 -0.5, %v4566
        %v4773 = vadd.f32 %v4772, 1.0
        %v4774 = vmul.f32 %v4773, %v4566
        %v4775 = vand.u32 2147483647, %v4566
        %vm4776 = vcmp.lt.f32.partialorder %v4775, 0.0004427343
        %v4777 = vsel %vm4776, %v4774, %v4771
        %v4778 = vadd.f32 %v4568, 1.0
        %v4779 = vlog2.pop %v4778
        %v4780 = vmul.f32 %v4779, 0.6931472
        %v4781 = vmul.f32 -0.5, %v4568
        %v4782 = vadd.f32 %v4781, 1.0
        %v4783 = vmul.f32 %v4782, %v4568
        %v4784 = vand.u32 2147483647, %v4568
        %vm4785 = vcmp.lt.f32.partialorder %v4784, 0.0004427343
        %v4786 = vsel %vm4785, %v4783, %v4780
        %v4787 = vadd.f32 %v4570, 1.0
        %v4788 = vlog2.pop %v4787
        %v4789 = vmul.f32 %v4788, 0.6931472
        %v4790 = vmul.f32 -0.5, %v4570
        %v4791 = vadd.f32 %v4790, 1.0
        %v4792 = vmul.f32 %v4791, %v4570
        %v4793 = vand.u32 2147483647, %v4570
        %vm4794 = vcmp.lt.f32.partialorder %v4793, 0.0004427343
        %v4795 = vsel %vm4794, %v4792, %v4789
        %v4796 = vadd.f32 %v4572, 1.0
        %v4797 = vlog2.pop %v4796
        %v4798 = vmul.f32 %v4797, 0.6931472
        %v4799 = vmul.f32 -0.5, %v4572
        %v4800 = vadd.f32 %v4799, 1.0
        %v4801 = vmul.f32 %v4800, %v4572
        %v4802 = vand.u32 2147483647, %v4572
        %vm4803 = vcmp.lt.f32.partialorder %v4802, 0.0004427343
        %v4804 = vsel %vm4803, %v4801, %v4798
        %v4805 = vadd.f32 %v4574, 1.0
        %v4806 = vlog2.pop %v4805
        %v4807 = vmul.f32 %v4806, 0.6931472
        %v4808 = vmul.f32 -0.5, %v4574
        %v4809 = vadd.f32 %v4808, 1.0
        %v4810 = vmul.f32 %v4809, %v4574
        %v4811 = vand.u32 2147483647, %v4574
        %vm4812 = vcmp.lt.f32.partialorder %v4811, 0.0004427343
        %v4813 = vsel %vm4812, %v4810, %v4807
        %v4814 = vadd.f32 %v4576, 1.0
        %v4815 = vlog2.pop %v4814
        %v4816 = vmul.f32 %v4815, 0.6931472
        %v4817 = vmul.f32 -0.5, %v4576
        %v4818 = vadd.f32 %v4817, 1.0
        %v4819 = vmul.f32 %v4818, %v4576
        %v4820 = vand.u32 2147483647, %v4576
        %vm4821 = vcmp.lt.f32.partialorder %v4820, 0.0004427343
        %v4822 = vsel %vm4821, %v4819, %v4816
        %v4823 = vadd.f32 %v4578, 1.0
        %v4824 = vlog2.pop %v4823
        %v4825 = vmul.f32 %v4824, 0.6931472
        %v4826 = vmul.f32 -0.5, %v4578
        %v4827 = vadd.f32 %v4826, 1.0
        %v4828 = vmul.f32 %v4827, %v4578
        %v4829 = vand.u32 2147483647, %v4578
        %vm4830 = vcmp.lt.f32.partialorder %v4829, 0.0004427343
        %v4831 = vsel %vm4830, %v4828, %v4825
        %v4832 = vadd.f32 %v4580, 1.0
        %v4833 = vlog2.pop %v4832
        %v4834 = vmul.f32 %v4833, 0.6931472
        %v4835 = vmul.f32 -0.5, %v4580
        %v4836 = vadd.f32 %v4835, 1.0
        %v4837 = vmul.f32 %v4836, %v4580
        %v4838 = vand.u32 2147483647, %v4580
        %vm4839 = vcmp.lt.f32.partialorder %v4838, 0.0004427343
        %v4840 = vsel %vm4839, %v4837, %v4834
        %v4841 = vadd.f32 %v4582, 1.0
        %v4842 = vlog2.pop %v4841
        %v4843 = vmul.f32 %v4842, 0.6931472
        %v4844 = vmul.f32 -0.5, %v4582
        %v4845 = vadd.f32 %v4844, 1.0
        %v4846 = vmul.f32 %v4845, %v4582
        %v4847 = vand.u32 2147483647, %v4582
        %vm4848 = vcmp.lt.f32.partialorder %v4847, 0.0004427343
        %v4849 = vsel %vm4848, %v4846, %v4843
        %v4850 = vadd.f32 %v4584, 1.0
        %v4851 = vlog2.pop %v4850
        %v4852 = vmul.f32 %v4851, 0.6931472
        %v4853 = vmul.f32 -0.5, %v4584
        %v4854 = vadd.f32 %v4853, 1.0
        %v4855 = vmul.f32 %v4854, %v4584
        %v4856 = vand.u32 2147483647, %v4584
        %vm4857 = vcmp.lt.f32.partialorder %v4856, 0.0004427343
        %v4858 = vsel %vm4857, %v4855, %v4852
        %v4859 = vadd.f32 %v4586, 1.0
        %v4860 = vlog2.pop %v4859
        %v4861 = vmul.f32 %v4860, 0.6931472
        %v4862 = vmul.f32 -0.5, %v4586
        %v4863 = vadd.f32 %v4862, 1.0
        %v4864 = vmul.f32 %v4863, %v4586
        %v4865 = vand.u32 2147483647, %v4586
        %vm4866 = vcmp.lt.f32.partialorder %v4865, 0.0004427343
        %v4867 = vsel %vm4866, %v4864, %v4861
        %v4868 = vadd.f32 %v4588, 1.0
        %v4869 = vlog2.pop %v4868
        %v4870 = vmul.f32 %v4869, 0.6931472
        %v4871 = vmul.f32 -0.5, %v4588
        %v4872 = vadd.f32 %v4871, 1.0
        %v4873 = vmul.f32 %v4872, %v4588
        %v4874 = vand.u32 2147483647, %v4588
        %vm4875 = vcmp.lt.f32.partialorder %v4874, 0.0004427343
        %v4876 = vsel %vm4875, %v4873, %v4870
        %v4877 = vrcp.pop 100.0
        %v4878 = vmul.f32 %v4597, %v4877
        %v4879 = vmul.f32 %v4606, %v4877
        %v4880 = vmul.f32 %v4615, %v4877
        %v4881 = vmul.f32 %v4624, %v4877
        %v4882 = vmul.f32 %v4633, %v4877
        %v4883 = vmul.f32 %v4642, %v4877
        %v4884 = vmul.f32 %v4651, %v4877
        %v4885 = vmul.f32 %v4660, %v4877
        %v4886 = vmul.f32 %v4669, %v4877
        %v4887 = vmul.f32 %v4678, %v4877
        %v4888 = vmul.f32 %v4687, %v4877
        %v4889 = vmul.f32 %v4696, %v4877
        %v4890 = vmul.f32 %v4705, %v4877
        %v4891 = vmul.f32 %v4714, %v4877
        %v4892 = vmul.f32 %v4723, %v4877
        %v4893 = vmul.f32 %v4732, %v4877
        %v4894 = vmul.f32 %v4741, %v4877
        %v4895 = vmul.f32 %v4750, %v4877
        %v4896 = vmul.f32 %v4759, %v4877
        %v4897 = vmul.f32 %v4768, %v4877
        %v4898 = vmul.f32 %v4777, %v4877
        %v4899 = vmul.f32 %v4786, %v4877
        %v4900 = vmul.f32 %v4795, %v4877
        %v4901 = vmul.f32 %v4804, %v4877
        %v4902 = vmul.f32 %v4813, %v4877
        %v4903 = vmul.f32 %v4822, %v4877
        %v4904 = vmul.f32 %v4831, %v4877
        %v4905 = vmul.f32 %v4840, %v4877
        %v4906 = vmul.f32 %v4849, %v4877
        %v4907 = vmul.f32 %v4858, %v4877
        %v4908 = vmul.f32 %v4867, %v4877
        %v4909 = vmul.f32 %v4876, %v4877
        %v4910 = vsel %vm4461, %v4271, %v4878
        %v4911 = vsel %vm4462, %v4276, %v4879
        %v4912 = vsel %vm4463, %v4281, %v4880
        %v4913 = vsel %vm4464, %v4286, %v4881
        %v4914 = vsel %vm4465, %v4291, %v4882
        %v4915 = vsel %vm4466, %v4296, %v4883
        %v4916 = vsel %vm4467, %v4301, %v4884
        %v4917 = vsel %vm4468, %v4306, %v4885
        %v4918 = vsel %vm4469, %v4311, %v4886
        %v4919 = vsel %vm4470, %v4316, %v4887
        %v4920 = vsel %vm4471, %v4321, %v4888
        %v4921 = vsel %vm4472, %v4326, %v4889
        %v4922 = vsel %vm4473, %v4331, %v4890
        %v4923 = vsel %vm4474, %v4336, %v4891
        %v4924 = vsel %vm4475, %v4341, %v4892
        %v4925 = vsel %vm4476, %v4346, %v4893
        %v4926 = vsel %vm4477, %v4351, %v4894
        %v4927 = vsel %vm4478, %v4356, %v4895
        %v4928 = vsel %vm4479, %v4361, %v4896
        %v4929 = vsel %vm4480, %v4366, %v4897
        %v4930 = vsel %vm4481, %v4371, %v4898
        %v4931 = vsel %vm4482, %v4376, %v4899
        %v4932 = vsel %vm4483, %v4381, %v4900
        %v4933 = vsel %vm4484, %v4386, %v4901
        %v4934 = vsel %vm4485, %v4391, %v4902
        %v4935 = vsel %vm4486, %v4396, %v4903
        %v4936 = vsel %vm4487, %v4401, %v4904
        %v4937 = vsel %vm4488, %v4406, %v4905
        %v4938 = vsel %vm4489, %v4411, %v4906
        %v4939 = vsel %vm4490, %v4416, %v4907
        %v4940 = vsel %vm4491, %v4421, %v4908
        %v4941 = vsel %vm4492, %v4426, %v4909
        %v4942 = vld [vmem:[%s3 + $0x20] sm:$0xff]
        %v4943 = vld [vmem:[%s3 + $0x28] sm:$0xff]
        %v4944 = vld [vmem:[%s3 + $0x30] sm:$0xff]
        %v4945 = vld [vmem:[%s3 + $0x38] sm:$0xff]
        %v4946 = vld [vmem:[%s3 + $0x40] sm:$0xff]
        %v4947 = vld [vmem:[%s3 + $0x48] sm:$0xff]
        %v4948 = vld [vmem:[%s3 + $0x50] sm:$0xff]
        %v4949 = vld [vmem:[%s3 + $0x58] sm:$0xff]
        %v4950 = vlaneseq
        %v4951 = vshrl.u32 %v4950, 7
        %v4952 = vsub.s32 0, %v4951
        %v4953 = vrot.slane %v4096, %v4952
        %vm4954 = vcmask 523264
        %v4956 = vsel %vm4954, %v4910, 0
        %v4959 = vsel %vm4954, %v4911, 0
        %v4962 = vsel %vm4954, %v4912, 0
        %v4965 = vsel %vm4954, %v4913, 0
        %v4968 = vsel %vm4954, %v4914, 0
        %v4971 = vsel %vm4954, %v4915, 0
        %v4974 = vsel %vm4954, %v4916, 0
        %v4977 = vsel %vm4954, %v4917, 0
        %v4980 = vsel %vm4954, %v4918, 0
        %v4983 = vsel %vm4954, %v4919, 0
        %v4986 = vsel %vm4954, %v4920, 0
        %v4989 = vsel %vm4954, %v4921, 0
        %v4992 = vsel %vm4954, %v4922, 0
        %v4995 = vsel %vm4954, %v4923, 0
        %v4998 = vsel %vm4954, %v4924, 0
        %v5001 = vsel %vm4954, %v4925, 0
        %v5004 = vsel %vm4954, %v4926, 0
        %v5007 = vsel %vm4954, %v4927, 0
        %v5010 = vsel %vm4954, %v4928, 0
        %v5013 = vsel %vm4954, %v4929, 0
        %v5016 = vsel %vm4954, %v4930, 0
        %v5019 = vsel %vm4954, %v4931, 0
        %v5022 = vsel %vm4954, %v4932, 0
        %v5025 = vsel %vm4954, %v4933, 0
        %v5028 = vsel %vm4954, %v4934, 0
        %v5031 = vsel %vm4954, %v4935, 0
        %v5034 = vsel %vm4954, %v4936, 0
        %v5037 = vsel %vm4954, %v4937, 0
        %v5040 = vsel %vm4954, %v4938, 0
        %v5043 = vsel %vm4954, %v4939, 0
        %v5046 = vsel %vm4954, %v4940, 0
        %v5049 = vsel %vm4954, %v4941, 0
        %5051 = vmatprep.subr.mxu0 0.0
        %5052 = vmatpush1.msra.mxu0 %v4942
        %5053 = vmatprep.subr.mxu0 0.0
        %5054 = vmatpush1.msra.mxu0 %v4943
        %5055 = vmatprep.subr.mxu0 0.0
        %5056 = vmatpush1.msra.mxu0 %v4944
        %5057 = vmatprep.subr.mxu0 0.0
        %5058 = vmatpush1.msra.mxu0 %v4945
        %5059 = vmatprep.subr.mxu0 0.0
        %5060 = vmatpush1.msra.mxu0 %v4946
        %5061 = vmatprep.subr.mxu0 0.0
        %5062 = vmatpush1.msra.mxu0 %v4947
        %5063 = vmatprep.subr.mxu0 0.0
        %5064 = vmatpush1.msra.mxu0 %v4948
        %5065 = vmatprep.subr.mxu0 0.0
        %5066 = vmatpush1.msra.mxu0 %v4949
        %5067 = vmatprep.subr.mxu0 0.0
        %5068 = vmatpush1.msra.mxu0 0.0
        %5069 = vmatprep.subr.mxu0 0.0
        %5070 = vmatpush1.msra.mxu0 0.0
        %5071 = vmatprep.subr.mxu0 0.0
        %5072 = vmatpush1.msra.mxu0 0.0
        %5073 = vmatprep.subr.mxu0 0.0
        %5074 = vmatpush1.msra.mxu0 0.0
        %5075 = vmatprep.subr.mxu0 0.0
        %5076 = vmatpush1.msra.mxu0 0.0
        %5077 = vmatprep.subr.mxu0 0.0
        %5078 = vmatpush1.msra.mxu0 0.0
        %5079 = vmatprep.subr.mxu0 0.0
        %5080 = vmatpush1.msra.mxu0 0.0
        %5081 = vmatprep.subr.mxu0 0.0
        %5082 = vmatpush1.msra.mxu0 0.0
        %5083 = vmatprep.subr.mxu0 0.0
        %5084 = vmatpush1.msra.mxu0 0.0
        %5085 = vmatprep.subr.mxu0 0.0
        %5086 = vmatpush1.msra.mxu0 0.0
        %5087 = vmatprep.subr.mxu0 0.0
        %5088 = vmatpush1.msra.mxu0 0.0
        %5089 = vmatprep.subr.mxu0 0.0
        %5090 = vmatpush1.msra.mxu0 0.0
        %5091 = vmatprep.subr.mxu0 0.0
        %5092 = vmatpush1.msra.mxu0 0.0
        %5093 = vmatprep.subr.mxu0 0.0
        %5094 = vmatpush1.msra.mxu0 0.0
        %5095 = vmatprep.subr.mxu0 0.0
        %5096 = vmatpush1.msra.mxu0 0.0
        %5097 = vmatprep.subr.mxu0 0.0
        %5098 = vmatpush1.msra.mxu0 0.0
        %5099 = vmatprep.subr.mxu0 0.0
        %5100 = vmatpush1.msra.mxu0 0.0
        %5101 = vmatprep.subr.mxu0 0.0
        %5102 = vmatpush1.msra.mxu0 0.0
        %5103 = vmatprep.subr.mxu0 0.0
        %5104 = vmatpush1.msra.mxu0 0.0
        %5105 = vmatprep.subr.mxu0 0.0
        %5106 = vmatpush1.msra.mxu0 0.0
        %5107 = vmatprep.subr.mxu0 0.0
        %5108 = vmatpush1.msra.mxu0 0.0
        %5109 = vmatprep.subr.mxu0 0.0
        %5110 = vmatpush1.msra.mxu0 0.0
        %5111 = vmatprep.subr.mxu0 0.0
        %5112 = vmatpush1.msra.mxu0 0.0
        %5113 = vmatprep.subr.mxu0 0.0
        %5114 = vmatpush1.msra.mxu0 0.0
        %5115 = vmatprep.mubr.f32.mxu0 0.0
        %5116 = vmatmul.mubr.f32.gmra.mrb[0].mxu0 %v4956
        %v5117 = vpop.f32.mrb[0].mxu0
        %v5118 = vadd.f32 %v4953, %v5117
        %v5119 = vpop.f32.mrb[0].mxu0
        %5120 = vmatprep.mubr.f32.mxu0 0.0
        %5121 = vmatmul.mubr.f32.gmra.mrb[0].mxu0 %v4959
        %v5122 = vpop.f32.mrb[0].mxu0
        %v5123 = vadd.f32 %v4953, %v5122
        %v5124 = vpop.f32.mrb[0].mxu0
        %5125 = vmatprep.mubr.f32.mxu0 0.0
        %5126 = vmatmul.mubr.f32.gmra.mrb[0].mxu0 %v4962
        %v5127 = vpop.f32.mrb[0].mxu0
        %v5128 = vadd.f32 %v4953, %v5127
        %v5129 = vpop.f32.mrb[0].mxu0
        %5130 = vmatprep.mubr.f32.mxu0 0.0
        %5131 = vmatmul.mubr.f32.gmra.mrb[0].mxu0 %v4965
        %v5132 = vpop.f32.mrb[0].mxu0
        %v5133 = vadd.f32 %v4953, %v5132
        %v5134 = vpop.f32.mrb[0].mxu0
        %5135 = vmatprep.mubr.f32.mxu0 0.0
        %5136 = vmatmul.mubr.f32.gmra.mrb[0].mxu0 %v4968
        %v5137 = vpop.f32.mrb[0].mxu0
        %v5138 = vadd.f32 %v4953, %v5137
        %v5139 = vpop.f32.mrb[0].mxu0
        %5140 = vmatprep.mubr.f32.mxu0 0.0
        %5141 = vmatmul.mubr.f32.gmra.mrb[0].mxu0 %v4971
        %v5142 = vpop.f32.mrb[0].mxu0
        %v5143 = vadd.f32 %v4953, %v5142
        %v5144 = vpop.f32.mrb[0].mxu0
        %5145 = vmatprep.mubr.f32.mxu0 0.0
        %5146 = vmatmul.mubr.f32.gmra.mrb[0].mxu0 %v4974
        %v5147 = vpop.f32.mrb[0].mxu0
        %v5148 = vadd.f32 %v4953, %v5147
        %v5149 = vpop.f32.mrb[0].mxu0
        %5150 = vmatprep.mubr.f32.mxu0 0.0
        %5151 = vmatmul.mubr.f32.gmra.mrb[0].mxu0 %v4977
        %v5152 = vpop.f32.mrb[0].mxu0
        %v5153 = vadd.f32 %v4953, %v5152
        %v5154 = vpop.f32.mrb[0].mxu0
        %5155 = vmatprep.mubr.f32.mxu0 0.0
        %5156 = vmatmul.mubr.f32.gmra.mrb[0].mxu0 %v4980
        %v5157 = vpop.f32.mrb[0].mxu0
        %v5158 = vadd.f32 %v4953, %v5157
        %v5159 = vpop.f32.mrb[0].mxu0
        %5160 = vmatprep.mubr.f32.mxu0 0.0
        %5161 = vmatmul.mubr.f32.gmra.mrb[0].mxu0 %v4983
        %v5162 = vpop.f32.mrb[0].mxu0
        %v5163 = vadd.f32 %v4953, %v5162
        %v5164 = vpop.f32.mrb[0].mxu0
        %5165 = vmatprep.mubr.f32.mxu0 0.0
        %5166 = vmatmul.mubr.f32.gmra.mrb[0].mxu0 %v4986
        %v5167 = vpop.f32.mrb[0].mxu0
        %v5168 = vadd.f32 %v4953, %v5167
        %v5169 = vpop.f32.mrb[0].mxu0
        %5170 = vmatprep.mubr.f32.mxu0 0.0
        %5171 = vmatmul.mubr.f32.gmra.mrb[0].mxu0 %v4989
        %v5172 = vpop.f32.mrb[0].mxu0
        %v5173 = vadd.f32 %v4953, %v5172
        %v5174 = vpop.f32.mrb[0].mxu0
        %5175 = vmatprep.mubr.f32.mxu0 0.0
        %5176 = vmatmul.mubr.f32.gmra.mrb[0].mxu0 %v4992
        %v5177 = vpop.f32.mrb[0].mxu0
        %v5178 = vadd.f32 %v4953, %v5177
        %v5179 = vpop.f32.mrb[0].mxu0
        %5180 = vmatprep.mubr.f32.mxu0 0.0
        %5181 = vmatmul.mubr.f32.gmra.mrb[0].mxu0 %v4995
        %v5182 = vpop.f32.mrb[0].mxu0
        %v5183 = vadd.f32 %v4953, %v5182
        %v5184 = vpop.f32.mrb[0].mxu0
        %5185 = vmatprep.mubr.f32.mxu0 0.0
        %5186 = vmatmul.mubr.f32.gmra.mrb[0].mxu0 %v4998
        %v5187 = vpop.f32.mrb[0].mxu0
        %v5188 = vadd.f32 %v4953, %v5187
        %v5189 = vpop.f32.mrb[0].mxu0
        %5190 = vmatprep.mubr.f32.mxu0 0.0
        %5191 = vmatmul.mubr.f32.gmra.mrb[0].mxu0 %v5001
        %v5192 = vpop.f32.mrb[0].mxu0
        %v5193 = vadd.f32 %v4953, %v5192
        %v5194 = vpop.f32.mrb[0].mxu0
        %5195 = vmatprep.mubr.f32.mxu0 0.0
        %5196 = vmatmul.mubr.f32.gmra.mrb[0].mxu0 %v5004
        %v5197 = vpop.f32.mrb[0].mxu0
        %v5198 = vadd.f32 %v4953, %v5197
        %v5199 = vpop.f32.mrb[0].mxu0
        %5200 = vmatprep.mubr.f32.mxu0 0.0
        %5201 = vmatmul.mubr.f32.gmra.mrb[0].mxu0 %v5007
        %v5202 = vpop.f32.mrb[0].mxu0
        %v5203 = vadd.f32 %v4953, %v5202
        %v5204 = vpop.f32.mrb[0].mxu0
        %5205 = vmatprep.mubr.f32.mxu0 0.0
        %5206 = vmatmul.mubr.f32.gmra.mrb[0].mxu0 %v5010
        %v5207 = vpop.f32.mrb[0].mxu0
        %v5208 = vadd.f32 %v4953, %v5207
        %v5209 = vpop.f32.mrb[0].mxu0
        %5210 = vmatprep.mubr.f32.mxu0 0.0
        %5211 = vmatmul.mubr.f32.gmra.mrb[0].mxu0 %v5013
        %v5212 = vpop.f32.mrb[0].mxu0
        %v5213 = vadd.f32 %v4953, %v5212
        %v5214 = vpop.f32.mrb[0].mxu0
        %5215 = vmatprep.mubr.f32.mxu0 0.0
        %5216 = vmatmul.mubr.f32.gmra.mrb[0].mxu0 %v5016
        %v5217 = vpop.f32.mrb[0].mxu0
        %v5218 = vadd.f32 %v4953, %v5217
        %v5219 = vpop.f32.mrb[0].mxu0
        %5220 = vmatprep.mubr.f32.mxu0 0.0
        %5221 = vmatmul.mubr.f32.gmra.mrb[0].mxu0 %v5019
        %v5222 = vpop.f32.mrb[0].mxu0
        %v5223 = vadd.f32 %v4953, %v5222
        %v5224 = vpop.f32.mrb[0].mxu0
        %5225 = vmatprep.mubr.f32.mxu0 0.0
        %5226 = vmatmul.mubr.f32.gmra.mrb[0].mxu0 %v5022
        %v5227 = vpop.f32.mrb[0].mxu0
        %v5228 = vadd.f32 %v4953, %v5227
        %v5229 = vpop.f32.mrb[0].mxu0
        %5230 = vmatprep.mubr.f32.mxu0 0.0
        %5231 = vmatmul.mubr.f32.gmra.mrb[0].mxu0 %v5025
        %v5232 = vpop.f32.mrb[0].mxu0
        %v5233 = vadd.f32 %v4953, %v5232
        %v5234 = vpop.f32.mrb[0].mxu0
        %5235 = vmatprep.mubr.f32.mxu0 0.0
        %5236 = vmatmul.mubr.f32.gmra.mrb[0].mxu0 %v5028
        %v5237 = vpop.f32.mrb[0].mxu0
        %v5238 = vadd.f32 %v4953, %v5237
        %v5239 = vpop.f32.mrb[0].mxu0
        %5240 = vmatprep.mubr.f32.mxu0 0.0
        %5241 = vmatmul.mubr.f32.gmra.mrb[0].mxu0 %v5031
        %v5242 = vpop.f32.mrb[0].mxu0
        %v5243 = vadd.f32 %v4953, %v5242
        %v5244 = vpop.f32.mrb[0].mxu0
        %5245 = vmatprep.mubr.f32.mxu0 0.0
        %5246 = vmatmul.mubr.f32.gmra.mrb[0].mxu0 %v5034
        %v5247 = vpop.f32.mrb[0].mxu0
        %v5248 = vadd.f32 %v4953, %v5247
        %v5249 = vpop.f32.mrb[0].mxu0
        %5250 = vmatprep.mubr.f32.mxu0 0.0
        %5251 = vmatmul.mubr.f32.gmra.mrb[0].mxu0 %v5037
        %v5252 = vpop.f32.mrb[0].mxu0
        %v5253 = vadd.f32 %v4953, %v5252
        %v5254 = vpop.f32.mrb[0].mxu0
        %5255 = vmatprep.mubr.f32.mxu0 0.0
        %5256 = vmatmul.mubr.f32.gmra.mrb[0].mxu0 %v5040
        %v5257 = vpop.f32.mrb[0].mxu0
        %v5258 = vadd.f32 %v4953, %v5257
        %v5259 = vpop.f32.mrb[0].mxu0
        %5260 = vmatprep.mubr.f32.mxu0 0.0
        %5261 = vmatmul.mubr.f32.gmra.mrb[0].mxu0 %v5043
        %v5262 = vpop.f32.mrb[0].mxu0
        %v5263 = vadd.f32 %v4953, %v5262
        %v5264 = vpop.f32.mrb[0].mxu0
        %5265 = vmatprep.mubr.f32.mxu0 0.0
        %5266 = vmatmul.mubr.f32.gmra.mrb[0].mxu0 %v5046
        %v5267 = vpop.f32.mrb[0].mxu0
        %v5268 = vadd.f32 %v4953, %v5267
        %v5269 = vpop.f32.mrb[0].mxu0
        %5270 = vmatprep.mubr.f32.mxu0 0.0
        %5271 = vmatmul.mubr.f32.gmra.mrb[0].mxu0 %v5049
        %v5272 = vpop.f32.mrb[0].mxu0
        %v5273 = vadd.f32 %v4953, %v5272
        %v5274 = vpop.f32.mrb[0].mxu0
        %5275 = vdwg.mxu0
        %v5276 = vmul.f32 %v5118, 100.0
        %v5277 = vmul.f32 %v5123, 100.0
        %v5278 = vmul.f32 %v5128, 100.0
        %v5279 = vmul.f32 %v5133, 100.0
        %v5280 = vmul.f32 %v5138, 100.0
        %v5281 = vmul.f32 %v5143, 100.0
        %v5282 = vmul.f32 %v5148, 100.0
        %v5283 = vmul.f32 %v5153, 100.0
        %v5284 = vmul.f32 %v5158, 100.0
        %v5285 = vmul.f32 %v5163, 100.0
        %v5286 = vmul.f32 %v5168, 100.0
        %v5287 = vmul.f32 %v5173, 100.0
        %v5288 = vmul.f32 %v5178, 100.0
        %v5289 = vmul.f32 %v5183, 100.0
        %v5290 = vmul.f32 %v5188, 100.0
        %v5291 = vmul.f32 %v5193, 100.0
        %v5292 = vmul.f32 %v5198, 100.0
        %v5293 = vmul.f32 %v5203, 100.0
        %v5294 = vmul.f32 %v5208, 100.0
        %v5295 = vmul.f32 %v5213, 100.0
        %v5296 = vmul.f32 %v5218, 100.0
        %v5297 = vmul.f32 %v5223, 100.0
        %v5298 = vmul.f32 %v5228, 100.0
        %v5299 = vmul.f32 %v5233, 100.0
        %v5300 = vmul.f32 %v5238, 100.0
        %v5301 = vmul.f32 %v5243, 100.0
        %v5302 = vmul.f32 %v5248, 100.0
        %v5303 = vmul.f32 %v5253, 100.0
        %v5304 = vmul.f32 %v5258, 100.0
        %v5305 = vmul.f32 %v5263, 100.0
        %v5306 = vmul.f32 %v5268, 100.0
        %v5307 = vmul.f32 %v5273, 100.0
        %vm5308 = vcmp.gt.f32.partialorder %v5276, 20.0
        %vm5309 = vcmp.gt.f32.partialorder %v5277, 20.0
        %vm5310 = vcmp.gt.f32.partialorder %v5278, 20.0
        %vm5311 = vcmp.gt.f32.partialorder %v5279, 20.0
        %vm5312 = vcmp.gt.f32.partialorder %v5280, 20.0
        %vm5313 = vcmp.gt.f32.partialorder %v5281, 20.0
        %vm5314 = vcmp.gt.f32.partialorder %v5282, 20.0
        %vm5315 = vcmp.gt.f32.partialorder %v5283, 20.0
        %vm5316 = vcmp.gt.f32.partialorder %v5284, 20.0
        %vm5317 = vcmp.gt.f32.partialorder %v5285, 20.0
        %vm5318 = vcmp.gt.f32.partialorder %v5286, 20.0
        %vm5319 = vcmp.gt.f32.partialorder %v5287, 20.0
        %vm5320 = vcmp.gt.f32.partialorder %v5288, 20.0
        %vm5321 = vcmp.gt.f32.partialorder %v5289, 20.0
        %vm5322 = vcmp.gt.f32.partialorder %v5290, 20.0
        %vm5323 = vcmp.gt.f32.partialorder %v5291, 20.0
        %vm5324 = vcmp.gt.f32.partialorder %v5292, 20.0
        %vm5325 = vcmp.gt.f32.partialorder %v5293, 20.0
        %vm5326 = vcmp.gt.f32.partialorder %v5294, 20.0
        %vm5327 = vcmp.gt.f32.partialorder %v5295, 20.0
        %vm5328 = vcmp.gt.f32.partialorder %v5296, 20.0
        %vm5329 = vcmp.gt.f32.partialorder %v5297, 20.0
        %vm5330 = vcmp.gt.f32.partialorder %v5298, 20.0
        %vm5331 = vcmp.gt.f32.partialorder %v5299, 20.0
        %vm5332 = vcmp.gt.f32.partialorder %v5300, 20.0
        %vm5333 = vcmp.gt.f32.partialorder %v5301, 20.0
        %vm5334 = vcmp.gt.f32.partialorder %v5302, 20.0
        %vm5335 = vcmp.gt.f32.partialorder %v5303, 20.0
        %vm5336 = vcmp.gt.f32.partialorder %v5304, 20.0
        %vm5337 = vcmp.gt.f32.partialorder %v5305, 20.0
        %vm5338 = vcmp.gt.f32.partialorder %v5306, 20.0
        %vm5339 = vcmp.gt.f32.partialorder %v5307, 20.0
        %v5340 = vmin.f32 %v5276, 20.0
        %v5341 = vmin.f32 %v5277, 20.0
        %v5342 = vmin.f32 %v5278, 20.0
        %v5343 = vmin.f32 %v5279, 20.0
        %v5344 = vmin.f32 %v5280, 20.0
        %v5345 = vmin.f32 %v5281, 20.0
        %v5346 = vmin.f32 %v5282, 20.0
        %v5347 = vmin.f32 %v5283, 20.0
        %v5348 = vmin.f32 %v5284, 20.0
        %v5349 = vmin.f32 %v5285, 20.0
        %v5350 = vmin.f32 %v5286, 20.0
        %v5351 = vmin.f32 %v5287, 20.0
        %v5352 = vmin.f32 %v5288, 20.0
        %v5353 = vmin.f32 %v5289, 20.0
        %v5354 = vmin.f32 %v5290, 20.0
        %v5355 = vmin.f32 %v5291, 20.0
        %v5356 = vmin.f32 %v5292, 20.0
        %v5357 = vmin.f32 %v5293, 20.0
        %v5358 = vmin.f32 %v5294, 20.0
        %v5359 = vmin.f32 %v5295, 20.0
        %v5360 = vmin.f32 %v5296, 20.0
        %v5361 = vmin.f32 %v5297, 20.0
        %v5362 = vmin.f32 %v5298, 20.0
        %v5363 = vmin.f32 %v5299, 20.0
        %v5364 = vmin.f32 %v5300, 20.0
        %v5365 = vmin.f32 %v5301, 20.0
        %v5366 = vmin.f32 %v5302, 20.0
        %v5367 = vmin.f32 %v5303, 20.0
        %v5368 = vmin.f32 %v5304, 20.0
        %v5369 = vmin.f32 %v5305, 20.0
        %v5370 = vmin.f32 %v5306, 20.0
        %v5371 = vmin.f32 %v5307, 20.0
        %v5372 = vmul.f32 %v5340, 1.442695
        %v5373 = vpow.pop %v5372
        %v5374 = vmul.f32 %v5341, 1.442695
        %v5375 = vpow.pop %v5374
        %v5376 = vmul.f32 %v5342, 1.442695
        %v5377 = vpow.pop %v5376
        %v5378 = vmul.f32 %v5343, 1.442695
        %v5379 = vpow.pop %v5378
        %v5380 = vmul.f32 %v5344, 1.442695
        %v5381 = vpow.pop %v5380
        %v5382 = vmul.f32 %v5345, 1.442695
        %v5383 = vpow.pop %v5382
        %v5384 = vmul.f32 %v5346, 1.442695
        %v5385 = vpow.pop %v5384
        %v5386 = vmul.f32 %v5347, 1.442695
        %v5387 = vpow.pop %v5386
        %v5388 = vmul.f32 %v5348, 1.442695
        %v5389 = vpow.pop %v5388
        %v5390 = vmul.f32 %v5349, 1.442695
        %v5391 = vpow.pop %v5390
        %v5392 = vmul.f32 %v5350, 1.442695
        %v5393 = vpow.pop %v5392
        %v5394 = vmul.f32 %v5351, 1.442695
        %v5395 = vpow.pop %v5394
        %v5396 = vmul.f32 %v5352, 1.442695
        %v5397 = vpow.pop %v5396
        %v5398 = vmul.f32 %v5353, 1.442695
        %v5399 = vpow.pop %v5398
        %v5400 = vmul.f32 %v5354, 1.442695
        %v5401 = vpow.pop %v5400
        %v5402 = vmul.f32 %v5355, 1.442695
        %v5403 = vpow.pop %v5402
        %v5404 = vmul.f32 %v5356, 1.442695
        %v5405 = vpow.pop %v5404
        %v5406 = vmul.f32 %v5357, 1.442695
        %v5407 = vpow.pop %v5406
        %v5408 = vmul.f32 %v5358, 1.442695
        %v5409 = vpow.pop %v5408
        %v5410 = vmul.f32 %v5359, 1.442695
        %v5411 = vpow.pop %v5410
        %v5412 = vmul.f32 %v5360, 1.442695
        %v5413 = vpow.pop %v5412
        %v5414 = vmul.f32 %v5361, 1.442695
        %v5415 = vpow.pop %v5414
        %v5416 = vmul.f32 %v5362, 1.442695
        %v5417 = vpow.pop %v5416
        %v5418 = vmul.f32 %v5363, 1.442695
        %v5419 = vpow.pop %v5418
        %v5420 = vmul.f32 %v5364, 1.442695
        %v5421 = vpow.pop %v5420
        %v5422 = vmul.f32 %v5365, 1.442695
        %v5423 = vpow.pop %v5422
        %v5424 = vmul.f32 %v5366, 1.442695
        %v5425 = vpow.pop %v5424
        %v5426 = vmul.f32 %v5367, 1.442695
        %v5427 = vpow.pop %v5426
        %v5428 = vmul.f32 %v5368, 1.442695
        %v5429 = vpow.pop %v5428
        %v5430 = vmul.f32 %v5369, 1.442695
        %v5431 = vpow.pop %v5430
        %v5432 = vmul.f32 %v5370, 1.442695
        %v5433 = vpow.pop %v5432
        %v5434 = vmul.f32 %v5371, 1.442695
        %v5435 = vpow.pop %v5434
        %v5436 = vadd.f32 %v5373, 1.0
        %v5437 = vlog2.pop %v5436
        %v5438 = vmul.f32 %v5437, 0.6931472
        %v5439 = vmul.f32 -0.5, %v5373
        %v5440 = vadd.f32 %v5439, 1.0
        %v5441 = vmul.f32 %v5440, %v5373
        %v5442 = vand.u32 2147483647, %v5373
        %vm5443 = vcmp.lt.f32.partialorder %v5442, 0.0004427343
        %v5444 = vsel %vm5443, %v5441, %v5438
        %v5445 = vadd.f32 %v5375, 1.0
        %v5446 = vlog2.pop %v5445
        %v5447 = vmul.f32 %v5446, 0.6931472
        %v5448 = vmul.f32 -0.5, %v5375
        %v5449 = vadd.f32 %v5448, 1.0
        %v5450 = vmul.f32 %v5449, %v5375
        %v5451 = vand.u32 2147483647, %v5375
        %vm5452 = vcmp.lt.f32.partialorder %v5451, 0.0004427343
        %v5453 = vsel %vm5452, %v5450, %v5447
        %v5454 = vadd.f32 %v5377, 1.0
        %v5455 = vlog2.pop %v5454
        %v5456 = vmul.f32 %v5455, 0.6931472
        %v5457 = vmul.f32 -0.5, %v5377
        %v5458 = vadd.f32 %v5457, 1.0
        %v5459 = vmul.f32 %v5458, %v5377
        %v5460 = vand.u32 2147483647, %v5377
        %vm5461 = vcmp.lt.f32.partialorder %v5460, 0.0004427343
        %v5462 = vsel %vm5461, %v5459, %v5456
        %v5463 = vadd.f32 %v5379, 1.0
        %v5464 = vlog2.pop %v5463
        %v5465 = vmul.f32 %v5464, 0.6931472
        %v5466 = vmul.f32 -0.5, %v5379
        %v5467 = vadd.f32 %v5466, 1.0
        %v5468 = vmul.f32 %v5467, %v5379
        %v5469 = vand.u32 2147483647, %v5379
        %vm5470 = vcmp.lt.f32.partialorder %v5469, 0.0004427343
        %v5471 = vsel %vm5470, %v5468, %v5465
        %v5472 = vadd.f32 %v5381, 1.0
        %v5473 = vlog2.pop %v5472
        %v5474 = vmul.f32 %v5473, 0.6931472
        %v5475 = vmul.f32 -0.5, %v5381
        %v5476 = vadd.f32 %v5475, 1.0
        %v5477 = vmul.f32 %v5476, %v5381
        %v5478 = vand.u32 2147483647, %v5381
        %vm5479 = vcmp.lt.f32.partialorder %v5478, 0.0004427343
        %v5480 = vsel %vm5479, %v5477, %v5474
        %v5481 = vadd.f32 %v5383, 1.0
        %v5482 = vlog2.pop %v5481
        %v5483 = vmul.f32 %v5482, 0.6931472
        %v5484 = vmul.f32 -0.5, %v5383
        %v5485 = vadd.f32 %v5484, 1.0
        %v5486 = vmul.f32 %v5485, %v5383
        %v5487 = vand.u32 2147483647, %v5383
        %vm5488 = vcmp.lt.f32.partialorder %v5487, 0.0004427343
        %v5489 = vsel %vm5488, %v5486, %v5483
        %v5490 = vadd.f32 %v5385, 1.0
        %v5491 = vlog2.pop %v5490
        %v5492 = vmul.f32 %v5491, 0.6931472
        %v5493 = vmul.f32 -0.5, %v5385
        %v5494 = vadd.f32 %v5493, 1.0
        %v5495 = vmul.f32 %v5494, %v5385
        %v5496 = vand.u32 2147483647, %v5385
        %vm5497 = vcmp.lt.f32.partialorder %v5496, 0.0004427343
        %v5498 = vsel %vm5497, %v5495, %v5492
        %v5499 = vadd.f32 %v5387, 1.0
        %v5500 = vlog2.pop %v5499
        %v5501 = vmul.f32 %v5500, 0.6931472
        %v5502 = vmul.f32 -0.5, %v5387
        %v5503 = vadd.f32 %v5502, 1.0
        %v5504 = vmul.f32 %v5503, %v5387
        %v5505 = vand.u32 2147483647, %v5387
        %vm5506 = vcmp.lt.f32.partialorder %v5505, 0.0004427343
        %v5507 = vsel %vm5506, %v5504, %v5501
        %v5508 = vadd.f32 %v5389, 1.0
        %v5509 = vlog2.pop %v5508
        %v5510 = vmul.f32 %v5509, 0.6931472
        %v5511 = vmul.f32 -0.5, %v5389
        %v5512 = vadd.f32 %v5511, 1.0
        %v5513 = vmul.f32 %v5512, %v5389
        %v5514 = vand.u32 2147483647, %v5389
        %vm5515 = vcmp.lt.f32.partialorder %v5514, 0.0004427343
        %v5516 = vsel %vm5515, %v5513, %v5510
        %v5517 = vadd.f32 %v5391, 1.0
        %v5518 = vlog2.pop %v5517
        %v5519 = vmul.f32 %v5518, 0.6931472
        %v5520 = vmul.f32 -0.5, %v5391
        %v5521 = vadd.f32 %v5520, 1.0
        %v5522 = vmul.f32 %v5521, %v5391
        %v5523 = vand.u32 2147483647, %v5391
        %vm5524 = vcmp.lt.f32.partialorder %v5523, 0.0004427343
        %v5525 = vsel %vm5524, %v5522, %v5519
        %v5526 = vadd.f32 %v5393, 1.0
        %v5527 = vlog2.pop %v5526
        %v5528 = vmul.f32 %v5527, 0.6931472
        %v5529 = vmul.f32 -0.5, %v5393
        %v5530 = vadd.f32 %v5529, 1.0
        %v5531 = vmul.f32 %v5530, %v5393
        %v5532 = vand.u32 2147483647, %v5393
        %vm5533 = vcmp.lt.f32.partialorder %v5532, 0.0004427343
        %v5534 = vsel %vm5533, %v5531, %v5528
        %v5535 = vadd.f32 %v5395, 1.0
        %v5536 = vlog2.pop %v5535
        %v5537 = vmul.f32 %v5536, 0.6931472
        %v5538 = vmul.f32 -0.5, %v5395
        %v5539 = vadd.f32 %v5538, 1.0
        %v5540 = vmul.f32 %v5539, %v5395
        %v5541 = vand.u32 2147483647, %v5395
        %vm5542 = vcmp.lt.f32.partialorder %v5541, 0.0004427343
        %v5543 = vsel %vm5542, %v5540, %v5537
        %v5544 = vadd.f32 %v5397, 1.0
        %v5545 = vlog2.pop %v5544
        %v5546 = vmul.f32 %v5545, 0.6931472
        %v5547 = vmul.f32 -0.5, %v5397
        %v5548 = vadd.f32 %v5547, 1.0
        %v5549 = vmul.f32 %v5548, %v5397
        %v5550 = vand.u32 2147483647, %v5397
        %vm5551 = vcmp.lt.f32.partialorder %v5550, 0.0004427343
        %v5552 = vsel %vm5551, %v5549, %v5546
        %v5553 = vadd.f32 %v5399, 1.0
        %v5554 = vlog2.pop %v5553
        %v5555 = vmul.f32 %v5554, 0.6931472
        %v5556 = vmul.f32 -0.5, %v5399
        %v5557 = vadd.f32 %v5556, 1.0
        %v5558 = vmul.f32 %v5557, %v5399
        %v5559 = vand.u32 2147483647, %v5399
        %vm5560 = vcmp.lt.f32.partialorder %v5559, 0.0004427343
        %v5561 = vsel %vm5560, %v5558, %v5555
        %v5562 = vadd.f32 %v5401, 1.0
        %v5563 = vlog2.pop %v5562
        %v5564 = vmul.f32 %v5563, 0.6931472
        %v5565 = vmul.f32 -0.5, %v5401
        %v5566 = vadd.f32 %v5565, 1.0
        %v5567 = vmul.f32 %v5566, %v5401
        %v5568 = vand.u32 2147483647, %v5401
        %vm5569 = vcmp.lt.f32.partialorder %v5568, 0.0004427343
        %v5570 = vsel %vm5569, %v5567, %v5564
        %v5571 = vadd.f32 %v5403, 1.0
        %v5572 = vlog2.pop %v5571
        %v5573 = vmul.f32 %v5572, 0.6931472
        %v5574 = vmul.f32 -0.5, %v5403
        %v5575 = vadd.f32 %v5574, 1.0
        %v5576 = vmul.f32 %v5575, %v5403
        %v5577 = vand.u32 2147483647, %v5403
        %vm5578 = vcmp.lt.f32.partialorder %v5577, 0.0004427343
        %v5579 = vsel %vm5578, %v5576, %v5573
        %v5580 = vadd.f32 %v5405, 1.0
        %v5581 = vlog2.pop %v5580
        %v5582 = vmul.f32 %v5581, 0.6931472
        %v5583 = vmul.f32 -0.5, %v5405
        %v5584 = vadd.f32 %v5583, 1.0
        %v5585 = vmul.f32 %v5584, %v5405
        %v5586 = vand.u32 2147483647, %v5405
        %vm5587 = vcmp.lt.f32.partialorder %v5586, 0.0004427343
        %v5588 = vsel %vm5587, %v5585, %v5582
        %v5589 = vadd.f32 %v5407, 1.0
        %v5590 = vlog2.pop %v5589
        %v5591 = vmul.f32 %v5590, 0.6931472
        %v5592 = vmul.f32 -0.5, %v5407
        %v5593 = vadd.f32 %v5592, 1.0
        %v5594 = vmul.f32 %v5593, %v5407
        %v5595 = vand.u32 2147483647, %v5407
        %vm5596 = vcmp.lt.f32.partialorder %v5595, 0.0004427343
        %v5597 = vsel %vm5596, %v5594, %v5591
        %v5598 = vadd.f32 %v5409, 1.0
        %v5599 = vlog2.pop %v5598
        %v5600 = vmul.f32 %v5599, 0.6931472
        %v5601 = vmul.f32 -0.5, %v5409
        %v5602 = vadd.f32 %v5601, 1.0
        %v5603 = vmul.f32 %v5602, %v5409
        %v5604 = vand.u32 2147483647, %v5409
        %vm5605 = vcmp.lt.f32.partialorder %v5604, 0.0004427343
        %v5606 = vsel %vm5605, %v5603, %v5600
        %v5607 = vadd.f32 %v5411, 1.0
        %v5608 = vlog2.pop %v5607
        %v5609 = vmul.f32 %v5608, 0.6931472
        %v5610 = vmul.f32 -0.5, %v5411
        %v5611 = vadd.f32 %v5610, 1.0
        %v5612 = vmul.f32 %v5611, %v5411
        %v5613 = vand.u32 2147483647, %v5411
        %vm5614 = vcmp.lt.f32.partialorder %v5613, 0.0004427343
        %v5615 = vsel %vm5614, %v5612, %v5609
        %v5616 = vadd.f32 %v5413, 1.0
        %v5617 = vlog2.pop %v5616
        %v5618 = vmul.f32 %v5617, 0.6931472
        %v5619 = vmul.f32 -0.5, %v5413
        %v5620 = vadd.f32 %v5619, 1.0
        %v5621 = vmul.f32 %v5620, %v5413
        %v5622 = vand.u32 2147483647, %v5413
        %vm5623 = vcmp.lt.f32.partialorder %v5622, 0.0004427343
        %v5624 = vsel %vm5623, %v5621, %v5618
        %v5625 = vadd.f32 %v5415, 1.0
        %v5626 = vlog2.pop %v5625
        %v5627 = vmul.f32 %v5626, 0.6931472
        %v5628 = vmul.f32 -0.5, %v5415
        %v5629 = vadd.f32 %v5628, 1.0
        %v5630 = vmul.f32 %v5629, %v5415
        %v5631 = vand.u32 2147483647, %v5415
        %vm5632 = vcmp.lt.f32.partialorder %v5631, 0.0004427343
        %v5633 = vsel %vm5632, %v5630, %v5627
        %v5634 = vadd.f32 %v5417, 1.0
        %v5635 = vlog2.pop %v5634
        %v5636 = vmul.f32 %v5635, 0.6931472
        %v5637 = vmul.f32 -0.5, %v5417
        %v5638 = vadd.f32 %v5637, 1.0
        %v5639 = vmul.f32 %v5638, %v5417
        %v5640 = vand.u32 2147483647, %v5417
        %vm5641 = vcmp.lt.f32.partialorder %v5640, 0.0004427343
        %v5642 = vsel %vm5641, %v5639, %v5636
        %v5643 = vadd.f32 %v5419, 1.0
        %v5644 = vlog2.pop %v5643
        %v5645 = vmul.f32 %v5644, 0.6931472
        %v5646 = vmul.f32 -0.5, %v5419
        %v5647 = vadd.f32 %v5646, 1.0
        %v5648 = vmul.f32 %v5647, %v5419
        %v5649 = vand.u32 2147483647, %v5419
        %vm5650 = vcmp.lt.f32.partialorder %v5649, 0.0004427343
        %v5651 = vsel %vm5650, %v5648, %v5645
        %v5652 = vadd.f32 %v5421, 1.0
        %v5653 = vlog2.pop %v5652
        %v5654 = vmul.f32 %v5653, 0.6931472
        %v5655 = vmul.f32 -0.5, %v5421
        %v5656 = vadd.f32 %v5655, 1.0
        %v5657 = vmul.f32 %v5656, %v5421
        %v5658 = vand.u32 2147483647, %v5421
        %vm5659 = vcmp.lt.f32.partialorder %v5658, 0.0004427343
        %v5660 = vsel %vm5659, %v5657, %v5654
        %v5661 = vadd.f32 %v5423, 1.0
        %v5662 = vlog2.pop %v5661
        %v5663 = vmul.f32 %v5662, 0.6931472
        %v5664 = vmul.f32 -0.5, %v5423
        %v5665 = vadd.f32 %v5664, 1.0
        %v5666 = vmul.f32 %v5665, %v5423
        %v5667 = vand.u32 2147483647, %v5423
        %vm5668 = vcmp.lt.f32.partialorder %v5667, 0.0004427343
        %v5669 = vsel %vm5668, %v5666, %v5663
        %v5670 = vadd.f32 %v5425, 1.0
        %v5671 = vlog2.pop %v5670
        %v5672 = vmul.f32 %v5671, 0.6931472
        %v5673 = vmul.f32 -0.5, %v5425
        %v5674 = vadd.f32 %v5673, 1.0
        %v5675 = vmul.f32 %v5674, %v5425
        %v5676 = vand.u32 2147483647, %v5425
        %vm5677 = vcmp.lt.f32.partialorder %v5676, 0.0004427343
        %v5678 = vsel %vm5677, %v5675, %v5672
        %v5679 = vadd.f32 %v5427, 1.0
        %v5680 = vlog2.pop %v5679
        %v5681 = vmul.f32 %v5680, 0.6931472
        %v5682 = vmul.f32 -0.5, %v5427
        %v5683 = vadd.f32 %v5682, 1.0
        %v5684 = vmul.f32 %v5683, %v5427
        %v5685 = vand.u32 2147483647, %v5427
        %vm5686 = vcmp.lt.f32.partialorder %v5685, 0.0004427343
        %v5687 = vsel %vm5686, %v5684, %v5681
        %v5688 = vadd.f32 %v5429, 1.0
        %v5689 = vlog2.pop %v5688
        %v5690 = vmul.f32 %v5689, 0.6931472
        %v5691 = vmul.f32 -0.5, %v5429
        %v5692 = vadd.f32 %v5691, 1.0
        %v5693 = vmul.f32 %v5692, %v5429
        %v5694 = vand.u32 2147483647, %v5429
        %vm5695 = vcmp.lt.f32.partialorder %v5694, 0.0004427343
        %v5696 = vsel %vm5695, %v5693, %v5690
        %v5697 = vadd.f32 %v5431, 1.0
        %v5698 = vlog2.pop %v5697
        %v5699 = vmul.f32 %v5698, 0.6931472
        %v5700 = vmul.f32 -0.5, %v5431
        %v5701 = vadd.f32 %v5700, 1.0
        %v5702 = vmul.f32 %v5701, %v5431
        %v5703 = vand.u32 2147483647, %v5431
        %vm5704 = vcmp.lt.f32.partialorder %v5703, 0.0004427343
        %v5705 = vsel %vm5704, %v5702, %v5699
        %v5706 = vadd.f32 %v5433, 1.0
        %v5707 = vlog2.pop %v5706
        %v5708 = vmul.f32 %v5707, 0.6931472
        %v5709 = vmul.f32 -0.5, %v5433
        %v5710 = vadd.f32 %v5709, 1.0
        %v5711 = vmul.f32 %v5710, %v5433
        %v5712 = vand.u32 2147483647, %v5433
        %vm5713 = vcmp.lt.f32.partialorder %v5712, 0.0004427343
        %v5714 = vsel %vm5713, %v5711, %v5708
        %v5715 = vadd.f32 %v5435, 1.0
        %v5716 = vlog2.pop %v5715
        %v5717 = vmul.f32 %v5716, 0.6931472
        %v5718 = vmul.f32 -0.5, %v5435
        %v5719 = vadd.f32 %v5718, 1.0
        %v5720 = vmul.f32 %v5719, %v5435
        %v5721 = vand.u32 2147483647, %v5435
        %vm5722 = vcmp.lt.f32.partialorder %v5721, 0.0004427343
        %v5723 = vsel %vm5722, %v5720, %v5717
        %v5724 = vmul.f32 %v5444, %v4877
        %v5725 = vmul.f32 %v5453, %v4877
        %v5726 = vmul.f32 %v5462, %v4877
        %v5727 = vmul.f32 %v5471, %v4877
        %v5728 = vmul.f32 %v5480, %v4877
        %v5729 = vmul.f32 %v5489, %v4877
        %v5730 = vmul.f32 %v5498, %v4877
        %v5731 = vmul.f32 %v5507, %v4877
        %v5732 = vmul.f32 %v5516, %v4877
        %v5733 = vmul.f32 %v5525, %v4877
        %v5734 = vmul.f32 %v5534, %v4877
        %v5735 = vmul.f32 %v5543, %v4877
        %v5736 = vmul.f32 %v5552, %v4877
        %v5737 = vmul.f32 %v5561, %v4877
        %v5738 = vmul.f32 %v5570, %v4877
        %v5739 = vmul.f32 %v5579, %v4877
        %v5740 = vmul.f32 %v5588, %v4877
        %v5741 = vmul.f32 %v5597, %v4877
        %v5742 = vmul.f32 %v5606, %v4877
        %v5743 = vmul.f32 %v5615, %v4877
        %v5744 = vmul.f32 %v5624, %v4877
        %v5745 = vmul.f32 %v5633, %v4877
        %v5746 = vmul.f32 %v5642, %v4877
        %v5747 = vmul.f32 %v5651, %v4877
        %v5748 = vmul.f32 %v5660, %v4877
        %v5749 = vmul.f32 %v5669, %v4877
        %v5750 = vmul.f32 %v5678, %v4877
        %v5751 = vmul.f32 %v5687, %v4877
        %v5752 = vmul.f32 %v5696, %v4877
        %v5753 = vmul.f32 %v5705, %v4877
        %v5754 = vmul.f32 %v5714, %v4877
        %v5755 = vmul.f32 %v5723, %v4877
        %v5756 = vsel %vm5308, %v5118, %v5724
        %v5757 = vsel %vm5309, %v5123, %v5725
        %v5758 = vsel %vm5310, %v5128, %v5726
        %v5759 = vsel %vm5311, %v5133, %v5727
        %v5760 = vsel %vm5312, %v5138, %v5728
        %v5761 = vsel %vm5313, %v5143, %v5729
        %v5762 = vsel %vm5314, %v5148, %v5730
        %v5763 = vsel %vm5315, %v5153, %v5731
        %v5764 = vsel %vm5316, %v5158, %v5732
        %v5765 = vsel %vm5317, %v5163, %v5733
        %v5766 = vsel %vm5318, %v5168, %v5734
        %v5767 = vsel %vm5319, %v5173, %v5735
        %v5768 = vsel %vm5320, %v5178, %v5736
        %v5769 = vsel %vm5321, %v5183, %v5737
        %v5770 = vsel %vm5322, %v5188, %v5738
        %v5771 = vsel %vm5323, %v5193, %v5739
        %v5772 = vsel %vm5324, %v5198, %v5740
        %v5773 = vsel %vm5325, %v5203, %v5741
        %v5774 = vsel %vm5326, %v5208, %v5742
        %v5775 = vsel %vm5327, %v5213, %v5743
        %v5776 = vsel %vm5328, %v5218, %v5744
        %v5777 = vsel %vm5329, %v5223, %v5745
        %v5778 = vsel %vm5330, %v5228, %v5746
        %v5779 = vsel %vm5331, %v5233, %v5747
        %v5780 = vsel %vm5332, %v5238, %v5748
        %v5781 = vsel %vm5333, %v5243, %v5749
        %v5782 = vsel %vm5334, %v5248, %v5750
        %v5783 = vsel %vm5335, %v5253, %v5751
        %v5784 = vsel %vm5336, %v5258, %v5752
        %v5785 = vsel %vm5337, %v5263, %v5753
        %v5786 = vsel %vm5338, %v5268, %v5754
        %v5787 = vsel %vm5339, %v5273, %v5755
        %v5788 = vld [vmem:[%s3 + $0x60] sm:$0xff]
        %v5789 = vld [vmem:[%s3 + $0x68] sm:$0xff]
        %v5790 = vld [vmem:[%s3 + $0x70] sm:$0xff]
        %v5791 = vld [vmem:[%s3 + $0x78] sm:$0xff]
        %v5792 = vld [vmem:[%s3 + $0x80] sm:$0xff]
        %v5793 = vld [vmem:[%s3 + $0x88] sm:$0xff]
        %v5794 = vld [vmem:[%s3 + $0x90] sm:$0xff]
        %v5795 = vld [vmem:[%s3 + $0x98] sm:$0xff]
        %v5796 = vld [vmem:[%s3 + $0xa0] sm:$0xff]
        %v5797 = vld [vmem:[%s3 + $0xa8] sm:$0xff]
        %v5798 = vld [vmem:[%s3 + $0xb0] sm:$0xff]
        %v5799 = vld [vmem:[%s3 + $0xb8] sm:$0xff]
        %5800 = vmatprep.subr.mxu0 0.0
        %5801 = vmatpush1.msra.mxu0 %v5796
        %5802 = vmatprep.subr.mxu0 0.0
        %5803 = vmatpush1.msra.mxu0 %v5797
        %5804 = vmatprep.subr.mxu0 0.0
        %5805 = vmatpush1.msra.mxu0 %v5798
        %5806 = vmatprep.subr.mxu0 0.0
        %5807 = vmatpush1.msra.mxu0 %v5799
        %5808 = vmatprep.subr.mxu0 0.0
        %5809 = vmatpush1.msra.mxu0 0.0
        %5810 = vmatprep.subr.mxu0 0.0
        %5811 = vmatpush1.msra.mxu0 0.0
        %5812 = vmatprep.subr.mxu0 0.0
        %5813 = vmatpush1.msra.mxu0 0.0
        %5814 = vmatprep.subr.mxu0 0.0
        %5815 = vmatpush1.msra.mxu0 0.0
        %5816 = vmatprep.subr.mxu0 0.0
        %5817 = vmatpush1.msra.mxu0 0.0
        %5818 = vmatprep.subr.mxu0 0.0
        %5819 = vmatpush1.msra.mxu0 0.0
        %5820 = vmatprep.subr.mxu0 0.0
        %5821 = vmatpush1.msra.mxu0 0.0
        %5822 = vmatprep.subr.mxu0 0.0
        %5823 = vmatpush1.msra.mxu0 0.0
        %5824 = vmatprep.subr.mxu0 0.0
        %5825 = vmatpush1.msra.mxu0 0.0
        %5826 = vmatprep.subr.mxu0 0.0
        %5827 = vmatpush1.msra.mxu0 0.0
        %5828 = vmatprep.subr.mxu0 0.0
        %5829 = vmatpush1.msra.mxu0 0.0
        %5830 = vmatprep.subr.mxu0 0.0
        %5831 = vmatpush1.msra.mxu0 0.0
        %5832 = vmatprep.subr.mxu0 0.0
        %5833 = vmatpush1.msra.mxu0 0.0
        %5834 = vmatprep.subr.mxu0 0.0
        %5835 = vmatpush1.msra.mxu0 0.0
        %5836 = vmatprep.subr.mxu0 0.0
        %5837 = vmatpush1.msra.mxu0 0.0
        %5838 = vmatprep.subr.mxu0 0.0
        %5839 = vmatpush1.msra.mxu0 0.0
        %5840 = vmatprep.subr.mxu0 0.0
        %5841 = vmatpush1.msra.mxu0 0.0
        %5842 = vmatprep.subr.mxu0 0.0
        %5843 = vmatpush1.msra.mxu0 0.0
        %5844 = vmatprep.subr.mxu0 0.0
        %5845 = vmatpush1.msra.mxu0 0.0
        %5846 = vmatprep.subr.mxu0 0.0
        %5847 = vmatpush1.msra.mxu0 0.0
        %5848 = vmatprep.subr.mxu0 0.0
        %5849 = vmatpush1.msra.mxu0 0.0
        %5850 = vmatprep.subr.mxu0 0.0
        %5851 = vmatpush1.msra.mxu0 0.0
        %5852 = vmatprep.subr.mxu0 0.0
        %5853 = vmatpush1.msra.mxu0 0.0
        %5854 = vmatprep.subr.mxu0 0.0
        %5855 = vmatpush1.msra.mxu0 0.0
        %5856 = vmatprep.subr.mxu0 0.0
        %5857 = vmatpush1.msra.mxu0 0.0
        %5858 = vmatprep.subr.mxu0 0.0
        %5859 = vmatpush1.msra.mxu0 0.0
        %5860 = vmatprep.subr.mxu0 0.0
        %5861 = vmatpush1.msra.mxu0 0.0
        %5862 = vmatprep.subr.mxu0 0.0
        %5863 = vmatpush1.msra.mxu0 0.0
        %5864 = vmatprep.mubr.f32.mxu0 0.0
        %5865 = vmatmul.mubr.f32.gmra.mrb[0].mxu0 %v4109
        %v5866 = vpop.f32.mrb[0].mxu0
        %v5867 = vadd.f32 0.0, %v5866
        %v5868 = vpop.f32.mrb[0].mxu0
        %5869 = vmatprep.mubr.f32.mxu0 0.0
        %5870 = vmatmul.mubr.f32.gmra.mrb[0].mxu0 %v4112
        %v5871 = vpop.f32.mrb[0].mxu0
        %v5872 = vadd.f32 0.0, %v5871
        %v5873 = vpop.f32.mrb[0].mxu0
        %5874 = vmatprep.mubr.f32.mxu0 0.0
        %5875 = vmatmul.mubr.f32.gmra.mrb[0].mxu0 %v4115
        %v5876 = vpop.f32.mrb[0].mxu0
        %v5877 = vadd.f32 0.0, %v5876
        %v5878 = vpop.f32.mrb[0].mxu0
        %5879 = vmatprep.mubr.f32.mxu0 0.0
        %5880 = vmatmul.mubr.f32.gmra.mrb[0].mxu0 %v4118
        %v5881 = vpop.f32.mrb[0].mxu0
        %v5882 = vadd.f32 0.0, %v5881
        %v5883 = vpop.f32.mrb[0].mxu0
        %5884 = vmatprep.mubr.f32.mxu0 0.0
        %5885 = vmatmul.mubr.f32.gmra.mrb[0].mxu0 %v4121
        %v5886 = vpop.f32.mrb[0].mxu0
        %v5887 = vadd.f32 0.0, %v5886
        %v5888 = vpop.f32.mrb[0].mxu0
        %5889 = vmatprep.mubr.f32.mxu0 0.0
        %5890 = vmatmul.mubr.f32.gmra.mrb[0].mxu0 %v4124
        %v5891 = vpop.f32.mrb[0].mxu0
        %v5892 = vadd.f32 0.0, %v5891
        %v5893 = vpop.f32.mrb[0].mxu0
        %5894 = vmatprep.mubr.f32.mxu0 0.0
        %5895 = vmatmul.mubr.f32.gmra.mrb[0].mxu0 %v4127
        %v5896 = vpop.f32.mrb[0].mxu0
        %v5897 = vadd.f32 0.0, %v5896
        %v5898 = vpop.f32.mrb[0].mxu0
        %5899 = vmatprep.mubr.f32.mxu0 0.0
        %5900 = vmatmul.mubr.f32.gmra.mrb[0].mxu0 %v4130
        %v5901 = vpop.f32.mrb[0].mxu0
        %v5902 = vadd.f32 0.0, %v5901
        %v5903 = vpop.f32.mrb[0].mxu0
        %5904 = vmatprep.mubr.f32.mxu0 0.0
        %5905 = vmatmul.mubr.f32.gmra.mrb[0].mxu0 %v4133
        %v5906 = vpop.f32.mrb[0].mxu0
        %v5907 = vadd.f32 0.0, %v5906
        %v5908 = vpop.f32.mrb[0].mxu0
        %5909 = vmatprep.mubr.f32.mxu0 0.0
        %5910 = vmatmul.mubr.f32.gmra.mrb[0].mxu0 %v4136
        %v5911 = vpop.f32.mrb[0].mxu0
        %v5912 = vadd.f32 0.0, %v5911
        %v5913 = vpop.f32.mrb[0].mxu0
        %5914 = vmatprep.mubr.f32.mxu0 0.0
        %5915 = vmatmul.mubr.f32.gmra.mrb[0].mxu0 %v4139
        %v5916 = vpop.f32.mrb[0].mxu0
        %v5917 = vadd.f32 0.0, %v5916
        %v5918 = vpop.f32.mrb[0].mxu0
        %5919 = vmatprep.mubr.f32.mxu0 0.0
        %5920 = vmatmul.mubr.f32.gmra.mrb[0].mxu0 %v4142
        %v5921 = vpop.f32.mrb[0].mxu0
        %v5922 = vadd.f32 0.0, %v5921
        %v5923 = vpop.f32.mrb[0].mxu0
        %5924 = vmatprep.mubr.f32.mxu0 0.0
        %5925 = vmatmul.mubr.f32.gmra.mrb[0].mxu0 %v4145
        %v5926 = vpop.f32.mrb[0].mxu0
        %v5927 = vadd.f32 0.0, %v5926
        %v5928 = vpop.f32.mrb[0].mxu0
        %5929 = vmatprep.mubr.f32.mxu0 0.0
        %5930 = vmatmul.mubr.f32.gmra.mrb[0].mxu0 %v4148
        %v5931 = vpop.f32.mrb[0].mxu0
        %v5932 = vadd.f32 0.0, %v5931
        %v5933 = vpop.f32.mrb[0].mxu0
        %5934 = vmatprep.mubr.f32.mxu0 0.0
        %5935 = vmatmul.mubr.f32.gmra.mrb[0].mxu0 %v4151
        %v5936 = vpop.f32.mrb[0].mxu0
        %v5937 = vadd.f32 0.0, %v5936
        %v5938 = vpop.f32.mrb[0].mxu0
        %5939 = vmatprep.mubr.f32.mxu0 0.0
        %5940 = vmatmul.mubr.f32.gmra.mrb[0].mxu0 %v4154
        %v5941 = vpop.f32.mrb[0].mxu0
        %v5942 = vadd.f32 0.0, %v5941
        %v5943 = vpop.f32.mrb[0].mxu0
        %5944 = vmatprep.mubr.f32.mxu0 0.0
        %5945 = vmatmul.mubr.f32.gmra.mrb[0].mxu0 %v4157
        %v5946 = vpop.f32.mrb[0].mxu0
        %v5947 = vadd.f32 0.0, %v5946
        %v5948 = vpop.f32.mrb[0].mxu0
        %5949 = vmatprep.mubr.f32.mxu0 0.0
        %5950 = vmatmul.mubr.f32.gmra.mrb[0].mxu0 %v4160
        %v5951 = vpop.f32.mrb[0].mxu0
        %v5952 = vadd.f32 0.0, %v5951
        %v5953 = vpop.f32.mrb[0].mxu0
        %5954 = vmatprep.mubr.f32.mxu0 0.0
        %5955 = vmatmul.mubr.f32.gmra.mrb[0].mxu0 %v4163
        %v5956 = vpop.f32.mrb[0].mxu0
        %v5957 = vadd.f32 0.0, %v5956
        %v5958 = vpop.f32.mrb[0].mxu0
        %5959 = vmatprep.mubr.f32.mxu0 0.0
        %5960 = vmatmul.mubr.f32.gmra.mrb[0].mxu0 %v4166
        %v5961 = vpop.f32.mrb[0].mxu0
        %v5962 = vadd.f32 0.0, %v5961
        %v5963 = vpop.f32.mrb[0].mxu0
        %5964 = vmatprep.mubr.f32.mxu0 0.0
        %5965 = vmatmul.mubr.f32.gmra.mrb[0].mxu0 %v4169
        %v5966 = vpop.f32.mrb[0].mxu0
        %v5967 = vadd.f32 0.0, %v5966
        %v5968 = vpop.f32.mrb[0].mxu0
        %5969 = vmatprep.mubr.f32.mxu0 0.0
        %5970 = vmatmul.mubr.f32.gmra.mrb[0].mxu0 %v4172
        %v5971 = vpop.f32.mrb[0].mxu0
        %v5972 = vadd.f32 0.0, %v5971
        %v5973 = vpop.f32.mrb[0].mxu0
        %5974 = vmatprep.mubr.f32.mxu0 0.0
        %5975 = vmatmul.mubr.f32.gmra.mrb[0].mxu0 %v4175
        %v5976 = vpop.f32.mrb[0].mxu0
        %v5977 = vadd.f32 0.0, %v5976
        %v5978 = vpop.f32.mrb[0].mxu0
        %5979 = vmatprep.mubr.f32.mxu0 0.0
        %5980 = vmatmul.mubr.f32.gmra.mrb[0].mxu0 %v4178
        %v5981 = vpop.f32.mrb[0].mxu0
        %v5982 = vadd.f32 0.0, %v5981
        %v5983 = vpop.f32.mrb[0].mxu0
        %5984 = vmatprep.mubr.f32.mxu0 0.0
        %5985 = vmatmul.mubr.f32.gmra.mrb[0].mxu0 %v4181
        %v5986 = vpop.f32.mrb[0].mxu0
        %v5987 = vadd.f32 0.0, %v5986
        %v5988 = vpop.f32.mrb[0].mxu0
        %5989 = vmatprep.mubr.f32.mxu0 0.0
        %5990 = vmatmul.mubr.f32.gmra.mrb[0].mxu0 %v4184
        %v5991 = vpop.f32.mrb[0].mxu0
        %v5992 = vadd.f32 0.0, %v5991
        %v5993 = vpop.f32.mrb[0].mxu0
        %5994 = vmatprep.mubr.f32.mxu0 0.0
        %5995 = vmatmul.mubr.f32.gmra.mrb[0].mxu0 %v4187
        %v5996 = vpop.f32.mrb[0].mxu0
        %v5997 = vadd.f32 0.0, %v5996
        %v5998 = vpop.f32.mrb[0].mxu0
        %5999 = vmatprep.mubr.f32.mxu0 0.0
        %6000 = vmatmul.mubr.f32.gmra.mrb[0].mxu0 %v4190
        %v6001 = vpop.f32.mrb[0].mxu0
        %v6002 = vadd.f32 0.0, %v6001
        %v6003 = vpop.f32.mrb[0].mxu0
        %6004 = vmatprep.mubr.f32.mxu0 0.0
        %6005 = vmatmul.mubr.f32.gmra.mrb[0].mxu0 %v4193
        %v6006 = vpop.f32.mrb[0].mxu0
        %v6007 = vadd.f32 0.0, %v6006
        %v6008 = vpop.f32.mrb[0].mxu0
        %6009 = vmatprep.mubr.f32.mxu0 0.0
        %6010 = vmatmul.mubr.f32.gmra.mrb[0].mxu0 %v4196
        %v6011 = vpop.f32.mrb[0].mxu0
        %v6012 = vadd.f32 0.0, %v6011
        %v6013 = vpop.f32.mrb[0].mxu0
        %6014 = vmatprep.mubr.f32.mxu0 0.0
        %6015 = vmatmul.mubr.f32.gmra.mrb[0].mxu0 %v4199
        %v6016 = vpop.f32.mrb[0].mxu0
        %v6017 = vadd.f32 0.0, %v6016
        %v6018 = vpop.f32.mrb[0].mxu0
        %6019 = vmatprep.mubr.f32.mxu0 0.0
        %6020 = vmatmul.mubr.f32.gmra.mrb[0].mxu0 %v4202
        %v6021 = vpop.f32.mrb[0].mxu0
        %v6022 = vadd.f32 0.0, %v6021
        %v6023 = vpop.f32.mrb[0].mxu0
        %6024 = vdwg.mxu0
        %v6026 = vsel %vm4954, %v5756, 0
        %v6029 = vsel %vm4954, %v5757, 0
        %v6032 = vsel %vm4954, %v5758, 0
        %v6035 = vsel %vm4954, %v5759, 0
        %v6038 = vsel %vm4954, %v5760, 0
        %v6041 = vsel %vm4954, %v5761, 0
        %v6044 = vsel %vm4954, %v5762, 0
        %v6047 = vsel %vm4954, %v5763, 0
        %v6050 = vsel %vm4954, %v5764, 0
        %v6053 = vsel %vm4954, %v5765, 0
        %v6056 = vsel %vm4954, %v5766, 0
        %v6059 = vsel %vm4954, %v5767, 0
        %v6062 = vsel %vm4954, %v5768, 0
        %v6065 = vsel %vm4954, %v5769, 0
        %v6068 = vsel %vm4954, %v5770, 0
        %v6071 = vsel %vm4954, %v5771, 0
        %v6074 = vsel %vm4954, %v5772, 0
        %v6077 = vsel %vm4954, %v5773, 0
        %v6080 = vsel %vm4954, %v5774, 0
        %v6083 = vsel %vm4954, %v5775, 0
        %v6086 = vsel %vm4954, %v5776, 0
        %v6089 = vsel %vm4954, %v5777, 0
        %v6092 = vsel %vm4954, %v5778, 0
        %v6095 = vsel %vm4954, %v5779, 0
        %v6098 = vsel %vm4954, %v5780, 0
        %v6101 = vsel %vm4954, %v5781, 0
        %v6104 = vsel %vm4954, %v5782, 0
        %v6107 = vsel %vm4954, %v5783, 0
        %v6110 = vsel %vm4954, %v5784, 0
        %v6113 = vsel %vm4954, %v5785, 0
        %v6116 = vsel %vm4954, %v5786, 0
        %v6119 = vsel %vm4954, %v5787, 0
        %6121 = vmatprep.subr.mxu0 0.0
        %6122 = vmatpush1.msra.mxu0 %v5788
        %6123 = vmatprep.subr.mxu0 0.0
        %6124 = vmatpush1.msra.mxu0 %v5789
        %6125 = vmatprep.subr.mxu0 0.0
        %6126 = vmatpush1.msra.mxu0 %v5790
        %6127 = vmatprep.subr.mxu0 0.0
        %6128 = vmatpush1.msra.mxu0 %v5791
        %6129 = vmatprep.subr.mxu0 0.0
        %6130 = vmatpush1.msra.mxu0 %v5792
        %6131 = vmatprep.subr.mxu0 0.0
        %6132 = vmatpush1.msra.mxu0 %v5793
        %6133 = vmatprep.subr.mxu0 0.0
        %6134 = vmatpush1.msra.mxu0 %v5794
        %6135 = vmatprep.subr.mxu0 0.0
        %6136 = vmatpush1.msra.mxu0 %v5795
        %6137 = vmatprep.subr.mxu0 0.0
        %6138 = vmatpush1.msra.mxu0 0.0
        %6139 = vmatprep.subr.mxu0 0.0
        %6140 = vmatpush1.msra.mxu0 0.0
        %6141 = vmatprep.subr.mxu0 0.0
        %6142 = vmatpush1.msra.mxu0 0.0
        %6143 = vmatprep.subr.mxu0 0.0
        %6144 = vmatpush1.msra.mxu0 0.0
        %6145 = vmatprep.subr.mxu0 0.0
        %6146 = vmatpush1.msra.mxu0 0.0
        %6147 = vmatprep.subr.mxu0 0.0
        %6148 = vmatpush1.msra.mxu0 0.0
        %6149 = vmatprep.subr.mxu0 0.0
        %6150 = vmatpush1.msra.mxu0 0.0
        %6151 = vmatprep.subr.mxu0 0.0
        %6152 = vmatpush1.msra.mxu0 0.0
        %6153 = vmatprep.subr.mxu0 0.0
        %6154 = vmatpush1.msra.mxu0 0.0
        %6155 = vmatprep.subr.mxu0 0.0
        %6156 = vmatpush1.msra.mxu0 0.0
        %6157 = vmatprep.subr.mxu0 0.0
        %6158 = vmatpush1.msra.mxu0 0.0
        %6159 = vmatprep.subr.mxu0 0.0
        %6160 = vmatpush1.msra.mxu0 0.0
        %6161 = vmatprep.subr.mxu0 0.0
        %6162 = vmatpush1.msra.mxu0 0.0
        %6163 = vmatprep.subr.mxu0 0.0
        %6164 = vmatpush1.msra.mxu0 0.0
        %6165 = vmatprep.subr.mxu0 0.0
        %6166 = vmatpush1.msra.mxu0 0.0
        %6167 = vmatprep.subr.mxu0 0.0
        %6168 = vmatpush1.msra.mxu0 0.0
        %6169 = vmatprep.subr.mxu0 0.0
        %6170 = vmatpush1.msra.mxu0 0.0
        %6171 = vmatprep.subr.mxu0 0.0
        %6172 = vmatpush1.msra.mxu0 0.0
        %6173 = vmatprep.subr.mxu0 0.0
        %6174 = vmatpush1.msra.mxu0 0.0
        %6175 = vmatprep.subr.mxu0 0.0
        %6176 = vmatpush1.msra.mxu0 0.0
        %6177 = vmatprep.subr.mxu0 0.0
        %6178 = vmatpush1.msra.mxu0 0.0
        %6179 = vmatprep.subr.mxu0 0.0
        %6180 = vmatpush1.msra.mxu0 0.0
        %6181 = vmatprep.subr.mxu0 0.0
        %6182 = vmatpush1.msra.mxu0 0.0
        %6183 = vmatprep.subr.mxu0 0.0
        %6184 = vmatpush1.msra.mxu0 0.0
        %6185 = vmatprep.mubr.f32.mxu0 0.0
        %6186 = vmatmul.mubr.f32.gmra.mrb[0].mxu0 %v6026
        %v6187 = vpop.f32.mrb[0].mxu0
        %v6188 = vadd.f32 %v5867, %v6187
        %v6189 = vpop.f32.mrb[0].mxu0
        %6190 = vmatprep.mubr.f32.mxu0 0.0
        %6191 = vmatmul.mubr.f32.gmra.mrb[0].mxu0 %v6029
        %v6192 = vpop.f32.mrb[0].mxu0
        %v6193 = vadd.f32 %v5872, %v6192
        %v6194 = vpop.f32.mrb[0].mxu0
        %6195 = vmatprep.mubr.f32.mxu0 0.0
        %6196 = vmatmul.mubr.f32.gmra.mrb[0].mxu0 %v6032
        %v6197 = vpop.f32.mrb[0].mxu0
        %v6198 = vadd.f32 %v5877, %v6197
        %v6199 = vpop.f32.mrb[0].mxu0
        %6200 = vmatprep.mubr.f32.mxu0 0.0
        %6201 = vmatmul.mubr.f32.gmra.mrb[0].mxu0 %v6035
        %v6202 = vpop.f32.mrb[0].mxu0
        %v6203 = vadd.f32 %v5882, %v6202
        %v6204 = vpop.f32.mrb[0].mxu0
        %6205 = vmatprep.mubr.f32.mxu0 0.0
        %6206 = vmatmul.mubr.f32.gmra.mrb[0].mxu0 %v6038
        %v6207 = vpop.f32.mrb[0].mxu0
        %v6208 = vadd.f32 %v5887, %v6207
        %v6209 = vpop.f32.mrb[0].mxu0
        %6210 = vmatprep.mubr.f32.mxu0 0.0
        %6211 = vmatmul.mubr.f32.gmra.mrb[0].mxu0 %v6041
        %v6212 = vpop.f32.mrb[0].mxu0
        %v6213 = vadd.f32 %v5892, %v6212
        %v6214 = vpop.f32.mrb[0].mxu0
        %6215 = vmatprep.mubr.f32.mxu0 0.0
        %6216 = vmatmul.mubr.f32.gmra.mrb[0].mxu0 %v6044
        %v6217 = vpop.f32.mrb[0].mxu0
        %v6218 = vadd.f32 %v5897, %v6217
        %v6219 = vpop.f32.mrb[0].mxu0
        %6220 = vmatprep.mubr.f32.mxu0 0.0
        %6221 = vmatmul.mubr.f32.gmra.mrb[0].mxu0 %v6047
        %v6222 = vpop.f32.mrb[0].mxu0
        %v6223 = vadd.f32 %v5902, %v6222
        %v6224 = vpop.f32.mrb[0].mxu0
        %6225 = vmatprep.mubr.f32.mxu0 0.0
        %6226 = vmatmul.mubr.f32.gmra.mrb[0].mxu0 %v6050
        %v6227 = vpop.f32.mrb[0].mxu0
        %v6228 = vadd.f32 %v5907, %v6227
        %v6229 = vpop.f32.mrb[0].mxu0
        %6230 = vmatprep.mubr.f32.mxu0 0.0
        %6231 = vmatmul.mubr.f32.gmra.mrb[0].mxu0 %v6053
        %v6232 = vpop.f32.mrb[0].mxu0
        %v6233 = vadd.f32 %v5912, %v6232
        %v6234 = vpop.f32.mrb[0].mxu0
        %6235 = vmatprep.mubr.f32.mxu0 0.0
        %6236 = vmatmul.mubr.f32.gmra.mrb[0].mxu0 %v6056
        %v6237 = vpop.f32.mrb[0].mxu0
        %v6238 = vadd.f32 %v5917, %v6237
        %v6239 = vpop.f32.mrb[0].mxu0
        %6240 = vmatprep.mubr.f32.mxu0 0.0
        %6241 = vmatmul.mubr.f32.gmra.mrb[0].mxu0 %v6059
        %v6242 = vpop.f32.mrb[0].mxu0
        %v6243 = vadd.f32 %v5922, %v6242
        %v6244 = vpop.f32.mrb[0].mxu0
        %6245 = vmatprep.mubr.f32.mxu0 0.0
        %6246 = vmatmul.mubr.f32.gmra.mrb[0].mxu0 %v6062
        %v6247 = vpop.f32.mrb[0].mxu0
        %v6248 = vadd.f32 %v5927, %v6247
        %v6249 = vpop.f32.mrb[0].mxu0
        %6250 = vmatprep.mubr.f32.mxu0 0.0
        %6251 = vmatmul.mubr.f32.gmra.mrb[0].mxu0 %v6065
        %v6252 = vpop.f32.mrb[0].mxu0
        %v6253 = vadd.f32 %v5932, %v6252
        %v6254 = vpop.f32.mrb[0].mxu0
        %6255 = vmatprep.mubr.f32.mxu0 0.0
        %6256 = vmatmul.mubr.f32.gmra.mrb[0].mxu0 %v6068
        %v6257 = vpop.f32.mrb[0].mxu0
        %v6258 = vadd.f32 %v5937, %v6257
        %v6259 = vpop.f32.mrb[0].mxu0
        %6260 = vmatprep.mubr.f32.mxu0 0.0
        %6261 = vmatmul.mubr.f32.gmra.mrb[0].mxu0 %v6071
        %v6262 = vpop.f32.mrb[0].mxu0
        %v6263 = vadd.f32 %v5942, %v6262
        %v6264 = vpop.f32.mrb[0].mxu0
        %6265 = vmatprep.mubr.f32.mxu0 0.0
        %6266 = vmatmul.mubr.f32.gmra.mrb[0].mxu0 %v6074
        %v6267 = vpop.f32.mrb[0].mxu0
        %v6268 = vadd.f32 %v5947, %v6267
        %v6269 = vpop.f32.mrb[0].mxu0
        %6270 = vmatprep.mubr.f32.mxu0 0.0
        %6271 = vmatmul.mubr.f32.gmra.mrb[0].mxu0 %v6077
        %v6272 = vpop.f32.mrb[0].mxu0
        %v6273 = vadd.f32 %v5952, %v6272
        %v6274 = vpop.f32.mrb[0].mxu0
        %6275 = vmatprep.mubr.f32.mxu0 0.0
        %6276 = vmatmul.mubr.f32.gmra.mrb[0].mxu0 %v6080
        %v6277 = vpop.f32.mrb[0].mxu0
        %v6278 = vadd.f32 %v5957, %v6277
        %v6279 = vpop.f32.mrb[0].mxu0
        %6280 = vmatprep.mubr.f32.mxu0 0.0
        %6281 = vmatmul.mubr.f32.gmra.mrb[0].mxu0 %v6083
        %v6282 = vpop.f32.mrb[0].mxu0
        %v6283 = vadd.f32 %v5962, %v6282
        %v6284 = vpop.f32.mrb[0].mxu0
        %6285 = vmatprep.mubr.f32.mxu0 0.0
        %6286 = vmatmul.mubr.f32.gmra.mrb[0].mxu0 %v6086
        %v6287 = vpop.f32.mrb[0].mxu0
        %v6288 = vadd.f32 %v5967, %v6287
        %v6289 = vpop.f32.mrb[0].mxu0
        %6290 = vmatprep.mubr.f32.mxu0 0.0
        %6291 = vmatmul.mubr.f32.gmra.mrb[0].mxu0 %v6089
        %v6292 = vpop.f32.mrb[0].mxu0
        %v6293 = vadd.f32 %v5972, %v6292
        %v6294 = vpop.f32.mrb[0].mxu0
        %6295 = vmatprep.mubr.f32.mxu0 0.0
        %6296 = vmatmul.mubr.f32.gmra.mrb[0].mxu0 %v6092
        %v6297 = vpop.f32.mrb[0].mxu0
        %v6298 = vadd.f32 %v5977, %v6297
        %v6299 = vpop.f32.mrb[0].mxu0
        %6300 = vmatprep.mubr.f32.mxu0 0.0
        %6301 = vmatmul.mubr.f32.gmra.mrb[0].mxu0 %v6095
        %v6302 = vpop.f32.mrb[0].mxu0
        %v6303 = vadd.f32 %v5982, %v6302
        %v6304 = vpop.f32.mrb[0].mxu0
        %6305 = vmatprep.mubr.f32.mxu0 0.0
        %6306 = vmatmul.mubr.f32.gmra.mrb[0].mxu0 %v6098
        %v6307 = vpop.f32.mrb[0].mxu0
        %v6308 = vadd.f32 %v5987, %v6307
        %v6309 = vpop.f32.mrb[0].mxu0
        %6310 = vmatprep.mubr.f32.mxu0 0.0
        %6311 = vmatmul.mubr.f32.gmra.mrb[0].mxu0 %v6101
        %v6312 = vpop.f32.mrb[0].mxu0
        %v6313 = vadd.f32 %v5992, %v6312
        %v6314 = vpop.f32.mrb[0].mxu0
        %6315 = vmatprep.mubr.f32.mxu0 0.0
        %6316 = vmatmul.mubr.f32.gmra.mrb[0].mxu0 %v6104
        %v6317 = vpop.f32.mrb[0].mxu0
        %v6318 = vadd.f32 %v5997, %v6317
        %v6319 = vpop.f32.mrb[0].mxu0
        %6320 = vmatprep.mubr.f32.mxu0 0.0
        %6321 = vmatmul.mubr.f32.gmra.mrb[0].mxu0 %v6107
        %v6322 = vpop.f32.mrb[0].mxu0
        %v6323 = vadd.f32 %v6002, %v6322
        %v6324 = vpop.f32.mrb[0].mxu0
        %6325 = vmatprep.mubr.f32.mxu0 0.0
        %6326 = vmatmul.mubr.f32.gmra.mrb[0].mxu0 %v6110
        %v6327 = vpop.f32.mrb[0].mxu0
        %v6328 = vadd.f32 %v6007, %v6327
        %v6329 = vpop.f32.mrb[0].mxu0
        %6330 = vmatprep.mubr.f32.mxu0 0.0
        %6331 = vmatmul.mubr.f32.gmra.mrb[0].mxu0 %v6113
        %v6332 = vpop.f32.mrb[0].mxu0
        %v6333 = vadd.f32 %v6012, %v6332
        %v6334 = vpop.f32.mrb[0].mxu0
        %6335 = vmatprep.mubr.f32.mxu0 0.0
        %6336 = vmatmul.mubr.f32.gmra.mrb[0].mxu0 %v6116
        %v6337 = vpop.f32.mrb[0].mxu0
        %v6338 = vadd.f32 %v6017, %v6337
        %v6339 = vpop.f32.mrb[0].mxu0
        %6340 = vmatprep.mubr.f32.mxu0 0.0
        %6341 = vmatmul.mubr.f32.gmra.mrb[0].mxu0 %v6119
        %v6342 = vpop.f32.mrb[0].mxu0
        %v6343 = vadd.f32 %v6022, %v6342
        %v6344 = vpop.f32.mrb[0].mxu0
        %6345 = vdwg.mxu0
        %v6346 = vmul.f32 %v6188, 0.70710677
        %v6347 = vmul.f32 %v6193, 0.70710677
        %v6348 = vmul.f32 %v6198, 0.70710677
        %v6349 = vmul.f32 %v6203, 0.70710677
        %v6350 = vmul.f32 %v6208, 0.70710677
        %v6351 = vmul.f32 %v6213, 0.70710677
        %v6352 = vmul.f32 %v6218, 0.70710677
        %v6353 = vmul.f32 %v6223, 0.70710677
        %v6354 = vmul.f32 %v6228, 0.70710677
        %v6355 = vmul.f32 %v6233, 0.70710677
        %v6356 = vmul.f32 %v6238, 0.70710677
        %v6357 = vmul.f32 %v6243, 0.70710677
        %v6358 = vmul.f32 %v6248, 0.70710677
        %v6359 = vmul.f32 %v6253, 0.70710677
        %v6360 = vmul.f32 %v6258, 0.70710677
        %v6361 = vmul.f32 %v6263, 0.70710677
        %v6362 = vmul.f32 %v6268, 0.70710677
        %v6363 = vmul.f32 %v6273, 0.70710677
        %v6364 = vmul.f32 %v6278, 0.70710677
        %v6365 = vmul.f32 %v6283, 0.70710677
        %v6366 = vmul.f32 %v6288, 0.70710677
        %v6367 = vmul.f32 %v6293, 0.70710677
        %v6368 = vmul.f32 %v6298, 0.70710677
        %v6369 = vmul.f32 %v6303, 0.70710677
        %v6370 = vmul.f32 %v6308, 0.70710677
        %v6371 = vmul.f32 %v6313, 0.70710677
        %v6372 = vmul.f32 %v6318, 0.70710677
        %v6373 = vmul.f32 %v6323, 0.70710677
        %v6374 = vmul.f32 %v6328, 0.70710677
        %v6375 = vmul.f32 %v6333, 0.70710677
        %v6376 = vmul.f32 %v6338, 0.70710677
        %v6377 = vmul.f32 %v6343, 0.70710677
        %v6378 = vlaneseq
        %v6379 = vshrl.u32 %v6378, 7
        %v6380 = vsub.s32 1, %v6379
        %v6381 = vrot.slane %v4096, %v6380
        %v6382 = vadd.f32 %v6346, %v6381
        %v6383 = vadd.f32 %v6347, %v6381
        %v6384 = vadd.f32 %v6348, %v6381
        %v6385 = vadd.f32 %v6349, %v6381
        %v6386 = vadd.f32 %v6350, %v6381
        %v6387 = vadd.f32 %v6351, %v6381
        %v6388 = vadd.f32 %v6352, %v6381
        %v6389 = vadd.f32 %v6353, %v6381
        %v6390 = vadd.f32 %v6354, %v6381
        %v6391 = vadd.f32 %v6355, %v6381
        %v6392 = vadd.f32 %v6356, %v6381
        %v6393 = vadd.f32 %v6357, %v6381
        %v6394 = vadd.f32 %v6358, %v6381
        %v6395 = vadd.f32 %v6359, %v6381
        %v6396 = vadd.f32 %v6360, %v6381
        %v6397 = vadd.f32 %v6361, %v6381
        %v6398 = vadd.f32 %v6362, %v6381
        %v6399 = vadd.f32 %v6363, %v6381
        %v6400 = vadd.f32 %v6364, %v6381
        %v6401 = vadd.f32 %v6365, %v6381
        %v6402 = vadd.f32 %v6366, %v6381
        %v6403 = vadd.f32 %v6367, %v6381
        %v6404 = vadd.f32 %v6368, %v6381
        %v6405 = vadd.f32 %v6369, %v6381
        %v6406 = vadd.f32 %v6370, %v6381
        %v6407 = vadd.f32 %v6371, %v6381
        %v6408 = vadd.f32 %v6372, %v6381
        %v6409 = vadd.f32 %v6373, %v6381
        %v6410 = vadd.f32 %v6374, %v6381
        %v6411 = vadd.f32 %v6375, %v6381
        %v6412 = vadd.f32 %v6376, %v6381
        %v6413 = vadd.f32 %v6377, %v6381
        %v6414 = vmul.f32 %v6382, 100.0
        %v6415 = vmul.f32 %v6383, 100.0
        %v6416 = vmul.f32 %v6384, 100.0
        %v6417 = vmul.f32 %v6385, 100.0
        %v6418 = vmul.f32 %v6386, 100.0
        %v6419 = vmul.f32 %v6387, 100.0
        %v6420 = vmul.f32 %v6388, 100.0
        %v6421 = vmul.f32 %v6389, 100.0
        %v6422 = vmul.f32 %v6390, 100.0
        %v6423 = vmul.f32 %v6391, 100.0
        %v6424 = vmul.f32 %v6392, 100.0
        %v6425 = vmul.f32 %v6393, 100.0
        %v6426 = vmul.f32 %v6394, 100.0
        %v6427 = vmul.f32 %v6395, 100.0
        %v6428 = vmul.f32 %v6396, 100.0
        %v6429 = vmul.f32 %v6397, 100.0
        %v6430 = vmul.f32 %v6398, 100.0
        %v6431 = vmul.f32 %v6399, 100.0
        %v6432 = vmul.f32 %v6400, 100.0
        %v6433 = vmul.f32 %v6401, 100.0
        %v6434 = vmul.f32 %v6402, 100.0
        %v6435 = vmul.f32 %v6403, 100.0
        %v6436 = vmul.f32 %v6404, 100.0
        %v6437 = vmul.f32 %v6405, 100.0
        %v6438 = vmul.f32 %v6406, 100.0
        %v6439 = vmul.f32 %v6407, 100.0
        %v6440 = vmul.f32 %v6408, 100.0
        %v6441 = vmul.f32 %v6409, 100.0
        %v6442 = vmul.f32 %v6410, 100.0
        %v6443 = vmul.f32 %v6411, 100.0
        %v6444 = vmul.f32 %v6412, 100.0
        %v6445 = vmul.f32 %v6413, 100.0
        %vm6446 = vcmp.gt.f32.partialorder %v6414, 20.0
        %vm6447 = vcmp.gt.f32.partialorder %v6415, 20.0
        %vm6448 = vcmp.gt.f32.partialorder %v6416, 20.0
        %vm6449 = vcmp.gt.f32.partialorder %v6417, 20.0
        %vm6450 = vcmp.gt.f32.partialorder %v6418, 20.0
        %vm6451 = vcmp.gt.f32.partialorder %v6419, 20.0
        %vm6452 = vcmp.gt.f32.partialorder %v6420, 20.0
        %vm6453 = vcmp.gt.f32.partialorder %v6421, 20.0
        %vm6454 = vcmp.gt.f32.partialorder %v6422, 20.0
        %vm6455 = vcmp.gt.f32.partialorder %v6423, 20.0
        %vm6456 = vcmp.gt.f32.partialorder %v6424, 20.0
        %vm6457 = vcmp.gt.f32.partialorder %v6425, 20.0
        %vm6458 = vcmp.gt.f32.partialorder %v6426, 20.0
        %vm6459 = vcmp.gt.f32.partialorder %v6427, 20.0
        %vm6460 = vcmp.gt.f32.partialorder %v6428, 20.0
        %vm6461 = vcmp.gt.f32.partialorder %v6429, 20.0
        %vm6462 = vcmp.gt.f32.partialorder %v6430, 20.0
        %vm6463 = vcmp.gt.f32.partialorder %v6431, 20.0
        %vm6464 = vcmp.gt.f32.partialorder %v6432, 20.0
        %vm6465 = vcmp.gt.f32.partialorder %v6433, 20.0
        %vm6466 = vcmp.gt.f32.partialorder %v6434, 20.0
        %vm6467 = vcmp.gt.f32.partialorder %v6435, 20.0
        %vm6468 = vcmp.gt.f32.partialorder %v6436, 20.0
        %vm6469 = vcmp.gt.f32.partialorder %v6437, 20.0
        %vm6470 = vcmp.gt.f32.partialorder %v6438, 20.0
        %vm6471 = vcmp.gt.f32.partialorder %v6439, 20.0
        %vm6472 = vcmp.gt.f32.partialorder %v6440, 20.0
        %vm6473 = vcmp.gt.f32.partialorder %v6441, 20.0
        %vm6474 = vcmp.gt.f32.partialorder %v6442, 20.0
        %vm6475 = vcmp.gt.f32.partialorder %v6443, 20.0
        %vm6476 = vcmp.gt.f32.partialorder %v6444, 20.0
        %vm6477 = vcmp.gt.f32.partialorder %v6445, 20.0
        %v6478 = vmin.f32 %v6414, 20.0
        %v6479 = vmin.f32 %v6415, 20.0
        %v6480 = vmin.f32 %v6416, 20.0
        %v6481 = vmin.f32 %v6417, 20.0
        %v6482 = vmin.f32 %v6418, 20.0
        %v6483 = vmin.f32 %v6419, 20.0
        %v6484 = vmin.f32 %v6420, 20.0
        %v6485 = vmin.f32 %v6421, 20.0
        %v6486 = vmin.f32 %v6422, 20.0
        %v6487 = vmin.f32 %v6423, 20.0
        %v6488 = vmin.f32 %v6424, 20.0
        %v6489 = vmin.f32 %v6425, 20.0
        %v6490 = vmin.f32 %v6426, 20.0
        %v6491 = vmin.f32 %v6427, 20.0
        %v6492 = vmin.f32 %v6428, 20.0
        %v6493 = vmin.f32 %v6429, 20.0
        %v6494 = vmin.f32 %v6430, 20.0
        %v6495 = vmin.f32 %v6431, 20.0
        %v6496 = vmin.f32 %v6432, 20.0
        %v6497 = vmin.f32 %v6433, 20.0
        %v6498 = vmin.f32 %v6434, 20.0
        %v6499 = vmin.f32 %v6435, 20.0
        %v6500 = vmin.f32 %v6436, 20.0
        %v6501 = vmin.f32 %v6437, 20.0
        %v6502 = vmin.f32 %v6438, 20.0
        %v6503 = vmin.f32 %v6439, 20.0
        %v6504 = vmin.f32 %v6440, 20.0
        %v6505 = vmin.f32 %v6441, 20.0
        %v6506 = vmin.f32 %v6442, 20.0
        %v6507 = vmin.f32 %v6443, 20.0
        %v6508 = vmin.f32 %v6444, 20.0
        %v6509 = vmin.f32 %v6445, 20.0
        %v6510 = vmul.f32 %v6478, 1.442695
        %v6511 = vpow.pop %v6510
        %v6512 = vmul.f32 %v6479, 1.442695
        %v6513 = vpow.pop %v6512
        %v6514 = vmul.f32 %v6480, 1.442695
        %v6515 = vpow.pop %v6514
        %v6516 = vmul.f32 %v6481, 1.442695
        %v6517 = vpow.pop %v6516
        %v6518 = vmul.f32 %v6482, 1.442695
        %v6519 = vpow.pop %v6518
        %v6520 = vmul.f32 %v6483, 1.442695
        %v6521 = vpow.pop %v6520
        %v6522 = vmul.f32 %v6484, 1.442695
        %v6523 = vpow.pop %v6522
        %v6524 = vmul.f32 %v6485, 1.442695
        %v6525 = vpow.pop %v6524
        %v6526 = vmul.f32 %v6486, 1.442695
        %v6527 = vpow.pop %v6526
        %v6528 = vmul.f32 %v6487, 1.442695
        %v6529 = vpow.pop %v6528
        %v6530 = vmul.f32 %v6488, 1.442695
        %v6531 = vpow.pop %v6530
        %v6532 = vmul.f32 %v6489, 1.442695
        %v6533 = vpow.pop %v6532
        %v6534 = vmul.f32 %v6490, 1.442695
        %v6535 = vpow.pop %v6534
        %v6536 = vmul.f32 %v6491, 1.442695
        %v6537 = vpow.pop %v6536
        %v6538 = vmul.f32 %v6492, 1.442695
        %v6539 = vpow.pop %v6538
        %v6540 = vmul.f32 %v6493, 1.442695
        %v6541 = vpow.pop %v6540
        %v6542 = vmul.f32 %v6494, 1.442695
        %v6543 = vpow.pop %v6542
        %v6544 = vmul.f32 %v6495, 1.442695
        %v6545 = vpow.pop %v6544
        %v6546 = vmul.f32 %v6496, 1.442695
        %v6547 = vpow.pop %v6546
        %v6548 = vmul.f32 %v6497, 1.442695
        %v6549 = vpow.pop %v6548
        %v6550 = vmul.f32 %v6498, 1.442695
        %v6551 = vpow.pop %v6550
        %v6552 = vmul.f32 %v6499, 1.442695
        %v6553 = vpow.pop %v6552
        %v6554 = vmul.f32 %v6500, 1.442695
        %v6555 = vpow.pop %v6554
        %v6556 = vmul.f32 %v6501, 1.442695
        %v6557 = vpow.pop %v6556
        %v6558 = vmul.f32 %v6502, 1.442695
        %v6559 = vpow.pop %v6558
        %v6560 = vmul.f32 %v6503, 1.442695
        %v6561 = vpow.pop %v6560
        %v6562 = vmul.f32 %v6504, 1.442695
        %v6563 = vpow.pop %v6562
        %v6564 = vmul.f32 %v6505, 1.442695
        %v6565 = vpow.pop %v6564
        %v6566 = vmul.f32 %v6506, 1.442695
        %v6567 = vpow.pop %v6566
        %v6568 = vmul.f32 %v6507, 1.442695
        %v6569 = vpow.pop %v6568
        %v6570 = vmul.f32 %v6508, 1.442695
        %v6571 = vpow.pop %v6570
        %v6572 = vmul.f32 %v6509, 1.442695
        %v6573 = vpow.pop %v6572
        %v6574 = vadd.f32 %v6511, 1.0
        %v6575 = vlog2.pop %v6574
        %v6576 = vmul.f32 %v6575, 0.6931472
        %v6577 = vmul.f32 -0.5, %v6511
        %v6578 = vadd.f32 %v6577, 1.0
        %v6579 = vmul.f32 %v6578, %v6511
        %v6580 = vand.u32 2147483647, %v6511
        %vm6581 = vcmp.lt.f32.partialorder %v6580, 0.0004427343
        %v6582 = vsel %vm6581, %v6579, %v6576
        %v6583 = vadd.f32 %v6513, 1.0
        %v6584 = vlog2.pop %v6583
        %v6585 = vmul.f32 %v6584, 0.6931472
        %v6586 = vmul.f32 -0.5, %v6513
        %v6587 = vadd.f32 %v6586, 1.0
        %v6588 = vmul.f32 %v6587, %v6513
        %v6589 = vand.u32 2147483647, %v6513
        %vm6590 = vcmp.lt.f32.partialorder %v6589, 0.0004427343
        %v6591 = vsel %vm6590, %v6588, %v6585
        %v6592 = vadd.f32 %v6515, 1.0
        %v6593 = vlog2.pop %v6592
        %v6594 = vmul.f32 %v6593, 0.6931472
        %v6595 = vmul.f32 -0.5, %v6515
        %v6596 = vadd.f32 %v6595, 1.0
        %v6597 = vmul.f32 %v6596, %v6515
        %v6598 = vand.u32 2147483647, %v6515
        %vm6599 = vcmp.lt.f32.partialorder %v6598, 0.0004427343
        %v6600 = vsel %vm6599, %v6597, %v6594
        %v6601 = vadd.f32 %v6517, 1.0
        %v6602 = vlog2.pop %v6601
        %v6603 = vmul.f32 %v6602, 0.6931472
        %v6604 = vmul.f32 -0.5, %v6517
        %v6605 = vadd.f32 %v6604, 1.0
        %v6606 = vmul.f32 %v6605, %v6517
        %v6607 = vand.u32 2147483647, %v6517
        %vm6608 = vcmp.lt.f32.partialorder %v6607, 0.0004427343
        %v6609 = vsel %vm6608, %v6606, %v6603
        %v6610 = vadd.f32 %v6519, 1.0
        %v6611 = vlog2.pop %v6610
        %v6612 = vmul.f32 %v6611, 0.6931472
        %v6613 = vmul.f32 -0.5, %v6519
        %v6614 = vadd.f32 %v6613, 1.0
        %v6615 = vmul.f32 %v6614, %v6519
        %v6616 = vand.u32 2147483647, %v6519
        %vm6617 = vcmp.lt.f32.partialorder %v6616, 0.0004427343
        %v6618 = vsel %vm6617, %v6615, %v6612
        %v6619 = vadd.f32 %v6521, 1.0
        %v6620 = vlog2.pop %v6619
        %v6621 = vmul.f32 %v6620, 0.6931472
        %v6622 = vmul.f32 -0.5, %v6521
        %v6623 = vadd.f32 %v6622, 1.0
        %v6624 = vmul.f32 %v6623, %v6521
        %v6625 = vand.u32 2147483647, %v6521
        %vm6626 = vcmp.lt.f32.partialorder %v6625, 0.0004427343
        %v6627 = vsel %vm6626, %v6624, %v6621
        %v6628 = vadd.f32 %v6523, 1.0
        %v6629 = vlog2.pop %v6628
        %v6630 = vmul.f32 %v6629, 0.6931472
        %v6631 = vmul.f32 -0.5, %v6523
        %v6632 = vadd.f32 %v6631, 1.0
        %v6633 = vmul.f32 %v6632, %v6523
        %v6634 = vand.u32 2147483647, %v6523
        %vm6635 = vcmp.lt.f32.partialorder %v6634, 0.0004427343
        %v6636 = vsel %vm6635, %v6633, %v6630
        %v6637 = vadd.f32 %v6525, 1.0
        %v6638 = vlog2.pop %v6637
        %v6639 = vmul.f32 %v6638, 0.6931472
        %v6640 = vmul.f32 -0.5, %v6525
        %v6641 = vadd.f32 %v6640, 1.0
        %v6642 = vmul.f32 %v6641, %v6525
        %v6643 = vand.u32 2147483647, %v6525
        %vm6644 = vcmp.lt.f32.partialorder %v6643, 0.0004427343
        %v6645 = vsel %vm6644, %v6642, %v6639
        %v6646 = vadd.f32 %v6527, 1.0
        %v6647 = vlog2.pop %v6646
        %v6648 = vmul.f32 %v6647, 0.6931472
        %v6649 = vmul.f32 -0.5, %v6527
        %v6650 = vadd.f32 %v6649, 1.0
        %v6651 = vmul.f32 %v6650, %v6527
        %v6652 = vand.u32 2147483647, %v6527
        %vm6653 = vcmp.lt.f32.partialorder %v6652, 0.0004427343
        %v6654 = vsel %vm6653, %v6651, %v6648
        %v6655 = vadd.f32 %v6529, 1.0
        %v6656 = vlog2.pop %v6655
        %v6657 = vmul.f32 %v6656, 0.6931472
        %v6658 = vmul.f32 -0.5, %v6529
        %v6659 = vadd.f32 %v6658, 1.0
        %v6660 = vmul.f32 %v6659, %v6529
        %v6661 = vand.u32 2147483647, %v6529
        %vm6662 = vcmp.lt.f32.partialorder %v6661, 0.0004427343
        %v6663 = vsel %vm6662, %v6660, %v6657
        %v6664 = vadd.f32 %v6531, 1.0
        %v6665 = vlog2.pop %v6664
        %v6666 = vmul.f32 %v6665, 0.6931472
        %v6667 = vmul.f32 -0.5, %v6531
        %v6668 = vadd.f32 %v6667, 1.0
        %v6669 = vmul.f32 %v6668, %v6531
        %v6670 = vand.u32 2147483647, %v6531
        %vm6671 = vcmp.lt.f32.partialorder %v6670, 0.0004427343
        %v6672 = vsel %vm6671, %v6669, %v6666
        %v6673 = vadd.f32 %v6533, 1.0
        %v6674 = vlog2.pop %v6673
        %v6675 = vmul.f32 %v6674, 0.6931472
        %v6676 = vmul.f32 -0.5, %v6533
        %v6677 = vadd.f32 %v6676, 1.0
        %v6678 = vmul.f32 %v6677, %v6533
        %v6679 = vand.u32 2147483647, %v6533
        %vm6680 = vcmp.lt.f32.partialorder %v6679, 0.0004427343
        %v6681 = vsel %vm6680, %v6678, %v6675
        %v6682 = vadd.f32 %v6535, 1.0
        %v6683 = vlog2.pop %v6682
        %v6684 = vmul.f32 %v6683, 0.6931472
        %v6685 = vmul.f32 -0.5, %v6535
        %v6686 = vadd.f32 %v6685, 1.0
        %v6687 = vmul.f32 %v6686, %v6535
        %v6688 = vand.u32 2147483647, %v6535
        %vm6689 = vcmp.lt.f32.partialorder %v6688, 0.0004427343
        %v6690 = vsel %vm6689, %v6687, %v6684
        %v6691 = vadd.f32 %v6537, 1.0
        %v6692 = vlog2.pop %v6691
        %v6693 = vmul.f32 %v6692, 0.6931472
        %v6694 = vmul.f32 -0.5, %v6537
        %v6695 = vadd.f32 %v6694, 1.0
        %v6696 = vmul.f32 %v6695, %v6537
        %v6697 = vand.u32 2147483647, %v6537
        %vm6698 = vcmp.lt.f32.partialorder %v6697, 0.0004427343
        %v6699 = vsel %vm6698, %v6696, %v6693
        %v6700 = vadd.f32 %v6539, 1.0
        %v6701 = vlog2.pop %v6700
        %v6702 = vmul.f32 %v6701, 0.6931472
        %v6703 = vmul.f32 -0.5, %v6539
        %v6704 = vadd.f32 %v6703, 1.0
        %v6705 = vmul.f32 %v6704, %v6539
        %v6706 = vand.u32 2147483647, %v6539
        %vm6707 = vcmp.lt.f32.partialorder %v6706, 0.0004427343
        %v6708 = vsel %vm6707, %v6705, %v6702
        %v6709 = vadd.f32 %v6541, 1.0
        %v6710 = vlog2.pop %v6709
        %v6711 = vmul.f32 %v6710, 0.6931472
        %v6712 = vmul.f32 -0.5, %v6541
        %v6713 = vadd.f32 %v6712, 1.0
        %v6714 = vmul.f32 %v6713, %v6541
        %v6715 = vand.u32 2147483647, %v6541
        %vm6716 = vcmp.lt.f32.partialorder %v6715, 0.0004427343
        %v6717 = vsel %vm6716, %v6714, %v6711
        %v6718 = vadd.f32 %v6543, 1.0
        %v6719 = vlog2.pop %v6718
        %v6720 = vmul.f32 %v6719, 0.6931472
        %v6721 = vmul.f32 -0.5, %v6543
        %v6722 = vadd.f32 %v6721, 1.0
        %v6723 = vmul.f32 %v6722, %v6543
        %v6724 = vand.u32 2147483647, %v6543
        %vm6725 = vcmp.lt.f32.partialorder %v6724, 0.0004427343
        %v6726 = vsel %vm6725, %v6723, %v6720
        %v6727 = vadd.f32 %v6545, 1.0
        %v6728 = vlog2.pop %v6727
        %v6729 = vmul.f32 %v6728, 0.6931472
        %v6730 = vmul.f32 -0.5, %v6545
        %v6731 = vadd.f32 %v6730, 1.0
        %v6732 = vmul.f32 %v6731, %v6545
        %v6733 = vand.u32 2147483647, %v6545
        %vm6734 = vcmp.lt.f32.partialorder %v6733, 0.0004427343
        %v6735 = vsel %vm6734, %v6732, %v6729
        %v6736 = vadd.f32 %v6547, 1.0
        %v6737 = vlog2.pop %v6736
        %v6738 = vmul.f32 %v6737, 0.6931472
        %v6739 = vmul.f32 -0.5, %v6547
        %v6740 = vadd.f32 %v6739, 1.0
        %v6741 = vmul.f32 %v6740, %v6547
        %v6742 = vand.u32 2147483647, %v6547
        %vm6743 = vcmp.lt.f32.partialorder %v6742, 0.0004427343
        %v6744 = vsel %vm6743, %v6741, %v6738
        %v6745 = vadd.f32 %v6549, 1.0
        %v6746 = vlog2.pop %v6745
        %v6747 = vmul.f32 %v6746, 0.6931472
        %v6748 = vmul.f32 -0.5, %v6549
        %v6749 = vadd.f32 %v6748, 1.0
        %v6750 = vmul.f32 %v6749, %v6549
        %v6751 = vand.u32 2147483647, %v6549
        %vm6752 = vcmp.lt.f32.partialorder %v6751, 0.0004427343
        %v6753 = vsel %vm6752, %v6750, %v6747
        %v6754 = vadd.f32 %v6551, 1.0
        %v6755 = vlog2.pop %v6754
        %v6756 = vmul.f32 %v6755, 0.6931472
        %v6757 = vmul.f32 -0.5, %v6551
        %v6758 = vadd.f32 %v6757, 1.0
        %v6759 = vmul.f32 %v6758, %v6551
        %v6760 = vand.u32 2147483647, %v6551
        %vm6761 = vcmp.lt.f32.partialorder %v6760, 0.0004427343
        %v6762 = vsel %vm6761, %v6759, %v6756
        %v6763 = vadd.f32 %v6553, 1.0
        %v6764 = vlog2.pop %v6763
        %v6765 = vmul.f32 %v6764, 0.6931472
        %v6766 = vmul.f32 -0.5, %v6553
        %v6767 = vadd.f32 %v6766, 1.0
        %v6768 = vmul.f32 %v6767, %v6553
        %v6769 = vand.u32 2147483647, %v6553
        %vm6770 = vcmp.lt.f32.partialorder %v6769, 0.0004427343
        %v6771 = vsel %vm6770, %v6768, %v6765
        %v6772 = vadd.f32 %v6555, 1.0
        %v6773 = vlog2.pop %v6772
        %v6774 = vmul.f32 %v6773, 0.6931472
        %v6775 = vmul.f32 -0.5, %v6555
        %v6776 = vadd.f32 %v6775, 1.0
        %v6777 = vmul.f32 %v6776, %v6555
        %v6778 = vand.u32 2147483647, %v6555
        %vm6779 = vcmp.lt.f32.partialorder %v6778, 0.0004427343
        %v6780 = vsel %vm6779, %v6777, %v6774
        %v6781 = vadd.f32 %v6557, 1.0
        %v6782 = vlog2.pop %v6781
        %v6783 = vmul.f32 %v6782, 0.6931472
        %v6784 = vmul.f32 -0.5, %v6557
        %v6785 = vadd.f32 %v6784, 1.0
        %v6786 = vmul.f32 %v6785, %v6557
        %v6787 = vand.u32 2147483647, %v6557
        %vm6788 = vcmp.lt.f32.partialorder %v6787, 0.0004427343
        %v6789 = vsel %vm6788, %v6786, %v6783
        %v6790 = vadd.f32 %v6559, 1.0
        %v6791 = vlog2.pop %v6790
        %v6792 = vmul.f32 %v6791, 0.6931472
        %v6793 = vmul.f32 -0.5, %v6559
        %v6794 = vadd.f32 %v6793, 1.0
        %v6795 = vmul.f32 %v6794, %v6559
        %v6796 = vand.u32 2147483647, %v6559
        %vm6797 = vcmp.lt.f32.partialorder %v6796, 0.0004427343
        %v6798 = vsel %vm6797, %v6795, %v6792
        %v6799 = vadd.f32 %v6561, 1.0
        %v6800 = vlog2.pop %v6799
        %v6801 = vmul.f32 %v6800, 0.6931472
        %v6802 = vmul.f32 -0.5, %v6561
        %v6803 = vadd.f32 %v6802, 1.0
        %v6804 = vmul.f32 %v6803, %v6561
        %v6805 = vand.u32 2147483647, %v6561
        %vm6806 = vcmp.lt.f32.partialorder %v6805, 0.0004427343
        %v6807 = vsel %vm6806, %v6804, %v6801
        %v6808 = vadd.f32 %v6563, 1.0
        %v6809 = vlog2.pop %v6808
        %v6810 = vmul.f32 %v6809, 0.6931472
        %v6811 = vmul.f32 -0.5, %v6563
        %v6812 = vadd.f32 %v6811, 1.0
        %v6813 = vmul.f32 %v6812, %v6563
        %v6814 = vand.u32 2147483647, %v6563
        %vm6815 = vcmp.lt.f32.partialorder %v6814, 0.0004427343
        %v6816 = vsel %vm6815, %v6813, %v6810
        %v6817 = vadd.f32 %v6565, 1.0
        %v6818 = vlog2.pop %v6817
        %v6819 = vmul.f32 %v6818, 0.6931472
        %v6820 = vmul.f32 -0.5, %v6565
        %v6821 = vadd.f32 %v6820, 1.0
        %v6822 = vmul.f32 %v6821, %v6565
        %v6823 = vand.u32 2147483647, %v6565
        %vm6824 = vcmp.lt.f32.partialorder %v6823, 0.0004427343
        %v6825 = vsel %vm6824, %v6822, %v6819
        %v6826 = vadd.f32 %v6567, 1.0
        %v6827 = vlog2.pop %v6826
        %v6828 = vmul.f32 %v6827, 0.6931472
        %v6829 = vmul.f32 -0.5, %v6567
        %v6830 = vadd.f32 %v6829, 1.0
        %v6831 = vmul.f32 %v6830, %v6567
        %v6832 = vand.u32 2147483647, %v6567
        %vm6833 = vcmp.lt.f32.partialorder %v6832, 0.0004427343
        %v6834 = vsel %vm6833, %v6831, %v6828
        %v6835 = vadd.f32 %v6569, 1.0
        %v6836 = vlog2.pop %v6835
        %v6837 = vmul.f32 %v6836, 0.6931472
        %v6838 = vmul.f32 -0.5, %v6569
        %v6839 = vadd.f32 %v6838, 1.0
        %v6840 = vmul.f32 %v6839, %v6569
        %v6841 = vand.u32 2147483647, %v6569
        %vm6842 = vcmp.lt.f32.partialorder %v6841, 0.0004427343
        %v6843 = vsel %vm6842, %v6840, %v6837
        %v6844 = vadd.f32 %v6571, 1.0
        %v6845 = vlog2.pop %v6844
        %v6846 = vmul.f32 %v6845, 0.6931472
        %v6847 = vmul.f32 -0.5, %v6571
        %v6848 = vadd.f32 %v6847, 1.0
        %v6849 = vmul.f32 %v6848, %v6571
        %v6850 = vand.u32 2147483647, %v6571
        %vm6851 = vcmp.lt.f32.partialorder %v6850, 0.0004427343
        %v6852 = vsel %vm6851, %v6849, %v6846
        %v6853 = vadd.f32 %v6573, 1.0
        %v6854 = vlog2.pop %v6853
        %v6855 = vmul.f32 %v6854, 0.6931472
        %v6856 = vmul.f32 -0.5, %v6573
        %v6857 = vadd.f32 %v6856, 1.0
        %v6858 = vmul.f32 %v6857, %v6573
        %v6859 = vand.u32 2147483647, %v6573
        %vm6860 = vcmp.lt.f32.partialorder %v6859, 0.0004427343
        %v6861 = vsel %vm6860, %v6858, %v6855
        %v6862 = vmul.f32 %v6582, %v4877
        %v6863 = vmul.f32 %v6591, %v4877
        %v6864 = vmul.f32 %v6600, %v4877
        %v6865 = vmul.f32 %v6609, %v4877
        %v6866 = vmul.f32 %v6618, %v4877
        %v6867 = vmul.f32 %v6627, %v4877
        %v6868 = vmul.f32 %v6636, %v4877
        %v6869 = vmul.f32 %v6645, %v4877
        %v6870 = vmul.f32 %v6654, %v4877
        %v6871 = vmul.f32 %v6663, %v4877
        %v6872 = vmul.f32 %v6672, %v4877
        %v6873 = vmul.f32 %v6681, %v4877
        %v6874 = vmul.f32 %v6690, %v4877
        %v6875 = vmul.f32 %v6699, %v4877
        %v6876 = vmul.f32 %v6708, %v4877
        %v6877 = vmul.f32 %v6717, %v4877
        %v6878 = vmul.f32 %v6726, %v4877
        %v6879 = vmul.f32 %v6735, %v4877
        %v6880 = vmul.f32 %v6744, %v4877
        %v6881 = vmul.f32 %v6753, %v4877
        %v6882 = vmul.f32 %v6762, %v4877
        %v6883 = vmul.f32 %v6771, %v4877
        %v6884 = vmul.f32 %v6780, %v4877
        %v6885 = vmul.f32 %v6789, %v4877
        %v6886 = vmul.f32 %v6798, %v4877
        %v6887 = vmul.f32 %v6807, %v4877
        %v6888 = vmul.f32 %v6816, %v4877
        %v6889 = vmul.f32 %v6825, %v4877
        %v6890 = vmul.f32 %v6834, %v4877
        %v6891 = vmul.f32 %v6843, %v4877
        %v6892 = vmul.f32 %v6852, %v4877
        %v6893 = vmul.f32 %v6861, %v4877
        %v6894 = vsel %vm6446, %v6382, %v6862
        %v6895 = vsel %vm6447, %v6383, %v6863
        %v6896 = vsel %vm6448, %v6384, %v6864
        %v6897 = vsel %vm6449, %v6385, %v6865
        %v6898 = vsel %vm6450, %v6386, %v6866
        %v6899 = vsel %vm6451, %v6387, %v6867
        %v6900 = vsel %vm6452, %v6388, %v6868
        %v6901 = vsel %vm6453, %v6389, %v6869
        %v6902 = vsel %vm6454, %v6390, %v6870
        %v6903 = vsel %vm6455, %v6391, %v6871
        %v6904 = vsel %vm6456, %v6392, %v6872
        %v6905 = vsel %vm6457, %v6393, %v6873
        %v6906 = vsel %vm6458, %v6394, %v6874
        %v6907 = vsel %vm6459, %v6395, %v6875
        %v6908 = vsel %vm6460, %v6396, %v6876
        %v6909 = vsel %vm6461, %v6397, %v6877
        %v6910 = vsel %vm6462, %v6398, %v6878
        %v6911 = vsel %vm6463, %v6399, %v6879
        %v6912 = vsel %vm6464, %v6400, %v6880
        %v6913 = vsel %vm6465, %v6401, %v6881
        %v6914 = vsel %vm6466, %v6402, %v6882
        %v6915 = vsel %vm6467, %v6403, %v6883
        %v6916 = vsel %vm6468, %v6404, %v6884
        %v6917 = vsel %vm6469, %v6405, %v6885
        %v6918 = vsel %vm6470, %v6406, %v6886
        %v6919 = vsel %vm6471, %v6407, %v6887
        %v6920 = vsel %vm6472, %v6408, %v6888
        %v6921 = vsel %vm6473, %v6409, %v6889
        %v6922 = vsel %vm6474, %v6410, %v6890
        %v6923 = vsel %vm6475, %v6411, %v6891
        %v6924 = vsel %vm6476, %v6412, %v6892
        %v6925 = vsel %vm6477, %v6413, %v6893
        %v6926 = vld [vmem:[%s3 + $0xc0] sm:$0xff]
        %v6927 = vld [vmem:[%s3 + $0xc8] sm:$0xff]
        %v6928 = vld [vmem:[%s3 + $0xd0] sm:$0xff]
        %v6929 = vld [vmem:[%s3 + $0xd8] sm:$0xff]
        %v6930 = vld [vmem:[%s3 + $0xe0] sm:$0xff]
        %v6931 = vld [vmem:[%s3 + $0xe8] sm:$0xff]
        %v6932 = vld [vmem:[%s3 + $0xf0] sm:$0xff]
        %v6933 = vld [vmem:[%s3 + $0xf8] sm:$0xff]
        %v6934 = vlaneseq
        %v6935 = vshrl.u32 %v6934, 7
        %v6936 = vsub.s32 2, %v6935
        %v6937 = vrot.slane %v4096, %v6936
        %v6939 = vsel %vm4954, %v6894, 0
        %v6942 = vsel %vm4954, %v6895, 0
        %v6945 = vsel %vm4954, %v6896, 0
        %v6948 = vsel %vm4954, %v6897, 0
        %v6951 = vsel %vm4954, %v6898, 0
        %v6954 = vsel %vm4954, %v6899, 0
        %v6957 = vsel %vm4954, %v6900, 0
        %v6960 = vsel %vm4954, %v6901, 0
        %v6963 = vsel %vm4954, %v6902, 0
        %v6966 = vsel %vm4954, %v6903, 0
        %v6969 = vsel %vm4954, %v6904, 0
        %v6972 = vsel %vm4954, %v6905, 0
        %v6975 = vsel %vm4954, %v6906, 0
        %v6978 = vsel %vm4954, %v6907, 0
        %v6981 = vsel %vm4954, %v6908, 0
        %v6984 = vsel %vm4954, %v6909, 0
        %v6987 = vsel %vm4954, %v6910, 0
        %v6990 = vsel %vm4954, %v6911, 0
        %v6993 = vsel %vm4954, %v6912, 0
        %v6996 = vsel %vm4954, %v6913, 0
        %v6999 = vsel %vm4954, %v6914, 0
        %v7002 = vsel %vm4954, %v6915, 0
        %v7005 = vsel %vm4954, %v6916, 0
        %v7008 = vsel %vm4954, %v6917, 0
        %v7011 = vsel %vm4954, %v6918, 0
        %v7014 = vsel %vm4954, %v6919, 0
        %v7017 = vsel %vm4954, %v6920, 0
        %v7020 = vsel %vm4954, %v6921, 0
        %v7023 = vsel %vm4954, %v6922, 0
        %v7026 = vsel %vm4954, %v6923, 0
        %v7029 = vsel %vm4954, %v6924, 0
        %v7032 = vsel %vm4954, %v6925, 0
        %7034 = vmatprep.subr.mxu0 0.0
        %7035 = vmatpush1.msra.mxu0 %v6926
        %7036 = vmatprep.subr.mxu0 0.0
        %7037 = vmatpush1.msra.mxu0 %v6927
        %7038 = vmatprep.subr.mxu0 0.0
        %7039 = vmatpush1.msra.mxu0 %v6928
        %7040 = vmatprep.subr.mxu0 0.0
        %7041 = vmatpush1.msra.mxu0 %v6929
        %7042 = vmatprep.subr.mxu0 0.0
        %7043 = vmatpush1.msra.mxu0 %v6930
        %7044 = vmatprep.subr.mxu0 0.0
        %7045 = vmatpush1.msra.mxu0 %v6931
        %7046 = vmatprep.subr.mxu0 0.0
        %7047 = vmatpush1.msra.mxu0 %v6932
        %7048 = vmatprep.subr.mxu0 0.0
        %7049 = vmatpush1.msra.mxu0 %v6933
        %7050 = vmatprep.subr.mxu0 0.0
        %7051 = vmatpush1.msra.mxu0 0.0
        %7052 = vmatprep.subr.mxu0 0.0
        %7053 = vmatpush1.msra.mxu0 0.0
        %7054 = vmatprep.subr.mxu0 0.0
        %7055 = vmatpush1.msra.mxu0 0.0
        %7056 = vmatprep.subr.mxu0 0.0
        %7057 = vmatpush1.msra.mxu0 0.0
        %7058 = vmatprep.subr.mxu0 0.0
        %7059 = vmatpush1.msra.mxu0 0.0
        %7060 = vmatprep.subr.mxu0 0.0
        %7061 = vmatpush1.msra.mxu0 0.0
        %7062 = vmatprep.subr.mxu0 0.0
        %7063 = vmatpush1.msra.mxu0 0.0
        %7064 = vmatprep.subr.mxu0 0.0
        %7065 = vmatpush1.msra.mxu0 0.0
        %7066 = vmatprep.subr.mxu0 0.0
        %7067 = vmatpush1.msra.mxu0 0.0
        %7068 = vmatprep.subr.mxu0 0.0
        %7069 = vmatpush1.msra.mxu0 0.0
        %7070 = vmatprep.subr.mxu0 0.0
        %7071 = vmatpush1.msra.mxu0 0.0
        %7072 = vmatprep.subr.mxu0 0.0
        %7073 = vmatpush1.msra.mxu0 0.0
        %7074 = vmatprep.subr.mxu0 0.0
        %7075 = vmatpush1.msra.mxu0 0.0
        %7076 = vmatprep.subr.mxu0 0.0
        %7077 = vmatpush1.msra.mxu0 0.0
        %7078 = vmatprep.subr.mxu0 0.0
        %7079 = vmatpush1.msra.mxu0 0.0
        %7080 = vmatprep.subr.mxu0 0.0
        %7081 = vmatpush1.msra.mxu0 0.0
        %7082 = vmatprep.subr.mxu0 0.0
        %7083 = vmatpush1.msra.mxu0 0.0
        %7084 = vmatprep.subr.mxu0 0.0
        %7085 = vmatpush1.msra.mxu0 0.0
        %7086 = vmatprep.subr.mxu0 0.0
        %7087 = vmatpush1.msra.mxu0 0.0
        %7088 = vmatprep.subr.mxu0 0.0
        %7089 = vmatpush1.msra.mxu0 0.0
        %7090 = vmatprep.subr.mxu0 0.0
        %7091 = vmatpush1.msra.mxu0 0.0
        %7092 = vmatprep.subr.mxu0 0.0
        %7093 = vmatpush1.msra.mxu0 0.0
        %7094 = vmatprep.subr.mxu0 0.0
        %7095 = vmatpush1.msra.mxu0 0.0
        %7096 = vmatprep.subr.mxu0 0.0
        %7097 = vmatpush1.msra.mxu0 0.0
        %7098 = vmatprep.mubr.f32.mxu0 0.0
        %7099 = vmatmul.mubr.f32.gmra.mrb[0].mxu0 %v6939
        %v7100 = vpop.f32.mrb[0].mxu0
        %v7101 = vadd.f32 %v6937, %v7100
        %v7102 = vpop.f32.mrb[0].mxu0
        %7103 = vmatprep.mubr.f32.mxu0 0.0
        %7104 = vmatmul.mubr.f32.gmra.mrb[0].mxu0 %v6942
        %v7105 = vpop.f32.mrb[0].mxu0
        %v7106 = vadd.f32 %v6937, %v7105
        %v7107 = vpop.f32.mrb[0].mxu0
        %7108 = vmatprep.mubr.f32.mxu0 0.0
        %7109 = vmatmul.mubr.f32.gmra.mrb[0].mxu0 %v6945
        %v7110 = vpop.f32.mrb[0].mxu0
        %v7111 = vadd.f32 %v6937, %v7110
        %v7112 = vpop.f32.mrb[0].mxu0
        %7113 = vmatprep.mubr.f32.mxu0 0.0
        %7114 = vmatmul.mubr.f32.gmra.mrb[0].mxu0 %v6948
        %v7115 = vpop.f32.mrb[0].mxu0
        %v7116 = vadd.f32 %v6937, %v7115
        %v7117 = vpop.f32.mrb[0].mxu0
        %7118 = vmatprep.mubr.f32.mxu0 0.0
        %7119 = vmatmul.mubr.f32.gmra.mrb[0].mxu0 %v6951
        %v7120 = vpop.f32.mrb[0].mxu0
        %v7121 = vadd.f32 %v6937, %v7120
        %v7122 = vpop.f32.mrb[0].mxu0
        %7123 = vmatprep.mubr.f32.mxu0 0.0
        %7124 = vmatmul.mubr.f32.gmra.mrb[0].mxu0 %v6954
        %v7125 = vpop.f32.mrb[0].mxu0
        %v7126 = vadd.f32 %v6937, %v7125
        %v7127 = vpop.f32.mrb[0].mxu0
        %7128 = vmatprep.mubr.f32.mxu0 0.0
        %7129 = vmatmul.mubr.f32.gmra.mrb[0].mxu0 %v6957
        %v7130 = vpop.f32.mrb[0].mxu0
        %v7131 = vadd.f32 %v6937, %v7130
        %v7132 = vpop.f32.mrb[0].mxu0
        %7133 = vmatprep.mubr.f32.mxu0 0.0
        %7134 = vmatmul.mubr.f32.gmra.mrb[0].mxu0 %v6960
        %v7135 = vpop.f32.mrb[0].mxu0
        %v7136 = vadd.f32 %v6937, %v7135
        %v7137 = vpop.f32.mrb[0].mxu0
        %7138 = vmatprep.mubr.f32.mxu0 0.0
        %7139 = vmatmul.mubr.f32.gmra.mrb[0].mxu0 %v6963
        %v7140 = vpop.f32.mrb[0].mxu0
        %v7141 = vadd.f32 %v6937, %v7140
        %v7142 = vpop.f32.mrb[0].mxu0
        %7143 = vmatprep.mubr.f32.mxu0 0.0
        %7144 = vmatmul.mubr.f32.gmra.mrb[0].mxu0 %v6966
        %v7145 = vpop.f32.mrb[0].mxu0
        %v7146 = vadd.f32 %v6937, %v7145
        %v7147 = vpop.f32.mrb[0].mxu0
        %7148 = vmatprep.mubr.f32.mxu0 0.0
        %7149 = vmatmul.mubr.f32.gmra.mrb[0].mxu0 %v6969
        %v7150 = vpop.f32.mrb[0].mxu0
        %v7151 = vadd.f32 %v6937, %v7150
        %v7152 = vpop.f32.mrb[0].mxu0
        %7153 = vmatprep.mubr.f32.mxu0 0.0
        %7154 = vmatmul.mubr.f32.gmra.mrb[0].mxu0 %v6972
        %v7155 = vpop.f32.mrb[0].mxu0
        %v7156 = vadd.f32 %v6937, %v7155
        %v7157 = vpop.f32.mrb[0].mxu0
        %7158 = vmatprep.mubr.f32.mxu0 0.0
        %7159 = vmatmul.mubr.f32.gmra.mrb[0].mxu0 %v6975
        %v7160 = vpop.f32.mrb[0].mxu0
        %v7161 = vadd.f32 %v6937, %v7160
        %v7162 = vpop.f32.mrb[0].mxu0
        %7163 = vmatprep.mubr.f32.mxu0 0.0
        %7164 = vmatmul.mubr.f32.gmra.mrb[0].mxu0 %v6978
        %v7165 = vpop.f32.mrb[0].mxu0
        %v7166 = vadd.f32 %v6937, %v7165
        %v7167 = vpop.f32.mrb[0].mxu0
        %7168 = vmatprep.mubr.f32.mxu0 0.0
        %7169 = vmatmul.mubr.f32.gmra.mrb[0].mxu0 %v6981
        %v7170 = vpop.f32.mrb[0].mxu0
        %v7171 = vadd.f32 %v6937, %v7170
        %v7172 = vpop.f32.mrb[0].mxu0
        %7173 = vmatprep.mubr.f32.mxu0 0.0
        %7174 = vmatmul.mubr.f32.gmra.mrb[0].mxu0 %v6984
        %v7175 = vpop.f32.mrb[0].mxu0
        %v7176 = vadd.f32 %v6937, %v7175
        %v7177 = vpop.f32.mrb[0].mxu0
        %7178 = vmatprep.mubr.f32.mxu0 0.0
        %7179 = vmatmul.mubr.f32.gmra.mrb[0].mxu0 %v6987
        %v7180 = vpop.f32.mrb[0].mxu0
        %v7181 = vadd.f32 %v6937, %v7180
        %v7182 = vpop.f32.mrb[0].mxu0
        %7183 = vmatprep.mubr.f32.mxu0 0.0
        %7184 = vmatmul.mubr.f32.gmra.mrb[0].mxu0 %v6990
        %v7185 = vpop.f32.mrb[0].mxu0
        %v7186 = vadd.f32 %v6937, %v7185
        %v7187 = vpop.f32.mrb[0].mxu0
        %7188 = vmatprep.mubr.f32.mxu0 0.0
        %7189 = vmatmul.mubr.f32.gmra.mrb[0].mxu0 %v6993
        %v7190 = vpop.f32.mrb[0].mxu0
        %v7191 = vadd.f32 %v6937, %v7190
        %v7192 = vpop.f32.mrb[0].mxu0
        %7193 = vmatprep.mubr.f32.mxu0 0.0
        %7194 = vmatmul.mubr.f32.gmra.mrb[0].mxu0 %v6996
        %v7195 = vpop.f32.mrb[0].mxu0
        %v7196 = vadd.f32 %v6937, %v7195
        %v7197 = vpop.f32.mrb[0].mxu0
        %7198 = vmatprep.mubr.f32.mxu0 0.0
        %7199 = vmatmul.mubr.f32.gmra.mrb[0].mxu0 %v6999
        %v7200 = vpop.f32.mrb[0].mxu0
        %v7201 = vadd.f32 %v6937, %v7200
        %v7202 = vpop.f32.mrb[0].mxu0
        %7203 = vmatprep.mubr.f32.mxu0 0.0
        %7204 = vmatmul.mubr.f32.gmra.mrb[0].mxu0 %v7002
        %v7205 = vpop.f32.mrb[0].mxu0
        %v7206 = vadd.f32 %v6937, %v7205
        %v7207 = vpop.f32.mrb[0].mxu0
        %7208 = vmatprep.mubr.f32.mxu0 0.0
        %7209 = vmatmul.mubr.f32.gmra.mrb[0].mxu0 %v7005
        %v7210 = vpop.f32.mrb[0].mxu0
        %v7211 = vadd.f32 %v6937, %v7210
        %v7212 = vpop.f32.mrb[0].mxu0
        %7213 = vmatprep.mubr.f32.mxu0 0.0
        %7214 = vmatmul.mubr.f32.gmra.mrb[0].mxu0 %v7008
        %v7215 = vpop.f32.mrb[0].mxu0
        %v7216 = vadd.f32 %v6937, %v7215
        %v7217 = vpop.f32.mrb[0].mxu0
        %7218 = vmatprep.mubr.f32.mxu0 0.0
        %7219 = vmatmul.mubr.f32.gmra.mrb[0].mxu0 %v7011
        %v7220 = vpop.f32.mrb[0].mxu0
        %v7221 = vadd.f32 %v6937, %v7220
        %v7222 = vpop.f32.mrb[0].mxu0
        %7223 = vmatprep.mubr.f32.mxu0 0.0
        %7224 = vmatmul.mubr.f32.gmra.mrb[0].mxu0 %v7014
        %v7225 = vpop.f32.mrb[0].mxu0
        %v7226 = vadd.f32 %v6937, %v7225
        %v7227 = vpop.f32.mrb[0].mxu0
        %7228 = vmatprep.mubr.f32.mxu0 0.0
        %7229 = vmatmul.mubr.f32.gmra.mrb[0].mxu0 %v7017
        %v7230 = vpop.f32.mrb[0].mxu0
        %v7231 = vadd.f32 %v6937, %v7230
        %v7232 = vpop.f32.mrb[0].mxu0
        %7233 = vmatprep.mubr.f32.mxu0 0.0
        %7234 = vmatmul.mubr.f32.gmra.mrb[0].mxu0 %v7020
        %v7235 = vpop.f32.mrb[0].mxu0
        %v7236 = vadd.f32 %v6937, %v7235
        %v7237 = vpop.f32.mrb[0].mxu0
        %7238 = vmatprep.mubr.f32.mxu0 0.0
        %7239 = vmatmul.mubr.f32.gmra.mrb[0].mxu0 %v7023
        %v7240 = vpop.f32.mrb[0].mxu0
        %v7241 = vadd.f32 %v6937, %v7240
        %v7242 = vpop.f32.mrb[0].mxu0
        %7243 = vmatprep.mubr.f32.mxu0 0.0
        %7244 = vmatmul.mubr.f32.gmra.mrb[0].mxu0 %v7026
        %v7245 = vpop.f32.mrb[0].mxu0
        %v7246 = vadd.f32 %v6937, %v7245
        %v7247 = vpop.f32.mrb[0].mxu0
        %7248 = vmatprep.mubr.f32.mxu0 0.0
        %7249 = vmatmul.mubr.f32.gmra.mrb[0].mxu0 %v7029
        %v7250 = vpop.f32.mrb[0].mxu0
        %v7251 = vadd.f32 %v6937, %v7250
        %v7252 = vpop.f32.mrb[0].mxu0
        %7253 = vmatprep.mubr.f32.mxu0 0.0
        %7254 = vmatmul.mubr.f32.gmra.mrb[0].mxu0 %v7032
        %v7255 = vpop.f32.mrb[0].mxu0
        %v7256 = vadd.f32 %v6937, %v7255
        %v7257 = vpop.f32.mrb[0].mxu0
        %7258 = vdwg.mxu0
        %v7259 = vmul.f32 %v7101, 100.0
        %v7260 = vmul.f32 %v7106, 100.0
        %v7261 = vmul.f32 %v7111, 100.0
        %v7262 = vmul.f32 %v7116, 100.0
        %v7263 = vmul.f32 %v7121, 100.0
        %v7264 = vmul.f32 %v7126, 100.0
        %v7265 = vmul.f32 %v7131, 100.0
        %v7266 = vmul.f32 %v7136, 100.0
        %v7267 = vmul.f32 %v7141, 100.0
        %v7268 = vmul.f32 %v7146, 100.0
        %v7269 = vmul.f32 %v7151, 100.0
        %v7270 = vmul.f32 %v7156, 100.0
        %v7271 = vmul.f32 %v7161, 100.0
        %v7272 = vmul.f32 %v7166, 100.0
        %v7273 = vmul.f32 %v7171, 100.0
        %v7274 = vmul.f32 %v7176, 100.0
        %v7275 = vmul.f32 %v7181, 100.0
        %v7276 = vmul.f32 %v7186, 100.0
        %v7277 = vmul.f32 %v7191, 100.0
        %v7278 = vmul.f32 %v7196, 100.0
        %v7279 = vmul.f32 %v7201, 100.0
        %v7280 = vmul.f32 %v7206, 100.0
        %v7281 = vmul.f32 %v7211, 100.0
        %v7282 = vmul.f32 %v7216, 100.0
        %v7283 = vmul.f32 %v7221, 100.0
        %v7284 = vmul.f32 %v7226, 100.0
        %v7285 = vmul.f32 %v7231, 100.0
        %v7286 = vmul.f32 %v7236, 100.0
        %v7287 = vmul.f32 %v7241, 100.0
        %v7288 = vmul.f32 %v7246, 100.0
        %v7289 = vmul.f32 %v7251, 100.0
        %v7290 = vmul.f32 %v7256, 100.0
        %vm7291 = vcmp.gt.f32.partialorder %v7259, 20.0
        %vm7292 = vcmp.gt.f32.partialorder %v7260, 20.0
        %vm7293 = vcmp.gt.f32.partialorder %v7261, 20.0
        %vm7294 = vcmp.gt.f32.partialorder %v7262, 20.0
        %vm7295 = vcmp.gt.f32.partialorder %v7263, 20.0
        %vm7296 = vcmp.gt.f32.partialorder %v7264, 20.0
        %vm7297 = vcmp.gt.f32.partialorder %v7265, 20.0
        %vm7298 = vcmp.gt.f32.partialorder %v7266, 20.0
        %vm7299 = vcmp.gt.f32.partialorder %v7267, 20.0
        %vm7300 = vcmp.gt.f32.partialorder %v7268, 20.0
        %vm7301 = vcmp.gt.f32.partialorder %v7269, 20.0
        %vm7302 = vcmp.gt.f32.partialorder %v7270, 20.0
        %vm7303 = vcmp.gt.f32.partialorder %v7271, 20.0
        %vm7304 = vcmp.gt.f32.partialorder %v7272, 20.0
        %vm7305 = vcmp.gt.f32.partialorder %v7273, 20.0
        %vm7306 = vcmp.gt.f32.partialorder %v7274, 20.0
        %vm7307 = vcmp.gt.f32.partialorder %v7275, 20.0
        %vm7308 = vcmp.gt.f32.partialorder %v7276, 20.0
        %vm7309 = vcmp.gt.f32.partialorder %v7277, 20.0
        %vm7310 = vcmp.gt.f32.partialorder %v7278, 20.0
        %vm7311 = vcmp.gt.f32.partialorder %v7279, 20.0
        %vm7312 = vcmp.gt.f32.partialorder %v7280, 20.0
        %vm7313 = vcmp.gt.f32.partialorder %v7281, 20.0
        %vm7314 = vcmp.gt.f32.partialorder %v7282, 20.0
        %vm7315 = vcmp.gt.f32.partialorder %v7283, 20.0
        %vm7316 = vcmp.gt.f32.partialorder %v7284, 20.0
        %vm7317 = vcmp.gt.f32.partialorder %v7285, 20.0
        %vm7318 = vcmp.gt.f32.partialorder %v7286, 20.0
        %vm7319 = vcmp.gt.f32.partialorder %v7287, 20.0
        %vm7320 = vcmp.gt.f32.partialorder %v7288, 20.0
        %vm7321 = vcmp.gt.f32.partialorder %v7289, 20.0
        %vm7322 = vcmp.gt.f32.partialorder %v7290, 20.0
        %v7323 = vmin.f32 %v7259, 20.0
        %v7324 = vmin.f32 %v7260, 20.0
        %v7325 = vmin.f32 %v7261, 20.0
        %v7326 = vmin.f32 %v7262, 20.0
        %v7327 = vmin.f32 %v7263, 20.0
        %v7328 = vmin.f32 %v7264, 20.0
        %v7329 = vmin.f32 %v7265, 20.0
        %v7330 = vmin.f32 %v7266, 20.0
        %v7331 = vmin.f32 %v7267, 20.0
        %v7332 = vmin.f32 %v7268, 20.0
        %v7333 = vmin.f32 %v7269, 20.0
        %v7334 = vmin.f32 %v7270, 20.0
        %v7335 = vmin.f32 %v7271, 20.0
        %v7336 = vmin.f32 %v7272, 20.0
        %v7337 = vmin.f32 %v7273, 20.0
        %v7338 = vmin.f32 %v7274, 20.0
        %v7339 = vmin.f32 %v7275, 20.0
        %v7340 = vmin.f32 %v7276, 20.0
        %v7341 = vmin.f32 %v7277, 20.0
        %v7342 = vmin.f32 %v7278, 20.0
        %v7343 = vmin.f32 %v7279, 20.0
        %v7344 = vmin.f32 %v7280, 20.0
        %v7345 = vmin.f32 %v7281, 20.0
        %v7346 = vmin.f32 %v7282, 20.0
        %v7347 = vmin.f32 %v7283, 20.0
        %v7348 = vmin.f32 %v7284, 20.0
        %v7349 = vmin.f32 %v7285, 20.0
        %v7350 = vmin.f32 %v7286, 20.0
        %v7351 = vmin.f32 %v7287, 20.0
        %v7352 = vmin.f32 %v7288, 20.0
        %v7353 = vmin.f32 %v7289, 20.0
        %v7354 = vmin.f32 %v7290, 20.0
        %v7355 = vmul.f32 %v7323, 1.442695
        %v7356 = vpow.pop %v7355
        %v7357 = vmul.f32 %v7324, 1.442695
        %v7358 = vpow.pop %v7357
        %v7359 = vmul.f32 %v7325, 1.442695
        %v7360 = vpow.pop %v7359
        %v7361 = vmul.f32 %v7326, 1.442695
        %v7362 = vpow.pop %v7361
        %v7363 = vmul.f32 %v7327, 1.442695
        %v7364 = vpow.pop %v7363
        %v7365 = vmul.f32 %v7328, 1.442695
        %v7366 = vpow.pop %v7365
        %v7367 = vmul.f32 %v7329, 1.442695
        %v7368 = vpow.pop %v7367
        %v7369 = vmul.f32 %v7330, 1.442695
        %v7370 = vpow.pop %v7369
        %v7371 = vmul.f32 %v7331, 1.442695
        %v7372 = vpow.pop %v7371
        %v7373 = vmul.f32 %v7332, 1.442695
        %v7374 = vpow.pop %v7373
        %v7375 = vmul.f32 %v7333, 1.442695
        %v7376 = vpow.pop %v7375
        %v7377 = vmul.f32 %v7334, 1.442695
        %v7378 = vpow.pop %v7377
        %v7379 = vmul.f32 %v7335, 1.442695
        %v7380 = vpow.pop %v7379
        %v7381 = vmul.f32 %v7336, 1.442695
        %v7382 = vpow.pop %v7381
        %v7383 = vmul.f32 %v7337, 1.442695
        %v7384 = vpow.pop %v7383
        %v7385 = vmul.f32 %v7338, 1.442695
        %v7386 = vpow.pop %v7385
        %v7387 = vmul.f32 %v7339, 1.442695
        %v7388 = vpow.pop %v7387
        %v7389 = vmul.f32 %v7340, 1.442695
        %v7390 = vpow.pop %v7389
        %v7391 = vmul.f32 %v7341, 1.442695
        %v7392 = vpow.pop %v7391
        %v7393 = vmul.f32 %v7342, 1.442695
        %v7394 = vpow.pop %v7393
        %v7395 = vmul.f32 %v7343, 1.442695
        %v7396 = vpow.pop %v7395
        %v7397 = vmul.f32 %v7344, 1.442695
        %v7398 = vpow.pop %v7397
        %v7399 = vmul.f32 %v7345, 1.442695
        %v7400 = vpow.pop %v7399
        %v7401 = vmul.f32 %v7346, 1.442695
        %v7402 = vpow.pop %v7401
        %v7403 = vmul.f32 %v7347, 1.442695
        %v7404 = vpow.pop %v7403
        %v7405 = vmul.f32 %v7348, 1.442695
        %v7406 = vpow.pop %v7405
        %v7407 = vmul.f32 %v7349, 1.442695
        %v7408 = vpow.pop %v7407
        %v7409 = vmul.f32 %v7350, 1.442695
        %v7410 = vpow.pop %v7409
        %v7411 = vmul.f32 %v7351, 1.442695
        %v7412 = vpow.pop %v7411
        %v7413 = vmul.f32 %v7352, 1.442695
        %v7414 = vpow.pop %v7413
        %v7415 = vmul.f32 %v7353, 1.442695
        %v7416 = vpow.pop %v7415
        %v7417 = vmul.f32 %v7354, 1.442695
        %v7418 = vpow.pop %v7417
        %v7419 = vadd.f32 %v7356, 1.0
        %v7420 = vlog2.pop %v7419
        %v7421 = vmul.f32 %v7420, 0.6931472
        %v7422 = vmul.f32 -0.5, %v7356
        %v7423 = vadd.f32 %v7422, 1.0
        %v7424 = vmul.f32 %v7423, %v7356
        %v7425 = vand.u32 2147483647, %v7356
        %vm7426 = vcmp.lt.f32.partialorder %v7425, 0.0004427343
        %v7427 = vsel %vm7426, %v7424, %v7421
        %v7428 = vadd.f32 %v7358, 1.0
        %v7429 = vlog2.pop %v7428
        %v7430 = vmul.f32 %v7429, 0.6931472
        %v7431 = vmul.f32 -0.5, %v7358
        %v7432 = vadd.f32 %v7431, 1.0
        %v7433 = vmul.f32 %v7432, %v7358
        %v7434 = vand.u32 2147483647, %v7358
        %vm7435 = vcmp.lt.f32.partialorder %v7434, 0.0004427343
        %v7436 = vsel %vm7435, %v7433, %v7430
        %v7437 = vadd.f32 %v7360, 1.0
        %v7438 = vlog2.pop %v7437
        %v7439 = vmul.f32 %v7438, 0.6931472
        %v7440 = vmul.f32 -0.5, %v7360
        %v7441 = vadd.f32 %v7440, 1.0
        %v7442 = vmul.f32 %v7441, %v7360
        %v7443 = vand.u32 2147483647, %v7360
        %vm7444 = vcmp.lt.f32.partialorder %v7443, 0.0004427343
        %v7445 = vsel %vm7444, %v7442, %v7439
        %v7446 = vadd.f32 %v7362, 1.0
        %v7447 = vlog2.pop %v7446
        %v7448 = vmul.f32 %v7447, 0.6931472
        %v7449 = vmul.f32 -0.5, %v7362
        %v7450 = vadd.f32 %v7449, 1.0
        %v7451 = vmul.f32 %v7450, %v7362
        %v7452 = vand.u32 2147483647, %v7362
        %vm7453 = vcmp.lt.f32.partialorder %v7452, 0.0004427343
        %v7454 = vsel %vm7453, %v7451, %v7448
        %v7455 = vadd.f32 %v7364, 1.0
        %v7456 = vlog2.pop %v7455
        %v7457 = vmul.f32 %v7456, 0.6931472
        %v7458 = vmul.f32 -0.5, %v7364
        %v7459 = vadd.f32 %v7458, 1.0
        %v7460 = vmul.f32 %v7459, %v7364
        %v7461 = vand.u32 2147483647, %v7364
        %vm7462 = vcmp.lt.f32.partialorder %v7461, 0.0004427343
        %v7463 = vsel %vm7462, %v7460, %v7457
        %v7464 = vadd.f32 %v7366, 1.0
        %v7465 = vlog2.pop %v7464
        %v7466 = vmul.f32 %v7465, 0.6931472
        %v7467 = vmul.f32 -0.5, %v7366
        %v7468 = vadd.f32 %v7467, 1.0
        %v7469 = vmul.f32 %v7468, %v7366
        %v7470 = vand.u32 2147483647, %v7366
        %vm7471 = vcmp.lt.f32.partialorder %v7470, 0.0004427343
        %v7472 = vsel %vm7471, %v7469, %v7466
        %v7473 = vadd.f32 %v7368, 1.0
        %v7474 = vlog2.pop %v7473
        %v7475 = vmul.f32 %v7474, 0.6931472
        %v7476 = vmul.f32 -0.5, %v7368
        %v7477 = vadd.f32 %v7476, 1.0
        %v7478 = vmul.f32 %v7477, %v7368
        %v7479 = vand.u32 2147483647, %v7368
        %vm7480 = vcmp.lt.f32.partialorder %v7479, 0.0004427343
        %v7481 = vsel %vm7480, %v7478, %v7475
        %v7482 = vadd.f32 %v7370, 1.0
        %v7483 = vlog2.pop %v7482
        %v7484 = vmul.f32 %v7483, 0.6931472
        %v7485 = vmul.f32 -0.5, %v7370
        %v7486 = vadd.f32 %v7485, 1.0
        %v7487 = vmul.f32 %v7486, %v7370
        %v7488 = vand.u32 2147483647, %v7370
        %vm7489 = vcmp.lt.f32.partialorder %v7488, 0.0004427343
        %v7490 = vsel %vm7489, %v7487, %v7484
        %v7491 = vadd.f32 %v7372, 1.0
        %v7492 = vlog2.pop %v7491
        %v7493 = vmul.f32 %v7492, 0.6931472
        %v7494 = vmul.f32 -0.5, %v7372
        %v7495 = vadd.f32 %v7494, 1.0
        %v7496 = vmul.f32 %v7495, %v7372
        %v7497 = vand.u32 2147483647, %v7372
        %vm7498 = vcmp.lt.f32.partialorder %v7497, 0.0004427343
        %v7499 = vsel %vm7498, %v7496, %v7493
        %v7500 = vadd.f32 %v7374, 1.0
        %v7501 = vlog2.pop %v7500
        %v7502 = vmul.f32 %v7501, 0.6931472
        %v7503 = vmul.f32 -0.5, %v7374
        %v7504 = vadd.f32 %v7503, 1.0
        %v7505 = vmul.f32 %v7504, %v7374
        %v7506 = vand.u32 2147483647, %v7374
        %vm7507 = vcmp.lt.f32.partialorder %v7506, 0.0004427343
        %v7508 = vsel %vm7507, %v7505, %v7502
        %v7509 = vadd.f32 %v7376, 1.0
        %v7510 = vlog2.pop %v7509
        %v7511 = vmul.f32 %v7510, 0.6931472
        %v7512 = vmul.f32 -0.5, %v7376
        %v7513 = vadd.f32 %v7512, 1.0
        %v7514 = vmul.f32 %v7513, %v7376
        %v7515 = vand.u32 2147483647, %v7376
        %vm7516 = vcmp.lt.f32.partialorder %v7515, 0.0004427343
        %v7517 = vsel %vm7516, %v7514, %v7511
        %v7518 = vadd.f32 %v7378, 1.0
        %v7519 = vlog2.pop %v7518
        %v7520 = vmul.f32 %v7519, 0.6931472
        %v7521 = vmul.f32 -0.5, %v7378
        %v7522 = vadd.f32 %v7521, 1.0
        %v7523 = vmul.f32 %v7522, %v7378
        %v7524 = vand.u32 2147483647, %v7378
        %vm7525 = vcmp.lt.f32.partialorder %v7524, 0.0004427343
        %v7526 = vsel %vm7525, %v7523, %v7520
        %v7527 = vadd.f32 %v7380, 1.0
        %v7528 = vlog2.pop %v7527
        %v7529 = vmul.f32 %v7528, 0.6931472
        %v7530 = vmul.f32 -0.5, %v7380
        %v7531 = vadd.f32 %v7530, 1.0
        %v7532 = vmul.f32 %v7531, %v7380
        %v7533 = vand.u32 2147483647, %v7380
        %vm7534 = vcmp.lt.f32.partialorder %v7533, 0.0004427343
        %v7535 = vsel %vm7534, %v7532, %v7529
        %v7536 = vadd.f32 %v7382, 1.0
        %v7537 = vlog2.pop %v7536
        %v7538 = vmul.f32 %v7537, 0.6931472
        %v7539 = vmul.f32 -0.5, %v7382
        %v7540 = vadd.f32 %v7539, 1.0
        %v7541 = vmul.f32 %v7540, %v7382
        %v7542 = vand.u32 2147483647, %v7382
        %vm7543 = vcmp.lt.f32.partialorder %v7542, 0.0004427343
        %v7544 = vsel %vm7543, %v7541, %v7538
        %v7545 = vadd.f32 %v7384, 1.0
        %v7546 = vlog2.pop %v7545
        %v7547 = vmul.f32 %v7546, 0.6931472
        %v7548 = vmul.f32 -0.5, %v7384
        %v7549 = vadd.f32 %v7548, 1.0
        %v7550 = vmul.f32 %v7549, %v7384
        %v7551 = vand.u32 2147483647, %v7384
        %vm7552 = vcmp.lt.f32.partialorder %v7551, 0.0004427343
        %v7553 = vsel %vm7552, %v7550, %v7547
        %v7554 = vadd.f32 %v7386, 1.0
        %v7555 = vlog2.pop %v7554
        %v7556 = vmul.f32 %v7555, 0.6931472
        %v7557 = vmul.f32 -0.5, %v7386
        %v7558 = vadd.f32 %v7557, 1.0
        %v7559 = vmul.f32 %v7558, %v7386
        %v7560 = vand.u32 2147483647, %v7386
        %vm7561 = vcmp.lt.f32.partialorder %v7560, 0.0004427343
        %v7562 = vsel %vm7561, %v7559, %v7556
        %v7563 = vadd.f32 %v7388, 1.0
        %v7564 = vlog2.pop %v7563
        %v7565 = vmul.f32 %v7564, 0.6931472
        %v7566 = vmul.f32 -0.5, %v7388
        %v7567 = vadd.f32 %v7566, 1.0
        %v7568 = vmul.f32 %v7567, %v7388
        %v7569 = vand.u32 2147483647, %v7388
        %vm7570 = vcmp.lt.f32.partialorder %v7569, 0.0004427343
        %v7571 = vsel %vm7570, %v7568, %v7565
        %v7572 = vadd.f32 %v7390, 1.0
        %v7573 = vlog2.pop %v7572
        %v7574 = vmul.f32 %v7573, 0.6931472
        %v7575 = vmul.f32 -0.5, %v7390
        %v7576 = vadd.f32 %v7575, 1.0
        %v7577 = vmul.f32 %v7576, %v7390
        %v7578 = vand.u32 2147483647, %v7390
        %vm7579 = vcmp.lt.f32.partialorder %v7578, 0.0004427343
        %v7580 = vsel %vm7579, %v7577, %v7574
        %v7581 = vadd.f32 %v7392, 1.0
        %v7582 = vlog2.pop %v7581
        %v7583 = vmul.f32 %v7582, 0.6931472
        %v7584 = vmul.f32 -0.5, %v7392
        %v7585 = vadd.f32 %v7584, 1.0
        %v7586 = vmul.f32 %v7585, %v7392
        %v7587 = vand.u32 2147483647, %v7392
        %vm7588 = vcmp.lt.f32.partialorder %v7587, 0.0004427343
        %v7589 = vsel %vm7588, %v7586, %v7583
        %v7590 = vadd.f32 %v7394, 1.0
        %v7591 = vlog2.pop %v7590
        %v7592 = vmul.f32 %v7591, 0.6931472
        %v7593 = vmul.f32 -0.5, %v7394
        %v7594 = vadd.f32 %v7593, 1.0
        %v7595 = vmul.f32 %v7594, %v7394
        %v7596 = vand.u32 2147483647, %v7394
        %vm7597 = vcmp.lt.f32.partialorder %v7596, 0.0004427343
        %v7598 = vsel %vm7597, %v7595, %v7592
        %v7599 = vadd.f32 %v7396, 1.0
        %v7600 = vlog2.pop %v7599
        %v7601 = vmul.f32 %v7600, 0.6931472
        %v7602 = vmul.f32 -0.5, %v7396
        %v7603 = vadd.f32 %v7602, 1.0
        %v7604 = vmul.f32 %v7603, %v7396
        %v7605 = vand.u32 2147483647, %v7396
        %vm7606 = vcmp.lt.f32.partialorder %v7605, 0.0004427343
        %v7607 = vsel %vm7606, %v7604, %v7601
        %v7608 = vadd.f32 %v7398, 1.0
        %v7609 = vlog2.pop %v7608
        %v7610 = vmul.f32 %v7609, 0.6931472
        %v7611 = vmul.f32 -0.5, %v7398
        %v7612 = vadd.f32 %v7611, 1.0
        %v7613 = vmul.f32 %v7612, %v7398
        %v7614 = vand.u32 2147483647, %v7398
        %vm7615 = vcmp.lt.f32.partialorder %v7614, 0.0004427343
        %v7616 = vsel %vm7615, %v7613, %v7610
        %v7617 = vadd.f32 %v7400, 1.0
        %v7618 = vlog2.pop %v7617
        %v7619 = vmul.f32 %v7618, 0.6931472
        %v7620 = vmul.f32 -0.5, %v7400
        %v7621 = vadd.f32 %v7620, 1.0
        %v7622 = vmul.f32 %v7621, %v7400
        %v7623 = vand.u32 2147483647, %v7400
        %vm7624 = vcmp.lt.f32.partialorder %v7623, 0.0004427343
        %v7625 = vsel %vm7624, %v7622, %v7619
        %v7626 = vadd.f32 %v7402, 1.0
        %v7627 = vlog2.pop %v7626
        %v7628 = vmul.f32 %v7627, 0.6931472
        %v7629 = vmul.f32 -0.5, %v7402
        %v7630 = vadd.f32 %v7629, 1.0
        %v7631 = vmul.f32 %v7630, %v7402
        %v7632 = vand.u32 2147483647, %v7402
        %vm7633 = vcmp.lt.f32.partialorder %v7632, 0.0004427343
        %v7634 = vsel %vm7633, %v7631, %v7628
        %v7635 = vadd.f32 %v7404, 1.0
        %v7636 = vlog2.pop %v7635
        %v7637 = vmul.f32 %v7636, 0.6931472
        %v7638 = vmul.f32 -0.5, %v7404
        %v7639 = vadd.f32 %v7638, 1.0
        %v7640 = vmul.f32 %v7639, %v7404
        %v7641 = vand.u32 2147483647, %v7404
        %vm7642 = vcmp.lt.f32.partialorder %v7641, 0.0004427343
        %v7643 = vsel %vm7642, %v7640, %v7637
        %v7644 = vadd.f32 %v7406, 1.0
        %v7645 = vlog2.pop %v7644
        %v7646 = vmul.f32 %v7645, 0.6931472
        %v7647 = vmul.f32 -0.5, %v7406
        %v7648 = vadd.f32 %v7647, 1.0
        %v7649 = vmul.f32 %v7648, %v7406
        %v7650 = vand.u32 2147483647, %v7406
        %vm7651 = vcmp.lt.f32.partialorder %v7650, 0.0004427343
        %v7652 = vsel %vm7651, %v7649, %v7646
        %v7653 = vadd.f32 %v7408, 1.0
        %v7654 = vlog2.pop %v7653
        %v7655 = vmul.f32 %v7654, 0.6931472
        %v7656 = vmul.f32 -0.5, %v7408
        %v7657 = vadd.f32 %v7656, 1.0
        %v7658 = vmul.f32 %v7657, %v7408
        %v7659 = vand.u32 2147483647, %v7408
        %vm7660 = vcmp.lt.f32.partialorder %v7659, 0.0004427343
        %v7661 = vsel %vm7660, %v7658, %v7655
        %v7662 = vadd.f32 %v7410, 1.0
        %v7663 = vlog2.pop %v7662
        %v7664 = vmul.f32 %v7663, 0.6931472
        %v7665 = vmul.f32 -0.5, %v7410
        %v7666 = vadd.f32 %v7665, 1.0
        %v7667 = vmul.f32 %v7666, %v7410
        %v7668 = vand.u32 2147483647, %v7410
        %vm7669 = vcmp.lt.f32.partialorder %v7668, 0.0004427343
        %v7670 = vsel %vm7669, %v7667, %v7664
        %v7671 = vadd.f32 %v7412, 1.0
        %v7672 = vlog2.pop %v7671
        %v7673 = vmul.f32 %v7672, 0.6931472
        %v7674 = vmul.f32 -0.5, %v7412
        %v7675 = vadd.f32 %v7674, 1.0
        %v7676 = vmul.f32 %v7675, %v7412
        %v7677 = vand.u32 2147483647, %v7412
        %vm7678 = vcmp.lt.f32.partialorder %v7677, 0.0004427343
        %v7679 = vsel %vm7678, %v7676, %v7673
        %v7680 = vadd.f32 %v7414, 1.0
        %v7681 = vlog2.pop %v7680
        %v7682 = vmul.f32 %v7681, 0.6931472
        %v7683 = vmul.f32 -0.5, %v7414
        %v7684 = vadd.f32 %v7683, 1.0
        %v7685 = vmul.f32 %v7684, %v7414
        %v7686 = vand.u32 2147483647, %v7414
        %vm7687 = vcmp.lt.f32.partialorder %v7686, 0.0004427343
        %v7688 = vsel %vm7687, %v7685, %v7682
        %v7689 = vadd.f32 %v7416, 1.0
        %v7690 = vlog2.pop %v7689
        %v7691 = vmul.f32 %v7690, 0.6931472
        %v7692 = vmul.f32 -0.5, %v7416
        %v7693 = vadd.f32 %v7692, 1.0
        %v7694 = vmul.f32 %v7693, %v7416
        %v7695 = vand.u32 2147483647, %v7416
        %vm7696 = vcmp.lt.f32.partialorder %v7695, 0.0004427343
        %v7697 = vsel %vm7696, %v7694, %v7691
        %v7698 = vadd.f32 %v7418, 1.0
        %v7699 = vlog2.pop %v7698
        %v7700 = vmul.f32 %v7699, 0.6931472
        %v7701 = vmul.f32 -0.5, %v7418
        %v7702 = vadd.f32 %v7701, 1.0
        %v7703 = vmul.f32 %v7702, %v7418
        %v7704 = vand.u32 2147483647, %v7418
        %vm7705 = vcmp.lt.f32.partialorder %v7704, 0.0004427343
        %v7706 = vsel %vm7705, %v7703, %v7700
        %v7707 = vmul.f32 %v7427, %v4877
        %v7708 = vmul.f32 %v7436, %v4877
        %v7709 = vmul.f32 %v7445, %v4877
        %v7710 = vmul.f32 %v7454, %v4877
        %v7711 = vmul.f32 %v7463, %v4877
        %v7712 = vmul.f32 %v7472, %v4877
        %v7713 = vmul.f32 %v7481, %v4877
        %v7714 = vmul.f32 %v7490, %v4877
        %v7715 = vmul.f32 %v7499, %v4877
        %v7716 = vmul.f32 %v7508, %v4877
        %v7717 = vmul.f32 %v7517, %v4877
        %v7718 = vmul.f32 %v7526, %v4877
        %v7719 = vmul.f32 %v7535, %v4877
        %v7720 = vmul.f32 %v7544, %v4877
        %v7721 = vmul.f32 %v7553, %v4877
        %v7722 = vmul.f32 %v7562, %v4877
        %v7723 = vmul.f32 %v7571, %v4877
        %v7724 = vmul.f32 %v7580, %v4877
        %v7725 = vmul.f32 %v7589, %v4877
        %v7726 = vmul.f32 %v7598, %v4877
        %v7727 = vmul.f32 %v7607, %v4877
        %v7728 = vmul.f32 %v7616, %v4877
        %v7729 = vmul.f32 %v7625, %v4877
        %v7730 = vmul.f32 %v7634, %v4877
        %v7731 = vmul.f32 %v7643, %v4877
        %v7732 = vmul.f32 %v7652, %v4877
        %v7733 = vmul.f32 %v7661, %v4877
        %v7734 = vmul.f32 %v7670, %v4877
        %v7735 = vmul.f32 %v7679, %v4877
        %v7736 = vmul.f32 %v7688, %v4877
        %v7737 = vmul.f32 %v7697, %v4877
        %v7738 = vmul.f32 %v7706, %v4877
        %v7739 = vsel %vm7291, %v7101, %v7707
        %v7740 = vsel %vm7292, %v7106, %v7708
        %v7741 = vsel %vm7293, %v7111, %v7709
        %v7742 = vsel %vm7294, %v7116, %v7710
        %v7743 = vsel %vm7295, %v7121, %v7711
        %v7744 = vsel %vm7296, %v7126, %v7712
        %v7745 = vsel %vm7297, %v7131, %v7713
        %v7746 = vsel %vm7298, %v7136, %v7714
        %v7747 = vsel %vm7299, %v7141, %v7715
        %v7748 = vsel %vm7300, %v7146, %v7716
        %v7749 = vsel %vm7301, %v7151, %v7717
        %v7750 = vsel %vm7302, %v7156, %v7718
        %v7751 = vsel %vm7303, %v7161, %v7719
        %v7752 = vsel %vm7304, %v7166, %v7720
        %v7753 = vsel %vm7305, %v7171, %v7721
        %v7754 = vsel %vm7306, %v7176, %v7722
        %v7755 = vsel %vm7307, %v7181, %v7723
        %v7756 = vsel %vm7308, %v7186, %v7724
        %v7757 = vsel %vm7309, %v7191, %v7725
        %v7758 = vsel %vm7310, %v7196, %v7726
        %v7759 = vsel %vm7311, %v7201, %v7727
        %v7760 = vsel %vm7312, %v7206, %v7728
        %v7761 = vsel %vm7313, %v7211, %v7729
        %v7762 = vsel %vm7314, %v7216, %v7730
        %v7763 = vsel %vm7315, %v7221, %v7731
        %v7764 = vsel %vm7316, %v7226, %v7732
        %v7765 = vsel %vm7317, %v7231, %v7733
        %v7766 = vsel %vm7318, %v7236, %v7734
        %v7767 = vsel %vm7319, %v7241, %v7735
        %v7768 = vsel %vm7320, %v7246, %v7736
        %v7769 = vsel %vm7321, %v7251, %v7737
        %v7770 = vsel %vm7322, %v7256, %v7738
        %v7772 = vsel %vm4954, %v4096, 0
        %v7775 = vsel %vm4954, %v7739, 0
        %v7778 = vsel %vm4954, %v7740, 0
        %v7781 = vsel %vm4954, %v7741, 0
        %v7784 = vsel %vm4954, %v7742, 0
        %v7787 = vsel %vm4954, %v7743, 0
        %v7790 = vsel %vm4954, %v7744, 0
        %v7793 = vsel %vm4954, %v7745, 0
        %v7796 = vsel %vm4954, %v7746, 0
        %v7799 = vsel %vm4954, %v7747, 0
        %v7802 = vsel %vm4954, %v7748, 0
        %v7805 = vsel %vm4954, %v7749, 0
        %v7808 = vsel %vm4954, %v7750, 0
        %v7811 = vsel %vm4954, %v7751, 0
        %v7814 = vsel %vm4954, %v7752, 0
        %v7817 = vsel %vm4954, %v7753, 0
        %v7820 = vsel %vm4954, %v7754, 0
        %v7823 = vsel %vm4954, %v7755, 0
        %v7826 = vsel %vm4954, %v7756, 0
        %v7829 = vsel %vm4954, %v7757, 0
        %v7832 = vsel %vm4954, %v7758, 0
        %v7835 = vsel %vm4954, %v7759, 0
        %v7838 = vsel %vm4954, %v7760, 0
        %v7841 = vsel %vm4954, %v7761, 0
        %v7844 = vsel %vm4954, %v7762, 0
        %v7847 = vsel %vm4954, %v7763, 0
        %v7850 = vsel %vm4954, %v7764, 0
        %v7853 = vsel %vm4954, %v7765, 0
        %v7856 = vsel %vm4954, %v7766, 0
        %v7859 = vsel %vm4954, %v7767, 0
        %v7862 = vsel %vm4954, %v7768, 0
        %v7865 = vsel %vm4954, %v7769, 0
        %v7868 = vsel %vm4954, %v7770, 0
        %7870 = vmatprep.subr.mxu0 0.0
        %7871 = vmatpush1.xpose.msra.mxu0 %v7775
        %7872 = vmatprep.subr.mxu0 0.0
        %7873 = vmatpush1.xpose.msra.mxu0 %v7778
        %7874 = vmatprep.subr.mxu0 0.0
        %7875 = vmatpush1.xpose.msra.mxu0 %v7781
        %7876 = vmatprep.subr.mxu0 0.0
        %7877 = vmatpush1.xpose.msra.mxu0 %v7784
        %7878 = vmatprep.subr.mxu0 0.0
        %7879 = vmatpush1.xpose.msra.mxu0 %v7787
        %7880 = vmatprep.subr.mxu0 0.0
        %7881 = vmatpush1.xpose.msra.mxu0 %v7790
        %7882 = vmatprep.subr.mxu0 0.0
        %7883 = vmatpush1.xpose.msra.mxu0 %v7793
        %7884 = vmatprep.subr.mxu0 0.0
        %7885 = vmatpush1.xpose.msra.mxu0 %v7796
        %7886 = vmatprep.subr.mxu0 0.0
        %7887 = vmatpush1.xpose.msra.mxu0 %v7799
        %7888 = vmatprep.subr.mxu0 0.0
        %7889 = vmatpush1.xpose.msra.mxu0 %v7802
        %7890 = vmatprep.subr.mxu0 0.0
        %7891 = vmatpush1.xpose.msra.mxu0 %v7805
        %7892 = vmatprep.subr.mxu0 0.0
        %7893 = vmatpush1.xpose.msra.mxu0 %v7808
        %7894 = vmatprep.subr.mxu0 0.0
        %7895 = vmatpush1.xpose.msra.mxu0 %v7811
        %7896 = vmatprep.subr.mxu0 0.0
        %7897 = vmatpush1.xpose.msra.mxu0 %v7814
        %7898 = vmatprep.subr.mxu0 0.0
        %7899 = vmatpush1.xpose.msra.mxu0 %v7817
        %7900 = vmatprep.subr.mxu0 0.0
        %7901 = vmatpush1.xpose.msra.mxu0 %v7820
        %7902 = vmatprep.subr.mxu0 0.0
        %7903 = vmatpush1.xpose.msra.mxu0 %v7823
        %7904 = vmatprep.subr.mxu0 0.0
        %7905 = vmatpush1.xpose.msra.mxu0 %v7826
        %7906 = vmatprep.subr.mxu0 0.0
        %7907 = vmatpush1.xpose.msra.mxu0 %v7829
        %7908 = vmatprep.subr.mxu0 0.0
        %7909 = vmatpush1.xpose.msra.mxu0 %v7832
        %7910 = vmatprep.subr.mxu0 0.0
        %7911 = vmatpush1.xpose.msra.mxu0 %v7835
        %7912 = vmatprep.subr.mxu0 0.0
        %7913 = vmatpush1.xpose.msra.mxu0 %v7838
        %7914 = vmatprep.subr.mxu0 0.0
        %7915 = vmatpush1.xpose.msra.mxu0 %v7841
        %7916 = vmatprep.subr.mxu0 0.0
        %7917 = vmatpush1.xpose.msra.mxu0 %v7844
        %7918 = vmatprep.subr.mxu0 0.0
        %7919 = vmatpush1.xpose.msra.mxu0 %v7847
        %7920 = vmatprep.subr.mxu0 0.0
        %7921 = vmatpush1.xpose.msra.mxu0 %v7850
        %7922 = vmatprep.subr.mxu0 0.0
        %7923 = vmatpush1.xpose.msra.mxu0 %v7853
        %7924 = vmatprep.subr.mxu0 0.0
        %7925 = vmatpush1.xpose.msra.mxu0 %v7856
        %7926 = vmatprep.subr.mxu0 0.0
        %7927 = vmatpush1.xpose.msra.mxu0 %v7859
        %7928 = vmatprep.subr.mxu0 0.0
        %7929 = vmatpush1.xpose.msra.mxu0 %v7862
        %7930 = vmatprep.subr.mxu0 0.0
        %7931 = vmatpush1.xpose.msra.mxu0 %v7865
        %7932 = vmatprep.subr.mxu0 0.0
        %7933 = vmatpush1.xpose.msra.mxu0 %v7868
        %7934 = vmatprep.mubr.f32.mxu0 0.0
        %7935 = vmatmul.mubr.f32.gmra.mrb[0].mxu0 %v7772
        %v7936 = vpop.f32.mrb[0].mxu0
        %v7937 = vadd.f32 0.0, %v7936
        %v7938 = vpop.f32.mrb[0].mxu0
        %v7939 = vadd.f32 0.0, %v7938
        %7940 = vdwg.mxu0
        %7941 = vset.pattern.permute.xlu0 0
        %7942 = vperm.xlu0 %7941, %v4096
        %v7943 = vpop.permute.xlu0 %7942
        %v7944 = vrot.slane %v7943, 1
        %v7946 = vadd.f32 %v7937, %v7944
        %v7947 = vadd.f32 %v7939, %v7944
        %v7950 = vcombine.low %v7946, %v7947
        %v7952 = vunpack.c.l.s4 1966171168
        %v7953 = vunpack.c.0.s8 %v7952
        %v7954 = vlaneseq
        %v7955 = vshrl.u32 %v7954, 7
        %v7956 = vsub.s32 %v7953, %v7955
        %v7957 = vrot.slane %v7950, %v7956
        %v7958 = vcombine.high %v7957, %v7957
        %v7960 = vunpack.c.l.s4 1966171168
        %v7961 = vunpack.c.0.s8 %v7960
        %v7962 = vlaneseq
        %v7963 = vshrl.u32 %v7962, 7
        %v7964 = vsub.s32 %v7961, %v7963
        %v7965 = vrot.slane %v7958, %v7964
        %v7966 = vcombine.high %v7965, %v7965
        %v7968 = vlaneseq
        %vm7969 = vcmp.ge.s32.totalorder %v7968, 0
        %vm7970 = vcmp.lt.s32.totalorder %v7968, 256
        %vm7971 = vmand %vm7969, %vm7970
        %7972 = vst.msk [vmem:[%s253] sm:$0x3] %vm7971, %v7966
        %s7973 = sand.u32 %s158, 1
        %s7974 = scalar_lea.sflag [#allocation3], %s7973
        %s7975 = sand.u32 %s158, 1
        %s7976 = smul.addr %s7975, 2
        %s7977 = scalar_lea.vmem [#allocation2], %s7976
        // Predicated region
        $region41: #{tpu_custom_call.1} parent=39 // pred_check
          %p7978 = pneg %p168
        $region42: #{tpu_custom_call.1} parent=39 // pred_check_branch
          %7980 = sbr.rel (%p7978) target = $region44
        $region43: #{tpu_custom_call.1} parent=39 // pred_region
          %s7981 = smul.u32 2, %s24
          %s7983 = ssub.s32 32, 32
          %7984 = vsyncadd %s7974, %s7983
          %s7985 = smul.addr %s23, 2
          %s7986 = sadd.s32 %s7981, %s7985
          %s7987 = smul.addr %s7986, 16
          %s7988 = scalar_lea.hbm %s5, %s7987
          %s7990 = sshll.u32 %s7977, 4
          %s7991 = int_to_ptr.vmem [resolvable:$true] %s7990
          %7993 = dma.vmem_to_hbm [thread:$0]  %s7991, 32, %s7988, %s7974
        $region44: #{tpu_custom_call.1} parent=39 // pred_fallthru
          _
      $region40: #{tpu_custom_call.1} parent=5 // pred_fallthru
        _
      %p7994 = scmp.le.s32.totalorder 2, %s14
      // Predicated region
      $region45: #{tpu_custom_call.1} parent=5 // pred_check
        %p7995 = pneg %p7994
      $region46: #{tpu_custom_call.1} parent=5 // pred_check_branch
        %7997 = sbr.rel (%p7995) target = $region48
      $region47: #{tpu_custom_call.1} parent=5 // pred_region
        %s7998 = ssub.s32 %s14, 2
        // Predicated region
        $region49: #{tpu_custom_call.1} parent=47 // pred_check
          %p7999 = pneg %p174
        $region50: #{tpu_custom_call.1} parent=47 // pred_check_branch
          %8001 = sbr.rel (%p7999) target = $region52
        $region51: #{tpu_custom_call.1} parent=47 // pred_region
          %s8002 = sand.u32 %s159, 1
          %s8003 = scalar_lea.sflag [#allocation3], %s8002
          %s8004 = sand.u32 %s159, 1
          %s8005 = smul.addr %s8004, 2
          %s8006 = scalar_lea.vmem [#allocation2], %s8005
          %8007 = dma.done %s8003, 32
        $region52: #{tpu_custom_call.1} parent=47 // pred_fallthru
          _
      $region48: #{tpu_custom_call.1} parent=5 // pred_fallthru
        _
    $region6: #{tpu_custom_call.1} parent=1 // loop_footer
      %s18 = sadd.s32 1, %s14
    $region7: #{tpu_custom_call.1} parent=1 // loop_footer_branch
      %13 = sbr.rel target = $region3
    $region8: #{tpu_custom_call.1} parent=1 // loop_exit
      _
    %8008 = vsyncpa [#allocation3], 1
    %s8009 = scalar_lea.sflag [#allocation3], 1
    %8010 = vsyncpa %s8009, 1

</llo_original>
